<compile_context>
chip_gen: v5e
topology: v5e:2x2
jax: 0.10.0
libtpu: 0.0.40
codegen_flags: <defaults>
</compile_context>

<pallas_src>
import functools

import jax
import jax.numpy as jnp
from jax.experimental import pallas as pl
from jax.experimental.pallas import tpu as pltpu

CP = 128        # padded working channel width -> lane-dense activations/weights/stores
CIN_PAD = 8     # input channels padded only to 8 (not 128) in HBM


def _round_up(v, m):
    return (v + m - 1) // m * m


# ----------------------------------------------------------------------------
# Fused Pallas kernel: whole backbone forward for one batch element
# ----------------------------------------------------------------------------
def _encoder_kernel(x_ref, mask_ref,
                    w_stem_ref, s_stem_ref, b_stem_ref,
                    w_b1_ref, s_b1_ref, b_b1_ref,
                    w_b2_ref, s_b2_ref, b_b2_ref,
                    w_b3_ref, s_b3_ref, b_b3_ref,
                    feat_ref, *, H, W, HP, WP):
    M = HP * WP                                   # flattened padded grid (multiple of 8)
    taps = [(dy, dx) for dy in range(3) for dx in range(3)]

    x = x_ref[0]                                  # (M, CIN_PAD) bf16 -- stays bf16
    valid = mask_ref[...] > 0.5                   # (M, 1) interior-pixel mask

    def conv3x3(lhs_bf16, w_ref):
        # out[q] = sum_t lhs[q + off_t] @ w_t  =  sum_t roll(lhs @ w_t, -off_t)[q]
        # The MXU LHS is the same unshifted bf16 tile for all 9 taps; the per-tap
        # shift is a static sublane roll (XLU) of the f32 result, so there are no
        # per-tap slice/reshape relayout copies and no packed-bf16 rolls.  Only the
        # interior rows of the padded grid are valid; they are masked downstream.
        acc = None
        for t, (dy, dx) in enumerate(taps):
            off = (dy - 1) * WP + (dx - 1)
            y = jnp.dot(lhs_bf16, w_ref[t], preferred_element_type=jnp.float32)
            if off != 0:
                y = pltpu.roll(y, shift=(-off) % M, axis=0)
            acc = y if acc is None else acc + y
        return acc                                # (M, CP) f32

    # ---- stem 3x3 conv + folded BN + ReLU (zero halo ring comes from host pad) ----
    h = jnp.maximum(conv3x3(x, w_stem_ref) * s_stem_ref[...] + b_stem_ref[...], 0.0)

    # ---- bottleneck 1x1 conv + BN + ReLU ----
    h1 = jnp.dot(h.astype(jnp.bfloat16), w_b1_ref[...],
                 preferred_element_type=jnp.float32)
    h1 = jnp.maximum(h1 * s_b1_ref[...] + b_b1_ref[...], 0.0)
    # Mask once: the zeroed padding ring IS the SAME-conv zero padding of the next conv.
    h1 = jnp.where(valid, h1, 0.0).astype(jnp.bfloat16)

    # ---- bottleneck 3x3 conv + BN + ReLU ----
    h2 = jnp.maximum(conv3x3(h1, w_b2_ref) * s_b2_ref[...] + b_b2_ref[...], 0.0)

    # ---- bottleneck 1x1 conv + BN, residual add (f32, no reslicing), ReLU ----
    h3 = jnp.dot(h2.astype(jnp.bfloat16), w_b3_ref[...],
                 preferred_element_type=jnp.float32)
    h3 = jnp.maximum(h3 * s_b3_ref[...] + b_b3_ref[...] + h, 0.0)

    # ---- global average pool over the real pixels only (one masked reduction) ----
    pooled = jnp.sum(jnp.where(valid, h3, 0.0), axis=0, keepdims=True)    # (1, CP)
    feat_ref[...] = (pooled * (1.0 / (H * W)))[None]


# ----------------------------------------------------------------------------
# pallas_call wrapper
# ----------------------------------------------------------------------------
def _pallas_encoder(x_flat, mask, kp, *, N, H, W, HP, WP):
    M = HP * WP
    kernel = functools.partial(_encoder_kernel, H=H, W=W, HP=HP, WP=WP)

    w3 = lambda b: (0, 0, 0)
    w2 = lambda b: (0, 0)

    grid_spec = pltpu.PrefetchScalarGridSpec(
        num_scalar_prefetch=0,
        grid=(N,),
        in_specs=[
            pl.BlockSpec((1, M, CIN_PAD), lambda b: (b, 0, 0)),    # padded image (bf16)
            pl.BlockSpec((M, 1), w2),                              # interior mask (f32)
            pl.BlockSpec((9, CIN_PAD, CP), w3), pl.BlockSpec((1, CP), w2), pl.BlockSpec((1, CP), w2),
            pl.BlockSpec((CP, CP), w2),         pl.BlockSpec((1, CP), w2), pl.BlockSpec((1, CP), w2),
            pl.BlockSpec((9, CP, CP), w3),      pl.BlockSpec((1, CP), w2), pl.BlockSpec((1, CP), w2),
            pl.BlockSpec((CP, CP), w2),         pl.BlockSpec((1, CP), w2), pl.BlockSpec((1, CP), w2),
        ],
        out_specs=pl.BlockSpec((1, 1, CP), lambda b: (b, 0, 0)),
    )
    return pl.pallas_call(
        kernel,
        out_shape=jax.ShapeDtypeStruct((N, 1, CP), jnp.float32),
        grid_spec=grid_spec,
        compiler_params=pltpu.CompilerParams(
            dimension_semantics=("parallel",),
            vmem_limit_bytes=32 * 1024 * 1024,   # safe on v5e/v6e/v7x; usage is ~3 MiB
        ),
    )(x_flat, mask,
      kp["w_stem"], kp["s_stem"], kp["b_stem"],
      kp["w_b1"], kp["s_b1"], kp["b_b1"],
      kp["w_b2"], kp["s_b2"], kp["b_b2"],
      kp["w_b3"], kp["s_b3"], kp["b_b3"])


@functools.partial(jax.jit, static_argnames=("c_feat",))
def image_encoder_forward(x_nchw, kp, *, c_feat):
    """ImageEncoder forward: x (N, C, H, W) -> pooled features (N, c_feat)."""
    N, C, H, W = x_nchw.shape
    assert C <= CIN_PAD
    HP = H + 2                               # +1 halo row each side (3x3 SAME conv)
    WP = _round_up(W + 2, 8)                 # halo + pad width to a multiple of 8

    # bf16 BEFORE any pad (halves prep HBM traffic); channels padded only to 8.
    x = jnp.transpose(x_nchw.astype(jnp.bfloat16), (0, 2, 3, 1))          # NCHW -> NHWC
    x = jnp.pad(x, ((0, 0), (1, 1), (1, WP - W - 1), (0, CIN_PAD - C)))   # zero halo ring
    x = x.reshape(N, HP * WP, CIN_PAD)                                    # flattened grid

    # Interior-pixel mask on the flattened padded grid (constant, ~1.7 KB).
    ri = jnp.arange(HP)[:, None]
    ci = jnp.arange(WP)[None, :]
    mask = ((ri >= 1) & (ri <= H) & (ci >= 1) & (ci <= W)).astype(jnp.float32)
    mask = mask.reshape(HP * WP, 1)

    feats = _pallas_encoder(x, mask, kp, N=N, H=H, W=W, HP=HP, WP=WP)     # (N, 1, CP)
    return feats[:, 0, :c_feat]


# ----------------------------------------------------------------------------
# Parameters (synthetic, deterministic) and packing to the kernel layout
# ----------------------------------------------------------------------------
def _fold_bn(gamma, beta, mean, var, eps=1e-5):
    scale = gamma * jax.lax.rsqrt(var + eps)
    return scale, beta - mean * scale


def init_params(key, c_in=4, c_stem=32, c_mid=16):
    ks = jax.random.split(key, 8)

    def w(k, shape, fan_in):
        return jax.random.normal(k, shape, jnp.float32) / jnp.sqrt(float(fan_in))

    def bn(k, c):
        g = 1.0 + 0.1 * jax.random.normal(k, (c,), jnp.float32)
        b = 0.05 * jnp.arange(c, dtype=jnp.float32) / c
        m = 0.02 * jnp.ones((c,), jnp.float32)
        v = jnp.ones((c,), jnp.float32)
        return _fold_bn(g, b, m, v)

    p = {}
    p["w_stem"] = w(ks[0], (3, 3, c_in, c_stem), 9 * c_in)
    p["s_stem"], p["b_stem"] = bn(ks[1], c_stem)
    p["w_b1"] = w(ks[2], (c_stem, c_mid), c_stem)
    p["s_b1"], p["b_b1"] = bn(ks[3], c_mid)
    p["w_b2"] = w(ks[4], (3, 3, c_mid, c_mid), 9 * c_mid)
    p["s_b2"], p["b_b2"] = bn(ks[5], c_mid)
    p["w_b3"] = w(ks[6], (c_mid, c_stem), c_mid)
    p["s_b3"], p["b_b3"] = bn(ks[7], c_stem)
    return p


def pack_params(p):
    """Tap-major 3x3 weights, bf16 weights, f32 folded-BN; stem K padded only to 8."""
    def pad_conv3(w, ci_pad):
        kh, kw, ci, co = w.shape
        out = jnp.zeros((kh, kw, ci_pad, CP), jnp.float32).at[:, :, :ci, :co].set(w)
        return out.reshape(kh * kw, ci_pad, CP).astype(jnp.bfloat16)

    def pad_mat(w):
        ci, co = w.shape
        return jnp.zeros((CP, CP), jnp.float32).at[:ci, :co].set(w).astype(jnp.bfloat16)

    def pad_vec(v):
        return jnp.zeros((1, CP), jnp.float32).at[0, :v.shape[0]].set(v)

    return {
        "w_stem": pad_conv3(p["w_stem"], CIN_PAD),
        "s_stem": pad_vec(p["s_stem"]), "b_stem": pad_vec(p["b_stem"]),
        "w_b1": pad_mat(p["w_b1"]), "s_b1": pad_vec(p["s_b1"]), "b_b1": pad_vec(p["b_b1"]),
        "w_b2": pad_conv3(p["w_b2"], CP),
        "s_b2": pad_vec(p["s_b2"]), "b_b2": pad_vec(p["b_b2"]),
        "w_b3": pad_mat(p["w_b3"]), "s_b3": pad_vec(p["s_b3"]), "b_b3": pad_vec(p["b_b3"]),
    }


# ----------------------------------------------------------------------------
# Pure-JAX reference (same bf16 operand rounding, f32 accumulation) for checking
# ----------------------------------------------------------------------------
def reference_forward(x_nchw, p):
    q = lambda a: a.astype(jnp.bfloat16).astype(jnp.float32)
    x = q(jnp.transpose(x_nchw, (0, 2, 3, 1)).astype(jnp.float32))

    def conv3(v, w):
        return jax.lax.conv_general_dilated(
            q(v), q(w), window_strides=(1, 1), padding="SAME",
            dimension_numbers=("NHWC", "HWIO", "NHWC"),
            preferred_element_type=jnp.float32)

    h = jnp.maximum(conv3(x, p["w_stem"]) * p["s_stem"] + p["b_stem"], 0.0)
    h1 = jnp.maximum(jnp.dot(q(h), q(p["w_b1"])) * p["s_b1"] + p["b_b1"], 0.0)
    h2 = jnp.maximum(conv3(h1, p["w_b2"]) * p["s_b2"] + p["b_b2"], 0.0)
    h3 = jnp.maximum(jnp.dot(q(h2), q(p["w_b3"])) * p["s_b3"] + p["b_b3"] + h, 0.0)
    return jnp.mean(h3, axis=(1, 2))


if __name__ == "__main__":
    key = jax.random.PRNGKey(0)
    k_x, k_p = jax.random.split(key)

    N, C, H, W = 2, 4, 16, 16
    C_STEM, C_MID = 32, 16

    x = jax.random.normal(k_x, (N, C, H, W), dtype=jnp.float32)
    params = init_params(k_p, c_in=C, c_stem=C_STEM, c_mid=C_MID)
    kparams = pack_params(params)

    feats = image_encoder_forward(x, kparams, c_feat=C_STEM)
    feats = jax.block_until_ready(feats)

    assert feats.shape == (N, C_STEM), feats.shape
    assert bool(jnp.all(jnp.isfinite(feats)))

    ref = reference_forward(x, params)
    err = float(jnp.max(jnp.abs(feats - ref)))
    assert err < 1e-2, f"kernel vs reference max abs err = {err}"

    print("KERNEL_OK")
</pallas_src>

<mosaic_0001>
module attributes {stable_mosaic.version = 11 : i64} {
  func.func @_encoder_kernel(%arg0: i32, %arg1: memref<1x432x8xbf16, #tpu.memory_space<vmem>>, %arg2: memref<432x1xf32, #tpu.memory_space<vmem>>, %arg3: memref<9x8x128xbf16, #tpu.memory_space<vmem>>, %arg4: memref<1x128xf32, #tpu.memory_space<vmem>>, %arg5: memref<1x128xf32, #tpu.memory_space<vmem>>, %arg6: memref<128x128xbf16, #tpu.memory_space<vmem>>, %arg7: memref<1x128xf32, #tpu.memory_space<vmem>>, %arg8: memref<1x128xf32, #tpu.memory_space<vmem>>, %arg9: memref<9x128x128xbf16, #tpu.memory_space<vmem>>, %arg10: memref<1x128xf32, #tpu.memory_space<vmem>>, %arg11: memref<1x128xf32, #tpu.memory_space<vmem>>, %arg12: memref<128x128xbf16, #tpu.memory_space<vmem>>, %arg13: memref<1x128xf32, #tpu.memory_space<vmem>>, %arg14: memref<1x128xf32, #tpu.memory_space<vmem>>, %arg15: memref<1x1x128xf32, #tpu.memory_space<vmem>>) attributes {dimension_semantics = [#tpu.dimension_semantics<parallel>], iteration_bounds = array<i64: 2>, scalar_prefetch = 0 : i64, scratch_operands = 0 : i64, tpu.core_type = #tpu.core_type<tc>, window_params = [{transform_indices = @transform_0, window_bounds = array<i64: 1, 432, 8>}, {pipeline_mode = #tpu.pipeline_mode<synchronous>, transform_indices = @transform_1, window_bounds = array<i64: 432, 1>}, {pipeline_mode = #tpu.pipeline_mode<synchronous>, transform_indices = @transform_2, window_bounds = array<i64: 9, 8, 128>}, {pipeline_mode = #tpu.pipeline_mode<synchronous>, transform_indices = @transform_3, window_bounds = array<i64: 1, 128>}, {pipeline_mode = #tpu.pipeline_mode<synchronous>, transform_indices = @transform_4, window_bounds = array<i64: 1, 128>}, {pipeline_mode = #tpu.pipeline_mode<synchronous>, transform_indices = @transform_5, window_bounds = array<i64: 128, 128>}, {pipeline_mode = #tpu.pipeline_mode<synchronous>, transform_indices = @transform_6, window_bounds = array<i64: 1, 128>}, {pipeline_mode = #tpu.pipeline_mode<synchronous>, transform_indices = @transform_7, window_bounds = array<i64: 1, 128>}, {pipeline_mode = #tpu.pipeline_mode<synchronous>, transform_indices = @transform_8, window_bounds = array<i64: 9, 128, 128>}, {pipeline_mode = #tpu.pipeline_mode<synchronous>, transform_indices = @transform_9, window_bounds = array<i64: 1, 128>}, {pipeline_mode = #tpu.pipeline_mode<synchronous>, transform_indices = @transform_10, window_bounds = array<i64: 1, 128>}, {pipeline_mode = #tpu.pipeline_mode<synchronous>, transform_indices = @transform_11, window_bounds = array<i64: 128, 128>}, {pipeline_mode = #tpu.pipeline_mode<synchronous>, transform_indices = @transform_12, window_bounds = array<i64: 1, 128>}, {pipeline_mode = #tpu.pipeline_mode<synchronous>, transform_indices = @transform_13, window_bounds = array<i64: 1, 128>}, {transform_indices = @transform_14, window_bounds = array<i64: 1, 1, 128>}]} {
    %c0 = arith.constant 0 : index
    %c0_0 = arith.constant 0 : index
    %c0_1 = arith.constant 0 : index
    %0 = vector.load %arg1[%c0, %c0_0, %c0_1] : memref<1x432x8xbf16, #tpu.memory_space<vmem>>, vector<1x432x8xbf16>
    %1 = vector.shape_cast %0 : vector<1x432x8xbf16> to vector<432x8xbf16>
    %c0_2 = arith.constant 0 : index
    %c0_3 = arith.constant 0 : index
    %2 = vector.load %arg2[%c0_2, %c0_3] : memref<432x1xf32, #tpu.memory_space<vmem>>, vector<432x1xf32>
    %cst = arith.constant 5.000000e-01 : f32
    %3 = vector.broadcast %cst : f32 to vector<432x1xf32>
    %4 = arith.cmpf ogt, %2, %3 : vector<432x1xf32>
    %c0_4 = arith.constant 0 : index
    %c0_5 = arith.constant 0 : index
    %c0_6 = arith.constant 0 : index
    %5 = vector.load %arg3[%c0_4, %c0_5, %c0_6] : memref<9x8x128xbf16, #tpu.memory_space<vmem>>, vector<1x8x128xbf16>
    %6 = vector.shape_cast %5 : vector<1x8x128xbf16> to vector<8x128xbf16>
    %cst_7 = arith.constant dense<0.000000e+00> : vector<432x128xf32>
    %7 = tpu.matmul %1, %6, %cst_7 {dimension_numbers = #tpu.dot_dimension_numbers<[1], [0], [0], [1], [0, 0, 1, 1], [], []>} : vector<432x8xbf16>, vector<8x128xbf16>, vector<432x128xf32> -> vector<432x128xf32>
    %c25_i32 = arith.constant 25 : i32
    %8 = tpu.dynamic_rotate %7 by %c25_i32 dim 0 : vector<432x128xf32>, i32 -> vector<432x128xf32>
    %c1 = arith.constant 1 : index
    %c0_8 = arith.constant 0 : index
    %c0_9 = arith.constant 0 : index
    %9 = vector.load %arg3[%c1, %c0_8, %c0_9] : memref<9x8x128xbf16, #tpu.memory_space<vmem>>, vector<1x8x128xbf16>
    %10 = vector.shape_cast %9 : vector<1x8x128xbf16> to vector<8x128xbf16>
    %cst_10 = arith.constant dense<0.000000e+00> : vector<432x128xf32>
    %11 = tpu.matmul %1, %10, %cst_10 {dimension_numbers = #tpu.dot_dimension_numbers<[1], [0], [0], [1], [0, 0, 1, 1], [], []>} : vector<432x8xbf16>, vector<8x128xbf16>, vector<432x128xf32> -> vector<432x128xf32>
    %c24_i32 = arith.constant 24 : i32
    %12 = tpu.dynamic_rotate %11 by %c24_i32 dim 0 : vector<432x128xf32>, i32 -> vector<432x128xf32>
    %13 = arith.addf %8, %12 : vector<432x128xf32>
    %c2 = arith.constant 2 : index
    %c0_11 = arith.constant 0 : index
    %c0_12 = arith.constant 0 : index
    %14 = vector.load %arg3[%c2, %c0_11, %c0_12] : memref<9x8x128xbf16, #tpu.memory_space<vmem>>, vector<1x8x128xbf16>
    %15 = vector.shape_cast %14 : vector<1x8x128xbf16> to vector<8x128xbf16>
    %cst_13 = arith.constant dense<0.000000e+00> : vector<432x128xf32>
    %16 = tpu.matmul %1, %15, %cst_13 {dimension_numbers = #tpu.dot_dimension_numbers<[1], [0], [0], [1], [0, 0, 1, 1], [], []>} : vector<432x8xbf16>, vector<8x128xbf16>, vector<432x128xf32> -> vector<432x128xf32>
    %c23_i32 = arith.constant 23 : i32
    %17 = tpu.dynamic_rotate %16 by %c23_i32 dim 0 : vector<432x128xf32>, i32 -> vector<432x128xf32>
    %18 = arith.addf %13, %17 : vector<432x128xf32>
    %c3 = arith.constant 3 : index
    %c0_14 = arith.constant 0 : index
    %c0_15 = arith.constant 0 : index
    %19 = vector.load %arg3[%c3, %c0_14, %c0_15] : memref<9x8x128xbf16, #tpu.memory_space<vmem>>, vector<1x8x128xbf16>
    %20 = vector.shape_cast %19 : vector<1x8x128xbf16> to vector<8x128xbf16>
    %cst_16 = arith.constant dense<0.000000e+00> : vector<432x128xf32>
    %21 = tpu.matmul %1, %20, %cst_16 {dimension_numbers = #tpu.dot_dimension_numbers<[1], [0], [0], [1], [0, 0, 1, 1], [], []>} : vector<432x8xbf16>, vector<8x128xbf16>, vector<432x128xf32> -> vector<432x128xf32>
    %c1_i32 = arith.constant 1 : i32
    %22 = tpu.dynamic_rotate %21 by %c1_i32 dim 0 : vector<432x128xf32>, i32 -> vector<432x128xf32>
    %23 = arith.addf %18, %22 : vector<432x128xf32>
    %c4 = arith.constant 4 : index
    %c0_17 = arith.constant 0 : index
    %c0_18 = arith.constant 0 : index
    %24 = vector.load %arg3[%c4, %c0_17, %c0_18] : memref<9x8x128xbf16, #tpu.memory_space<vmem>>, vector<1x8x128xbf16>
    %25 = vector.shape_cast %24 : vector<1x8x128xbf16> to vector<8x128xbf16>
    %cst_19 = arith.constant dense<0.000000e+00> : vector<432x128xf32>
    %26 = tpu.matmul %1, %25, %cst_19 {dimension_numbers = #tpu.dot_dimension_numbers<[1], [0], [0], [1], [0, 0, 1, 1], [], []>} : vector<432x8xbf16>, vector<8x128xbf16>, vector<432x128xf32> -> vector<432x128xf32>
    %27 = arith.addf %23, %26 : vector<432x128xf32>
    %c5 = arith.constant 5 : index
    %c0_20 = arith.constant 0 : index
    %c0_21 = arith.constant 0 : index
    %28 = vector.load %arg3[%c5, %c0_20, %c0_21] : memref<9x8x128xbf16, #tpu.memory_space<vmem>>, vector<1x8x128xbf16>
    %29 = vector.shape_cast %28 : vector<1x8x128xbf16> to vector<8x128xbf16>
    %cst_22 = arith.constant dense<0.000000e+00> : vector<432x128xf32>
    %30 = tpu.matmul %1, %29, %cst_22 {dimension_numbers = #tpu.dot_dimension_numbers<[1], [0], [0], [1], [0, 0, 1, 1], [], []>} : vector<432x8xbf16>, vector<8x128xbf16>, vector<432x128xf32> -> vector<432x128xf32>
    %c431_i32 = arith.constant 431 : i32
    %31 = tpu.dynamic_rotate %30 by %c431_i32 dim 0 : vector<432x128xf32>, i32 -> vector<432x128xf32>
    %32 = arith.addf %27, %31 : vector<432x128xf32>
    %c6 = arith.constant 6 : index
    %c0_23 = arith.constant 0 : index
    %c0_24 = arith.constant 0 : index
    %33 = vector.load %arg3[%c6, %c0_23, %c0_24] : memref<9x8x128xbf16, #tpu.memory_space<vmem>>, vector<1x8x128xbf16>
    %34 = vector.shape_cast %33 : vector<1x8x128xbf16> to vector<8x128xbf16>
    %cst_25 = arith.constant dense<0.000000e+00> : vector<432x128xf32>
    %35 = tpu.matmul %1, %34, %cst_25 {dimension_numbers = #tpu.dot_dimension_numbers<[1], [0], [0], [1], [0, 0, 1, 1], [], []>} : vector<432x8xbf16>, vector<8x128xbf16>, vector<432x128xf32> -> vector<432x128xf32>
    %c409_i32 = arith.constant 409 : i32
    %36 = tpu.dynamic_rotate %35 by %c409_i32 dim 0 : vector<432x128xf32>, i32 -> vector<432x128xf32>
    %37 = arith.addf %32, %36 : vector<432x128xf32>
    %c7 = arith.constant 7 : index
    %c0_26 = arith.constant 0 : index
    %c0_27 = arith.constant 0 : index
    %38 = vector.load %arg3[%c7, %c0_26, %c0_27] : memref<9x8x128xbf16, #tpu.memory_space<vmem>>, vector<1x8x128xbf16>
    %39 = vector.shape_cast %38 : vector<1x8x128xbf16> to vector<8x128xbf16>
    %cst_28 = arith.constant dense<0.000000e+00> : vector<432x128xf32>
    %40 = tpu.matmul %1, %39, %cst_28 {dimension_numbers = #tpu.dot_dimension_numbers<[1], [0], [0], [1], [0, 0, 1, 1], [], []>} : vector<432x8xbf16>, vector<8x128xbf16>, vector<432x128xf32> -> vector<432x128xf32>
    %c408_i32 = arith.constant 408 : i32
    %41 = tpu.dynamic_rotate %40 by %c408_i32 dim 0 : vector<432x128xf32>, i32 -> vector<432x128xf32>
    %42 = arith.addf %37, %41 : vector<432x128xf32>
    %c8 = arith.constant 8 : index
    %c0_29 = arith.constant 0 : index
    %c0_30 = arith.constant 0 : index
    %43 = vector.load %arg3[%c8, %c0_29, %c0_30] : memref<9x8x128xbf16, #tpu.memory_space<vmem>>, vector<1x8x128xbf16>
    %44 = vector.shape_cast %43 : vector<1x8x128xbf16> to vector<8x128xbf16>
    %cst_31 = arith.constant dense<0.000000e+00> : vector<432x128xf32>
    %45 = tpu.matmul %1, %44, %cst_31 {dimension_numbers = #tpu.dot_dimension_numbers<[1], [0], [0], [1], [0, 0, 1, 1], [], []>} : vector<432x8xbf16>, vector<8x128xbf16>, vector<432x128xf32> -> vector<432x128xf32>
    %c407_i32 = arith.constant 407 : i32
    %46 = tpu.dynamic_rotate %45 by %c407_i32 dim 0 : vector<432x128xf32>, i32 -> vector<432x128xf32>
    %47 = arith.addf %42, %46 : vector<432x128xf32>
    %c0_32 = arith.constant 0 : index
    %c0_33 = arith.constant 0 : index
    %48 = vector.load %arg4[%c0_32, %c0_33] : memref<1x128xf32, #tpu.memory_space<vmem>>, vector<1x128xf32>
    %49 = vector.broadcast %48 : vector<1x128xf32> to vector<432x128xf32>
    %50 = arith.mulf %47, %49 : vector<432x128xf32>
    %c0_34 = arith.constant 0 : index
    %c0_35 = arith.constant 0 : index
    %51 = vector.load %arg5[%c0_34, %c0_35] : memref<1x128xf32, #tpu.memory_space<vmem>>, vector<1x128xf32>
    %52 = vector.broadcast %51 : vector<1x128xf32> to vector<432x128xf32>
    %53 = arith.addf %50, %52 : vector<432x128xf32>
    %cst_36 = arith.constant 0.000000e+00 : f32
    %54 = vector.broadcast %cst_36 : f32 to vector<432x128xf32>
    %55 = arith.maximumf %53, %54 : vector<432x128xf32>
    %56 = arith.truncf %55 : vector<432x128xf32> to vector<432x128xbf16>
    %c0_37 = arith.constant 0 : index
    %c0_38 = arith.constant 0 : index
    %57 = vector.load %arg6[%c0_37, %c0_38] : memref<128x128xbf16, #tpu.memory_space<vmem>>, vector<128x128xbf16>
    %cst_39 = arith.constant dense<0.000000e+00> : vector<432x128xf32>
    %58 = tpu.matmul %56, %57, %cst_39 {dimension_numbers = #tpu.dot_dimension_numbers<[1], [0], [0], [1], [0, 0, 1, 1], [], []>} : vector<432x128xbf16>, vector<128x128xbf16>, vector<432x128xf32> -> vector<432x128xf32>
    %c0_40 = arith.constant 0 : index
    %c0_41 = arith.constant 0 : index
    %59 = vector.load %arg7[%c0_40, %c0_41] : memref<1x128xf32, #tpu.memory_space<vmem>>, vector<1x128xf32>
    %60 = vector.broadcast %59 : vector<1x128xf32> to vector<432x128xf32>
    %61 = arith.mulf %58, %60 : vector<432x128xf32>
    %c0_42 = arith.constant 0 : index
    %c0_43 = arith.constant 0 : index
    %62 = vector.load %arg8[%c0_42, %c0_43] : memref<1x128xf32, #tpu.memory_space<vmem>>, vector<1x128xf32>
    %63 = vector.broadcast %62 : vector<1x128xf32> to vector<432x128xf32>
    %64 = arith.addf %61, %63 : vector<432x128xf32>
    %cst_44 = arith.constant 0.000000e+00 : f32
    %65 = vector.broadcast %cst_44 : f32 to vector<432x128xf32>
    %66 = arith.maximumf %64, %65 : vector<432x128xf32>
    %cst_45 = arith.constant 0.000000e+00 : f32
    %67 = vector.shape_cast %4 : vector<432x1xi1> to vector<432x1xi1>
    %68 = vector.broadcast %67 : vector<432x1xi1> to vector<432x128xi1>
    %69 = vector.broadcast %cst_45 : f32 to vector<432x128xf32>
    %70 = arith.select %68, %66, %69 : vector<432x128xi1>, vector<432x128xf32>
    %71 = arith.truncf %70 : vector<432x128xf32> to vector<432x128xbf16>
    %c0_46 = arith.constant 0 : index
    %c0_47 = arith.constant 0 : index
    %c0_48 = arith.constant 0 : index
    %72 = vector.load %arg9[%c0_46, %c0_47, %c0_48] : memref<9x128x128xbf16, #tpu.memory_space<vmem>>, vector<1x128x128xbf16>
    %73 = vector.shape_cast %72 : vector<1x128x128xbf16> to vector<128x128xbf16>
    %cst_49 = arith.constant dense<0.000000e+00> : vector<432x128xf32>
    %74 = tpu.matmul %71, %73, %cst_49 {dimension_numbers = #tpu.dot_dimension_numbers<[1], [0], [0], [1], [0, 0, 1, 1], [], []>} : vector<432x128xbf16>, vector<128x128xbf16>, vector<432x128xf32> -> vector<432x128xf32>
    %c25_i32_50 = arith.constant 25 : i32
    %75 = tpu.dynamic_rotate %74 by %c25_i32_50 dim 0 : vector<432x128xf32>, i32 -> vector<432x128xf32>
    %c1_51 = arith.constant 1 : index
    %c0_52 = arith.constant 0 : index
    %c0_53 = arith.constant 0 : index
    %76 = vector.load %arg9[%c1_51, %c0_52, %c0_53] : memref<9x128x128xbf16, #tpu.memory_space<vmem>>, vector<1x128x128xbf16>
    %77 = vector.shape_cast %76 : vector<1x128x128xbf16> to vector<128x128xbf16>
    %cst_54 = arith.constant dense<0.000000e+00> : vector<432x128xf32>
    %78 = tpu.matmul %71, %77, %cst_54 {dimension_numbers = #tpu.dot_dimension_numbers<[1], [0], [0], [1], [0, 0, 1, 1], [], []>} : vector<432x128xbf16>, vector<128x128xbf16>, vector<432x128xf32> -> vector<432x128xf32>
    %c24_i32_55 = arith.constant 24 : i32
    %79 = tpu.dynamic_rotate %78 by %c24_i32_55 dim 0 : vector<432x128xf32>, i32 -> vector<432x128xf32>
    %80 = arith.addf %75, %79 : vector<432x128xf32>
    %c2_56 = arith.constant 2 : index
    %c0_57 = arith.constant 0 : index
    %c0_58 = arith.constant 0 : index
    %81 = vector.load %arg9[%c2_56, %c0_57, %c0_58] : memref<9x128x128xbf16, #tpu.memory_space<vmem>>, vector<1x128x128xbf16>
    %82 = vector.shape_cast %81 : vector<1x128x128xbf16> to vector<128x128xbf16>
    %cst_59 = arith.constant dense<0.000000e+00> : vector<432x128xf32>
    %83 = tpu.matmul %71, %82, %cst_59 {dimension_numbers = #tpu.dot_dimension_numbers<[1], [0], [0], [1], [0, 0, 1, 1], [], []>} : vector<432x128xbf16>, vector<128x128xbf16>, vector<432x128xf32> -> vector<432x128xf32>
    %c23_i32_60 = arith.constant 23 : i32
    %84 = tpu.dynamic_rotate %83 by %c23_i32_60 dim 0 : vector<432x128xf32>, i32 -> vector<432x128xf32>
    %85 = arith.addf %80, %84 : vector<432x128xf32>
    %c3_61 = arith.constant 3 : index
    %c0_62 = arith.constant 0 : index
    %c0_63 = arith.constant 0 : index
    %86 = vector.load %arg9[%c3_61, %c0_62, %c0_63] : memref<9x128x128xbf16, #tpu.memory_space<vmem>>, vector<1x128x128xbf16>
    %87 = vector.shape_cast %86 : vector<1x128x128xbf16> to vector<128x128xbf16>
    %cst_64 = arith.constant dense<0.000000e+00> : vector<432x128xf32>
    %88 = tpu.matmul %71, %87, %cst_64 {dimension_numbers = #tpu.dot_dimension_numbers<[1], [0], [0], [1], [0, 0, 1, 1], [], []>} : vector<432x128xbf16>, vector<128x128xbf16>, vector<432x128xf32> -> vector<432x128xf32>
    %c1_i32_65 = arith.constant 1 : i32
    %89 = tpu.dynamic_rotate %88 by %c1_i32_65 dim 0 : vector<432x128xf32>, i32 -> vector<432x128xf32>
    %90 = arith.addf %85, %89 : vector<432x128xf32>
    %c4_66 = arith.constant 4 : index
    %c0_67 = arith.constant 0 : index
    %c0_68 = arith.constant 0 : index
    %91 = vector.load %arg9[%c4_66, %c0_67, %c0_68] : memref<9x128x128xbf16, #tpu.memory_space<vmem>>, vector<1x128x128xbf16>
    %92 = vector.shape_cast %91 : vector<1x128x128xbf16> to vector<128x128xbf16>
    %cst_69 = arith.constant dense<0.000000e+00> : vector<432x128xf32>
    %93 = tpu.matmul %71, %92, %cst_69 {dimension_numbers = #tpu.dot_dimension_numbers<[1], [0], [0], [1], [0, 0, 1, 1], [], []>} : vector<432x128xbf16>, vector<128x128xbf16>, vector<432x128xf32> -> vector<432x128xf32>
    %94 = arith.addf %90, %93 : vector<432x128xf32>
    %c5_70 = arith.constant 5 : index
    %c0_71 = arith.constant 0 : index
    %c0_72 = arith.constant 0 : index
    %95 = vector.load %arg9[%c5_70, %c0_71, %c0_72] : memref<9x128x128xbf16, #tpu.memory_space<vmem>>, vector<1x128x128xbf16>
    %96 = vector.shape_cast %95 : vector<1x128x128xbf16> to vector<128x128xbf16>
    %cst_73 = arith.constant dense<0.000000e+00> : vector<432x128xf32>
    %97 = tpu.matmul %71, %96, %cst_73 {dimension_numbers = #tpu.dot_dimension_numbers<[1], [0], [0], [1], [0, 0, 1, 1], [], []>} : vector<432x128xbf16>, vector<128x128xbf16>, vector<432x128xf32> -> vector<432x128xf32>
    %c431_i32_74 = arith.constant 431 : i32
    %98 = tpu.dynamic_rotate %97 by %c431_i32_74 dim 0 : vector<432x128xf32>, i32 -> vector<432x128xf32>
    %99 = arith.addf %94, %98 : vector<432x128xf32>
    %c6_75 = arith.constant 6 : index
    %c0_76 = arith.constant 0 : index
    %c0_77 = arith.constant 0 : index
    %100 = vector.load %arg9[%c6_75, %c0_76, %c0_77] : memref<9x128x128xbf16, #tpu.memory_space<vmem>>, vector<1x128x128xbf16>
    %101 = vector.shape_cast %100 : vector<1x128x128xbf16> to vector<128x128xbf16>
    %cst_78 = arith.constant dense<0.000000e+00> : vector<432x128xf32>
    %102 = tpu.matmul %71, %101, %cst_78 {dimension_numbers = #tpu.dot_dimension_numbers<[1], [0], [0], [1], [0, 0, 1, 1], [], []>} : vector<432x128xbf16>, vector<128x128xbf16>, vector<432x128xf32> -> vector<432x128xf32>
    %c409_i32_79 = arith.constant 409 : i32
    %103 = tpu.dynamic_rotate %102 by %c409_i32_79 dim 0 : vector<432x128xf32>, i32 -> vector<432x128xf32>
    %104 = arith.addf %99, %103 : vector<432x128xf32>
    %c7_80 = arith.constant 7 : index
    %c0_81 = arith.constant 0 : index
    %c0_82 = arith.constant 0 : index
    %105 = vector.load %arg9[%c7_80, %c0_81, %c0_82] : memref<9x128x128xbf16, #tpu.memory_space<vmem>>, vector<1x128x128xbf16>
    %106 = vector.shape_cast %105 : vector<1x128x128xbf16> to vector<128x128xbf16>
    %cst_83 = arith.constant dense<0.000000e+00> : vector<432x128xf32>
    %107 = tpu.matmul %71, %106, %cst_83 {dimension_numbers = #tpu.dot_dimension_numbers<[1], [0], [0], [1], [0, 0, 1, 1], [], []>} : vector<432x128xbf16>, vector<128x128xbf16>, vector<432x128xf32> -> vector<432x128xf32>
    %c408_i32_84 = arith.constant 408 : i32
    %108 = tpu.dynamic_rotate %107 by %c408_i32_84 dim 0 : vector<432x128xf32>, i32 -> vector<432x128xf32>
    %109 = arith.addf %104, %108 : vector<432x128xf32>
    %c8_85 = arith.constant 8 : index
    %c0_86 = arith.constant 0 : index
    %c0_87 = arith.constant 0 : index
    %110 = vector.load %arg9[%c8_85, %c0_86, %c0_87] : memref<9x128x128xbf16, #tpu.memory_space<vmem>>, vector<1x128x128xbf16>
    %111 = vector.shape_cast %110 : vector<1x128x128xbf16> to vector<128x128xbf16>
    %cst_88 = arith.constant dense<0.000000e+00> : vector<432x128xf32>
    %112 = tpu.matmul %71, %111, %cst_88 {dimension_numbers = #tpu.dot_dimension_numbers<[1], [0], [0], [1], [0, 0, 1, 1], [], []>} : vector<432x128xbf16>, vector<128x128xbf16>, vector<432x128xf32> -> vector<432x128xf32>
    %c407_i32_89 = arith.constant 407 : i32
    %113 = tpu.dynamic_rotate %112 by %c407_i32_89 dim 0 : vector<432x128xf32>, i32 -> vector<432x128xf32>
    %114 = arith.addf %109, %113 : vector<432x128xf32>
    %c0_90 = arith.constant 0 : index
    %c0_91 = arith.constant 0 : index
    %115 = vector.load %arg10[%c0_90, %c0_91] : memref<1x128xf32, #tpu.memory_space<vmem>>, vector<1x128xf32>
    %116 = vector.broadcast %115 : vector<1x128xf32> to vector<432x128xf32>
    %117 = arith.mulf %114, %116 : vector<432x128xf32>
    %c0_92 = arith.constant 0 : index
    %c0_93 = arith.constant 0 : index
    %118 = vector.load %arg11[%c0_92, %c0_93] : memref<1x128xf32, #tpu.memory_space<vmem>>, vector<1x128xf32>
    %119 = vector.broadcast %118 : vector<1x128xf32> to vector<432x128xf32>
    %120 = arith.addf %117, %119 : vector<432x128xf32>
    %cst_94 = arith.constant 0.000000e+00 : f32
    %121 = vector.broadcast %cst_94 : f32 to vector<432x128xf32>
    %122 = arith.maximumf %120, %121 : vector<432x128xf32>
    %123 = arith.truncf %122 : vector<432x128xf32> to vector<432x128xbf16>
    %c0_95 = arith.constant 0 : index
    %c0_96 = arith.constant 0 : index
    %124 = vector.load %arg12[%c0_95, %c0_96] : memref<128x128xbf16, #tpu.memory_space<vmem>>, vector<128x128xbf16>
    %cst_97 = arith.constant dense<0.000000e+00> : vector<432x128xf32>
    %125 = tpu.matmul %123, %124, %cst_97 {dimension_numbers = #tpu.dot_dimension_numbers<[1], [0], [0], [1], [0, 0, 1, 1], [], []>} : vector<432x128xbf16>, vector<128x128xbf16>, vector<432x128xf32> -> vector<432x128xf32>
    %c0_98 = arith.constant 0 : index
    %c0_99 = arith.constant 0 : index
    %126 = vector.load %arg13[%c0_98, %c0_99] : memref<1x128xf32, #tpu.memory_space<vmem>>, vector<1x128xf32>
    %127 = vector.broadcast %126 : vector<1x128xf32> to vector<432x128xf32>
    %128 = arith.mulf %125, %127 : vector<432x128xf32>
    %c0_100 = arith.constant 0 : index
    %c0_101 = arith.constant 0 : index
    %129 = vector.load %arg14[%c0_100, %c0_101] : memref<1x128xf32, #tpu.memory_space<vmem>>, vector<1x128xf32>
    %130 = vector.broadcast %129 : vector<1x128xf32> to vector<432x128xf32>
    %131 = arith.addf %128, %130 : vector<432x128xf32>
    %132 = arith.addf %131, %55 : vector<432x128xf32>
    %cst_102 = arith.constant 0.000000e+00 : f32
    %133 = vector.broadcast %cst_102 : f32 to vector<432x128xf32>
    %134 = arith.maximumf %132, %133 : vector<432x128xf32>
    %cst_103 = arith.constant 0.000000e+00 : f32
    %135 = vector.shape_cast %4 : vector<432x1xi1> to vector<432x1xi1>
    %136 = vector.broadcast %135 : vector<432x1xi1> to vector<432x128xi1>
    %137 = vector.broadcast %cst_103 : f32 to vector<432x128xf32>
    %138 = arith.select %136, %134, %137 : vector<432x128xi1>, vector<432x128xf32>
    %cst_104 = arith.constant dense<0.000000e+00> : vector<128xf32>
    %139 = vector.multi_reduction <add>, %138, %cst_104 [0] : vector<432x128xf32> to vector<128xf32>
    %140 = vector.shape_cast %139 : vector<128xf32> to vector<1x128xf32>
    %cst_105 = arith.constant 3.906250e-03 : f32
    %141 = vector.broadcast %cst_105 : f32 to vector<1x128xf32>
    %142 = arith.mulf %140, %141 : vector<1x128xf32>
    %143 = vector.shape_cast %142 : vector<1x128xf32> to vector<1x1x128xf32>
    %c0_106 = arith.constant 0 : index
    %c0_107 = arith.constant 0 : index
    %c0_108 = arith.constant 0 : index
    %144 = vector.load %arg15[%c0_106, %c0_107, %c0_108] : memref<1x1x128xf32, #tpu.memory_space<vmem>>, vector<1x1x128xf32>
    tpu.vector_store %arg15[%c0_106, %c0_107, %c0_108], %143 {strides = array<i32>} : memref<1x1x128xf32, #tpu.memory_space<vmem>>, vector<1x1x128xf32>,
    return
  }
  func.func @transform_0(%arg0: i32) -> (i32, i32, i32) {
    %c0_i32 = arith.constant 0 : i32
    %c0_i32_0 = arith.constant 0 : i32
    %c0_i32_1 = arith.constant 0 : i32
    return %arg0, %c0_i32, %c0_i32_0 : i32, i32, i32
  }
  func.func @transform_1(%arg0: i32) -> (i32, i32) {
    %c0_i32 = arith.constant 0 : i32
    %c0_i32_0 = arith.constant 0 : i32
    %c0_i32_1 = arith.constant 0 : i32
    return %c0_i32, %c0_i32_0 : i32, i32
  }
  func.func @transform_2(%arg0: i32) -> (i32, i32, i32) {
    %c0_i32 = arith.constant 0 : i32
    %c0_i32_0 = arith.constant 0 : i32
    %c0_i32_1 = arith.constant 0 : i32
    %c0_i32_2 = arith.constant 0 : i32
    return %c0_i32, %c0_i32_0, %c0_i32_1 : i32, i32, i32
  }
  func.func @transform_3(%arg0: i32) -> (i32, i32) {
    %c0_i32 = arith.constant 0 : i32
    %c0_i32_0 = arith.constant 0 : i32
    %c0_i32_1 = arith.constant 0 : i32
    return %c0_i32, %c0_i32_0 : i32, i32
  }
  func.func @transform_4(%arg0: i32) -> (i32, i32) {
    %c0_i32 = arith.constant 0 : i32
    %c0_i32_0 = arith.constant 0 : i32
    %c0_i32_1 = arith.constant 0 : i32
    return %c0_i32, %c0_i32_0 : i32, i32
  }
  func.func @transform_5(%arg0: i32) -> (i32, i32) {
    %c0_i32 = arith.constant 0 : i32
    %c0_i32_0 = arith.constant 0 : i32
    %c0_i32_1 = arith.constant 0 : i32
    return %c0_i32, %c0_i32_0 : i32, i32
  }
  func.func @transform_6(%arg0: i32) -> (i32, i32) {
    %c0_i32 = arith.constant 0 : i32
    %c0_i32_0 = arith.constant 0 : i32
    %c0_i32_1 = arith.constant 0 : i32
    return %c0_i32, %c0_i32_0 : i32, i32
  }
  func.func @transform_7(%arg0: i32) -> (i32, i32) {
    %c0_i32 = arith.constant 0 : i32
    %c0_i32_0 = arith.constant 0 : i32
    %c0_i32_1 = arith.constant 0 : i32
    return %c0_i32, %c0_i32_0 : i32, i32
  }
  func.func @transform_8(%arg0: i32) -> (i32, i32, i32) {
    %c0_i32 = arith.constant 0 : i32
    %c0_i32_0 = arith.constant 0 : i32
    %c0_i32_1 = arith.constant 0 : i32
    %c0_i32_2 = arith.constant 0 : i32
    return %c0_i32, %c0_i32_0, %c0_i32_1 : i32, i32, i32
  }
  func.func @transform_9(%arg0: i32) -> (i32, i32) {
    %c0_i32 = arith.constant 0 : i32
    %c0_i32_0 = arith.constant 0 : i32
    %c0_i32_1 = arith.constant 0 : i32
    return %c0_i32, %c0_i32_0 : i32, i32
  }
  func.func @transform_10(%arg0: i32) -> (i32, i32) {
    %c0_i32 = arith.constant 0 : i32
    %c0_i32_0 = arith.constant 0 : i32
    %c0_i32_1 = arith.constant 0 : i32
    return %c0_i32, %c0_i32_0 : i32, i32
  }
  func.func @transform_11(%arg0: i32) -> (i32, i32) {
    %c0_i32 = arith.constant 0 : i32
    %c0_i32_0 = arith.constant 0 : i32
    %c0_i32_1 = arith.constant 0 : i32
    return %c0_i32, %c0_i32_0 : i32, i32
  }
  func.func @transform_12(%arg0: i32) -> (i32, i32) {
    %c0_i32 = arith.constant 0 : i32
    %c0_i32_0 = arith.constant 0 : i32
    %c0_i32_1 = arith.constant 0 : i32
    return %c0_i32, %c0_i32_0 : i32, i32
  }
  func.func @transform_13(%arg0: i32) -> (i32, i32) {
    %c0_i32 = arith.constant 0 : i32
    %c0_i32_0 = arith.constant 0 : i32
    %c0_i32_1 = arith.constant 0 : i32
    return %c0_i32, %c0_i32_0 : i32, i32
  }
  func.func @transform_14(%arg0: i32) -> (i32, i32, i32) {
    %c0_i32 = arith.constant 0 : i32
    %c0_i32_0 = arith.constant 0 : i32
    %c0_i32_1 = arith.constant 0 : i32
    return %arg0, %c0_i32, %c0_i32_0 : i32, i32, i32
  }
}

</mosaic_0001>

<llo_original>
// kernel: image_encoder_forward.1
$region0: #{image_encoder_forward.1}
  #allocation0 [shape = 'u32[]', space=smem, size = 0x4, offset = 0x4, fixed_abs, tag = 'smem constant byte address 0x4 - core index']
  #allocation1 [shape = 'u32[72,128]{1,0:T(1,128)}', space=vmem, size = 0x9000, scoped, tag = 'internal scratch']
  %s0 = inlined_call_operand.vmem [shape: bf16[2,432,8], index: 0, kind: input, shape index: {}]
  %s1 = inlined_call_operand.vmem [shape: f32[432,1], index: 1, kind: input, shape index: {}]
  %s2 = inlined_call_operand.vmem [shape: bf16[9,8,128], index: 2, kind: input, shape index: {}]
  %s3 = inlined_call_operand.vmem [shape: f32[1,128], index: 3, kind: input, shape index: {}]
  %s4 = inlined_call_operand.vmem [shape: f32[1,128], index: 4, kind: input, shape index: {}]
  %s5 = inlined_call_operand.vmem [shape: bf16[128,128], index: 5, kind: input, shape index: {}]
  %s6 = inlined_call_operand.vmem [shape: f32[1,128], index: 6, kind: input, shape index: {}]
  %s7 = inlined_call_operand.vmem [shape: f32[1,128], index: 7, kind: input, shape index: {}]
  %s8 = inlined_call_operand.vmem [shape: bf16[9,128,128], index: 8, kind: input, shape index: {}]
  %s9 = inlined_call_operand.vmem [shape: f32[1,128], index: 9, kind: input, shape index: {}]
  %s10 = inlined_call_operand.vmem [shape: f32[1,128], index: 10, kind: input, shape index: {}]
  %s11 = inlined_call_operand.vmem [shape: bf16[128,128], index: 11, kind: input, shape index: {}]
  %s12 = inlined_call_operand.vmem [shape: f32[1,128], index: 12, kind: input, shape index: {}]
  %s13 = inlined_call_operand.vmem [shape: f32[1,128], index: 13, kind: input, shape index: {}]
  %s14 = inlined_call_operand.hbm [shape: f32[2,1,128], index: 14, kind: output, shape index: {}]
  %s15 = sld [smem:[#allocation0]]
  $region89: #{image_encoder_forward.1} parent=0
    _
  %s17 = ssub.s32 1, %s15
  %s18 = scalar_select 0, %s17, %s15
  $region1: #{image_encoder_forward.1} parent=0
    #allocation2 [shape = 'u8[1024]{0}', space=vmem, size = 0x400, scoped, tag = 'output window, operand 0']
    #allocation3 [shape = 's32[2]{0}', space=sflag, size = 0x8, scoped, tag = 'scoped memory for image_encoder_forward.1']
    %19 = vsyncpa [#allocation3], 0
    %s20 = scalar_lea.sflag [#allocation3], 1
    %21 = vsyncpa %s20, 0
    loop: start=0, step=1, limit=4
    $region2: #{image_encoder_forward.1} parent=1 // loop_pre_header
      _
    $region3: #{image_encoder_forward.1} parent=1 // loop_header
      %s23 = sphi 0, %s27
      %p24 = scmp.ge.s32.totalorder %s23, 4
      %s33 = sphi 0, %s35
      %s36 = sphi 0, %s33
      %s37 = sphi 0, %s36
      %s53 = sphi 0, %s37
      %s57 = sphi 0, %s57
      %s59 = sphi 0, %s57
      %s60 = sphi 0, %s59
      %s74 = sphi 0, %s60
      %s78 = sphi 0, %s78
      %s80 = sphi 0, %s78
      %s81 = sphi 0, %s80
      %s95 = sphi 0, %s81
      %s99 = sphi 0, %s99
      %s101 = sphi 0, %s99
      %s102 = sphi 0, %s101
      %s116 = sphi 0, %s102
      %s120 = sphi 0, %s120
      %s122 = sphi 0, %s120
      %s123 = sphi 0, %s122
      %s137 = sphi 0, %s123
      %s141 = sphi 0, %s141
      %s143 = sphi 0, %s141
      %s144 = sphi 0, %s143
      %s158 = sphi 0, %s144
      %s162 = sphi 0, %s162
      %s164 = sphi 0, %s162
      %s165 = sphi 0, %s164
      %s179 = sphi 0, %s165
      %s183 = sphi 0, %s183
      %s185 = sphi 0, %s183
      %s186 = sphi 0, %s185
      %s200 = sphi 0, %s186
      %s204 = sphi 0, %s204
      %s206 = sphi 0, %s204
      %s207 = sphi 0, %s206
      %s221 = sphi 0, %s207
      %s225 = sphi 0, %s225
      %s227 = sphi 0, %s225
      %s228 = sphi 0, %s227
      %s242 = sphi 0, %s228
      %s246 = sphi 0, %s246
      %s248 = sphi 0, %s246
      %s249 = sphi 0, %s248
      %s263 = sphi 0, %s249
      %s267 = sphi 0, %s267
      %s269 = sphi 0, %s267
      %s270 = sphi 0, %s269
      %s284 = sphi 0, %s270
      %s288 = sphi 0, %s288
      %s290 = sphi 0, %s288
      %s291 = sphi 0, %s290
      %s305 = sphi 0, %s291
      %s309 = sphi 0, %s309
      %s311 = sphi 0, %s309
      %s312 = sphi 0, %s311
      %s326 = sphi 0, %s312
      %s332 = sphi 0, %s334
      %s335 = sphi 0, %s332
      %s336 = sphi 0, %s335
      %s352 = sphi 0, %s336
    $region4: #{image_encoder_forward.1} parent=1 // loop_header_branch
      %26 = sbr.rel (%p24) target = $region8
    $region5: #{image_encoder_forward.1} parent=1 // loop_body
      %s28 = ssub.s32 %s23, 1
      %s29 = ssub.s32 %s23, 2
      %s30 = sadd.s32 %s23, 1
      %s31 = ssub.s32 %s23, %s30
      %p32 = scmp.eq.s32.totalorder %s31, 0
      %s34 = sadd.s32 %s33, 1
      %s35 = scalar_select %p32, %s33, %s34
      %p38 = pneg %p32
      %p39 = scmp.eq.s32.totalorder %s23, 1
      %p40 = por %p38, %p39
      %p41 = scmp.ne.s32.totalorder %s33, %s36
      %p42 = scmp.eq.s32.totalorder %s23, 0
      %p43 = por %p41, %p42
      %p44 = scmp.ne.s32.totalorder %s33, %s36
      %p45 = scmp.eq.s32.totalorder %s28, 1
      %p46 = por %p44, %p45
      %p47 = scmp.ne.s32.totalorder %s36, %s37
      %p48 = scmp.eq.s32.totalorder %s28, 0
      %p49 = por %p47, %p48
      %p50 = scmp.ne.s32.totalorder %s36, %s37
      %p51 = scmp.eq.s32.totalorder %s29, 1
      %p52 = por %p50, %p51
      %p54 = scmp.ne.s32.totalorder %s37, %s53
      %p55 = scmp.eq.s32.totalorder %s29, 0
      %p56 = por %p54, %p55
      %s58 = sadd.s32 %s57, 1
      %p61 = scmp.eq.s32.totalorder %s23, 1
      %p62 = scmp.ne.s32.totalorder %s57, %s59
      %p63 = scmp.eq.s32.totalorder %s23, 0
      %p64 = por %p62, %p63
      %p65 = scmp.ne.s32.totalorder %s57, %s59
      %p66 = scmp.eq.s32.totalorder %s28, 1
      %p67 = por %p65, %p66
      %p68 = scmp.ne.s32.totalorder %s59, %s60
      %p69 = scmp.eq.s32.totalorder %s28, 0
      %p70 = por %p68, %p69
      %p71 = scmp.ne.s32.totalorder %s59, %s60
      %p72 = scmp.eq.s32.totalorder %s29, 1
      %p73 = por %p71, %p72
      %p75 = scmp.ne.s32.totalorder %s60, %s74
      %p76 = scmp.eq.s32.totalorder %s29, 0
      %p77 = por %p75, %p76
      %s79 = sadd.s32 %s78, 1
      %p82 = scmp.eq.s32.totalorder %s23, 1
      %p83 = scmp.ne.s32.totalorder %s78, %s80
      %p84 = scmp.eq.s32.totalorder %s23, 0
      %p85 = por %p83, %p84
      %p86 = scmp.ne.s32.totalorder %s78, %s80
      %p87 = scmp.eq.s32.totalorder %s28, 1
      %p88 = por %p86, %p87
      %p89 = scmp.ne.s32.totalorder %s80, %s81
      %p90 = scmp.eq.s32.totalorder %s28, 0
      %p91 = por %p89, %p90
      %p92 = scmp.ne.s32.totalorder %s80, %s81
      %p93 = scmp.eq.s32.totalorder %s29, 1
      %p94 = por %p92, %p93
      %p96 = scmp.ne.s32.totalorder %s81, %s95
      %p97 = scmp.eq.s32.totalorder %s29, 0
      %p98 = por %p96, %p97
      %s100 = sadd.s32 %s99, 1
      %p103 = scmp.eq.s32.totalorder %s23, 1
      %p104 = scmp.ne.s32.totalorder %s99, %s101
      %p105 = scmp.eq.s32.totalorder %s23, 0
      %p106 = por %p104, %p105
      %p107 = scmp.ne.s32.totalorder %s99, %s101
      %p108 = scmp.eq.s32.totalorder %s28, 1
      %p109 = por %p107, %p108
      %p110 = scmp.ne.s32.totalorder %s101, %s102
      %p111 = scmp.eq.s32.totalorder %s28, 0
      %p112 = por %p110, %p111
      %p113 = scmp.ne.s32.totalorder %s101, %s102
      %p114 = scmp.eq.s32.totalorder %s29, 1
      %p115 = por %p113, %p114
      %p117 = scmp.ne.s32.totalorder %s102, %s116
      %p118 = scmp.eq.s32.totalorder %s29, 0
      %p119 = por %p117, %p118
      %s121 = sadd.s32 %s120, 1
      %p124 = scmp.eq.s32.totalorder %s23, 1
      %p125 = scmp.ne.s32.totalorder %s120, %s122
      %p126 = scmp.eq.s32.totalorder %s23, 0
      %p127 = por %p125, %p126
      %p128 = scmp.ne.s32.totalorder %s120, %s122
      %p129 = scmp.eq.s32.totalorder %s28, 1
      %p130 = por %p128, %p129
      %p131 = scmp.ne.s32.totalorder %s122, %s123
      %p132 = scmp.eq.s32.totalorder %s28, 0
      %p133 = por %p131, %p132
      %p134 = scmp.ne.s32.totalorder %s122, %s123
      %p135 = scmp.eq.s32.totalorder %s29, 1
      %p136 = por %p134, %p135
      %p138 = scmp.ne.s32.totalorder %s123, %s137
      %p139 = scmp.eq.s32.totalorder %s29, 0
      %p140 = por %p138, %p139
      %s142 = sadd.s32 %s141, 1
      %p145 = scmp.eq.s32.totalorder %s23, 1
      %p146 = scmp.ne.s32.totalorder %s141, %s143
      %p147 = scmp.eq.s32.totalorder %s23, 0
      %p148 = por %p146, %p147
      %p149 = scmp.ne.s32.totalorder %s141, %s143
      %p150 = scmp.eq.s32.totalorder %s28, 1
      %p151 = por %p149, %p150
      %p152 = scmp.ne.s32.totalorder %s143, %s144
      %p153 = scmp.eq.s32.totalorder %s28, 0
      %p154 = por %p152, %p153
      %p155 = scmp.ne.s32.totalorder %s143, %s144
      %p156 = scmp.eq.s32.totalorder %s29, 1
      %p157 = por %p155, %p156
      %p159 = scmp.ne.s32.totalorder %s144, %s158
      %p160 = scmp.eq.s32.totalorder %s29, 0
      %p161 = por %p159, %p160
      %s163 = sadd.s32 %s162, 1
      %p166 = scmp.eq.s32.totalorder %s23, 1
      %p167 = scmp.ne.s32.totalorder %s162, %s164
      %p168 = scmp.eq.s32.totalorder %s23, 0
      %p169 = por %p167, %p168
      %p170 = scmp.ne.s32.totalorder %s162, %s164
      %p171 = scmp.eq.s32.totalorder %s28, 1
      %p172 = por %p170, %p171
      %p173 = scmp.ne.s32.totalorder %s164, %s165
      %p174 = scmp.eq.s32.totalorder %s28, 0
      %p175 = por %p173, %p174
      %p176 = scmp.ne.s32.totalorder %s164, %s165
      %p177 = scmp.eq.s32.totalorder %s29, 1
      %p178 = por %p176, %p177
      %p180 = scmp.ne.s32.totalorder %s165, %s179
      %p181 = scmp.eq.s32.totalorder %s29, 0
      %p182 = por %p180, %p181
      %s184 = sadd.s32 %s183, 1
      %p187 = scmp.eq.s32.totalorder %s23, 1
      %p188 = scmp.ne.s32.totalorder %s183, %s185
      %p189 = scmp.eq.s32.totalorder %s23, 0
      %p190 = por %p188, %p189
      %p191 = scmp.ne.s32.totalorder %s183, %s185
      %p192 = scmp.eq.s32.totalorder %s28, 1
      %p193 = por %p191, %p192
      %p194 = scmp.ne.s32.totalorder %s185, %s186
      %p195 = scmp.eq.s32.totalorder %s28, 0
      %p196 = por %p194, %p195
      %p197 = scmp.ne.s32.totalorder %s185, %s186
      %p198 = scmp.eq.s32.totalorder %s29, 1
      %p199 = por %p197, %p198
      %p201 = scmp.ne.s32.totalorder %s186, %s200
      %p202 = scmp.eq.s32.totalorder %s29, 0
      %p203 = por %p201, %p202
      %s205 = sadd.s32 %s204, 1
      %p208 = scmp.eq.s32.totalorder %s23, 1
      %p209 = scmp.ne.s32.totalorder %s204, %s206
      %p210 = scmp.eq.s32.totalorder %s23, 0
      %p211 = por %p209, %p210
      %p212 = scmp.ne.s32.totalorder %s204, %s206
      %p213 = scmp.eq.s32.totalorder %s28, 1
      %p214 = por %p212, %p213
      %p215 = scmp.ne.s32.totalorder %s206, %s207
      %p216 = scmp.eq.s32.totalorder %s28, 0
      %p217 = por %p215, %p216
      %p218 = scmp.ne.s32.totalorder %s206, %s207
      %p219 = scmp.eq.s32.totalorder %s29, 1
      %p220 = por %p218, %p219
      %p222 = scmp.ne.s32.totalorder %s207, %s221
      %p223 = scmp.eq.s32.totalorder %s29, 0
      %p224 = por %p222, %p223
      %s226 = sadd.s32 %s225, 1
      %p229 = scmp.eq.s32.totalorder %s23, 1
      %p230 = scmp.ne.s32.totalorder %s225, %s227
      %p231 = scmp.eq.s32.totalorder %s23, 0
      %p232 = por %p230, %p231
      %p233 = scmp.ne.s32.totalorder %s225, %s227
      %p234 = scmp.eq.s32.totalorder %s28, 1
      %p235 = por %p233, %p234
      %p236 = scmp.ne.s32.totalorder %s227, %s228
      %p237 = scmp.eq.s32.totalorder %s28, 0
      %p238 = por %p236, %p237
      %p239 = scmp.ne.s32.totalorder %s227, %s228
      %p240 = scmp.eq.s32.totalorder %s29, 1
      %p241 = por %p239, %p240
      %p243 = scmp.ne.s32.totalorder %s228, %s242
      %p244 = scmp.eq.s32.totalorder %s29, 0
      %p245 = por %p243, %p244
      %s247 = sadd.s32 %s246, 1
      %p250 = scmp.eq.s32.totalorder %s23, 1
      %p251 = scmp.ne.s32.totalorder %s246, %s248
      %p252 = scmp.eq.s32.totalorder %s23, 0
      %p253 = por %p251, %p252
      %p254 = scmp.ne.s32.totalorder %s246, %s248
      %p255 = scmp.eq.s32.totalorder %s28, 1
      %p256 = por %p254, %p255
      %p257 = scmp.ne.s32.totalorder %s248, %s249
      %p258 = scmp.eq.s32.totalorder %s28, 0
      %p259 = por %p257, %p258
      %p260 = scmp.ne.s32.totalorder %s248, %s249
      %p261 = scmp.eq.s32.totalorder %s29, 1
      %p262 = por %p260, %p261
      %p264 = scmp.ne.s32.totalorder %s249, %s263
      %p265 = scmp.eq.s32.totalorder %s29, 0
      %p266 = por %p264, %p265
      %s268 = sadd.s32 %s267, 1
      %p271 = scmp.eq.s32.totalorder %s23, 1
      %p272 = scmp.ne.s32.totalorder %s267, %s269
      %p273 = scmp.eq.s32.totalorder %s23, 0
      %p274 = por %p272, %p273
      %p275 = scmp.ne.s32.totalorder %s267, %s269
      %p276 = scmp.eq.s32.totalorder %s28, 1
      %p277 = por %p275, %p276
      %p278 = scmp.ne.s32.totalorder %s269, %s270
      %p279 = scmp.eq.s32.totalorder %s28, 0
      %p280 = por %p278, %p279
      %p281 = scmp.ne.s32.totalorder %s269, %s270
      %p282 = scmp.eq.s32.totalorder %s29, 1
      %p283 = por %p281, %p282
      %p285 = scmp.ne.s32.totalorder %s270, %s284
      %p286 = scmp.eq.s32.totalorder %s29, 0
      %p287 = por %p285, %p286
      %s289 = sadd.s32 %s288, 1
      %p292 = scmp.eq.s32.totalorder %s23, 1
      %p293 = scmp.ne.s32.totalorder %s288, %s290
      %p294 = scmp.eq.s32.totalorder %s23, 0
      %p295 = por %p293, %p294
      %p296 = scmp.ne.s32.totalorder %s288, %s290
      %p297 = scmp.eq.s32.totalorder %s28, 1
      %p298 = por %p296, %p297
      %p299 = scmp.ne.s32.totalorder %s290, %s291
      %p300 = scmp.eq.s32.totalorder %s28, 0
      %p301 = por %p299, %p300
      %p302 = scmp.ne.s32.totalorder %s290, %s291
      %p303 = scmp.eq.s32.totalorder %s29, 1
      %p304 = por %p302, %p303
      %p306 = scmp.ne.s32.totalorder %s291, %s305
      %p307 = scmp.eq.s32.totalorder %s29, 0
      %p308 = por %p306, %p307
      %s310 = sadd.s32 %s309, 1
      %p313 = scmp.eq.s32.totalorder %s23, 1
      %p314 = scmp.ne.s32.totalorder %s309, %s311
      %p315 = scmp.eq.s32.totalorder %s23, 0
      %p316 = por %p314, %p315
      %p317 = scmp.ne.s32.totalorder %s309, %s311
      %p318 = scmp.eq.s32.totalorder %s28, 1
      %p319 = por %p317, %p318
      %p320 = scmp.ne.s32.totalorder %s311, %s312
      %p321 = scmp.eq.s32.totalorder %s28, 0
      %p322 = por %p320, %p321
      %p323 = scmp.ne.s32.totalorder %s311, %s312
      %p324 = scmp.eq.s32.totalorder %s29, 1
      %p325 = por %p323, %p324
      %p327 = scmp.ne.s32.totalorder %s312, %s326
      %p328 = scmp.eq.s32.totalorder %s29, 0
      %p329 = por %p327, %p328
      %s330 = ssub.s32 %s23, %s30
      %p331 = scmp.eq.s32.totalorder %s330, 0
      %s333 = sadd.s32 %s332, 1
      %s334 = scalar_select %p331, %s332, %s333
      %p337 = pneg %p331
      %p338 = scmp.eq.s32.totalorder %s23, 1
      %p339 = por %p337, %p338
      %p340 = scmp.ne.s32.totalorder %s332, %s335
      %p341 = scmp.eq.s32.totalorder %s23, 0
      %p342 = por %p340, %p341
      %p343 = scmp.ne.s32.totalorder %s332, %s335
      %p344 = scmp.eq.s32.totalorder %s28, 1
      %p345 = por %p343, %p344
      %p346 = scmp.ne.s32.totalorder %s335, %s336
      %p347 = scmp.eq.s32.totalorder %s28, 0
      %p348 = por %p346, %p347
      %p349 = scmp.ne.s32.totalorder %s335, %s336
      %p350 = scmp.eq.s32.totalorder %s29, 1
      %p351 = por %p349, %p350
      %p353 = scmp.ne.s32.totalorder %s336, %s352
      %p354 = scmp.eq.s32.totalorder %s29, 0
      %p355 = por %p353, %p354
      %p356 = scmp.le.s32.totalorder 1, %s23
      %p357 = scmp.lt.s32.totalorder %s23, 3
      %p358 = pnand %p356, %p357
      %p359 = pneg %p358
      // Predicated region
      $region9: #{image_encoder_forward.1} parent=5 // pred_check
        _
      $region10: #{image_encoder_forward.1} parent=5 // pred_check_branch
        %361 = sbr.rel (%p358) target = $region12
      $region11: #{image_encoder_forward.1} parent=5 // pred_region
        %s362 = ssub.s32 %s23, 1
        // Predicated region
        $region13: #{image_encoder_forward.1} parent=11 // pred_check
          %p363 = pneg %p70
        $region14: #{image_encoder_forward.1} parent=11 // pred_check_branch
          %365 = sbr.rel (%p363) target = $region16
        $region15: #{image_encoder_forward.1} parent=11 // pred_region
          _
        $region16: #{image_encoder_forward.1} parent=11 // pred_fallthru
          _
        // Predicated region
        $region17: #{image_encoder_forward.1} parent=11 // pred_check
          %p366 = pneg %p91
        $region18: #{image_encoder_forward.1} parent=11 // pred_check_branch
          %368 = sbr.rel (%p366) target = $region20
        $region19: #{image_encoder_forward.1} parent=11 // pred_region
          _
        $region20: #{image_encoder_forward.1} parent=11 // pred_fallthru
          _
        // Predicated region
        $region21: #{image_encoder_forward.1} parent=11 // pred_check
          %p369 = pneg %p112
        $region22: #{image_encoder_forward.1} parent=11 // pred_check_branch
          %371 = sbr.rel (%p369) target = $region24
        $region23: #{image_encoder_forward.1} parent=11 // pred_region
          _
        $region24: #{image_encoder_forward.1} parent=11 // pred_fallthru
          _
        // Predicated region
        $region25: #{image_encoder_forward.1} parent=11 // pred_check
          %p372 = pneg %p133
        $region26: #{image_encoder_forward.1} parent=11 // pred_check_branch
          %374 = sbr.rel (%p372) target = $region28
        $region27: #{image_encoder_forward.1} parent=11 // pred_region
          _
        $region28: #{image_encoder_forward.1} parent=11 // pred_fallthru
          _
        // Predicated region
        $region29: #{image_encoder_forward.1} parent=11 // pred_check
          %p375 = pneg %p154
        $region30: #{image_encoder_forward.1} parent=11 // pred_check_branch
          %377 = sbr.rel (%p375) target = $region32
        $region31: #{image_encoder_forward.1} parent=11 // pred_region
          _
        $region32: #{image_encoder_forward.1} parent=11 // pred_fallthru
          _
        // Predicated region
        $region33: #{image_encoder_forward.1} parent=11 // pred_check
          %p378 = pneg %p175
        $region34: #{image_encoder_forward.1} parent=11 // pred_check_branch
          %380 = sbr.rel (%p378) target = $region36
        $region35: #{image_encoder_forward.1} parent=11 // pred_region
          _
        $region36: #{image_encoder_forward.1} parent=11 // pred_fallthru
          _
        // Predicated region
        $region37: #{image_encoder_forward.1} parent=11 // pred_check
          %p381 = pneg %p196
        $region38: #{image_encoder_forward.1} parent=11 // pred_check_branch
          %383 = sbr.rel (%p381) target = $region40
        $region39: #{image_encoder_forward.1} parent=11 // pred_region
          _
        $region40: #{image_encoder_forward.1} parent=11 // pred_fallthru
          _
        // Predicated region
        $region41: #{image_encoder_forward.1} parent=11 // pred_check
          %p384 = pneg %p217
        $region42: #{image_encoder_forward.1} parent=11 // pred_check_branch
          %386 = sbr.rel (%p384) target = $region44
        $region43: #{image_encoder_forward.1} parent=11 // pred_region
          _
        $region44: #{image_encoder_forward.1} parent=11 // pred_fallthru
          _
        // Predicated region
        $region45: #{image_encoder_forward.1} parent=11 // pred_check
          %p387 = pneg %p238
        $region46: #{image_encoder_forward.1} parent=11 // pred_check_branch
          %389 = sbr.rel (%p387) target = $region48
        $region47: #{image_encoder_forward.1} parent=11 // pred_region
          _
        $region48: #{image_encoder_forward.1} parent=11 // pred_fallthru
          _
        // Predicated region
        $region49: #{image_encoder_forward.1} parent=11 // pred_check
          %p390 = pneg %p259
        $region50: #{image_encoder_forward.1} parent=11 // pred_check_branch
          %392 = sbr.rel (%p390) target = $region52
        $region51: #{image_encoder_forward.1} parent=11 // pred_region
          _
        $region52: #{image_encoder_forward.1} parent=11 // pred_fallthru
          _
        // Predicated region
        $region53: #{image_encoder_forward.1} parent=11 // pred_check
          %p393 = pneg %p280
        $region54: #{image_encoder_forward.1} parent=11 // pred_check_branch
          %395 = sbr.rel (%p393) target = $region56
        $region55: #{image_encoder_forward.1} parent=11 // pred_region
          _
        $region56: #{image_encoder_forward.1} parent=11 // pred_fallthru
          _
        // Predicated region
        $region57: #{image_encoder_forward.1} parent=11 // pred_check
          %p396 = pneg %p301
        $region58: #{image_encoder_forward.1} parent=11 // pred_check_branch
          %398 = sbr.rel (%p396) target = $region60
        $region59: #{image_encoder_forward.1} parent=11 // pred_region
          _
        $region60: #{image_encoder_forward.1} parent=11 // pred_fallthru
          _
        // Predicated region
        $region61: #{image_encoder_forward.1} parent=11 // pred_check
          %p399 = pneg %p322
        $region62: #{image_encoder_forward.1} parent=11 // pred_check_branch
          %401 = sbr.rel (%p399) target = $region64
        $region63: #{image_encoder_forward.1} parent=11 // pred_region
          _
        $region64: #{image_encoder_forward.1} parent=11 // pred_fallthru
          _
      $region12: #{image_encoder_forward.1} parent=5 // pred_fallthru
        _
      %p402 = scmp.lt.s32.totalorder %s23, 2
      // Predicated region
      $region65: #{image_encoder_forward.1} parent=5 // pred_check
        %p403 = pneg %p402
      $region66: #{image_encoder_forward.1} parent=5 // pred_check_branch
        %405 = sbr.rel (%p403) target = $region68
      $region67: #{image_encoder_forward.1} parent=5 // pred_region
        // Predicated region
        $region69: #{image_encoder_forward.1} parent=67 // pred_check
          %p406 = pneg %p43
        $region70: #{image_encoder_forward.1} parent=67 // pred_check_branch
          %408 = sbr.rel (%p406) target = $region72
        $region71: #{image_encoder_forward.1} parent=67 // pred_region
          %p409 = scmp.lt.s32.totalorder %s23, 1
          %s410 = scalar_select %p409, %s23, 1
          %s411 = smul.addr %s410, 54
          %s412 = smul.addr %s411, 4
          %s413 = scalar_lea.vmem %s0, %s412
        $region72: #{image_encoder_forward.1} parent=67 // pred_fallthru
          _
      $region68: #{image_encoder_forward.1} parent=5 // pred_fallthru
        _
      %p414 = scmp.le.s32.totalorder 1, %s23
      %p415 = scmp.lt.s32.totalorder %s23, 3
      %p416 = pnand %p414, %p415
      %p417 = pneg %p416
      // Predicated region
      $region73: #{image_encoder_forward.1} parent=5 // pred_check
        _
      $region74: #{image_encoder_forward.1} parent=5 // pred_check_branch
        %419 = sbr.rel (%p416) target = $region76
      $region75: #{image_encoder_forward.1} parent=5 // pred_region
        %s420 = ssub.s32 %s23, 1
        %p421 = scmp.lt.s32.totalorder %s28, 1
        %s422 = scalar_select %p421, %s28, 1
        %s423 = smul.addr %s422, 54
        %s424 = smul.addr %s423, 4
        %s425 = scalar_lea.vmem %s0, %s424
        %p426 = pneg %p49
        %p427 = pneg %p46
        %p428 = pneg %p70
        %p429 = pneg %p67
        %p430 = pneg %p91
        %p431 = pneg %p88
        %p432 = pneg %p112
        %p433 = pneg %p109
        %p434 = pneg %p133
        %p435 = pneg %p130
        %p436 = pneg %p154
        %p437 = pneg %p151
        %p438 = pneg %p175
        %p439 = pneg %p172
        %p440 = pneg %p196
        %p441 = pneg %p193
        %p442 = pneg %p217
        %p443 = pneg %p214
        %p444 = pneg %p238
        %p445 = pneg %p235
        %p446 = pneg %p259
        %p447 = pneg %p256
        %p448 = pneg %p280
        %p449 = pneg %p277
        %p450 = pneg %p301
        %p451 = pneg %p298
        %p452 = pneg %p322
        %p453 = pneg %p319
        %p454 = pneg %p348
        %p455 = pneg %p345
        %s456 = sand.u32 %s335, 1
        %s457 = scalar_lea.sflag [#allocation3], %s456
        %s458 = sand.u32 %s335, 1
        %s459 = scalar_lea.vmem [#allocation2], %s458
        %p460 = scmp.lt.s32.totalorder %s28, 1
        %s461 = scalar_select %p460, %s28, 1
        %s462 = smul.addr %s461, 54
        %s463 = smul.addr %s462, 4
        %s464 = scalar_lea.vmem %s0, %s463
        %v466 = vld [vmem:[%s464] sm:$0xf]
        %v467 = vld [vmem:[%s464 + $0x4] sm:$0xf]
        %v468 = vld [vmem:[%s464 + $0x8] sm:$0xf]
        %v469 = vld [vmem:[%s464 + $0xc] sm:$0xf]
        %v470 = vld [vmem:[%s464 + $0x10] sm:$0xf]
        %v471 = vld [vmem:[%s464 + $0x14] sm:$0xf]
        %v472 = vld [vmem:[%s464 + $0x18] sm:$0xf]
        %v473 = vld [vmem:[%s464 + $0x1c] sm:$0xf]
        %v474 = vld [vmem:[%s464 + $0x20] sm:$0xf]
        %v475 = vld [vmem:[%s464 + $0x24] sm:$0xf]
        %v476 = vld [vmem:[%s464 + $0x28] sm:$0xf]
        %v477 = vld [vmem:[%s464 + $0x2c] sm:$0xf]
        %v478 = vld [vmem:[%s464 + $0x30] sm:$0xf]
        %v479 = vld [vmem:[%s464 + $0x34] sm:$0xf]
        %v480 = vld [vmem:[%s464 + $0x38] sm:$0xf]
        %v481 = vld [vmem:[%s464 + $0x3c] sm:$0xf]
        %v482 = vld [vmem:[%s464 + $0x40] sm:$0xf]
        %v483 = vld [vmem:[%s464 + $0x44] sm:$0xf]
        %v484 = vld [vmem:[%s464 + $0x48] sm:$0xf]
        %v485 = vld [vmem:[%s464 + $0x4c] sm:$0xf]
        %v486 = vld [vmem:[%s464 + $0x50] sm:$0xf]
        %v487 = vld [vmem:[%s464 + $0x54] sm:$0xf]
        %v488 = vld [vmem:[%s464 + $0x58] sm:$0xf]
        %v489 = vld [vmem:[%s464 + $0x5c] sm:$0xf]
        %v490 = vld [vmem:[%s464 + $0x60] sm:$0xf]
        %v491 = vld [vmem:[%s464 + $0x64] sm:$0xf]
        %v492 = vld [vmem:[%s464 + $0x68] sm:$0xf]
        %v493 = vld [vmem:[%s464 + $0x6c] sm:$0xf]
        %v494 = vld [vmem:[%s464 + $0x70] sm:$0xf]
        %v495 = vld [vmem:[%s464 + $0x74] sm:$0xf]
        %v496 = vld [vmem:[%s464 + $0x78] sm:$0xf]
        %v497 = vld [vmem:[%s464 + $0x7c] sm:$0xf]
        %v498 = vld [vmem:[%s464 + $0x80] sm:$0xf]
        %v499 = vld [vmem:[%s464 + $0x84] sm:$0xf]
        %v500 = vld [vmem:[%s464 + $0x88] sm:$0xf]
        %v501 = vld [vmem:[%s464 + $0x8c] sm:$0xf]
        %v502 = vld [vmem:[%s464 + $0x90] sm:$0xf]
        %v503 = vld [vmem:[%s464 + $0x94] sm:$0xf]
        %v504 = vld [vmem:[%s464 + $0x98] sm:$0xf]
        %v505 = vld [vmem:[%s464 + $0x9c] sm:$0xf]
        %v506 = vld [vmem:[%s464 + $0xa0] sm:$0xf]
        %v507 = vld [vmem:[%s464 + $0xa4] sm:$0xf]
        %v508 = vld [vmem:[%s464 + $0xa8] sm:$0xf]
        %v509 = vld [vmem:[%s464 + $0xac] sm:$0xf]
        %v510 = vld [vmem:[%s464 + $0xb0] sm:$0xf]
        %v511 = vld [vmem:[%s464 + $0xb4] sm:$0xf]
        %v512 = vld [vmem:[%s464 + $0xb8] sm:$0xf]
        %v513 = vld [vmem:[%s464 + $0xbc] sm:$0xf]
        %v514 = vld [vmem:[%s464 + $0xc0] sm:$0xf]
        %v515 = vld [vmem:[%s464 + $0xc4] sm:$0xf]
        %v516 = vld [vmem:[%s464 + $0xc8] sm:$0xf]
        %v517 = vld [vmem:[%s464 + $0xcc] sm:$0xf]
        %v518 = vld [vmem:[%s464 + $0xd0] sm:$0xf]
        %v519 = vld [vmem:[%s464 + $0xd4] sm:$0xf]
        %v520 = vld [vmem:[%s1] sm:$0xff]
        %v521 = vld [vmem:[%s1 + $0x8] sm:$0xff]
        %v522 = vld [vmem:[%s1 + $0x10] sm:$0xff]
        %v523 = vld [vmem:[%s1 + $0x18] sm:$0xff]
        %v524 = vld [vmem:[%s1 + $0x20] sm:$0xff]
        %v525 = vld [vmem:[%s1 + $0x28] sm:$0xff]
        %v526 = vld [vmem:[%s1 + $0x30] sm:$0xff]
        %v527 = vld [vmem:[%s1 + $0x38] sm:$0xff]
        %v528 = vld [vmem:[%s1 + $0x40] sm:$0xff]
        %v529 = vld [vmem:[%s1 + $0x48] sm:$0xff]
        %v530 = vld [vmem:[%s1 + $0x50] sm:$0xff]
        %v531 = vld [vmem:[%s1 + $0x58] sm:$0xff]
        %v532 = vld [vmem:[%s1 + $0x60] sm:$0xff]
        %v533 = vld [vmem:[%s1 + $0x68] sm:$0xff]
        %v534 = vld [vmem:[%s1 + $0x70] sm:$0xff]
        %v535 = vld [vmem:[%s1 + $0x78] sm:$0xff]
        %v536 = vld [vmem:[%s1 + $0x80] sm:$0xff]
        %v537 = vld [vmem:[%s1 + $0x88] sm:$0xff]
        %v538 = vld [vmem:[%s1 + $0x90] sm:$0xff]
        %v539 = vld [vmem:[%s1 + $0x98] sm:$0xff]
        %v540 = vld [vmem:[%s1 + $0xa0] sm:$0xff]
        %v541 = vld [vmem:[%s1 + $0xa8] sm:$0xff]
        %v542 = vld [vmem:[%s1 + $0xb0] sm:$0xff]
        %v543 = vld [vmem:[%s1 + $0xb8] sm:$0xff]
        %v544 = vld [vmem:[%s1 + $0xc0] sm:$0xff]
        %v545 = vld [vmem:[%s1 + $0xc8] sm:$0xff]
        %v546 = vld [vmem:[%s1 + $0xd0] sm:$0xff]
        %v547 = vld [vmem:[%s1 + $0xd8] sm:$0xff]
        %v548 = vld [vmem:[%s1 + $0xe0] sm:$0xff]
        %v549 = vld [vmem:[%s1 + $0xe8] sm:$0xff]
        %v550 = vld [vmem:[%s1 + $0xf0] sm:$0xff]
        %v551 = vld [vmem:[%s1 + $0xf8] sm:$0xff]
        %v552 = vld [vmem:[%s1 + $0x100] sm:$0xff]
        %v553 = vld [vmem:[%s1 + $0x108] sm:$0xff]
        %v554 = vld [vmem:[%s1 + $0x110] sm:$0xff]
        %v555 = vld [vmem:[%s1 + $0x118] sm:$0xff]
        %v556 = vld [vmem:[%s1 + $0x120] sm:$0xff]
        %v557 = vld [vmem:[%s1 + $0x128] sm:$0xff]
        %v558 = vld [vmem:[%s1 + $0x130] sm:$0xff]
        %v559 = vld [vmem:[%s1 + $0x138] sm:$0xff]
        %v560 = vld [vmem:[%s1 + $0x140] sm:$0xff]
        %v561 = vld [vmem:[%s1 + $0x148] sm:$0xff]
        %v562 = vld [vmem:[%s1 + $0x150] sm:$0xff]
        %v563 = vld [vmem:[%s1 + $0x158] sm:$0xff]
        %v564 = vld [vmem:[%s1 + $0x160] sm:$0xff]
        %v565 = vld [vmem:[%s1 + $0x168] sm:$0xff]
        %v566 = vld [vmem:[%s1 + $0x170] sm:$0xff]
        %v567 = vld [vmem:[%s1 + $0x178] sm:$0xff]
        %v568 = vld [vmem:[%s1 + $0x180] sm:$0xff]
        %v569 = vld [vmem:[%s1 + $0x188] sm:$0xff]
        %v570 = vld [vmem:[%s1 + $0x190] sm:$0xff]
        %v571 = vld [vmem:[%s1 + $0x198] sm:$0xff]
        %v572 = vld [vmem:[%s1 + $0x1a0] sm:$0xff]
        %v573 = vld [vmem:[%s1 + $0x1a8] sm:$0xff]
        %vm574 = vcmp.gt.f32.partialorder %v520, 0.5
        %vm575 = vcmp.gt.f32.partialorder %v521, 0.5
        %vm576 = vcmp.gt.f32.partialorder %v522, 0.5
        %vm577 = vcmp.gt.f32.partialorder %v523, 0.5
        %vm578 = vcmp.gt.f32.partialorder %v524, 0.5
        %vm579 = vcmp.gt.f32.partialorder %v525, 0.5
        %vm580 = vcmp.gt.f32.partialorder %v526, 0.5
        %vm581 = vcmp.gt.f32.partialorder %v527, 0.5
        %vm582 = vcmp.gt.f32.partialorder %v528, 0.5
        %vm583 = vcmp.gt.f32.partialorder %v529, 0.5
        %vm584 = vcmp.gt.f32.partialorder %v530, 0.5
        %vm585 = vcmp.gt.f32.partialorder %v531, 0.5
        %vm586 = vcmp.gt.f32.partialorder %v532, 0.5
        %vm587 = vcmp.gt.f32.partialorder %v533, 0.5
        %vm588 = vcmp.gt.f32.partialorder %v534, 0.5
        %vm589 = vcmp.gt.f32.partialorder %v535, 0.5
        %vm590 = vcmp.gt.f32.partialorder %v536, 0.5
        %vm591 = vcmp.gt.f32.partialorder %v537, 0.5
        %vm592 = vcmp.gt.f32.partialorder %v538, 0.5
        %vm593 = vcmp.gt.f32.partialorder %v539, 0.5
        %vm594 = vcmp.gt.f32.partialorder %v540, 0.5
        %vm595 = vcmp.gt.f32.partialorder %v541, 0.5
        %vm596 = vcmp.gt.f32.partialorder %v542, 0.5
        %vm597 = vcmp.gt.f32.partialorder %v543, 0.5
        %vm598 = vcmp.gt.f32.partialorder %v544, 0.5
        %vm599 = vcmp.gt.f32.partialorder %v545, 0.5
        %vm600 = vcmp.gt.f32.partialorder %v546, 0.5
        %vm601 = vcmp.gt.f32.partialorder %v547, 0.5
        %vm602 = vcmp.gt.f32.partialorder %v548, 0.5
        %vm603 = vcmp.gt.f32.partialorder %v549, 0.5
        %vm604 = vcmp.gt.f32.partialorder %v550, 0.5
        %vm605 = vcmp.gt.f32.partialorder %v551, 0.5
        %vm606 = vcmp.gt.f32.partialorder %v552, 0.5
        %vm607 = vcmp.gt.f32.partialorder %v553, 0.5
        %vm608 = vcmp.gt.f32.partialorder %v554, 0.5
        %vm609 = vcmp.gt.f32.partialorder %v555, 0.5
        %vm610 = vcmp.gt.f32.partialorder %v556, 0.5
        %vm611 = vcmp.gt.f32.partialorder %v557, 0.5
        %vm612 = vcmp.gt.f32.partialorder %v558, 0.5
        %vm613 = vcmp.gt.f32.partialorder %v559, 0.5
        %vm614 = vcmp.gt.f32.partialorder %v560, 0.5
        %vm615 = vcmp.gt.f32.partialorder %v561, 0.5
        %vm616 = vcmp.gt.f32.partialorder %v562, 0.5
        %vm617 = vcmp.gt.f32.partialorder %v563, 0.5
        %vm618 = vcmp.gt.f32.partialorder %v564, 0.5
        %vm619 = vcmp.gt.f32.partialorder %v565, 0.5
        %vm620 = vcmp.gt.f32.partialorder %v566, 0.5
        %vm621 = vcmp.gt.f32.partialorder %v567, 0.5
        %vm622 = vcmp.gt.f32.partialorder %v568, 0.5
        %vm623 = vcmp.gt.f32.partialorder %v569, 0.5
        %vm624 = vcmp.gt.f32.partialorder %v570, 0.5
        %vm625 = vcmp.gt.f32.partialorder %v571, 0.5
        %vm626 = vcmp.gt.f32.partialorder %v572, 0.5
        %vm627 = vcmp.gt.f32.partialorder %v573, 0.5
        %v628 = vld [vmem:[%s2] sm:$0xf]
        %v683 = vunpack.c.l.b16 %v466
        %v684 = vunpack.c.l.b16 %v467
        %v685 = vunpack.c.l.b16 %v468
        %v686 = vunpack.c.l.b16 %v469
        %v687 = vunpack.c.l.b16 %v470
        %v688 = vunpack.c.l.b16 %v471
        %v689 = vunpack.c.l.b16 %v472
        %v690 = vunpack.c.l.b16 %v473
        %v691 = vunpack.c.l.b16 %v474
        %v692 = vunpack.c.l.b16 %v475
        %v693 = vunpack.c.l.b16 %v476
        %v694 = vunpack.c.l.b16 %v477
        %v695 = vunpack.c.l.b16 %v478
        %v696 = vunpack.c.l.b16 %v479
        %v697 = vunpack.c.l.b16 %v480
        %v698 = vunpack.c.l.b16 %v481
        %v699 = vunpack.c.l.b16 %v482
        %v700 = vunpack.c.l.b16 %v483
        %v701 = vunpack.c.l.b16 %v484
        %v702 = vunpack.c.l.b16 %v485
        %v703 = vunpack.c.l.b16 %v486
        %v704 = vunpack.c.l.b16 %v487
        %v705 = vunpack.c.l.b16 %v488
        %v706 = vunpack.c.l.b16 %v489
        %v707 = vunpack.c.l.b16 %v490
        %v708 = vunpack.c.l.b16 %v491
        %v709 = vunpack.c.l.b16 %v492
        %v710 = vunpack.c.l.b16 %v493
        %v711 = vunpack.c.l.b16 %v494
        %v712 = vunpack.c.l.b16 %v495
        %v713 = vunpack.c.l.b16 %v496
        %v714 = vunpack.c.l.b16 %v497
        %v715 = vunpack.c.l.b16 %v498
        %v716 = vunpack.c.l.b16 %v499
        %v717 = vunpack.c.l.b16 %v500
        %v718 = vunpack.c.l.b16 %v501
        %v719 = vunpack.c.l.b16 %v502
        %v720 = vunpack.c.l.b16 %v503
        %v721 = vunpack.c.l.b16 %v504
        %v722 = vunpack.c.l.b16 %v505
        %v723 = vunpack.c.l.b16 %v506
        %v724 = vunpack.c.l.b16 %v507
        %v725 = vunpack.c.l.b16 %v508
        %v726 = vunpack.c.l.b16 %v509
        %v727 = vunpack.c.l.b16 %v510
        %v728 = vunpack.c.l.b16 %v511
        %v729 = vunpack.c.l.b16 %v512
        %v730 = vunpack.c.l.b16 %v513
        %v731 = vunpack.c.l.b16 %v514
        %v732 = vunpack.c.l.b16 %v515
        %v733 = vunpack.c.l.b16 %v516
        %v734 = vunpack.c.l.b16 %v517
        %v735 = vunpack.c.l.b16 %v518
        %v736 = vunpack.c.l.b16 %v519
        %v737 = vpack.c.b16 %v684, %v683
        %v738 = vpack.c.b16 %v686, %v685
        %v739 = vpack.c.b16 %v688, %v687
        %v740 = vpack.c.b16 %v690, %v689
        %v741 = vpack.c.b16 %v692, %v691
        %v742 = vpack.c.b16 %v694, %v693
        %v743 = vpack.c.b16 %v696, %v695
        %v744 = vpack.c.b16 %v698, %v697
        %v745 = vpack.c.b16 %v700, %v699
        %v746 = vpack.c.b16 %v702, %v701
        %v747 = vpack.c.b16 %v704, %v703
        %v748 = vpack.c.b16 %v706, %v705
        %v749 = vpack.c.b16 %v708, %v707
        %v750 = vpack.c.b16 %v710, %v709
        %v751 = vpack.c.b16 %v712, %v711
        %v752 = vpack.c.b16 %v714, %v713
        %v753 = vpack.c.b16 %v716, %v715
        %v754 = vpack.c.b16 %v718, %v717
        %v755 = vpack.c.b16 %v720, %v719
        %v756 = vpack.c.b16 %v722, %v721
        %v757 = vpack.c.b16 %v724, %v723
        %v758 = vpack.c.b16 %v726, %v725
        %v759 = vpack.c.b16 %v728, %v727
        %v760 = vpack.c.b16 %v730, %v729
        %v761 = vpack.c.b16 %v732, %v731
        %v762 = vpack.c.b16 %v734, %v733
        %v763 = vpack.c.b16 %v736, %v735
        %vm764 = vcmask 64512
        %v766 = vsel %vm764, %v737, 0
        %v769 = vsel %vm764, %v738, 0
        %v772 = vsel %vm764, %v739, 0
        %v775 = vsel %vm764, %v740, 0
        %v778 = vsel %vm764, %v741, 0
        %v781 = vsel %vm764, %v742, 0
        %v784 = vsel %vm764, %v743, 0
        %v787 = vsel %vm764, %v744, 0
        %v790 = vsel %vm764, %v745, 0
        %v793 = vsel %vm764, %v746, 0
        %v796 = vsel %vm764, %v747, 0
        %v799 = vsel %vm764, %v748, 0
        %v802 = vsel %vm764, %v749, 0
        %v805 = vsel %vm764, %v750, 0
        %v808 = vsel %vm764, %v751, 0
        %v811 = vsel %vm764, %v752, 0
        %v814 = vsel %vm764, %v753, 0
        %v817 = vsel %vm764, %v754, 0
        %v820 = vsel %vm764, %v755, 0
        %v823 = vsel %vm764, %v756, 0
        %v826 = vsel %vm764, %v757, 0
        %v829 = vsel %vm764, %v758, 0
        %v832 = vsel %vm764, %v759, 0
        %v835 = vsel %vm764, %v760, 0
        %v838 = vsel %vm764, %v761, 0
        %v841 = vsel %vm764, %v762, 0
        %v844 = vsel %vm764, %v763, 0
        %vm846 = vcmask 1043456
        %v848 = vsel %vm846, %v628, 0
        %850 = vmatpush.bf16.msra.mxu0 0
        %851 = vmatpush.bf16.msra.mxu0 0
        %852 = vmatpush.bf16.msra.mxu0 0
        %853 = vmatpush.bf16.msra.mxu0 0
        %854 = vmatpush.bf16.msra.mxu0 0
        %855 = vmatpush.bf16.msra.mxu0 0
        %856 = vmatpush.bf16.msra.mxu0 0
        %857 = vmatpush.bf16.msra.mxu0 %v848
        %858 = vmatmul.bf16.gmra.mxu0 %v766
        %v859 = vpop.f32.mrf.mxu0
        %v860 = vadd.f32 0.0, %v859
        %v861 = vpop.f32.mrf.mxu0
        %v862 = vadd.f32 0.0, %v861
        %863 = vmatmul.bf16.gmra.mxu0 %v769
        %v864 = vpop.f32.mrf.mxu0
        %v865 = vadd.f32 0.0, %v864
        %v866 = vpop.f32.mrf.mxu0
        %v867 = vadd.f32 0.0, %v866
        %868 = vmatmul.bf16.gmra.mxu0 %v772
        %v869 = vpop.f32.mrf.mxu0
        %v870 = vadd.f32 0.0, %v869
        %v871 = vpop.f32.mrf.mxu0
        %v872 = vadd.f32 0.0, %v871
        %873 = vmatmul.bf16.gmra.mxu0 %v775
        %v874 = vpop.f32.mrf.mxu0
        %v875 = vadd.f32 0.0, %v874
        %v876 = vpop.f32.mrf.mxu0
        %v877 = vadd.f32 0.0, %v876
        %878 = vmatmul.bf16.gmra.mxu0 %v778
        %v879 = vpop.f32.mrf.mxu0
        %v880 = vadd.f32 0.0, %v879
        %v881 = vpop.f32.mrf.mxu0
        %v882 = vadd.f32 0.0, %v881
        %883 = vmatmul.bf16.gmra.mxu0 %v781
        %v884 = vpop.f32.mrf.mxu0
        %v885 = vadd.f32 0.0, %v884
        %v886 = vpop.f32.mrf.mxu0
        %v887 = vadd.f32 0.0, %v886
        %888 = vmatmul.bf16.gmra.mxu0 %v784
        %v889 = vpop.f32.mrf.mxu0
        %v890 = vadd.f32 0.0, %v889
        %v891 = vpop.f32.mrf.mxu0
        %v892 = vadd.f32 0.0, %v891
        %893 = vmatmul.bf16.gmra.mxu0 %v787
        %v894 = vpop.f32.mrf.mxu0
        %v895 = vadd.f32 0.0, %v894
        %v896 = vpop.f32.mrf.mxu0
        %v897 = vadd.f32 0.0, %v896
        %898 = vmatmul.bf16.gmra.mxu0 %v790
        %v899 = vpop.f32.mrf.mxu0
        %v900 = vadd.f32 0.0, %v899
        %v901 = vpop.f32.mrf.mxu0
        %v902 = vadd.f32 0.0, %v901
        %903 = vmatmul.bf16.gmra.mxu0 %v793
        %v904 = vpop.f32.mrf.mxu0
        %v905 = vadd.f32 0.0, %v904
        %v906 = vpop.f32.mrf.mxu0
        %v907 = vadd.f32 0.0, %v906
        %908 = vmatmul.bf16.gmra.mxu0 %v796
        %v909 = vpop.f32.mrf.mxu0
        %v910 = vadd.f32 0.0, %v909
        %v911 = vpop.f32.mrf.mxu0
        %v912 = vadd.f32 0.0, %v911
        %913 = vmatmul.bf16.gmra.mxu0 %v799
        %v914 = vpop.f32.mrf.mxu0
        %v915 = vadd.f32 0.0, %v914
        %v916 = vpop.f32.mrf.mxu0
        %v917 = vadd.f32 0.0, %v916
        %918 = vmatmul.bf16.gmra.mxu0 %v802
        %v919 = vpop.f32.mrf.mxu0
        %v920 = vadd.f32 0.0, %v919
        %v921 = vpop.f32.mrf.mxu0
        %v922 = vadd.f32 0.0, %v921
        %923 = vmatmul.bf16.gmra.mxu0 %v805
        %v924 = vpop.f32.mrf.mxu0
        %v925 = vadd.f32 0.0, %v924
        %v926 = vpop.f32.mrf.mxu0
        %v927 = vadd.f32 0.0, %v926
        %928 = vmatmul.bf16.gmra.mxu0 %v808
        %v929 = vpop.f32.mrf.mxu0
        %v930 = vadd.f32 0.0, %v929
        %v931 = vpop.f32.mrf.mxu0
        %v932 = vadd.f32 0.0, %v931
        %933 = vmatmul.bf16.gmra.mxu0 %v811
        %v934 = vpop.f32.mrf.mxu0
        %v935 = vadd.f32 0.0, %v934
        %v936 = vpop.f32.mrf.mxu0
        %v937 = vadd.f32 0.0, %v936
        %938 = vmatmul.bf16.gmra.mxu0 %v814
        %v939 = vpop.f32.mrf.mxu0
        %v940 = vadd.f32 0.0, %v939
        %v941 = vpop.f32.mrf.mxu0
        %v942 = vadd.f32 0.0, %v941
        %943 = vmatmul.bf16.gmra.mxu0 %v817
        %v944 = vpop.f32.mrf.mxu0
        %v945 = vadd.f32 0.0, %v944
        %v946 = vpop.f32.mrf.mxu0
        %v947 = vadd.f32 0.0, %v946
        %948 = vmatmul.bf16.gmra.mxu0 %v820
        %v949 = vpop.f32.mrf.mxu0
        %v950 = vadd.f32 0.0, %v949
        %v951 = vpop.f32.mrf.mxu0
        %v952 = vadd.f32 0.0, %v951
        %953 = vmatmul.bf16.gmra.mxu0 %v823
        %v954 = vpop.f32.mrf.mxu0
        %v955 = vadd.f32 0.0, %v954
        %v956 = vpop.f32.mrf.mxu0
        %v957 = vadd.f32 0.0, %v956
        %958 = vmatmul.bf16.gmra.mxu0 %v826
        %v959 = vpop.f32.mrf.mxu0
        %v960 = vadd.f32 0.0, %v959
        %v961 = vpop.f32.mrf.mxu0
        %v962 = vadd.f32 0.0, %v961
        %963 = vmatmul.bf16.gmra.mxu0 %v829
        %v964 = vpop.f32.mrf.mxu0
        %v965 = vadd.f32 0.0, %v964
        %v966 = vpop.f32.mrf.mxu0
        %v967 = vadd.f32 0.0, %v966
        %968 = vmatmul.bf16.gmra.mxu0 %v832
        %v969 = vpop.f32.mrf.mxu0
        %v970 = vadd.f32 0.0, %v969
        %v971 = vpop.f32.mrf.mxu0
        %v972 = vadd.f32 0.0, %v971
        %973 = vmatmul.bf16.gmra.mxu0 %v835
        %v974 = vpop.f32.mrf.mxu0
        %v975 = vadd.f32 0.0, %v974
        %v976 = vpop.f32.mrf.mxu0
        %v977 = vadd.f32 0.0, %v976
        %978 = vmatmul.bf16.gmra.mxu0 %v838
        %v979 = vpop.f32.mrf.mxu0
        %v980 = vadd.f32 0.0, %v979
        %v981 = vpop.f32.mrf.mxu0
        %v982 = vadd.f32 0.0, %v981
        %983 = vmatmul.bf16.gmra.mxu0 %v841
        %v984 = vpop.f32.mrf.mxu0
        %v985 = vadd.f32 0.0, %v984
        %v986 = vpop.f32.mrf.mxu0
        %v987 = vadd.f32 0.0, %v986
        %988 = vmatmul.bf16.gmra.mxu0 %v844
        %v989 = vpop.f32.mrf.mxu0
        %v990 = vadd.f32 0.0, %v989
        %v991 = vpop.f32.mrf.mxu0
        %v992 = vadd.f32 0.0, %v991
        %993 = vdwg.mxu0
        %v994 = vrot.slane %v860, 7
        %v995 = vrot.slane %v862, 7
        %v996 = vrot.slane %v865, 7
        %v997 = vrot.slane %v867, 7
        %v998 = vrot.slane %v870, 7
        %v999 = vrot.slane %v872, 7
        %v1000 = vrot.slane %v875, 7
        %v1001 = vrot.slane %v877, 7
        %v1002 = vrot.slane %v880, 7
        %v1003 = vrot.slane %v882, 7
        %v1004 = vrot.slane %v885, 7
        %v1005 = vrot.slane %v887, 7
        %v1006 = vrot.slane %v890, 7
        %v1007 = vrot.slane %v892, 7
        %v1008 = vrot.slane %v895, 7
        %v1009 = vrot.slane %v897, 7
        %v1010 = vrot.slane %v900, 7
        %v1011 = vrot.slane %v902, 7
        %v1012 = vrot.slane %v905, 7
        %v1013 = vrot.slane %v907, 7
        %v1014 = vrot.slane %v910, 7
        %v1015 = vrot.slane %v912, 7
        %v1016 = vrot.slane %v915, 7
        %v1017 = vrot.slane %v917, 7
        %v1018 = vrot.slane %v920, 7
        %v1019 = vrot.slane %v922, 7
        %v1020 = vrot.slane %v925, 7
        %v1021 = vrot.slane %v927, 7
        %v1022 = vrot.slane %v930, 7
        %v1023 = vrot.slane %v932, 7
        %v1024 = vrot.slane %v935, 7
        %v1025 = vrot.slane %v937, 7
        %v1026 = vrot.slane %v940, 7
        %v1027 = vrot.slane %v942, 7
        %v1028 = vrot.slane %v945, 7
        %v1029 = vrot.slane %v947, 7
        %v1030 = vrot.slane %v950, 7
        %v1031 = vrot.slane %v952, 7
        %v1032 = vrot.slane %v955, 7
        %v1033 = vrot.slane %v957, 7
        %v1034 = vrot.slane %v960, 7
        %v1035 = vrot.slane %v962, 7
        %v1036 = vrot.slane %v965, 7
        %v1037 = vrot.slane %v967, 7
        %v1038 = vrot.slane %v970, 7
        %v1039 = vrot.slane %v972, 7
        %v1040 = vrot.slane %v975, 7
        %v1041 = vrot.slane %v977, 7
        %v1042 = vrot.slane %v980, 7
        %v1043 = vrot.slane %v982, 7
        %v1044 = vrot.slane %v985, 7
        %v1045 = vrot.slane %v987, 7
        %v1046 = vrot.slane %v990, 7
        %v1047 = vrot.slane %v992, 7
        %v1048 = vlaneseq
        %v1049 = vshrl.u32 %v1048, 7
        %vm1050 = vcmp.lt.s32.totalorder %v1049, 1
        %v1051 = vsel %vm1050, %v1046, %v1047
        %v1052 = vsel %vm1050, %v1045, %v1046
        %v1053 = vsel %vm1050, %v1044, %v1045
        %v1054 = vsel %vm1050, %v1043, %v1044
        %v1055 = vsel %vm1050, %v1042, %v1043
        %v1056 = vsel %vm1050, %v1041, %v1042
        %v1057 = vsel %vm1050, %v1040, %v1041
        %v1058 = vsel %vm1050, %v1039, %v1040
        %v1059 = vsel %vm1050, %v1038, %v1039
        %v1060 = vsel %vm1050, %v1037, %v1038
        %v1061 = vsel %vm1050, %v1036, %v1037
        %v1062 = vsel %vm1050, %v1035, %v1036
        %v1063 = vsel %vm1050, %v1034, %v1035
        %v1064 = vsel %vm1050, %v1033, %v1034
        %v1065 = vsel %vm1050, %v1032, %v1033
        %v1066 = vsel %vm1050, %v1031, %v1032
        %v1067 = vsel %vm1050, %v1030, %v1031
        %v1068 = vsel %vm1050, %v1029, %v1030
        %v1069 = vsel %vm1050, %v1028, %v1029
        %v1070 = vsel %vm1050, %v1027, %v1028
        %v1071 = vsel %vm1050, %v1026, %v1027
        %v1072 = vsel %vm1050, %v1025, %v1026
        %v1073 = vsel %vm1050, %v1024, %v1025
        %v1074 = vsel %vm1050, %v1023, %v1024
        %v1075 = vsel %vm1050, %v1022, %v1023
        %v1076 = vsel %vm1050, %v1021, %v1022
        %v1077 = vsel %vm1050, %v1020, %v1021
        %v1078 = vsel %vm1050, %v1019, %v1020
        %v1079 = vsel %vm1050, %v1018, %v1019
        %v1080 = vsel %vm1050, %v1017, %v1018
        %v1081 = vsel %vm1050, %v1016, %v1017
        %v1082 = vsel %vm1050, %v1015, %v1016
        %v1083 = vsel %vm1050, %v1014, %v1015
        %v1084 = vsel %vm1050, %v1013, %v1014
        %v1085 = vsel %vm1050, %v1012, %v1013
        %v1086 = vsel %vm1050, %v1011, %v1012
        %v1087 = vsel %vm1050, %v1010, %v1011
        %v1088 = vsel %vm1050, %v1009, %v1010
        %v1089 = vsel %vm1050, %v1008, %v1009
        %v1090 = vsel %vm1050, %v1007, %v1008
        %v1091 = vsel %vm1050, %v1006, %v1007
        %v1092 = vsel %vm1050, %v1005, %v1006
        %v1093 = vsel %vm1050, %v1004, %v1005
        %v1094 = vsel %vm1050, %v1003, %v1004
        %v1095 = vsel %vm1050, %v1002, %v1003
        %v1096 = vsel %vm1050, %v1001, %v1002
        %v1097 = vsel %vm1050, %v1000, %v1001
        %v1098 = vsel %vm1050, %v999, %v1000
        %v1099 = vsel %vm1050, %v998, %v999
        %v1100 = vsel %vm1050, %v997, %v998
        %v1101 = vsel %vm1050, %v996, %v997
        %v1102 = vsel %vm1050, %v995, %v996
        %v1103 = vsel %vm1050, %v994, %v995
        %v1104 = vsel %vm1050, %v1047, %v994
        %s1105 = scalar_lea.vmem %s2, 4
        %v1106 = vld [vmem:[%s1105] sm:$0xf]
        %v1108 = vsel %vm846, %v1106, 0
        %1110 = vmatpush.bf16.msra.mxu0 0
        %1111 = vmatpush.bf16.msra.mxu0 0
        %1112 = vmatpush.bf16.msra.mxu0 0
        %1113 = vmatpush.bf16.msra.mxu0 0
        %1114 = vmatpush.bf16.msra.mxu0 0
        %1115 = vmatpush.bf16.msra.mxu0 0
        %1116 = vmatpush.bf16.msra.mxu0 0
        %1117 = vmatpush.bf16.msra.mxu0 %v1108
        %1118 = vmatmul.bf16.gmra.mxu0 %v766
        %v1119 = vpop.f32.mrf.mxu0
        %v1120 = vadd.f32 0.0, %v1119
        %v1121 = vpop.f32.mrf.mxu0
        %v1122 = vadd.f32 0.0, %v1121
        %1123 = vmatmul.bf16.gmra.mxu0 %v769
        %v1124 = vpop.f32.mrf.mxu0
        %v1125 = vadd.f32 0.0, %v1124
        %v1126 = vpop.f32.mrf.mxu0
        %v1127 = vadd.f32 0.0, %v1126
        %1128 = vmatmul.bf16.gmra.mxu0 %v772
        %v1129 = vpop.f32.mrf.mxu0
        %v1130 = vadd.f32 0.0, %v1129
        %v1131 = vpop.f32.mrf.mxu0
        %v1132 = vadd.f32 0.0, %v1131
        %1133 = vmatmul.bf16.gmra.mxu0 %v775
        %v1134 = vpop.f32.mrf.mxu0
        %v1135 = vadd.f32 0.0, %v1134
        %v1136 = vpop.f32.mrf.mxu0
        %v1137 = vadd.f32 0.0, %v1136
        %1138 = vmatmul.bf16.gmra.mxu0 %v778
        %v1139 = vpop.f32.mrf.mxu0
        %v1140 = vadd.f32 0.0, %v1139
        %v1141 = vpop.f32.mrf.mxu0
        %v1142 = vadd.f32 0.0, %v1141
        %1143 = vmatmul.bf16.gmra.mxu0 %v781
        %v1144 = vpop.f32.mrf.mxu0
        %v1145 = vadd.f32 0.0, %v1144
        %v1146 = vpop.f32.mrf.mxu0
        %v1147 = vadd.f32 0.0, %v1146
        %1148 = vmatmul.bf16.gmra.mxu0 %v784
        %v1149 = vpop.f32.mrf.mxu0
        %v1150 = vadd.f32 0.0, %v1149
        %v1151 = vpop.f32.mrf.mxu0
        %v1152 = vadd.f32 0.0, %v1151
        %1153 = vmatmul.bf16.gmra.mxu0 %v787
        %v1154 = vpop.f32.mrf.mxu0
        %v1155 = vadd.f32 0.0, %v1154
        %v1156 = vpop.f32.mrf.mxu0
        %v1157 = vadd.f32 0.0, %v1156
        %1158 = vmatmul.bf16.gmra.mxu0 %v790
        %v1159 = vpop.f32.mrf.mxu0
        %v1160 = vadd.f32 0.0, %v1159
        %v1161 = vpop.f32.mrf.mxu0
        %v1162 = vadd.f32 0.0, %v1161
        %1163 = vmatmul.bf16.gmra.mxu0 %v793
        %v1164 = vpop.f32.mrf.mxu0
        %v1165 = vadd.f32 0.0, %v1164
        %v1166 = vpop.f32.mrf.mxu0
        %v1167 = vadd.f32 0.0, %v1166
        %1168 = vmatmul.bf16.gmra.mxu0 %v796
        %v1169 = vpop.f32.mrf.mxu0
        %v1170 = vadd.f32 0.0, %v1169
        %v1171 = vpop.f32.mrf.mxu0
        %v1172 = vadd.f32 0.0, %v1171
        %1173 = vmatmul.bf16.gmra.mxu0 %v799
        %v1174 = vpop.f32.mrf.mxu0
        %v1175 = vadd.f32 0.0, %v1174
        %v1176 = vpop.f32.mrf.mxu0
        %v1177 = vadd.f32 0.0, %v1176
        %1178 = vmatmul.bf16.gmra.mxu0 %v802
        %v1179 = vpop.f32.mrf.mxu0
        %v1180 = vadd.f32 0.0, %v1179
        %v1181 = vpop.f32.mrf.mxu0
        %v1182 = vadd.f32 0.0, %v1181
        %1183 = vmatmul.bf16.gmra.mxu0 %v805
        %v1184 = vpop.f32.mrf.mxu0
        %v1185 = vadd.f32 0.0, %v1184
        %v1186 = vpop.f32.mrf.mxu0
        %v1187 = vadd.f32 0.0, %v1186
        %1188 = vmatmul.bf16.gmra.mxu0 %v808
        %v1189 = vpop.f32.mrf.mxu0
        %v1190 = vadd.f32 0.0, %v1189
        %v1191 = vpop.f32.mrf.mxu0
        %v1192 = vadd.f32 0.0, %v1191
        %1193 = vmatmul.bf16.gmra.mxu0 %v811
        %v1194 = vpop.f32.mrf.mxu0
        %v1195 = vadd.f32 0.0, %v1194
        %v1196 = vpop.f32.mrf.mxu0
        %v1197 = vadd.f32 0.0, %v1196
        %1198 = vmatmul.bf16.gmra.mxu0 %v814
        %v1199 = vpop.f32.mrf.mxu0
        %v1200 = vadd.f32 0.0, %v1199
        %v1201 = vpop.f32.mrf.mxu0
        %v1202 = vadd.f32 0.0, %v1201
        %1203 = vmatmul.bf16.gmra.mxu0 %v817
        %v1204 = vpop.f32.mrf.mxu0
        %v1205 = vadd.f32 0.0, %v1204
        %v1206 = vpop.f32.mrf.mxu0
        %v1207 = vadd.f32 0.0, %v1206
        %1208 = vmatmul.bf16.gmra.mxu0 %v820
        %v1209 = vpop.f32.mrf.mxu0
        %v1210 = vadd.f32 0.0, %v1209
        %v1211 = vpop.f32.mrf.mxu0
        %v1212 = vadd.f32 0.0, %v1211
        %1213 = vmatmul.bf16.gmra.mxu0 %v823
        %v1214 = vpop.f32.mrf.mxu0
        %v1215 = vadd.f32 0.0, %v1214
        %v1216 = vpop.f32.mrf.mxu0
        %v1217 = vadd.f32 0.0, %v1216
        %1218 = vmatmul.bf16.gmra.mxu0 %v826
        %v1219 = vpop.f32.mrf.mxu0
        %v1220 = vadd.f32 0.0, %v1219
        %v1221 = vpop.f32.mrf.mxu0
        %v1222 = vadd.f32 0.0, %v1221
        %1223 = vmatmul.bf16.gmra.mxu0 %v829
        %v1224 = vpop.f32.mrf.mxu0
        %v1225 = vadd.f32 0.0, %v1224
        %v1226 = vpop.f32.mrf.mxu0
        %v1227 = vadd.f32 0.0, %v1226
        %1228 = vmatmul.bf16.gmra.mxu0 %v832
        %v1229 = vpop.f32.mrf.mxu0
        %v1230 = vadd.f32 0.0, %v1229
        %v1231 = vpop.f32.mrf.mxu0
        %v1232 = vadd.f32 0.0, %v1231
        %1233 = vmatmul.bf16.gmra.mxu0 %v835
        %v1234 = vpop.f32.mrf.mxu0
        %v1235 = vadd.f32 0.0, %v1234
        %v1236 = vpop.f32.mrf.mxu0
        %v1237 = vadd.f32 0.0, %v1236
        %1238 = vmatmul.bf16.gmra.mxu0 %v838
        %v1239 = vpop.f32.mrf.mxu0
        %v1240 = vadd.f32 0.0, %v1239
        %v1241 = vpop.f32.mrf.mxu0
        %v1242 = vadd.f32 0.0, %v1241
        %1243 = vmatmul.bf16.gmra.mxu0 %v841
        %v1244 = vpop.f32.mrf.mxu0
        %v1245 = vadd.f32 0.0, %v1244
        %v1246 = vpop.f32.mrf.mxu0
        %v1247 = vadd.f32 0.0, %v1246
        %1248 = vmatmul.bf16.gmra.mxu0 %v844
        %v1249 = vpop.f32.mrf.mxu0
        %v1250 = vadd.f32 0.0, %v1249
        %v1251 = vpop.f32.mrf.mxu0
        %v1252 = vadd.f32 0.0, %v1251
        %1253 = vdwg.mxu0
        %v1254 = vadd.f32 %v1053, %v1247
        %v1255 = vadd.f32 %v1052, %v1250
        %v1256 = vadd.f32 %v1051, %v1252
        %v1257 = vadd.f32 %v1104, %v1120
        %v1258 = vadd.f32 %v1103, %v1122
        %v1259 = vadd.f32 %v1102, %v1125
        %v1260 = vadd.f32 %v1101, %v1127
        %v1261 = vadd.f32 %v1100, %v1130
        %v1262 = vadd.f32 %v1099, %v1132
        %v1263 = vadd.f32 %v1098, %v1135
        %v1264 = vadd.f32 %v1097, %v1137
        %v1265 = vadd.f32 %v1096, %v1140
        %v1266 = vadd.f32 %v1095, %v1142
        %v1267 = vadd.f32 %v1094, %v1145
        %v1268 = vadd.f32 %v1093, %v1147
        %v1269 = vadd.f32 %v1092, %v1150
        %v1270 = vadd.f32 %v1091, %v1152
        %v1271 = vadd.f32 %v1090, %v1155
        %v1272 = vadd.f32 %v1089, %v1157
        %v1273 = vadd.f32 %v1088, %v1160
        %v1274 = vadd.f32 %v1087, %v1162
        %v1275 = vadd.f32 %v1086, %v1165
        %v1276 = vadd.f32 %v1085, %v1167
        %v1277 = vadd.f32 %v1084, %v1170
        %v1278 = vadd.f32 %v1083, %v1172
        %v1279 = vadd.f32 %v1082, %v1175
        %v1280 = vadd.f32 %v1081, %v1177
        %v1281 = vadd.f32 %v1080, %v1180
        %v1282 = vadd.f32 %v1079, %v1182
        %v1283 = vadd.f32 %v1078, %v1185
        %v1284 = vadd.f32 %v1077, %v1187
        %v1285 = vadd.f32 %v1076, %v1190
        %v1286 = vadd.f32 %v1075, %v1192
        %v1287 = vadd.f32 %v1074, %v1195
        %v1288 = vadd.f32 %v1073, %v1197
        %v1289 = vadd.f32 %v1072, %v1200
        %v1290 = vadd.f32 %v1071, %v1202
        %v1291 = vadd.f32 %v1070, %v1205
        %v1292 = vadd.f32 %v1069, %v1207
        %v1293 = vadd.f32 %v1068, %v1210
        %v1294 = vadd.f32 %v1067, %v1212
        %v1295 = vadd.f32 %v1066, %v1215
        %v1296 = vadd.f32 %v1065, %v1217
        %v1297 = vadd.f32 %v1064, %v1220
        %v1298 = vadd.f32 %v1063, %v1222
        %v1299 = vadd.f32 %v1062, %v1225
        %v1300 = vadd.f32 %v1061, %v1227
        %v1301 = vadd.f32 %v1060, %v1230
        %v1302 = vadd.f32 %v1059, %v1232
        %v1303 = vadd.f32 %v1058, %v1235
        %v1304 = vadd.f32 %v1057, %v1237
        %v1305 = vadd.f32 %v1056, %v1240
        %v1306 = vadd.f32 %v1055, %v1242
        %v1307 = vadd.f32 %v1054, %v1245
        %s1308 = scalar_lea.vmem %s2, 8
        %v1309 = vld [vmem:[%s1308] sm:$0xf]
        %v1311 = vsel %vm846, %v1309, 0
        %1313 = vmatpush.bf16.msra.mxu0 0
        %1314 = vmatpush.bf16.msra.mxu0 0
        %1315 = vmatpush.bf16.msra.mxu0 0
        %1316 = vmatpush.bf16.msra.mxu0 0
        %1317 = vmatpush.bf16.msra.mxu0 0
        %1318 = vmatpush.bf16.msra.mxu0 0
        %1319 = vmatpush.bf16.msra.mxu0 0
        %1320 = vmatpush.bf16.msra.mxu0 %v1311
        %1321 = vmatmul.bf16.gmra.mxu0 %v766
        %v1322 = vpop.f32.mrf.mxu0
        %v1323 = vadd.f32 0.0, %v1322
        %v1324 = vpop.f32.mrf.mxu0
        %v1325 = vadd.f32 0.0, %v1324
        %1326 = vmatmul.bf16.gmra.mxu0 %v769
        %v1327 = vpop.f32.mrf.mxu0
        %v1328 = vadd.f32 0.0, %v1327
        %v1329 = vpop.f32.mrf.mxu0
        %v1330 = vadd.f32 0.0, %v1329
        %1331 = vmatmul.bf16.gmra.mxu0 %v772
        %v1332 = vpop.f32.mrf.mxu0
        %v1333 = vadd.f32 0.0, %v1332
        %v1334 = vpop.f32.mrf.mxu0
        %v1335 = vadd.f32 0.0, %v1334
        %1336 = vmatmul.bf16.gmra.mxu0 %v775
        %v1337 = vpop.f32.mrf.mxu0
        %v1338 = vadd.f32 0.0, %v1337
        %v1339 = vpop.f32.mrf.mxu0
        %v1340 = vadd.f32 0.0, %v1339
        %1341 = vmatmul.bf16.gmra.mxu0 %v778
        %v1342 = vpop.f32.mrf.mxu0
        %v1343 = vadd.f32 0.0, %v1342
        %v1344 = vpop.f32.mrf.mxu0
        %v1345 = vadd.f32 0.0, %v1344
        %1346 = vmatmul.bf16.gmra.mxu0 %v781
        %v1347 = vpop.f32.mrf.mxu0
        %v1348 = vadd.f32 0.0, %v1347
        %v1349 = vpop.f32.mrf.mxu0
        %v1350 = vadd.f32 0.0, %v1349
        %1351 = vmatmul.bf16.gmra.mxu0 %v784
        %v1352 = vpop.f32.mrf.mxu0
        %v1353 = vadd.f32 0.0, %v1352
        %v1354 = vpop.f32.mrf.mxu0
        %v1355 = vadd.f32 0.0, %v1354
        %1356 = vmatmul.bf16.gmra.mxu0 %v787
        %v1357 = vpop.f32.mrf.mxu0
        %v1358 = vadd.f32 0.0, %v1357
        %v1359 = vpop.f32.mrf.mxu0
        %v1360 = vadd.f32 0.0, %v1359
        %1361 = vmatmul.bf16.gmra.mxu0 %v790
        %v1362 = vpop.f32.mrf.mxu0
        %v1363 = vadd.f32 0.0, %v1362
        %v1364 = vpop.f32.mrf.mxu0
        %v1365 = vadd.f32 0.0, %v1364
        %1366 = vmatmul.bf16.gmra.mxu0 %v793
        %v1367 = vpop.f32.mrf.mxu0
        %v1368 = vadd.f32 0.0, %v1367
        %v1369 = vpop.f32.mrf.mxu0
        %v1370 = vadd.f32 0.0, %v1369
        %1371 = vmatmul.bf16.gmra.mxu0 %v796
        %v1372 = vpop.f32.mrf.mxu0
        %v1373 = vadd.f32 0.0, %v1372
        %v1374 = vpop.f32.mrf.mxu0
        %v1375 = vadd.f32 0.0, %v1374
        %1376 = vmatmul.bf16.gmra.mxu0 %v799
        %v1377 = vpop.f32.mrf.mxu0
        %v1378 = vadd.f32 0.0, %v1377
        %v1379 = vpop.f32.mrf.mxu0
        %v1380 = vadd.f32 0.0, %v1379
        %1381 = vmatmul.bf16.gmra.mxu0 %v802
        %v1382 = vpop.f32.mrf.mxu0
        %v1383 = vadd.f32 0.0, %v1382
        %v1384 = vpop.f32.mrf.mxu0
        %v1385 = vadd.f32 0.0, %v1384
        %1386 = vmatmul.bf16.gmra.mxu0 %v805
        %v1387 = vpop.f32.mrf.mxu0
        %v1388 = vadd.f32 0.0, %v1387
        %v1389 = vpop.f32.mrf.mxu0
        %v1390 = vadd.f32 0.0, %v1389
        %1391 = vmatmul.bf16.gmra.mxu0 %v808
        %v1392 = vpop.f32.mrf.mxu0
        %v1393 = vadd.f32 0.0, %v1392
        %v1394 = vpop.f32.mrf.mxu0
        %v1395 = vadd.f32 0.0, %v1394
        %1396 = vmatmul.bf16.gmra.mxu0 %v811
        %v1397 = vpop.f32.mrf.mxu0
        %v1398 = vadd.f32 0.0, %v1397
        %v1399 = vpop.f32.mrf.mxu0
        %v1400 = vadd.f32 0.0, %v1399
        %1401 = vmatmul.bf16.gmra.mxu0 %v814
        %v1402 = vpop.f32.mrf.mxu0
        %v1403 = vadd.f32 0.0, %v1402
        %v1404 = vpop.f32.mrf.mxu0
        %v1405 = vadd.f32 0.0, %v1404
        %1406 = vmatmul.bf16.gmra.mxu0 %v817
        %v1407 = vpop.f32.mrf.mxu0
        %v1408 = vadd.f32 0.0, %v1407
        %v1409 = vpop.f32.mrf.mxu0
        %v1410 = vadd.f32 0.0, %v1409
        %1411 = vmatmul.bf16.gmra.mxu0 %v820
        %v1412 = vpop.f32.mrf.mxu0
        %v1413 = vadd.f32 0.0, %v1412
        %v1414 = vpop.f32.mrf.mxu0
        %v1415 = vadd.f32 0.0, %v1414
        %1416 = vmatmul.bf16.gmra.mxu0 %v823
        %v1417 = vpop.f32.mrf.mxu0
        %v1418 = vadd.f32 0.0, %v1417
        %v1419 = vpop.f32.mrf.mxu0
        %v1420 = vadd.f32 0.0, %v1419
        %1421 = vmatmul.bf16.gmra.mxu0 %v826
        %v1422 = vpop.f32.mrf.mxu0
        %v1423 = vadd.f32 0.0, %v1422
        %v1424 = vpop.f32.mrf.mxu0
        %v1425 = vadd.f32 0.0, %v1424
        %1426 = vmatmul.bf16.gmra.mxu0 %v829
        %v1427 = vpop.f32.mrf.mxu0
        %v1428 = vadd.f32 0.0, %v1427
        %v1429 = vpop.f32.mrf.mxu0
        %v1430 = vadd.f32 0.0, %v1429
        %1431 = vmatmul.bf16.gmra.mxu0 %v832
        %v1432 = vpop.f32.mrf.mxu0
        %v1433 = vadd.f32 0.0, %v1432
        %v1434 = vpop.f32.mrf.mxu0
        %v1435 = vadd.f32 0.0, %v1434
        %1436 = vmatmul.bf16.gmra.mxu0 %v835
        %v1437 = vpop.f32.mrf.mxu0
        %v1438 = vadd.f32 0.0, %v1437
        %v1439 = vpop.f32.mrf.mxu0
        %v1440 = vadd.f32 0.0, %v1439
        %1441 = vmatmul.bf16.gmra.mxu0 %v838
        %v1442 = vpop.f32.mrf.mxu0
        %v1443 = vadd.f32 0.0, %v1442
        %v1444 = vpop.f32.mrf.mxu0
        %v1445 = vadd.f32 0.0, %v1444
        %1446 = vmatmul.bf16.gmra.mxu0 %v841
        %v1447 = vpop.f32.mrf.mxu0
        %v1448 = vadd.f32 0.0, %v1447
        %v1449 = vpop.f32.mrf.mxu0
        %v1450 = vadd.f32 0.0, %v1449
        %1451 = vmatmul.bf16.gmra.mxu0 %v844
        %v1452 = vpop.f32.mrf.mxu0
        %v1453 = vadd.f32 0.0, %v1452
        %v1454 = vpop.f32.mrf.mxu0
        %v1455 = vadd.f32 0.0, %v1454
        %1456 = vdwg.mxu0
        %v1457 = vrot.slane %v1323, 1
        %v1458 = vrot.slane %v1325, 1
        %v1459 = vrot.slane %v1328, 1
        %v1460 = vrot.slane %v1330, 1
        %v1461 = vrot.slane %v1333, 1
        %v1462 = vrot.slane %v1335, 1
        %v1463 = vrot.slane %v1338, 1
        %v1464 = vrot.slane %v1340, 1
        %v1465 = vrot.slane %v1343, 1
        %v1466 = vrot.slane %v1345, 1
        %v1467 = vrot.slane %v1348, 1
        %v1468 = vrot.slane %v1350, 1
        %v1469 = vrot.slane %v1353, 1
        %v1470 = vrot.slane %v1355, 1
        %v1471 = vrot.slane %v1358, 1
        %v1472 = vrot.slane %v1360, 1
        %v1473 = vrot.slane %v1363, 1
        %v1474 = vrot.slane %v1365, 1
        %v1475 = vrot.slane %v1368, 1
        %v1476 = vrot.slane %v1370, 1
        %v1477 = vrot.slane %v1373, 1
        %v1478 = vrot.slane %v1375, 1
        %v1479 = vrot.slane %v1378, 1
        %v1480 = vrot.slane %v1380, 1
        %v1481 = vrot.slane %v1383, 1
        %v1482 = vrot.slane %v1385, 1
        %v1483 = vrot.slane %v1388, 1
        %v1484 = vrot.slane %v1390, 1
        %v1485 = vrot.slane %v1393, 1
        %v1486 = vrot.slane %v1395, 1
        %v1487 = vrot.slane %v1398, 1
        %v1488 = vrot.slane %v1400, 1
        %v1489 = vrot.slane %v1403, 1
        %v1490 = vrot.slane %v1405, 1
        %v1491 = vrot.slane %v1408, 1
        %v1492 = vrot.slane %v1410, 1
        %v1493 = vrot.slane %v1413, 1
        %v1494 = vrot.slane %v1415, 1
        %v1495 = vrot.slane %v1418, 1
        %v1496 = vrot.slane %v1420, 1
        %v1497 = vrot.slane %v1423, 1
        %v1498 = vrot.slane %v1425, 1
        %v1499 = vrot.slane %v1428, 1
        %v1500 = vrot.slane %v1430, 1
        %v1501 = vrot.slane %v1433, 1
        %v1502 = vrot.slane %v1435, 1
        %v1503 = vrot.slane %v1438, 1
        %v1504 = vrot.slane %v1440, 1
        %v1505 = vrot.slane %v1443, 1
        %v1506 = vrot.slane %v1445, 1
        %v1507 = vrot.slane %v1448, 1
        %v1508 = vrot.slane %v1450, 1
        %v1509 = vrot.slane %v1453, 1
        %v1510 = vrot.slane %v1455, 1
        %vm1511 = vcmp.lt.s32.totalorder %v1049, 7
        %v1512 = vsel %vm1511, %v1509, %v1510
        %v1513 = vsel %vm1511, %v1508, %v1509
        %v1514 = vsel %vm1511, %v1507, %v1508
        %v1515 = vsel %vm1511, %v1506, %v1507
        %v1516 = vsel %vm1511, %v1505, %v1506
        %v1517 = vsel %vm1511, %v1504, %v1505
        %v1518 = vsel %vm1511, %v1503, %v1504
        %v1519 = vsel %vm1511, %v1502, %v1503
        %v1520 = vsel %vm1511, %v1501, %v1502
        %v1521 = vsel %vm1511, %v1500, %v1501
        %v1522 = vsel %vm1511, %v1499, %v1500
        %v1523 = vsel %vm1511, %v1498, %v1499
        %v1524 = vsel %vm1511, %v1497, %v1498
        %v1525 = vsel %vm1511, %v1496, %v1497
        %v1526 = vsel %vm1511, %v1495, %v1496
        %v1527 = vsel %vm1511, %v1494, %v1495
        %v1528 = vsel %vm1511, %v1493, %v1494
        %v1529 = vsel %vm1511, %v1492, %v1493
        %v1530 = vsel %vm1511, %v1491, %v1492
        %v1531 = vsel %vm1511, %v1490, %v1491
        %v1532 = vsel %vm1511, %v1489, %v1490
        %v1533 = vsel %vm1511, %v1488, %v1489
        %v1534 = vsel %vm1511, %v1487, %v1488
        %v1535 = vsel %vm1511, %v1486, %v1487
        %v1536 = vsel %vm1511, %v1485, %v1486
        %v1537 = vsel %vm1511, %v1484, %v1485
        %v1538 = vsel %vm1511, %v1483, %v1484
        %v1539 = vsel %vm1511, %v1482, %v1483
        %v1540 = vsel %vm1511, %v1481, %v1482
        %v1541 = vsel %vm1511, %v1480, %v1481
        %v1542 = vsel %vm1511, %v1479, %v1480
        %v1543 = vsel %vm1511, %v1478, %v1479
        %v1544 = vsel %vm1511, %v1477, %v1478
        %v1545 = vsel %vm1511, %v1476, %v1477
        %v1546 = vsel %vm1511, %v1475, %v1476
        %v1547 = vsel %vm1511, %v1474, %v1475
        %v1548 = vsel %vm1511, %v1473, %v1474
        %v1549 = vsel %vm1511, %v1472, %v1473
        %v1550 = vsel %vm1511, %v1471, %v1472
        %v1551 = vsel %vm1511, %v1470, %v1471
        %v1552 = vsel %vm1511, %v1469, %v1470
        %v1553 = vsel %vm1511, %v1468, %v1469
        %v1554 = vsel %vm1511, %v1467, %v1468
        %v1555 = vsel %vm1511, %v1466, %v1467
        %v1556 = vsel %vm1511, %v1465, %v1466
        %v1557 = vsel %vm1511, %v1464, %v1465
        %v1558 = vsel %vm1511, %v1463, %v1464
        %v1559 = vsel %vm1511, %v1462, %v1463
        %v1560 = vsel %vm1511, %v1461, %v1462
        %v1561 = vsel %vm1511, %v1460, %v1461
        %v1562 = vsel %vm1511, %v1459, %v1460
        %v1563 = vsel %vm1511, %v1458, %v1459
        %v1564 = vsel %vm1511, %v1457, %v1458
        %v1565 = vsel %vm1511, %v1510, %v1457
        %v1566 = vadd.f32 %v1254, %v1513
        %v1567 = vadd.f32 %v1255, %v1512
        %v1568 = vadd.f32 %v1256, %v1565
        %v1569 = vadd.f32 %v1257, %v1564
        %v1570 = vadd.f32 %v1258, %v1563
        %v1571 = vadd.f32 %v1259, %v1562
        %v1572 = vadd.f32 %v1260, %v1561
        %v1573 = vadd.f32 %v1261, %v1560
        %v1574 = vadd.f32 %v1262, %v1559
        %v1575 = vadd.f32 %v1263, %v1558
        %v1576 = vadd.f32 %v1264, %v1557
        %v1577 = vadd.f32 %v1265, %v1556
        %v1578 = vadd.f32 %v1266, %v1555
        %v1579 = vadd.f32 %v1267, %v1554
        %v1580 = vadd.f32 %v1268, %v1553
        %v1581 = vadd.f32 %v1269, %v1552
        %v1582 = vadd.f32 %v1270, %v1551
        %v1583 = vadd.f32 %v1271, %v1550
        %v1584 = vadd.f32 %v1272, %v1549
        %v1585 = vadd.f32 %v1273, %v1548
        %v1586 = vadd.f32 %v1274, %v1547
        %v1587 = vadd.f32 %v1275, %v1546
        %v1588 = vadd.f32 %v1276, %v1545
        %v1589 = vadd.f32 %v1277, %v1544
        %v1590 = vadd.f32 %v1278, %v1543
        %v1591 = vadd.f32 %v1279, %v1542
        %v1592 = vadd.f32 %v1280, %v1541
        %v1593 = vadd.f32 %v1281, %v1540
        %v1594 = vadd.f32 %v1282, %v1539
        %v1595 = vadd.f32 %v1283, %v1538
        %v1596 = vadd.f32 %v1284, %v1537
        %v1597 = vadd.f32 %v1285, %v1536
        %v1598 = vadd.f32 %v1286, %v1535
        %v1599 = vadd.f32 %v1287, %v1534
        %v1600 = vadd.f32 %v1288, %v1533
        %v1601 = vadd.f32 %v1289, %v1532
        %v1602 = vadd.f32 %v1290, %v1531
        %v1603 = vadd.f32 %v1291, %v1530
        %v1604 = vadd.f32 %v1292, %v1529
        %v1605 = vadd.f32 %v1293, %v1528
        %v1606 = vadd.f32 %v1294, %v1527
        %v1607 = vadd.f32 %v1295, %v1526
        %v1608 = vadd.f32 %v1296, %v1525
        %v1609 = vadd.f32 %v1297, %v1524
        %v1610 = vadd.f32 %v1298, %v1523
        %v1611 = vadd.f32 %v1299, %v1522
        %v1612 = vadd.f32 %v1300, %v1521
        %v1613 = vadd.f32 %v1301, %v1520
        %v1614 = vadd.f32 %v1302, %v1519
        %v1615 = vadd.f32 %v1303, %v1518
        %v1616 = vadd.f32 %v1304, %v1517
        %v1617 = vadd.f32 %v1305, %v1516
        %v1618 = vadd.f32 %v1306, %v1515
        %v1619 = vadd.f32 %v1307, %v1514
        %s1620 = scalar_lea.vmem %s2, 12
        %v1621 = vld [vmem:[%s1620] sm:$0xf]
        %v1623 = vsel %vm846, %v1621, 0
        %1625 = vmatpush.bf16.msra.mxu0 0
        %1626 = vmatpush.bf16.msra.mxu0 0
        %1627 = vmatpush.bf16.msra.mxu0 0
        %1628 = vmatpush.bf16.msra.mxu0 0
        %1629 = vmatpush.bf16.msra.mxu0 0
        %1630 = vmatpush.bf16.msra.mxu0 0
        %1631 = vmatpush.bf16.msra.mxu0 0
        %1632 = vmatpush.bf16.msra.mxu0 %v1623
        %1633 = vmatmul.bf16.gmra.mxu0 %v766
        %v1634 = vpop.f32.mrf.mxu0
        %v1635 = vadd.f32 0.0, %v1634
        %v1636 = vpop.f32.mrf.mxu0
        %v1637 = vadd.f32 0.0, %v1636
        %1638 = vmatmul.bf16.gmra.mxu0 %v769
        %v1639 = vpop.f32.mrf.mxu0
        %v1640 = vadd.f32 0.0, %v1639
        %v1641 = vpop.f32.mrf.mxu0
        %v1642 = vadd.f32 0.0, %v1641
        %1643 = vmatmul.bf16.gmra.mxu0 %v772
        %v1644 = vpop.f32.mrf.mxu0
        %v1645 = vadd.f32 0.0, %v1644
        %v1646 = vpop.f32.mrf.mxu0
        %v1647 = vadd.f32 0.0, %v1646
        %1648 = vmatmul.bf16.gmra.mxu0 %v775
        %v1649 = vpop.f32.mrf.mxu0
        %v1650 = vadd.f32 0.0, %v1649
        %v1651 = vpop.f32.mrf.mxu0
        %v1652 = vadd.f32 0.0, %v1651
        %1653 = vmatmul.bf16.gmra.mxu0 %v778
        %v1654 = vpop.f32.mrf.mxu0
        %v1655 = vadd.f32 0.0, %v1654
        %v1656 = vpop.f32.mrf.mxu0
        %v1657 = vadd.f32 0.0, %v1656
        %1658 = vmatmul.bf16.gmra.mxu0 %v781
        %v1659 = vpop.f32.mrf.mxu0
        %v1660 = vadd.f32 0.0, %v1659
        %v1661 = vpop.f32.mrf.mxu0
        %v1662 = vadd.f32 0.0, %v1661
        %1663 = vmatmul.bf16.gmra.mxu0 %v784
        %v1664 = vpop.f32.mrf.mxu0
        %v1665 = vadd.f32 0.0, %v1664
        %v1666 = vpop.f32.mrf.mxu0
        %v1667 = vadd.f32 0.0, %v1666
        %1668 = vmatmul.bf16.gmra.mxu0 %v787
        %v1669 = vpop.f32.mrf.mxu0
        %v1670 = vadd.f32 0.0, %v1669
        %v1671 = vpop.f32.mrf.mxu0
        %v1672 = vadd.f32 0.0, %v1671
        %1673 = vmatmul.bf16.gmra.mxu0 %v790
        %v1674 = vpop.f32.mrf.mxu0
        %v1675 = vadd.f32 0.0, %v1674
        %v1676 = vpop.f32.mrf.mxu0
        %v1677 = vadd.f32 0.0, %v1676
        %1678 = vmatmul.bf16.gmra.mxu0 %v793
        %v1679 = vpop.f32.mrf.mxu0
        %v1680 = vadd.f32 0.0, %v1679
        %v1681 = vpop.f32.mrf.mxu0
        %v1682 = vadd.f32 0.0, %v1681
        %1683 = vmatmul.bf16.gmra.mxu0 %v796
        %v1684 = vpop.f32.mrf.mxu0
        %v1685 = vadd.f32 0.0, %v1684
        %v1686 = vpop.f32.mrf.mxu0
        %v1687 = vadd.f32 0.0, %v1686
        %1688 = vmatmul.bf16.gmra.mxu0 %v799
        %v1689 = vpop.f32.mrf.mxu0
        %v1690 = vadd.f32 0.0, %v1689
        %v1691 = vpop.f32.mrf.mxu0
        %v1692 = vadd.f32 0.0, %v1691
        %1693 = vmatmul.bf16.gmra.mxu0 %v802
        %v1694 = vpop.f32.mrf.mxu0
        %v1695 = vadd.f32 0.0, %v1694
        %v1696 = vpop.f32.mrf.mxu0
        %v1697 = vadd.f32 0.0, %v1696
        %1698 = vmatmul.bf16.gmra.mxu0 %v805
        %v1699 = vpop.f32.mrf.mxu0
        %v1700 = vadd.f32 0.0, %v1699
        %v1701 = vpop.f32.mrf.mxu0
        %v1702 = vadd.f32 0.0, %v1701
        %1703 = vmatmul.bf16.gmra.mxu0 %v808
        %v1704 = vpop.f32.mrf.mxu0
        %v1705 = vadd.f32 0.0, %v1704
        %v1706 = vpop.f32.mrf.mxu0
        %v1707 = vadd.f32 0.0, %v1706
        %1708 = vmatmul.bf16.gmra.mxu0 %v811
        %v1709 = vpop.f32.mrf.mxu0
        %v1710 = vadd.f32 0.0, %v1709
        %v1711 = vpop.f32.mrf.mxu0
        %v1712 = vadd.f32 0.0, %v1711
        %1713 = vmatmul.bf16.gmra.mxu0 %v814
        %v1714 = vpop.f32.mrf.mxu0
        %v1715 = vadd.f32 0.0, %v1714
        %v1716 = vpop.f32.mrf.mxu0
        %v1717 = vadd.f32 0.0, %v1716
        %1718 = vmatmul.bf16.gmra.mxu0 %v817
        %v1719 = vpop.f32.mrf.mxu0
        %v1720 = vadd.f32 0.0, %v1719
        %v1721 = vpop.f32.mrf.mxu0
        %v1722 = vadd.f32 0.0, %v1721
        %1723 = vmatmul.bf16.gmra.mxu0 %v820
        %v1724 = vpop.f32.mrf.mxu0
        %v1725 = vadd.f32 0.0, %v1724
        %v1726 = vpop.f32.mrf.mxu0
        %v1727 = vadd.f32 0.0, %v1726
        %1728 = vmatmul.bf16.gmra.mxu0 %v823
        %v1729 = vpop.f32.mrf.mxu0
        %v1730 = vadd.f32 0.0, %v1729
        %v1731 = vpop.f32.mrf.mxu0
        %v1732 = vadd.f32 0.0, %v1731
        %1733 = vmatmul.bf16.gmra.mxu0 %v826
        %v1734 = vpop.f32.mrf.mxu0
        %v1735 = vadd.f32 0.0, %v1734
        %v1736 = vpop.f32.mrf.mxu0
        %v1737 = vadd.f32 0.0, %v1736
        %1738 = vmatmul.bf16.gmra.mxu0 %v829
        %v1739 = vpop.f32.mrf.mxu0
        %v1740 = vadd.f32 0.0, %v1739
        %v1741 = vpop.f32.mrf.mxu0
        %v1742 = vadd.f32 0.0, %v1741
        %1743 = vmatmul.bf16.gmra.mxu0 %v832
        %v1744 = vpop.f32.mrf.mxu0
        %v1745 = vadd.f32 0.0, %v1744
        %v1746 = vpop.f32.mrf.mxu0
        %v1747 = vadd.f32 0.0, %v1746
        %1748 = vmatmul.bf16.gmra.mxu0 %v835
        %v1749 = vpop.f32.mrf.mxu0
        %v1750 = vadd.f32 0.0, %v1749
        %v1751 = vpop.f32.mrf.mxu0
        %v1752 = vadd.f32 0.0, %v1751
        %1753 = vmatmul.bf16.gmra.mxu0 %v838
        %v1754 = vpop.f32.mrf.mxu0
        %v1755 = vadd.f32 0.0, %v1754
        %v1756 = vpop.f32.mrf.mxu0
        %v1757 = vadd.f32 0.0, %v1756
        %1758 = vmatmul.bf16.gmra.mxu0 %v841
        %v1759 = vpop.f32.mrf.mxu0
        %v1760 = vadd.f32 0.0, %v1759
        %v1761 = vpop.f32.mrf.mxu0
        %v1762 = vadd.f32 0.0, %v1761
        %1763 = vmatmul.bf16.gmra.mxu0 %v844
        %v1764 = vpop.f32.mrf.mxu0
        %v1765 = vadd.f32 0.0, %v1764
        %v1766 = vpop.f32.mrf.mxu0
        %v1767 = vadd.f32 0.0, %v1766
        %1768 = vdwg.mxu0
        %v1769 = vrot.slane %v1635, 7
        %v1770 = vrot.slane %v1637, 7
        %v1771 = vrot.slane %v1640, 7
        %v1772 = vrot.slane %v1642, 7
        %v1773 = vrot.slane %v1645, 7
        %v1774 = vrot.slane %v1647, 7
        %v1775 = vrot.slane %v1650, 7
        %v1776 = vrot.slane %v1652, 7
        %v1777 = vrot.slane %v1655, 7
        %v1778 = vrot.slane %v1657, 7
        %v1779 = vrot.slane %v1660, 7
        %v1780 = vrot.slane %v1662, 7
        %v1781 = vrot.slane %v1665, 7
        %v1782 = vrot.slane %v1667, 7
        %v1783 = vrot.slane %v1670, 7
        %v1784 = vrot.slane %v1672, 7
        %v1785 = vrot.slane %v1675, 7
        %v1786 = vrot.slane %v1677, 7
        %v1787 = vrot.slane %v1680, 7
        %v1788 = vrot.slane %v1682, 7
        %v1789 = vrot.slane %v1685, 7
        %v1790 = vrot.slane %v1687, 7
        %v1791 = vrot.slane %v1690, 7
        %v1792 = vrot.slane %v1692, 7
        %v1793 = vrot.slane %v1695, 7
        %v1794 = vrot.slane %v1697, 7
        %v1795 = vrot.slane %v1700, 7
        %v1796 = vrot.slane %v1702, 7
        %v1797 = vrot.slane %v1705, 7
        %v1798 = vrot.slane %v1707, 7
        %v1799 = vrot.slane %v1710, 7
        %v1800 = vrot.slane %v1712, 7
        %v1801 = vrot.slane %v1715, 7
        %v1802 = vrot.slane %v1717, 7
        %v1803 = vrot.slane %v1720, 7
        %v1804 = vrot.slane %v1722, 7
        %v1805 = vrot.slane %v1725, 7
        %v1806 = vrot.slane %v1727, 7
        %v1807 = vrot.slane %v1730, 7
        %v1808 = vrot.slane %v1732, 7
        %v1809 = vrot.slane %v1735, 7
        %v1810 = vrot.slane %v1737, 7
        %v1811 = vrot.slane %v1740, 7
        %v1812 = vrot.slane %v1742, 7
        %v1813 = vrot.slane %v1745, 7
        %v1814 = vrot.slane %v1747, 7
        %v1815 = vrot.slane %v1750, 7
        %v1816 = vrot.slane %v1752, 7
        %v1817 = vrot.slane %v1755, 7
        %v1818 = vrot.slane %v1757, 7
        %v1819 = vrot.slane %v1760, 7
        %v1820 = vrot.slane %v1762, 7
        %v1821 = vrot.slane %v1765, 7
        %v1822 = vrot.slane %v1767, 7
        %v1823 = vsel %vm1050, %v1821, %v1822
        %v1824 = vsel %vm1050, %v1820, %v1821
        %v1825 = vsel %vm1050, %v1819, %v1820
        %v1826 = vsel %vm1050, %v1818, %v1819
        %v1827 = vsel %vm1050, %v1817, %v1818
        %v1828 = vsel %vm1050, %v1816, %v1817
        %v1829 = vsel %vm1050, %v1815, %v1816
        %v1830 = vsel %vm1050, %v1814, %v1815
        %v1831 = vsel %vm1050, %v1813, %v1814
        %v1832 = vsel %vm1050, %v1812, %v1813
        %v1833 = vsel %vm1050, %v1811, %v1812
        %v1834 = vsel %vm1050, %v1810, %v1811
        %v1835 = vsel %vm1050, %v1809, %v1810
        %v1836 = vsel %vm1050, %v1808, %v1809
        %v1837 = vsel %vm1050, %v1807, %v1808
        %v1838 = vsel %vm1050, %v1806, %v1807
        %v1839 = vsel %vm1050, %v1805, %v1806
        %v1840 = vsel %vm1050, %v1804, %v1805
        %v1841 = vsel %vm1050, %v1803, %v1804
        %v1842 = vsel %vm1050, %v1802, %v1803
        %v1843 = vsel %vm1050, %v1801, %v1802
        %v1844 = vsel %vm1050, %v1800, %v1801
        %v1845 = vsel %vm1050, %v1799, %v1800
        %v1846 = vsel %vm1050, %v1798, %v1799
        %v1847 = vsel %vm1050, %v1797, %v1798
        %v1848 = vsel %vm1050, %v1796, %v1797
        %v1849 = vsel %vm1050, %v1795, %v1796
        %v1850 = vsel %vm1050, %v1794, %v1795
        %v1851 = vsel %vm1050, %v1793, %v1794
        %v1852 = vsel %vm1050, %v1792, %v1793
        %v1853 = vsel %vm1050, %v1791, %v1792
        %v1854 = vsel %vm1050, %v1790, %v1791
        %v1855 = vsel %vm1050, %v1789, %v1790
        %v1856 = vsel %vm1050, %v1788, %v1789
        %v1857 = vsel %vm1050, %v1787, %v1788
        %v1858 = vsel %vm1050, %v1786, %v1787
        %v1859 = vsel %vm1050, %v1785, %v1786
        %v1860 = vsel %vm1050, %v1784, %v1785
        %v1861 = vsel %vm1050, %v1783, %v1784
        %v1862 = vsel %vm1050, %v1782, %v1783
        %v1863 = vsel %vm1050, %v1781, %v1782
        %v1864 = vsel %vm1050, %v1780, %v1781
        %v1865 = vsel %vm1050, %v1779, %v1780
        %v1866 = vsel %vm1050, %v1778, %v1779
        %v1867 = vsel %vm1050, %v1777, %v1778
        %v1868 = vsel %vm1050, %v1776, %v1777
        %v1869 = vsel %vm1050, %v1775, %v1776
        %v1870 = vsel %vm1050, %v1774, %v1775
        %v1871 = vsel %vm1050, %v1773, %v1774
        %v1872 = vsel %vm1050, %v1772, %v1773
        %v1873 = vsel %vm1050, %v1771, %v1772
        %v1874 = vsel %vm1050, %v1770, %v1771
        %v1875 = vsel %vm1050, %v1769, %v1770
        %v1876 = vsel %vm1050, %v1822, %v1769
        %v1877 = vadd.f32 %v1566, %v1876
        %v1878 = vadd.f32 %v1567, %v1875
        %v1879 = vadd.f32 %v1568, %v1874
        %v1880 = vadd.f32 %v1569, %v1873
        %v1881 = vadd.f32 %v1570, %v1872
        %v1882 = vadd.f32 %v1571, %v1871
        %v1883 = vadd.f32 %v1572, %v1870
        %v1884 = vadd.f32 %v1573, %v1869
        %v1885 = vadd.f32 %v1574, %v1868
        %v1886 = vadd.f32 %v1575, %v1867
        %v1887 = vadd.f32 %v1576, %v1866
        %v1888 = vadd.f32 %v1577, %v1865
        %v1889 = vadd.f32 %v1578, %v1864
        %v1890 = vadd.f32 %v1579, %v1863
        %v1891 = vadd.f32 %v1580, %v1862
        %v1892 = vadd.f32 %v1581, %v1861
        %v1893 = vadd.f32 %v1582, %v1860
        %v1894 = vadd.f32 %v1583, %v1859
        %v1895 = vadd.f32 %v1584, %v1858
        %v1896 = vadd.f32 %v1585, %v1857
        %v1897 = vadd.f32 %v1586, %v1856
        %v1898 = vadd.f32 %v1587, %v1855
        %v1899 = vadd.f32 %v1588, %v1854
        %v1900 = vadd.f32 %v1589, %v1853
        %v1901 = vadd.f32 %v1590, %v1852
        %v1902 = vadd.f32 %v1591, %v1851
        %v1903 = vadd.f32 %v1592, %v1850
        %v1904 = vadd.f32 %v1593, %v1849
        %v1905 = vadd.f32 %v1594, %v1848
        %v1906 = vadd.f32 %v1595, %v1847
        %v1907 = vadd.f32 %v1596, %v1846
        %v1908 = vadd.f32 %v1597, %v1845
        %v1909 = vadd.f32 %v1598, %v1844
        %v1910 = vadd.f32 %v1599, %v1843
        %v1911 = vadd.f32 %v1600, %v1842
        %v1912 = vadd.f32 %v1601, %v1841
        %v1913 = vadd.f32 %v1602, %v1840
        %v1914 = vadd.f32 %v1603, %v1839
        %v1915 = vadd.f32 %v1604, %v1838
        %v1916 = vadd.f32 %v1605, %v1837
        %v1917 = vadd.f32 %v1606, %v1836
        %v1918 = vadd.f32 %v1607, %v1835
        %v1919 = vadd.f32 %v1608, %v1834
        %v1920 = vadd.f32 %v1609, %v1833
        %v1921 = vadd.f32 %v1610, %v1832
        %v1922 = vadd.f32 %v1611, %v1831
        %v1923 = vadd.f32 %v1612, %v1830
        %v1924 = vadd.f32 %v1613, %v1829
        %v1925 = vadd.f32 %v1614, %v1828
        %v1926 = vadd.f32 %v1615, %v1827
        %v1927 = vadd.f32 %v1616, %v1826
        %v1928 = vadd.f32 %v1617, %v1825
        %v1929 = vadd.f32 %v1618, %v1824
        %v1930 = vadd.f32 %v1619, %v1823
        %s1931 = scalar_lea.vmem %s2, 16
        %v1932 = vld [vmem:[%s1931] sm:$0xf]
        %v1934 = vsel %vm846, %v1932, 0
        %1936 = vmatpush.bf16.msra.mxu0 0
        %1937 = vmatpush.bf16.msra.mxu0 0
        %1938 = vmatpush.bf16.msra.mxu0 0
        %1939 = vmatpush.bf16.msra.mxu0 0
        %1940 = vmatpush.bf16.msra.mxu0 0
        %1941 = vmatpush.bf16.msra.mxu0 0
        %1942 = vmatpush.bf16.msra.mxu0 0
        %1943 = vmatpush.bf16.msra.mxu0 %v1934
        %1944 = vmatmul.bf16.gmra.mxu0 %v766
        %v1945 = vpop.f32.mrf.mxu0
        %v1946 = vadd.f32 0.0, %v1945
        %v1947 = vpop.f32.mrf.mxu0
        %v1948 = vadd.f32 0.0, %v1947
        %1949 = vmatmul.bf16.gmra.mxu0 %v769
        %v1950 = vpop.f32.mrf.mxu0
        %v1951 = vadd.f32 0.0, %v1950
        %v1952 = vpop.f32.mrf.mxu0
        %v1953 = vadd.f32 0.0, %v1952
        %1954 = vmatmul.bf16.gmra.mxu0 %v772
        %v1955 = vpop.f32.mrf.mxu0
        %v1956 = vadd.f32 0.0, %v1955
        %v1957 = vpop.f32.mrf.mxu0
        %v1958 = vadd.f32 0.0, %v1957
        %1959 = vmatmul.bf16.gmra.mxu0 %v775
        %v1960 = vpop.f32.mrf.mxu0
        %v1961 = vadd.f32 0.0, %v1960
        %v1962 = vpop.f32.mrf.mxu0
        %v1963 = vadd.f32 0.0, %v1962
        %1964 = vmatmul.bf16.gmra.mxu0 %v778
        %v1965 = vpop.f32.mrf.mxu0
        %v1966 = vadd.f32 0.0, %v1965
        %v1967 = vpop.f32.mrf.mxu0
        %v1968 = vadd.f32 0.0, %v1967
        %1969 = vmatmul.bf16.gmra.mxu0 %v781
        %v1970 = vpop.f32.mrf.mxu0
        %v1971 = vadd.f32 0.0, %v1970
        %v1972 = vpop.f32.mrf.mxu0
        %v1973 = vadd.f32 0.0, %v1972
        %1974 = vmatmul.bf16.gmra.mxu0 %v784
        %v1975 = vpop.f32.mrf.mxu0
        %v1976 = vadd.f32 0.0, %v1975
        %v1977 = vpop.f32.mrf.mxu0
        %v1978 = vadd.f32 0.0, %v1977
        %1979 = vmatmul.bf16.gmra.mxu0 %v787
        %v1980 = vpop.f32.mrf.mxu0
        %v1981 = vadd.f32 0.0, %v1980
        %v1982 = vpop.f32.mrf.mxu0
        %v1983 = vadd.f32 0.0, %v1982
        %1984 = vmatmul.bf16.gmra.mxu0 %v790
        %v1985 = vpop.f32.mrf.mxu0
        %v1986 = vadd.f32 0.0, %v1985
        %v1987 = vpop.f32.mrf.mxu0
        %v1988 = vadd.f32 0.0, %v1987
        %1989 = vmatmul.bf16.gmra.mxu0 %v793
        %v1990 = vpop.f32.mrf.mxu0
        %v1991 = vadd.f32 0.0, %v1990
        %v1992 = vpop.f32.mrf.mxu0
        %v1993 = vadd.f32 0.0, %v1992
        %1994 = vmatmul.bf16.gmra.mxu0 %v796
        %v1995 = vpop.f32.mrf.mxu0
        %v1996 = vadd.f32 0.0, %v1995
        %v1997 = vpop.f32.mrf.mxu0
        %v1998 = vadd.f32 0.0, %v1997
        %1999 = vmatmul.bf16.gmra.mxu0 %v799
        %v2000 = vpop.f32.mrf.mxu0
        %v2001 = vadd.f32 0.0, %v2000
        %v2002 = vpop.f32.mrf.mxu0
        %v2003 = vadd.f32 0.0, %v2002
        %2004 = vmatmul.bf16.gmra.mxu0 %v802
        %v2005 = vpop.f32.mrf.mxu0
        %v2006 = vadd.f32 0.0, %v2005
        %v2007 = vpop.f32.mrf.mxu0
        %v2008 = vadd.f32 0.0, %v2007
        %2009 = vmatmul.bf16.gmra.mxu0 %v805
        %v2010 = vpop.f32.mrf.mxu0
        %v2011 = vadd.f32 0.0, %v2010
        %v2012 = vpop.f32.mrf.mxu0
        %v2013 = vadd.f32 0.0, %v2012
        %2014 = vmatmul.bf16.gmra.mxu0 %v808
        %v2015 = vpop.f32.mrf.mxu0
        %v2016 = vadd.f32 0.0, %v2015
        %v2017 = vpop.f32.mrf.mxu0
        %v2018 = vadd.f32 0.0, %v2017
        %2019 = vmatmul.bf16.gmra.mxu0 %v811
        %v2020 = vpop.f32.mrf.mxu0
        %v2021 = vadd.f32 0.0, %v2020
        %v2022 = vpop.f32.mrf.mxu0
        %v2023 = vadd.f32 0.0, %v2022
        %2024 = vmatmul.bf16.gmra.mxu0 %v814
        %v2025 = vpop.f32.mrf.mxu0
        %v2026 = vadd.f32 0.0, %v2025
        %v2027 = vpop.f32.mrf.mxu0
        %v2028 = vadd.f32 0.0, %v2027
        %2029 = vmatmul.bf16.gmra.mxu0 %v817
        %v2030 = vpop.f32.mrf.mxu0
        %v2031 = vadd.f32 0.0, %v2030
        %v2032 = vpop.f32.mrf.mxu0
        %v2033 = vadd.f32 0.0, %v2032
        %2034 = vmatmul.bf16.gmra.mxu0 %v820
        %v2035 = vpop.f32.mrf.mxu0
        %v2036 = vadd.f32 0.0, %v2035
        %v2037 = vpop.f32.mrf.mxu0
        %v2038 = vadd.f32 0.0, %v2037
        %2039 = vmatmul.bf16.gmra.mxu0 %v823
        %v2040 = vpop.f32.mrf.mxu0
        %v2041 = vadd.f32 0.0, %v2040
        %v2042 = vpop.f32.mrf.mxu0
        %v2043 = vadd.f32 0.0, %v2042
        %2044 = vmatmul.bf16.gmra.mxu0 %v826
        %v2045 = vpop.f32.mrf.mxu0
        %v2046 = vadd.f32 0.0, %v2045
        %v2047 = vpop.f32.mrf.mxu0
        %v2048 = vadd.f32 0.0, %v2047
        %2049 = vmatmul.bf16.gmra.mxu0 %v829
        %v2050 = vpop.f32.mrf.mxu0
        %v2051 = vadd.f32 0.0, %v2050
        %v2052 = vpop.f32.mrf.mxu0
        %v2053 = vadd.f32 0.0, %v2052
        %2054 = vmatmul.bf16.gmra.mxu0 %v832
        %v2055 = vpop.f32.mrf.mxu0
        %v2056 = vadd.f32 0.0, %v2055
        %v2057 = vpop.f32.mrf.mxu0
        %v2058 = vadd.f32 0.0, %v2057
        %2059 = vmatmul.bf16.gmra.mxu0 %v835
        %v2060 = vpop.f32.mrf.mxu0
        %v2061 = vadd.f32 0.0, %v2060
        %v2062 = vpop.f32.mrf.mxu0
        %v2063 = vadd.f32 0.0, %v2062
        %2064 = vmatmul.bf16.gmra.mxu0 %v838
        %v2065 = vpop.f32.mrf.mxu0
        %v2066 = vadd.f32 0.0, %v2065
        %v2067 = vpop.f32.mrf.mxu0
        %v2068 = vadd.f32 0.0, %v2067
        %2069 = vmatmul.bf16.gmra.mxu0 %v841
        %v2070 = vpop.f32.mrf.mxu0
        %v2071 = vadd.f32 0.0, %v2070
        %v2072 = vpop.f32.mrf.mxu0
        %v2073 = vadd.f32 0.0, %v2072
        %2074 = vmatmul.bf16.gmra.mxu0 %v844
        %v2075 = vpop.f32.mrf.mxu0
        %v2076 = vadd.f32 0.0, %v2075
        %v2077 = vpop.f32.mrf.mxu0
        %v2078 = vadd.f32 0.0, %v2077
        %2079 = vdwg.mxu0
        %v2080 = vadd.f32 %v1877, %v1946
        %v2081 = vadd.f32 %v1878, %v1948
        %v2082 = vadd.f32 %v1879, %v1951
        %v2083 = vadd.f32 %v1880, %v1953
        %v2084 = vadd.f32 %v1881, %v1956
        %v2085 = vadd.f32 %v1882, %v1958
        %v2086 = vadd.f32 %v1883, %v1961
        %v2087 = vadd.f32 %v1884, %v1963
        %v2088 = vadd.f32 %v1885, %v1966
        %v2089 = vadd.f32 %v1886, %v1968
        %v2090 = vadd.f32 %v1887, %v1971
        %v2091 = vadd.f32 %v1888, %v1973
        %v2092 = vadd.f32 %v1889, %v1976
        %v2093 = vadd.f32 %v1890, %v1978
        %v2094 = vadd.f32 %v1891, %v1981
        %v2095 = vadd.f32 %v1892, %v1983
        %v2096 = vadd.f32 %v1893, %v1986
        %v2097 = vadd.f32 %v1894, %v1988
        %v2098 = vadd.f32 %v1895, %v1991
        %v2099 = vadd.f32 %v1896, %v1993
        %v2100 = vadd.f32 %v1897, %v1996
        %v2101 = vadd.f32 %v1898, %v1998
        %v2102 = vadd.f32 %v1899, %v2001
        %v2103 = vadd.f32 %v1900, %v2003
        %v2104 = vadd.f32 %v1901, %v2006
        %v2105 = vadd.f32 %v1902, %v2008
        %v2106 = vadd.f32 %v1903, %v2011
        %v2107 = vadd.f32 %v1904, %v2013
        %v2108 = vadd.f32 %v1905, %v2016
        %v2109 = vadd.f32 %v1906, %v2018
        %v2110 = vadd.f32 %v1907, %v2021
        %v2111 = vadd.f32 %v1908, %v2023
        %v2112 = vadd.f32 %v1909, %v2026
        %v2113 = vadd.f32 %v1910, %v2028
        %v2114 = vadd.f32 %v1911, %v2031
        %v2115 = vadd.f32 %v1912, %v2033
        %v2116 = vadd.f32 %v1913, %v2036
        %v2117 = vadd.f32 %v1914, %v2038
        %v2118 = vadd.f32 %v1915, %v2041
        %v2119 = vadd.f32 %v1916, %v2043
        %v2120 = vadd.f32 %v1917, %v2046
        %v2121 = vadd.f32 %v1918, %v2048
        %v2122 = vadd.f32 %v1919, %v2051
        %v2123 = vadd.f32 %v1920, %v2053
        %v2124 = vadd.f32 %v1921, %v2056
        %v2125 = vadd.f32 %v1922, %v2058
        %v2126 = vadd.f32 %v1923, %v2061
        %v2127 = vadd.f32 %v1924, %v2063
        %v2128 = vadd.f32 %v1925, %v2066
        %v2129 = vadd.f32 %v1926, %v2068
        %v2130 = vadd.f32 %v1927, %v2071
        %v2131 = vadd.f32 %v1928, %v2073
        %v2132 = vadd.f32 %v1929, %v2076
        %v2133 = vadd.f32 %v1930, %v2078
        %s2134 = scalar_lea.vmem %s2, 20
        %v2135 = vld [vmem:[%s2134] sm:$0xf]
        %v2137 = vsel %vm846, %v2135, 0
        %2139 = vmatpush.bf16.msra.mxu0 0
        %2140 = vmatpush.bf16.msra.mxu0 0
        %2141 = vmatpush.bf16.msra.mxu0 0
        %2142 = vmatpush.bf16.msra.mxu0 0
        %2143 = vmatpush.bf16.msra.mxu0 0
        %2144 = vmatpush.bf16.msra.mxu0 0
        %2145 = vmatpush.bf16.msra.mxu0 0
        %2146 = vmatpush.bf16.msra.mxu0 %v2137
        %2147 = vmatmul.bf16.gmra.mxu0 %v766
        %v2148 = vpop.f32.mrf.mxu0
        %v2149 = vadd.f32 0.0, %v2148
        %v2150 = vpop.f32.mrf.mxu0
        %v2151 = vadd.f32 0.0, %v2150
        %2152 = vmatmul.bf16.gmra.mxu0 %v769
        %v2153 = vpop.f32.mrf.mxu0
        %v2154 = vadd.f32 0.0, %v2153
        %v2155 = vpop.f32.mrf.mxu0
        %v2156 = vadd.f32 0.0, %v2155
        %2157 = vmatmul.bf16.gmra.mxu0 %v772
        %v2158 = vpop.f32.mrf.mxu0
        %v2159 = vadd.f32 0.0, %v2158
        %v2160 = vpop.f32.mrf.mxu0
        %v2161 = vadd.f32 0.0, %v2160
        %2162 = vmatmul.bf16.gmra.mxu0 %v775
        %v2163 = vpop.f32.mrf.mxu0
        %v2164 = vadd.f32 0.0, %v2163
        %v2165 = vpop.f32.mrf.mxu0
        %v2166 = vadd.f32 0.0, %v2165
        %2167 = vmatmul.bf16.gmra.mxu0 %v778
        %v2168 = vpop.f32.mrf.mxu0
        %v2169 = vadd.f32 0.0, %v2168
        %v2170 = vpop.f32.mrf.mxu0
        %v2171 = vadd.f32 0.0, %v2170
        %2172 = vmatmul.bf16.gmra.mxu0 %v781
        %v2173 = vpop.f32.mrf.mxu0
        %v2174 = vadd.f32 0.0, %v2173
        %v2175 = vpop.f32.mrf.mxu0
        %v2176 = vadd.f32 0.0, %v2175
        %2177 = vmatmul.bf16.gmra.mxu0 %v784
        %v2178 = vpop.f32.mrf.mxu0
        %v2179 = vadd.f32 0.0, %v2178
        %v2180 = vpop.f32.mrf.mxu0
        %v2181 = vadd.f32 0.0, %v2180
        %2182 = vmatmul.bf16.gmra.mxu0 %v787
        %v2183 = vpop.f32.mrf.mxu0
        %v2184 = vadd.f32 0.0, %v2183
        %v2185 = vpop.f32.mrf.mxu0
        %v2186 = vadd.f32 0.0, %v2185
        %2187 = vmatmul.bf16.gmra.mxu0 %v790
        %v2188 = vpop.f32.mrf.mxu0
        %v2189 = vadd.f32 0.0, %v2188
        %v2190 = vpop.f32.mrf.mxu0
        %v2191 = vadd.f32 0.0, %v2190
        %2192 = vmatmul.bf16.gmra.mxu0 %v793
        %v2193 = vpop.f32.mrf.mxu0
        %v2194 = vadd.f32 0.0, %v2193
        %v2195 = vpop.f32.mrf.mxu0
        %v2196 = vadd.f32 0.0, %v2195
        %2197 = vmatmul.bf16.gmra.mxu0 %v796
        %v2198 = vpop.f32.mrf.mxu0
        %v2199 = vadd.f32 0.0, %v2198
        %v2200 = vpop.f32.mrf.mxu0
        %v2201 = vadd.f32 0.0, %v2200
        %2202 = vmatmul.bf16.gmra.mxu0 %v799
        %v2203 = vpop.f32.mrf.mxu0
        %v2204 = vadd.f32 0.0, %v2203
        %v2205 = vpop.f32.mrf.mxu0
        %v2206 = vadd.f32 0.0, %v2205
        %2207 = vmatmul.bf16.gmra.mxu0 %v802
        %v2208 = vpop.f32.mrf.mxu0
        %v2209 = vadd.f32 0.0, %v2208
        %v2210 = vpop.f32.mrf.mxu0
        %v2211 = vadd.f32 0.0, %v2210
        %2212 = vmatmul.bf16.gmra.mxu0 %v805
        %v2213 = vpop.f32.mrf.mxu0
        %v2214 = vadd.f32 0.0, %v2213
        %v2215 = vpop.f32.mrf.mxu0
        %v2216 = vadd.f32 0.0, %v2215
        %2217 = vmatmul.bf16.gmra.mxu0 %v808
        %v2218 = vpop.f32.mrf.mxu0
        %v2219 = vadd.f32 0.0, %v2218
        %v2220 = vpop.f32.mrf.mxu0
        %v2221 = vadd.f32 0.0, %v2220
        %2222 = vmatmul.bf16.gmra.mxu0 %v811
        %v2223 = vpop.f32.mrf.mxu0
        %v2224 = vadd.f32 0.0, %v2223
        %v2225 = vpop.f32.mrf.mxu0
        %v2226 = vadd.f32 0.0, %v2225
        %2227 = vmatmul.bf16.gmra.mxu0 %v814
        %v2228 = vpop.f32.mrf.mxu0
        %v2229 = vadd.f32 0.0, %v2228
        %v2230 = vpop.f32.mrf.mxu0
        %v2231 = vadd.f32 0.0, %v2230
        %2232 = vmatmul.bf16.gmra.mxu0 %v817
        %v2233 = vpop.f32.mrf.mxu0
        %v2234 = vadd.f32 0.0, %v2233
        %v2235 = vpop.f32.mrf.mxu0
        %v2236 = vadd.f32 0.0, %v2235
        %2237 = vmatmul.bf16.gmra.mxu0 %v820
        %v2238 = vpop.f32.mrf.mxu0
        %v2239 = vadd.f32 0.0, %v2238
        %v2240 = vpop.f32.mrf.mxu0
        %v2241 = vadd.f32 0.0, %v2240
        %2242 = vmatmul.bf16.gmra.mxu0 %v823
        %v2243 = vpop.f32.mrf.mxu0
        %v2244 = vadd.f32 0.0, %v2243
        %v2245 = vpop.f32.mrf.mxu0
        %v2246 = vadd.f32 0.0, %v2245
        %2247 = vmatmul.bf16.gmra.mxu0 %v826
        %v2248 = vpop.f32.mrf.mxu0
        %v2249 = vadd.f32 0.0, %v2248
        %v2250 = vpop.f32.mrf.mxu0
        %v2251 = vadd.f32 0.0, %v2250
        %2252 = vmatmul.bf16.gmra.mxu0 %v829
        %v2253 = vpop.f32.mrf.mxu0
        %v2254 = vadd.f32 0.0, %v2253
        %v2255 = vpop.f32.mrf.mxu0
        %v2256 = vadd.f32 0.0, %v2255
        %2257 = vmatmul.bf16.gmra.mxu0 %v832
        %v2258 = vpop.f32.mrf.mxu0
        %v2259 = vadd.f32 0.0, %v2258
        %v2260 = vpop.f32.mrf.mxu0
        %v2261 = vadd.f32 0.0, %v2260
        %2262 = vmatmul.bf16.gmra.mxu0 %v835
        %v2263 = vpop.f32.mrf.mxu0
        %v2264 = vadd.f32 0.0, %v2263
        %v2265 = vpop.f32.mrf.mxu0
        %v2266 = vadd.f32 0.0, %v2265
        %2267 = vmatmul.bf16.gmra.mxu0 %v838
        %v2268 = vpop.f32.mrf.mxu0
        %v2269 = vadd.f32 0.0, %v2268
        %v2270 = vpop.f32.mrf.mxu0
        %v2271 = vadd.f32 0.0, %v2270
        %2272 = vmatmul.bf16.gmra.mxu0 %v841
        %v2273 = vpop.f32.mrf.mxu0
        %v2274 = vadd.f32 0.0, %v2273
        %v2275 = vpop.f32.mrf.mxu0
        %v2276 = vadd.f32 0.0, %v2275
        %2277 = vmatmul.bf16.gmra.mxu0 %v844
        %v2278 = vpop.f32.mrf.mxu0
        %v2279 = vadd.f32 0.0, %v2278
        %v2280 = vpop.f32.mrf.mxu0
        %v2281 = vadd.f32 0.0, %v2280
        %2282 = vdwg.mxu0
        %v2283 = vrot.slane %v2149, 1
        %v2284 = vrot.slane %v2151, 1
        %v2285 = vrot.slane %v2154, 1
        %v2286 = vrot.slane %v2156, 1
        %v2287 = vrot.slane %v2159, 1
        %v2288 = vrot.slane %v2161, 1
        %v2289 = vrot.slane %v2164, 1
        %v2290 = vrot.slane %v2166, 1
        %v2291 = vrot.slane %v2169, 1
        %v2292 = vrot.slane %v2171, 1
        %v2293 = vrot.slane %v2174, 1
        %v2294 = vrot.slane %v2176, 1
        %v2295 = vrot.slane %v2179, 1
        %v2296 = vrot.slane %v2181, 1
        %v2297 = vrot.slane %v2184, 1
        %v2298 = vrot.slane %v2186, 1
        %v2299 = vrot.slane %v2189, 1
        %v2300 = vrot.slane %v2191, 1
        %v2301 = vrot.slane %v2194, 1
        %v2302 = vrot.slane %v2196, 1
        %v2303 = vrot.slane %v2199, 1
        %v2304 = vrot.slane %v2201, 1
        %v2305 = vrot.slane %v2204, 1
        %v2306 = vrot.slane %v2206, 1
        %v2307 = vrot.slane %v2209, 1
        %v2308 = vrot.slane %v2211, 1
        %v2309 = vrot.slane %v2214, 1
        %v2310 = vrot.slane %v2216, 1
        %v2311 = vrot.slane %v2219, 1
        %v2312 = vrot.slane %v2221, 1
        %v2313 = vrot.slane %v2224, 1
        %v2314 = vrot.slane %v2226, 1
        %v2315 = vrot.slane %v2229, 1
        %v2316 = vrot.slane %v2231, 1
        %v2317 = vrot.slane %v2234, 1
        %v2318 = vrot.slane %v2236, 1
        %v2319 = vrot.slane %v2239, 1
        %v2320 = vrot.slane %v2241, 1
        %v2321 = vrot.slane %v2244, 1
        %v2322 = vrot.slane %v2246, 1
        %v2323 = vrot.slane %v2249, 1
        %v2324 = vrot.slane %v2251, 1
        %v2325 = vrot.slane %v2254, 1
        %v2326 = vrot.slane %v2256, 1
        %v2327 = vrot.slane %v2259, 1
        %v2328 = vrot.slane %v2261, 1
        %v2329 = vrot.slane %v2264, 1
        %v2330 = vrot.slane %v2266, 1
        %v2331 = vrot.slane %v2269, 1
        %v2332 = vrot.slane %v2271, 1
        %v2333 = vrot.slane %v2274, 1
        %v2334 = vrot.slane %v2276, 1
        %v2335 = vrot.slane %v2279, 1
        %v2336 = vrot.slane %v2281, 1
        %v2337 = vsel %vm1511, %v2335, %v2336
        %v2338 = vsel %vm1511, %v2334, %v2335
        %v2339 = vsel %vm1511, %v2333, %v2334
        %v2340 = vsel %vm1511, %v2332, %v2333
        %v2341 = vsel %vm1511, %v2331, %v2332
        %v2342 = vsel %vm1511, %v2330, %v2331
        %v2343 = vsel %vm1511, %v2329, %v2330
        %v2344 = vsel %vm1511, %v2328, %v2329
        %v2345 = vsel %vm1511, %v2327, %v2328
        %v2346 = vsel %vm1511, %v2326, %v2327
        %v2347 = vsel %vm1511, %v2325, %v2326
        %v2348 = vsel %vm1511, %v2324, %v2325
        %v2349 = vsel %vm1511, %v2323, %v2324
        %v2350 = vsel %vm1511, %v2322, %v2323
        %v2351 = vsel %vm1511, %v2321, %v2322
        %v2352 = vsel %vm1511, %v2320, %v2321
        %v2353 = vsel %vm1511, %v2319, %v2320
        %v2354 = vsel %vm1511, %v2318, %v2319
        %v2355 = vsel %vm1511, %v2317, %v2318
        %v2356 = vsel %vm1511, %v2316, %v2317
        %v2357 = vsel %vm1511, %v2315, %v2316
        %v2358 = vsel %vm1511, %v2314, %v2315
        %v2359 = vsel %vm1511, %v2313, %v2314
        %v2360 = vsel %vm1511, %v2312, %v2313
        %v2361 = vsel %vm1511, %v2311, %v2312
        %v2362 = vsel %vm1511, %v2310, %v2311
        %v2363 = vsel %vm1511, %v2309, %v2310
        %v2364 = vsel %vm1511, %v2308, %v2309
        %v2365 = vsel %vm1511, %v2307, %v2308
        %v2366 = vsel %vm1511, %v2306, %v2307
        %v2367 = vsel %vm1511, %v2305, %v2306
        %v2368 = vsel %vm1511, %v2304, %v2305
        %v2369 = vsel %vm1511, %v2303, %v2304
        %v2370 = vsel %vm1511, %v2302, %v2303
        %v2371 = vsel %vm1511, %v2301, %v2302
        %v2372 = vsel %vm1511, %v2300, %v2301
        %v2373 = vsel %vm1511, %v2299, %v2300
        %v2374 = vsel %vm1511, %v2298, %v2299
        %v2375 = vsel %vm1511, %v2297, %v2298
        %v2376 = vsel %vm1511, %v2296, %v2297
        %v2377 = vsel %vm1511, %v2295, %v2296
        %v2378 = vsel %vm1511, %v2294, %v2295
        %v2379 = vsel %vm1511, %v2293, %v2294
        %v2380 = vsel %vm1511, %v2292, %v2293
        %v2381 = vsel %vm1511, %v2291, %v2292
        %v2382 = vsel %vm1511, %v2290, %v2291
        %v2383 = vsel %vm1511, %v2289, %v2290
        %v2384 = vsel %vm1511, %v2288, %v2289
        %v2385 = vsel %vm1511, %v2287, %v2288
        %v2386 = vsel %vm1511, %v2286, %v2287
        %v2387 = vsel %vm1511, %v2285, %v2286
        %v2388 = vsel %vm1511, %v2284, %v2285
        %v2389 = vsel %vm1511, %v2283, %v2284
        %v2390 = vsel %vm1511, %v2336, %v2283
        %v2391 = vadd.f32 %v2080, %v2389
        %v2392 = vadd.f32 %v2081, %v2388
        %v2393 = vadd.f32 %v2082, %v2387
        %v2394 = vadd.f32 %v2083, %v2386
        %v2395 = vadd.f32 %v2084, %v2385
        %v2396 = vadd.f32 %v2085, %v2384
        %v2397 = vadd.f32 %v2086, %v2383
        %v2398 = vadd.f32 %v2087, %v2382
        %v2399 = vadd.f32 %v2088, %v2381
        %v2400 = vadd.f32 %v2089, %v2380
        %v2401 = vadd.f32 %v2090, %v2379
        %v2402 = vadd.f32 %v2091, %v2378
        %v2403 = vadd.f32 %v2092, %v2377
        %v2404 = vadd.f32 %v2093, %v2376
        %v2405 = vadd.f32 %v2094, %v2375
        %v2406 = vadd.f32 %v2095, %v2374
        %v2407 = vadd.f32 %v2096, %v2373
        %v2408 = vadd.f32 %v2097, %v2372
        %v2409 = vadd.f32 %v2098, %v2371
        %v2410 = vadd.f32 %v2099, %v2370
        %v2411 = vadd.f32 %v2100, %v2369
        %v2412 = vadd.f32 %v2101, %v2368
        %v2413 = vadd.f32 %v2102, %v2367
        %v2414 = vadd.f32 %v2103, %v2366
        %v2415 = vadd.f32 %v2104, %v2365
        %v2416 = vadd.f32 %v2105, %v2364
        %v2417 = vadd.f32 %v2106, %v2363
        %v2418 = vadd.f32 %v2107, %v2362
        %v2419 = vadd.f32 %v2108, %v2361
        %v2420 = vadd.f32 %v2109, %v2360
        %v2421 = vadd.f32 %v2110, %v2359
        %v2422 = vadd.f32 %v2111, %v2358
        %v2423 = vadd.f32 %v2112, %v2357
        %v2424 = vadd.f32 %v2113, %v2356
        %v2425 = vadd.f32 %v2114, %v2355
        %v2426 = vadd.f32 %v2115, %v2354
        %v2427 = vadd.f32 %v2116, %v2353
        %v2428 = vadd.f32 %v2117, %v2352
        %v2429 = vadd.f32 %v2118, %v2351
        %v2430 = vadd.f32 %v2119, %v2350
        %v2431 = vadd.f32 %v2120, %v2349
        %v2432 = vadd.f32 %v2121, %v2348
        %v2433 = vadd.f32 %v2122, %v2347
        %v2434 = vadd.f32 %v2123, %v2346
        %v2435 = vadd.f32 %v2124, %v2345
        %v2436 = vadd.f32 %v2125, %v2344
        %v2437 = vadd.f32 %v2126, %v2343
        %v2438 = vadd.f32 %v2127, %v2342
        %v2439 = vadd.f32 %v2128, %v2341
        %v2440 = vadd.f32 %v2129, %v2340
        %v2441 = vadd.f32 %v2130, %v2339
        %v2442 = vadd.f32 %v2131, %v2338
        %v2443 = vadd.f32 %v2132, %v2337
        %v2444 = vadd.f32 %v2133, %v2390
        %s2445 = scalar_lea.vmem %s2, 24
        %v2446 = vld [vmem:[%s2445] sm:$0xf]
        %v2448 = vsel %vm846, %v2446, 0
        %2450 = vmatpush.bf16.msra.mxu0 0
        %2451 = vmatpush.bf16.msra.mxu0 0
        %2452 = vmatpush.bf16.msra.mxu0 0
        %2453 = vmatpush.bf16.msra.mxu0 0
        %2454 = vmatpush.bf16.msra.mxu0 0
        %2455 = vmatpush.bf16.msra.mxu0 0
        %2456 = vmatpush.bf16.msra.mxu0 0
        %2457 = vmatpush.bf16.msra.mxu0 %v2448
        %2458 = vmatmul.bf16.gmra.mxu0 %v766
        %v2459 = vpop.f32.mrf.mxu0
        %v2460 = vadd.f32 0.0, %v2459
        %v2461 = vpop.f32.mrf.mxu0
        %v2462 = vadd.f32 0.0, %v2461
        %2463 = vmatmul.bf16.gmra.mxu0 %v769
        %v2464 = vpop.f32.mrf.mxu0
        %v2465 = vadd.f32 0.0, %v2464
        %v2466 = vpop.f32.mrf.mxu0
        %v2467 = vadd.f32 0.0, %v2466
        %2468 = vmatmul.bf16.gmra.mxu0 %v772
        %v2469 = vpop.f32.mrf.mxu0
        %v2470 = vadd.f32 0.0, %v2469
        %v2471 = vpop.f32.mrf.mxu0
        %v2472 = vadd.f32 0.0, %v2471
        %2473 = vmatmul.bf16.gmra.mxu0 %v775
        %v2474 = vpop.f32.mrf.mxu0
        %v2475 = vadd.f32 0.0, %v2474
        %v2476 = vpop.f32.mrf.mxu0
        %v2477 = vadd.f32 0.0, %v2476
        %2478 = vmatmul.bf16.gmra.mxu0 %v778
        %v2479 = vpop.f32.mrf.mxu0
        %v2480 = vadd.f32 0.0, %v2479
        %v2481 = vpop.f32.mrf.mxu0
        %v2482 = vadd.f32 0.0, %v2481
        %2483 = vmatmul.bf16.gmra.mxu0 %v781
        %v2484 = vpop.f32.mrf.mxu0
        %v2485 = vadd.f32 0.0, %v2484
        %v2486 = vpop.f32.mrf.mxu0
        %v2487 = vadd.f32 0.0, %v2486
        %2488 = vmatmul.bf16.gmra.mxu0 %v784
        %v2489 = vpop.f32.mrf.mxu0
        %v2490 = vadd.f32 0.0, %v2489
        %v2491 = vpop.f32.mrf.mxu0
        %v2492 = vadd.f32 0.0, %v2491
        %2493 = vmatmul.bf16.gmra.mxu0 %v787
        %v2494 = vpop.f32.mrf.mxu0
        %v2495 = vadd.f32 0.0, %v2494
        %v2496 = vpop.f32.mrf.mxu0
        %v2497 = vadd.f32 0.0, %v2496
        %2498 = vmatmul.bf16.gmra.mxu0 %v790
        %v2499 = vpop.f32.mrf.mxu0
        %v2500 = vadd.f32 0.0, %v2499
        %v2501 = vpop.f32.mrf.mxu0
        %v2502 = vadd.f32 0.0, %v2501
        %2503 = vmatmul.bf16.gmra.mxu0 %v793
        %v2504 = vpop.f32.mrf.mxu0
        %v2505 = vadd.f32 0.0, %v2504
        %v2506 = vpop.f32.mrf.mxu0
        %v2507 = vadd.f32 0.0, %v2506
        %2508 = vmatmul.bf16.gmra.mxu0 %v796
        %v2509 = vpop.f32.mrf.mxu0
        %v2510 = vadd.f32 0.0, %v2509
        %v2511 = vpop.f32.mrf.mxu0
        %v2512 = vadd.f32 0.0, %v2511
        %2513 = vmatmul.bf16.gmra.mxu0 %v799
        %v2514 = vpop.f32.mrf.mxu0
        %v2515 = vadd.f32 0.0, %v2514
        %v2516 = vpop.f32.mrf.mxu0
        %v2517 = vadd.f32 0.0, %v2516
        %2518 = vmatmul.bf16.gmra.mxu0 %v802
        %v2519 = vpop.f32.mrf.mxu0
        %v2520 = vadd.f32 0.0, %v2519
        %v2521 = vpop.f32.mrf.mxu0
        %v2522 = vadd.f32 0.0, %v2521
        %2523 = vmatmul.bf16.gmra.mxu0 %v805
        %v2524 = vpop.f32.mrf.mxu0
        %v2525 = vadd.f32 0.0, %v2524
        %v2526 = vpop.f32.mrf.mxu0
        %v2527 = vadd.f32 0.0, %v2526
        %2528 = vmatmul.bf16.gmra.mxu0 %v808
        %v2529 = vpop.f32.mrf.mxu0
        %v2530 = vadd.f32 0.0, %v2529
        %v2531 = vpop.f32.mrf.mxu0
        %v2532 = vadd.f32 0.0, %v2531
        %2533 = vmatmul.bf16.gmra.mxu0 %v811
        %v2534 = vpop.f32.mrf.mxu0
        %v2535 = vadd.f32 0.0, %v2534
        %v2536 = vpop.f32.mrf.mxu0
        %v2537 = vadd.f32 0.0, %v2536
        %2538 = vmatmul.bf16.gmra.mxu0 %v814
        %v2539 = vpop.f32.mrf.mxu0
        %v2540 = vadd.f32 0.0, %v2539
        %v2541 = vpop.f32.mrf.mxu0
        %v2542 = vadd.f32 0.0, %v2541
        %2543 = vmatmul.bf16.gmra.mxu0 %v817
        %v2544 = vpop.f32.mrf.mxu0
        %v2545 = vadd.f32 0.0, %v2544
        %v2546 = vpop.f32.mrf.mxu0
        %v2547 = vadd.f32 0.0, %v2546
        %2548 = vmatmul.bf16.gmra.mxu0 %v820
        %v2549 = vpop.f32.mrf.mxu0
        %v2550 = vadd.f32 0.0, %v2549
        %v2551 = vpop.f32.mrf.mxu0
        %v2552 = vadd.f32 0.0, %v2551
        %2553 = vmatmul.bf16.gmra.mxu0 %v823
        %v2554 = vpop.f32.mrf.mxu0
        %v2555 = vadd.f32 0.0, %v2554
        %v2556 = vpop.f32.mrf.mxu0
        %v2557 = vadd.f32 0.0, %v2556
        %2558 = vmatmul.bf16.gmra.mxu0 %v826
        %v2559 = vpop.f32.mrf.mxu0
        %v2560 = vadd.f32 0.0, %v2559
        %v2561 = vpop.f32.mrf.mxu0
        %v2562 = vadd.f32 0.0, %v2561
        %2563 = vmatmul.bf16.gmra.mxu0 %v829
        %v2564 = vpop.f32.mrf.mxu0
        %v2565 = vadd.f32 0.0, %v2564
        %v2566 = vpop.f32.mrf.mxu0
        %v2567 = vadd.f32 0.0, %v2566
        %2568 = vmatmul.bf16.gmra.mxu0 %v832
        %v2569 = vpop.f32.mrf.mxu0
        %v2570 = vadd.f32 0.0, %v2569
        %v2571 = vpop.f32.mrf.mxu0
        %v2572 = vadd.f32 0.0, %v2571
        %2573 = vmatmul.bf16.gmra.mxu0 %v835
        %v2574 = vpop.f32.mrf.mxu0
        %v2575 = vadd.f32 0.0, %v2574
        %v2576 = vpop.f32.mrf.mxu0
        %v2577 = vadd.f32 0.0, %v2576
        %2578 = vmatmul.bf16.gmra.mxu0 %v838
        %v2579 = vpop.f32.mrf.mxu0
        %v2580 = vadd.f32 0.0, %v2579
        %v2581 = vpop.f32.mrf.mxu0
        %v2582 = vadd.f32 0.0, %v2581
        %2583 = vmatmul.bf16.gmra.mxu0 %v841
        %v2584 = vpop.f32.mrf.mxu0
        %v2585 = vadd.f32 0.0, %v2584
        %v2586 = vpop.f32.mrf.mxu0
        %v2587 = vadd.f32 0.0, %v2586
        %2588 = vmatmul.bf16.gmra.mxu0 %v844
        %v2589 = vpop.f32.mrf.mxu0
        %v2590 = vadd.f32 0.0, %v2589
        %v2591 = vpop.f32.mrf.mxu0
        %v2592 = vadd.f32 0.0, %v2591
        %2593 = vdwg.mxu0
        %v2594 = vrot.slane %v2460, 7
        %v2595 = vrot.slane %v2462, 7
        %v2596 = vrot.slane %v2465, 7
        %v2597 = vrot.slane %v2467, 7
        %v2598 = vrot.slane %v2470, 7
        %v2599 = vrot.slane %v2472, 7
        %v2600 = vrot.slane %v2475, 7
        %v2601 = vrot.slane %v2477, 7
        %v2602 = vrot.slane %v2480, 7
        %v2603 = vrot.slane %v2482, 7
        %v2604 = vrot.slane %v2485, 7
        %v2605 = vrot.slane %v2487, 7
        %v2606 = vrot.slane %v2490, 7
        %v2607 = vrot.slane %v2492, 7
        %v2608 = vrot.slane %v2495, 7
        %v2609 = vrot.slane %v2497, 7
        %v2610 = vrot.slane %v2500, 7
        %v2611 = vrot.slane %v2502, 7
        %v2612 = vrot.slane %v2505, 7
        %v2613 = vrot.slane %v2507, 7
        %v2614 = vrot.slane %v2510, 7
        %v2615 = vrot.slane %v2512, 7
        %v2616 = vrot.slane %v2515, 7
        %v2617 = vrot.slane %v2517, 7
        %v2618 = vrot.slane %v2520, 7
        %v2619 = vrot.slane %v2522, 7
        %v2620 = vrot.slane %v2525, 7
        %v2621 = vrot.slane %v2527, 7
        %v2622 = vrot.slane %v2530, 7
        %v2623 = vrot.slane %v2532, 7
        %v2624 = vrot.slane %v2535, 7
        %v2625 = vrot.slane %v2537, 7
        %v2626 = vrot.slane %v2540, 7
        %v2627 = vrot.slane %v2542, 7
        %v2628 = vrot.slane %v2545, 7
        %v2629 = vrot.slane %v2547, 7
        %v2630 = vrot.slane %v2550, 7
        %v2631 = vrot.slane %v2552, 7
        %v2632 = vrot.slane %v2555, 7
        %v2633 = vrot.slane %v2557, 7
        %v2634 = vrot.slane %v2560, 7
        %v2635 = vrot.slane %v2562, 7
        %v2636 = vrot.slane %v2565, 7
        %v2637 = vrot.slane %v2567, 7
        %v2638 = vrot.slane %v2570, 7
        %v2639 = vrot.slane %v2572, 7
        %v2640 = vrot.slane %v2575, 7
        %v2641 = vrot.slane %v2577, 7
        %v2642 = vrot.slane %v2580, 7
        %v2643 = vrot.slane %v2582, 7
        %v2644 = vrot.slane %v2585, 7
        %v2645 = vrot.slane %v2587, 7
        %v2646 = vrot.slane %v2590, 7
        %v2647 = vrot.slane %v2592, 7
        %v2648 = vsel %vm1050, %v2646, %v2647
        %v2649 = vsel %vm1050, %v2645, %v2646
        %v2650 = vsel %vm1050, %v2644, %v2645
        %v2651 = vsel %vm1050, %v2643, %v2644
        %v2652 = vsel %vm1050, %v2642, %v2643
        %v2653 = vsel %vm1050, %v2641, %v2642
        %v2654 = vsel %vm1050, %v2640, %v2641
        %v2655 = vsel %vm1050, %v2639, %v2640
        %v2656 = vsel %vm1050, %v2638, %v2639
        %v2657 = vsel %vm1050, %v2637, %v2638
        %v2658 = vsel %vm1050, %v2636, %v2637
        %v2659 = vsel %vm1050, %v2635, %v2636
        %v2660 = vsel %vm1050, %v2634, %v2635
        %v2661 = vsel %vm1050, %v2633, %v2634
        %v2662 = vsel %vm1050, %v2632, %v2633
        %v2663 = vsel %vm1050, %v2631, %v2632
        %v2664 = vsel %vm1050, %v2630, %v2631
        %v2665 = vsel %vm1050, %v2629, %v2630
        %v2666 = vsel %vm1050, %v2628, %v2629
        %v2667 = vsel %vm1050, %v2627, %v2628
        %v2668 = vsel %vm1050, %v2626, %v2627
        %v2669 = vsel %vm1050, %v2625, %v2626
        %v2670 = vsel %vm1050, %v2624, %v2625
        %v2671 = vsel %vm1050, %v2623, %v2624
        %v2672 = vsel %vm1050, %v2622, %v2623
        %v2673 = vsel %vm1050, %v2621, %v2622
        %v2674 = vsel %vm1050, %v2620, %v2621
        %v2675 = vsel %vm1050, %v2619, %v2620
        %v2676 = vsel %vm1050, %v2618, %v2619
        %v2677 = vsel %vm1050, %v2617, %v2618
        %v2678 = vsel %vm1050, %v2616, %v2617
        %v2679 = vsel %vm1050, %v2615, %v2616
        %v2680 = vsel %vm1050, %v2614, %v2615
        %v2681 = vsel %vm1050, %v2613, %v2614
        %v2682 = vsel %vm1050, %v2612, %v2613
        %v2683 = vsel %vm1050, %v2611, %v2612
        %v2684 = vsel %vm1050, %v2610, %v2611
        %v2685 = vsel %vm1050, %v2609, %v2610
        %v2686 = vsel %vm1050, %v2608, %v2609
        %v2687 = vsel %vm1050, %v2607, %v2608
        %v2688 = vsel %vm1050, %v2606, %v2607
        %v2689 = vsel %vm1050, %v2605, %v2606
        %v2690 = vsel %vm1050, %v2604, %v2605
        %v2691 = vsel %vm1050, %v2603, %v2604
        %v2692 = vsel %vm1050, %v2602, %v2603
        %v2693 = vsel %vm1050, %v2601, %v2602
        %v2694 = vsel %vm1050, %v2600, %v2601
        %v2695 = vsel %vm1050, %v2599, %v2600
        %v2696 = vsel %vm1050, %v2598, %v2599
        %v2697 = vsel %vm1050, %v2597, %v2598
        %v2698 = vsel %vm1050, %v2596, %v2597
        %v2699 = vsel %vm1050, %v2595, %v2596
        %v2700 = vsel %vm1050, %v2594, %v2595
        %v2701 = vsel %vm1050, %v2647, %v2594
        %v2702 = vadd.f32 %v2391, %v2698
        %v2703 = vadd.f32 %v2392, %v2697
        %v2704 = vadd.f32 %v2393, %v2696
        %v2705 = vadd.f32 %v2394, %v2695
        %v2706 = vadd.f32 %v2395, %v2694
        %v2707 = vadd.f32 %v2396, %v2693
        %v2708 = vadd.f32 %v2397, %v2692
        %v2709 = vadd.f32 %v2398, %v2691
        %v2710 = vadd.f32 %v2399, %v2690
        %v2711 = vadd.f32 %v2400, %v2689
        %v2712 = vadd.f32 %v2401, %v2688
        %v2713 = vadd.f32 %v2402, %v2687
        %v2714 = vadd.f32 %v2403, %v2686
        %v2715 = vadd.f32 %v2404, %v2685
        %v2716 = vadd.f32 %v2405, %v2684
        %v2717 = vadd.f32 %v2406, %v2683
        %v2718 = vadd.f32 %v2407, %v2682
        %v2719 = vadd.f32 %v2408, %v2681
        %v2720 = vadd.f32 %v2409, %v2680
        %v2721 = vadd.f32 %v2410, %v2679
        %v2722 = vadd.f32 %v2411, %v2678
        %v2723 = vadd.f32 %v2412, %v2677
        %v2724 = vadd.f32 %v2413, %v2676
        %v2725 = vadd.f32 %v2414, %v2675
        %v2726 = vadd.f32 %v2415, %v2674
        %v2727 = vadd.f32 %v2416, %v2673
        %v2728 = vadd.f32 %v2417, %v2672
        %v2729 = vadd.f32 %v2418, %v2671
        %v2730 = vadd.f32 %v2419, %v2670
        %v2731 = vadd.f32 %v2420, %v2669
        %v2732 = vadd.f32 %v2421, %v2668
        %v2733 = vadd.f32 %v2422, %v2667
        %v2734 = vadd.f32 %v2423, %v2666
        %v2735 = vadd.f32 %v2424, %v2665
        %v2736 = vadd.f32 %v2425, %v2664
        %v2737 = vadd.f32 %v2426, %v2663
        %v2738 = vadd.f32 %v2427, %v2662
        %v2739 = vadd.f32 %v2428, %v2661
        %v2740 = vadd.f32 %v2429, %v2660
        %v2741 = vadd.f32 %v2430, %v2659
        %v2742 = vadd.f32 %v2431, %v2658
        %v2743 = vadd.f32 %v2432, %v2657
        %v2744 = vadd.f32 %v2433, %v2656
        %v2745 = vadd.f32 %v2434, %v2655
        %v2746 = vadd.f32 %v2435, %v2654
        %v2747 = vadd.f32 %v2436, %v2653
        %v2748 = vadd.f32 %v2437, %v2652
        %v2749 = vadd.f32 %v2438, %v2651
        %v2750 = vadd.f32 %v2439, %v2650
        %v2751 = vadd.f32 %v2440, %v2649
        %v2752 = vadd.f32 %v2441, %v2648
        %v2753 = vadd.f32 %v2442, %v2701
        %v2754 = vadd.f32 %v2443, %v2700
        %v2755 = vadd.f32 %v2444, %v2699
        %s2756 = scalar_lea.vmem %s2, 28
        %v2757 = vld [vmem:[%s2756] sm:$0xf]
        %v2759 = vsel %vm846, %v2757, 0
        %2761 = vmatpush.bf16.msra.mxu0 0
        %2762 = vmatpush.bf16.msra.mxu0 0
        %2763 = vmatpush.bf16.msra.mxu0 0
        %2764 = vmatpush.bf16.msra.mxu0 0
        %2765 = vmatpush.bf16.msra.mxu0 0
        %2766 = vmatpush.bf16.msra.mxu0 0
        %2767 = vmatpush.bf16.msra.mxu0 0
        %2768 = vmatpush.bf16.msra.mxu0 %v2759
        %2769 = vmatmul.bf16.gmra.mxu0 %v766
        %v2770 = vpop.f32.mrf.mxu0
        %v2771 = vadd.f32 0.0, %v2770
        %v2772 = vpop.f32.mrf.mxu0
        %v2773 = vadd.f32 0.0, %v2772
        %2774 = vmatmul.bf16.gmra.mxu0 %v769
        %v2775 = vpop.f32.mrf.mxu0
        %v2776 = vadd.f32 0.0, %v2775
        %v2777 = vpop.f32.mrf.mxu0
        %v2778 = vadd.f32 0.0, %v2777
        %2779 = vmatmul.bf16.gmra.mxu0 %v772
        %v2780 = vpop.f32.mrf.mxu0
        %v2781 = vadd.f32 0.0, %v2780
        %v2782 = vpop.f32.mrf.mxu0
        %v2783 = vadd.f32 0.0, %v2782
        %2784 = vmatmul.bf16.gmra.mxu0 %v775
        %v2785 = vpop.f32.mrf.mxu0
        %v2786 = vadd.f32 0.0, %v2785
        %v2787 = vpop.f32.mrf.mxu0
        %v2788 = vadd.f32 0.0, %v2787
        %2789 = vmatmul.bf16.gmra.mxu0 %v778
        %v2790 = vpop.f32.mrf.mxu0
        %v2791 = vadd.f32 0.0, %v2790
        %v2792 = vpop.f32.mrf.mxu0
        %v2793 = vadd.f32 0.0, %v2792
        %2794 = vmatmul.bf16.gmra.mxu0 %v781
        %v2795 = vpop.f32.mrf.mxu0
        %v2796 = vadd.f32 0.0, %v2795
        %v2797 = vpop.f32.mrf.mxu0
        %v2798 = vadd.f32 0.0, %v2797
        %2799 = vmatmul.bf16.gmra.mxu0 %v784
        %v2800 = vpop.f32.mrf.mxu0
        %v2801 = vadd.f32 0.0, %v2800
        %v2802 = vpop.f32.mrf.mxu0
        %v2803 = vadd.f32 0.0, %v2802
        %2804 = vmatmul.bf16.gmra.mxu0 %v787
        %v2805 = vpop.f32.mrf.mxu0
        %v2806 = vadd.f32 0.0, %v2805
        %v2807 = vpop.f32.mrf.mxu0
        %v2808 = vadd.f32 0.0, %v2807
        %2809 = vmatmul.bf16.gmra.mxu0 %v790
        %v2810 = vpop.f32.mrf.mxu0
        %v2811 = vadd.f32 0.0, %v2810
        %v2812 = vpop.f32.mrf.mxu0
        %v2813 = vadd.f32 0.0, %v2812
        %2814 = vmatmul.bf16.gmra.mxu0 %v793
        %v2815 = vpop.f32.mrf.mxu0
        %v2816 = vadd.f32 0.0, %v2815
        %v2817 = vpop.f32.mrf.mxu0
        %v2818 = vadd.f32 0.0, %v2817
        %2819 = vmatmul.bf16.gmra.mxu0 %v796
        %v2820 = vpop.f32.mrf.mxu0
        %v2821 = vadd.f32 0.0, %v2820
        %v2822 = vpop.f32.mrf.mxu0
        %v2823 = vadd.f32 0.0, %v2822
        %2824 = vmatmul.bf16.gmra.mxu0 %v799
        %v2825 = vpop.f32.mrf.mxu0
        %v2826 = vadd.f32 0.0, %v2825
        %v2827 = vpop.f32.mrf.mxu0
        %v2828 = vadd.f32 0.0, %v2827
        %2829 = vmatmul.bf16.gmra.mxu0 %v802
        %v2830 = vpop.f32.mrf.mxu0
        %v2831 = vadd.f32 0.0, %v2830
        %v2832 = vpop.f32.mrf.mxu0
        %v2833 = vadd.f32 0.0, %v2832
        %2834 = vmatmul.bf16.gmra.mxu0 %v805
        %v2835 = vpop.f32.mrf.mxu0
        %v2836 = vadd.f32 0.0, %v2835
        %v2837 = vpop.f32.mrf.mxu0
        %v2838 = vadd.f32 0.0, %v2837
        %2839 = vmatmul.bf16.gmra.mxu0 %v808
        %v2840 = vpop.f32.mrf.mxu0
        %v2841 = vadd.f32 0.0, %v2840
        %v2842 = vpop.f32.mrf.mxu0
        %v2843 = vadd.f32 0.0, %v2842
        %2844 = vmatmul.bf16.gmra.mxu0 %v811
        %v2845 = vpop.f32.mrf.mxu0
        %v2846 = vadd.f32 0.0, %v2845
        %v2847 = vpop.f32.mrf.mxu0
        %v2848 = vadd.f32 0.0, %v2847
        %2849 = vmatmul.bf16.gmra.mxu0 %v814
        %v2850 = vpop.f32.mrf.mxu0
        %v2851 = vadd.f32 0.0, %v2850
        %v2852 = vpop.f32.mrf.mxu0
        %v2853 = vadd.f32 0.0, %v2852
        %2854 = vmatmul.bf16.gmra.mxu0 %v817
        %v2855 = vpop.f32.mrf.mxu0
        %v2856 = vadd.f32 0.0, %v2855
        %v2857 = vpop.f32.mrf.mxu0
        %v2858 = vadd.f32 0.0, %v2857
        %2859 = vmatmul.bf16.gmra.mxu0 %v820
        %v2860 = vpop.f32.mrf.mxu0
        %v2861 = vadd.f32 0.0, %v2860
        %v2862 = vpop.f32.mrf.mxu0
        %v2863 = vadd.f32 0.0, %v2862
        %2864 = vmatmul.bf16.gmra.mxu0 %v823
        %v2865 = vpop.f32.mrf.mxu0
        %v2866 = vadd.f32 0.0, %v2865
        %v2867 = vpop.f32.mrf.mxu0
        %v2868 = vadd.f32 0.0, %v2867
        %2869 = vmatmul.bf16.gmra.mxu0 %v826
        %v2870 = vpop.f32.mrf.mxu0
        %v2871 = vadd.f32 0.0, %v2870
        %v2872 = vpop.f32.mrf.mxu0
        %v2873 = vadd.f32 0.0, %v2872
        %2874 = vmatmul.bf16.gmra.mxu0 %v829
        %v2875 = vpop.f32.mrf.mxu0
        %v2876 = vadd.f32 0.0, %v2875
        %v2877 = vpop.f32.mrf.mxu0
        %v2878 = vadd.f32 0.0, %v2877
        %2879 = vmatmul.bf16.gmra.mxu0 %v832
        %v2880 = vpop.f32.mrf.mxu0
        %v2881 = vadd.f32 0.0, %v2880
        %v2882 = vpop.f32.mrf.mxu0
        %v2883 = vadd.f32 0.0, %v2882
        %2884 = vmatmul.bf16.gmra.mxu0 %v835
        %v2885 = vpop.f32.mrf.mxu0
        %v2886 = vadd.f32 0.0, %v2885
        %v2887 = vpop.f32.mrf.mxu0
        %v2888 = vadd.f32 0.0, %v2887
        %2889 = vmatmul.bf16.gmra.mxu0 %v838
        %v2890 = vpop.f32.mrf.mxu0
        %v2891 = vadd.f32 0.0, %v2890
        %v2892 = vpop.f32.mrf.mxu0
        %v2893 = vadd.f32 0.0, %v2892
        %2894 = vmatmul.bf16.gmra.mxu0 %v841
        %v2895 = vpop.f32.mrf.mxu0
        %v2896 = vadd.f32 0.0, %v2895
        %v2897 = vpop.f32.mrf.mxu0
        %v2898 = vadd.f32 0.0, %v2897
        %2899 = vmatmul.bf16.gmra.mxu0 %v844
        %v2900 = vpop.f32.mrf.mxu0
        %v2901 = vadd.f32 0.0, %v2900
        %v2902 = vpop.f32.mrf.mxu0
        %v2903 = vadd.f32 0.0, %v2902
        %2904 = vdwg.mxu0
        %v2905 = vadd.f32 %v2702, %v2778
        %v2906 = vadd.f32 %v2703, %v2781
        %v2907 = vadd.f32 %v2704, %v2783
        %v2908 = vadd.f32 %v2705, %v2786
        %v2909 = vadd.f32 %v2706, %v2788
        %v2910 = vadd.f32 %v2707, %v2791
        %v2911 = vadd.f32 %v2708, %v2793
        %v2912 = vadd.f32 %v2709, %v2796
        %v2913 = vadd.f32 %v2710, %v2798
        %v2914 = vadd.f32 %v2711, %v2801
        %v2915 = vadd.f32 %v2712, %v2803
        %v2916 = vadd.f32 %v2713, %v2806
        %v2917 = vadd.f32 %v2714, %v2808
        %v2918 = vadd.f32 %v2715, %v2811
        %v2919 = vadd.f32 %v2716, %v2813
        %v2920 = vadd.f32 %v2717, %v2816
        %v2921 = vadd.f32 %v2718, %v2818
        %v2922 = vadd.f32 %v2719, %v2821
        %v2923 = vadd.f32 %v2720, %v2823
        %v2924 = vadd.f32 %v2721, %v2826
        %v2925 = vadd.f32 %v2722, %v2828
        %v2926 = vadd.f32 %v2723, %v2831
        %v2927 = vadd.f32 %v2724, %v2833
        %v2928 = vadd.f32 %v2725, %v2836
        %v2929 = vadd.f32 %v2726, %v2838
        %v2930 = vadd.f32 %v2727, %v2841
        %v2931 = vadd.f32 %v2728, %v2843
        %v2932 = vadd.f32 %v2729, %v2846
        %v2933 = vadd.f32 %v2730, %v2848
        %v2934 = vadd.f32 %v2731, %v2851
        %v2935 = vadd.f32 %v2732, %v2853
        %v2936 = vadd.f32 %v2733, %v2856
        %v2937 = vadd.f32 %v2734, %v2858
        %v2938 = vadd.f32 %v2735, %v2861
        %v2939 = vadd.f32 %v2736, %v2863
        %v2940 = vadd.f32 %v2737, %v2866
        %v2941 = vadd.f32 %v2738, %v2868
        %v2942 = vadd.f32 %v2739, %v2871
        %v2943 = vadd.f32 %v2740, %v2873
        %v2944 = vadd.f32 %v2741, %v2876
        %v2945 = vadd.f32 %v2742, %v2878
        %v2946 = vadd.f32 %v2743, %v2881
        %v2947 = vadd.f32 %v2744, %v2883
        %v2948 = vadd.f32 %v2745, %v2886
        %v2949 = vadd.f32 %v2746, %v2888
        %v2950 = vadd.f32 %v2747, %v2891
        %v2951 = vadd.f32 %v2748, %v2893
        %v2952 = vadd.f32 %v2749, %v2896
        %v2953 = vadd.f32 %v2750, %v2898
        %v2954 = vadd.f32 %v2751, %v2901
        %v2955 = vadd.f32 %v2752, %v2903
        %v2956 = vadd.f32 %v2753, %v2771
        %v2957 = vadd.f32 %v2754, %v2773
        %v2958 = vadd.f32 %v2755, %v2776
        %s2959 = scalar_lea.vmem %s2, 32
        %v2960 = vld [vmem:[%s2959] sm:$0xf]
        %v2962 = vsel %vm846, %v2960, 0
        %2964 = vmatpush.bf16.msra.mxu0 0
        %2965 = vmatpush.bf16.msra.mxu0 0
        %2966 = vmatpush.bf16.msra.mxu0 0
        %2967 = vmatpush.bf16.msra.mxu0 0
        %2968 = vmatpush.bf16.msra.mxu0 0
        %2969 = vmatpush.bf16.msra.mxu0 0
        %2970 = vmatpush.bf16.msra.mxu0 0
        %2971 = vmatpush.bf16.msra.mxu0 %v2962
        %2972 = vmatmul.bf16.gmra.mxu0 %v766
        %v2973 = vpop.f32.mrf.mxu0
        %v2974 = vadd.f32 0.0, %v2973
        %v2975 = vpop.f32.mrf.mxu0
        %v2976 = vadd.f32 0.0, %v2975
        %2977 = vmatmul.bf16.gmra.mxu0 %v769
        %v2978 = vpop.f32.mrf.mxu0
        %v2979 = vadd.f32 0.0, %v2978
        %v2980 = vpop.f32.mrf.mxu0
        %v2981 = vadd.f32 0.0, %v2980
        %2982 = vmatmul.bf16.gmra.mxu0 %v772
        %v2983 = vpop.f32.mrf.mxu0
        %v2984 = vadd.f32 0.0, %v2983
        %v2985 = vpop.f32.mrf.mxu0
        %v2986 = vadd.f32 0.0, %v2985
        %2987 = vmatmul.bf16.gmra.mxu0 %v775
        %v2988 = vpop.f32.mrf.mxu0
        %v2989 = vadd.f32 0.0, %v2988
        %v2990 = vpop.f32.mrf.mxu0
        %v2991 = vadd.f32 0.0, %v2990
        %2992 = vmatmul.bf16.gmra.mxu0 %v778
        %v2993 = vpop.f32.mrf.mxu0
        %v2994 = vadd.f32 0.0, %v2993
        %v2995 = vpop.f32.mrf.mxu0
        %v2996 = vadd.f32 0.0, %v2995
        %2997 = vmatmul.bf16.gmra.mxu0 %v781
        %v2998 = vpop.f32.mrf.mxu0
        %v2999 = vadd.f32 0.0, %v2998
        %v3000 = vpop.f32.mrf.mxu0
        %v3001 = vadd.f32 0.0, %v3000
        %3002 = vmatmul.bf16.gmra.mxu0 %v784
        %v3003 = vpop.f32.mrf.mxu0
        %v3004 = vadd.f32 0.0, %v3003
        %v3005 = vpop.f32.mrf.mxu0
        %v3006 = vadd.f32 0.0, %v3005
        %3007 = vmatmul.bf16.gmra.mxu0 %v787
        %v3008 = vpop.f32.mrf.mxu0
        %v3009 = vadd.f32 0.0, %v3008
        %v3010 = vpop.f32.mrf.mxu0
        %v3011 = vadd.f32 0.0, %v3010
        %3012 = vmatmul.bf16.gmra.mxu0 %v790
        %v3013 = vpop.f32.mrf.mxu0
        %v3014 = vadd.f32 0.0, %v3013
        %v3015 = vpop.f32.mrf.mxu0
        %v3016 = vadd.f32 0.0, %v3015
        %3017 = vmatmul.bf16.gmra.mxu0 %v793
        %v3018 = vpop.f32.mrf.mxu0
        %v3019 = vadd.f32 0.0, %v3018
        %v3020 = vpop.f32.mrf.mxu0
        %v3021 = vadd.f32 0.0, %v3020
        %3022 = vmatmul.bf16.gmra.mxu0 %v796
        %v3023 = vpop.f32.mrf.mxu0
        %v3024 = vadd.f32 0.0, %v3023
        %v3025 = vpop.f32.mrf.mxu0
        %v3026 = vadd.f32 0.0, %v3025
        %3027 = vmatmul.bf16.gmra.mxu0 %v799
        %v3028 = vpop.f32.mrf.mxu0
        %v3029 = vadd.f32 0.0, %v3028
        %v3030 = vpop.f32.mrf.mxu0
        %v3031 = vadd.f32 0.0, %v3030
        %3032 = vmatmul.bf16.gmra.mxu0 %v802
        %v3033 = vpop.f32.mrf.mxu0
        %v3034 = vadd.f32 0.0, %v3033
        %v3035 = vpop.f32.mrf.mxu0
        %v3036 = vadd.f32 0.0, %v3035
        %3037 = vmatmul.bf16.gmra.mxu0 %v805
        %v3038 = vpop.f32.mrf.mxu0
        %v3039 = vadd.f32 0.0, %v3038
        %v3040 = vpop.f32.mrf.mxu0
        %v3041 = vadd.f32 0.0, %v3040
        %3042 = vmatmul.bf16.gmra.mxu0 %v808
        %v3043 = vpop.f32.mrf.mxu0
        %v3044 = vadd.f32 0.0, %v3043
        %v3045 = vpop.f32.mrf.mxu0
        %v3046 = vadd.f32 0.0, %v3045
        %3047 = vmatmul.bf16.gmra.mxu0 %v811
        %v3048 = vpop.f32.mrf.mxu0
        %v3049 = vadd.f32 0.0, %v3048
        %v3050 = vpop.f32.mrf.mxu0
        %v3051 = vadd.f32 0.0, %v3050
        %3052 = vmatmul.bf16.gmra.mxu0 %v814
        %v3053 = vpop.f32.mrf.mxu0
        %v3054 = vadd.f32 0.0, %v3053
        %v3055 = vpop.f32.mrf.mxu0
        %v3056 = vadd.f32 0.0, %v3055
        %3057 = vmatmul.bf16.gmra.mxu0 %v817
        %v3058 = vpop.f32.mrf.mxu0
        %v3059 = vadd.f32 0.0, %v3058
        %v3060 = vpop.f32.mrf.mxu0
        %v3061 = vadd.f32 0.0, %v3060
        %3062 = vmatmul.bf16.gmra.mxu0 %v820
        %v3063 = vpop.f32.mrf.mxu0
        %v3064 = vadd.f32 0.0, %v3063
        %v3065 = vpop.f32.mrf.mxu0
        %v3066 = vadd.f32 0.0, %v3065
        %3067 = vmatmul.bf16.gmra.mxu0 %v823
        %v3068 = vpop.f32.mrf.mxu0
        %v3069 = vadd.f32 0.0, %v3068
        %v3070 = vpop.f32.mrf.mxu0
        %v3071 = vadd.f32 0.0, %v3070
        %3072 = vmatmul.bf16.gmra.mxu0 %v826
        %v3073 = vpop.f32.mrf.mxu0
        %v3074 = vadd.f32 0.0, %v3073
        %v3075 = vpop.f32.mrf.mxu0
        %v3076 = vadd.f32 0.0, %v3075
        %3077 = vmatmul.bf16.gmra.mxu0 %v829
        %v3078 = vpop.f32.mrf.mxu0
        %v3079 = vadd.f32 0.0, %v3078
        %v3080 = vpop.f32.mrf.mxu0
        %v3081 = vadd.f32 0.0, %v3080
        %3082 = vmatmul.bf16.gmra.mxu0 %v832
        %v3083 = vpop.f32.mrf.mxu0
        %v3084 = vadd.f32 0.0, %v3083
        %v3085 = vpop.f32.mrf.mxu0
        %v3086 = vadd.f32 0.0, %v3085
        %3087 = vmatmul.bf16.gmra.mxu0 %v835
        %v3088 = vpop.f32.mrf.mxu0
        %v3089 = vadd.f32 0.0, %v3088
        %v3090 = vpop.f32.mrf.mxu0
        %v3091 = vadd.f32 0.0, %v3090
        %3092 = vmatmul.bf16.gmra.mxu0 %v838
        %v3093 = vpop.f32.mrf.mxu0
        %v3094 = vadd.f32 0.0, %v3093
        %v3095 = vpop.f32.mrf.mxu0
        %v3096 = vadd.f32 0.0, %v3095
        %3097 = vmatmul.bf16.gmra.mxu0 %v841
        %v3098 = vpop.f32.mrf.mxu0
        %v3099 = vadd.f32 0.0, %v3098
        %v3100 = vpop.f32.mrf.mxu0
        %v3101 = vadd.f32 0.0, %v3100
        %3102 = vmatmul.bf16.gmra.mxu0 %v844
        %v3103 = vpop.f32.mrf.mxu0
        %v3104 = vadd.f32 0.0, %v3103
        %v3105 = vpop.f32.mrf.mxu0
        %v3106 = vadd.f32 0.0, %v3105
        %3107 = vdwg.mxu0
        %v3108 = vrot.slane %v2974, 1
        %v3109 = vrot.slane %v2976, 1
        %v3110 = vrot.slane %v2979, 1
        %v3111 = vrot.slane %v2981, 1
        %v3112 = vrot.slane %v2984, 1
        %v3113 = vrot.slane %v2986, 1
        %v3114 = vrot.slane %v2989, 1
        %v3115 = vrot.slane %v2991, 1
        %v3116 = vrot.slane %v2994, 1
        %v3117 = vrot.slane %v2996, 1
        %v3118 = vrot.slane %v2999, 1
        %v3119 = vrot.slane %v3001, 1
        %v3120 = vrot.slane %v3004, 1
        %v3121 = vrot.slane %v3006, 1
        %v3122 = vrot.slane %v3009, 1
        %v3123 = vrot.slane %v3011, 1
        %v3124 = vrot.slane %v3014, 1
        %v3125 = vrot.slane %v3016, 1
        %v3126 = vrot.slane %v3019, 1
        %v3127 = vrot.slane %v3021, 1
        %v3128 = vrot.slane %v3024, 1
        %v3129 = vrot.slane %v3026, 1
        %v3130 = vrot.slane %v3029, 1
        %v3131 = vrot.slane %v3031, 1
        %v3132 = vrot.slane %v3034, 1
        %v3133 = vrot.slane %v3036, 1
        %v3134 = vrot.slane %v3039, 1
        %v3135 = vrot.slane %v3041, 1
        %v3136 = vrot.slane %v3044, 1
        %v3137 = vrot.slane %v3046, 1
        %v3138 = vrot.slane %v3049, 1
        %v3139 = vrot.slane %v3051, 1
        %v3140 = vrot.slane %v3054, 1
        %v3141 = vrot.slane %v3056, 1
        %v3142 = vrot.slane %v3059, 1
        %v3143 = vrot.slane %v3061, 1
        %v3144 = vrot.slane %v3064, 1
        %v3145 = vrot.slane %v3066, 1
        %v3146 = vrot.slane %v3069, 1
        %v3147 = vrot.slane %v3071, 1
        %v3148 = vrot.slane %v3074, 1
        %v3149 = vrot.slane %v3076, 1
        %v3150 = vrot.slane %v3079, 1
        %v3151 = vrot.slane %v3081, 1
        %v3152 = vrot.slane %v3084, 1
        %v3153 = vrot.slane %v3086, 1
        %v3154 = vrot.slane %v3089, 1
        %v3155 = vrot.slane %v3091, 1
        %v3156 = vrot.slane %v3094, 1
        %v3157 = vrot.slane %v3096, 1
        %v3158 = vrot.slane %v3099, 1
        %v3159 = vrot.slane %v3101, 1
        %v3160 = vrot.slane %v3104, 1
        %v3161 = vrot.slane %v3106, 1
        %v3162 = vsel %vm1511, %v3160, %v3161
        %v3163 = vsel %vm1511, %v3159, %v3160
        %v3164 = vsel %vm1511, %v3158, %v3159
        %v3165 = vsel %vm1511, %v3157, %v3158
        %v3166 = vsel %vm1511, %v3156, %v3157
        %v3167 = vsel %vm1511, %v3155, %v3156
        %v3168 = vsel %vm1511, %v3154, %v3155
        %v3169 = vsel %vm1511, %v3153, %v3154
        %v3170 = vsel %vm1511, %v3152, %v3153
        %v3171 = vsel %vm1511, %v3151, %v3152
        %v3172 = vsel %vm1511, %v3150, %v3151
        %v3173 = vsel %vm1511, %v3149, %v3150
        %v3174 = vsel %vm1511, %v3148, %v3149
        %v3175 = vsel %vm1511, %v3147, %v3148
        %v3176 = vsel %vm1511, %v3146, %v3147
        %v3177 = vsel %vm1511, %v3145, %v3146
        %v3178 = vsel %vm1511, %v3144, %v3145
        %v3179 = vsel %vm1511, %v3143, %v3144
        %v3180 = vsel %vm1511, %v3142, %v3143
        %v3181 = vsel %vm1511, %v3141, %v3142
        %v3182 = vsel %vm1511, %v3140, %v3141
        %v3183 = vsel %vm1511, %v3139, %v3140
        %v3184 = vsel %vm1511, %v3138, %v3139
        %v3185 = vsel %vm1511, %v3137, %v3138
        %v3186 = vsel %vm1511, %v3136, %v3137
        %v3187 = vsel %vm1511, %v3135, %v3136
        %v3188 = vsel %vm1511, %v3134, %v3135
        %v3189 = vsel %vm1511, %v3133, %v3134
        %v3190 = vsel %vm1511, %v3132, %v3133
        %v3191 = vsel %vm1511, %v3131, %v3132
        %v3192 = vsel %vm1511, %v3130, %v3131
        %v3193 = vsel %vm1511, %v3129, %v3130
        %v3194 = vsel %vm1511, %v3128, %v3129
        %v3195 = vsel %vm1511, %v3127, %v3128
        %v3196 = vsel %vm1511, %v3126, %v3127
        %v3197 = vsel %vm1511, %v3125, %v3126
        %v3198 = vsel %vm1511, %v3124, %v3125
        %v3199 = vsel %vm1511, %v3123, %v3124
        %v3200 = vsel %vm1511, %v3122, %v3123
        %v3201 = vsel %vm1511, %v3121, %v3122
        %v3202 = vsel %vm1511, %v3120, %v3121
        %v3203 = vsel %vm1511, %v3119, %v3120
        %v3204 = vsel %vm1511, %v3118, %v3119
        %v3205 = vsel %vm1511, %v3117, %v3118
        %v3206 = vsel %vm1511, %v3116, %v3117
        %v3207 = vsel %vm1511, %v3115, %v3116
        %v3208 = vsel %vm1511, %v3114, %v3115
        %v3209 = vsel %vm1511, %v3113, %v3114
        %v3210 = vsel %vm1511, %v3112, %v3113
        %v3211 = vsel %vm1511, %v3111, %v3112
        %v3212 = vsel %vm1511, %v3110, %v3111
        %v3213 = vsel %vm1511, %v3109, %v3110
        %v3214 = vsel %vm1511, %v3108, %v3109
        %v3215 = vsel %vm1511, %v3161, %v3108
        %v3216 = vadd.f32 %v2905, %v3211
        %v3217 = vadd.f32 %v2906, %v3210
        %v3218 = vadd.f32 %v2907, %v3209
        %v3219 = vadd.f32 %v2908, %v3208
        %v3220 = vadd.f32 %v2909, %v3207
        %v3221 = vadd.f32 %v2910, %v3206
        %v3222 = vadd.f32 %v2911, %v3205
        %v3223 = vadd.f32 %v2912, %v3204
        %v3224 = vadd.f32 %v2913, %v3203
        %v3225 = vadd.f32 %v2914, %v3202
        %v3226 = vadd.f32 %v2915, %v3201
        %v3227 = vadd.f32 %v2916, %v3200
        %v3228 = vadd.f32 %v2917, %v3199
        %v3229 = vadd.f32 %v2918, %v3198
        %v3230 = vadd.f32 %v2919, %v3197
        %v3231 = vadd.f32 %v2920, %v3196
        %v3232 = vadd.f32 %v2921, %v3195
        %v3233 = vadd.f32 %v2922, %v3194
        %v3234 = vadd.f32 %v2923, %v3193
        %v3235 = vadd.f32 %v2924, %v3192
        %v3236 = vadd.f32 %v2925, %v3191
        %v3237 = vadd.f32 %v2926, %v3190
        %v3238 = vadd.f32 %v2927, %v3189
        %v3239 = vadd.f32 %v2928, %v3188
        %v3240 = vadd.f32 %v2929, %v3187
        %v3241 = vadd.f32 %v2930, %v3186
        %v3242 = vadd.f32 %v2931, %v3185
        %v3243 = vadd.f32 %v2932, %v3184
        %v3244 = vadd.f32 %v2933, %v3183
        %v3245 = vadd.f32 %v2934, %v3182
        %v3246 = vadd.f32 %v2935, %v3181
        %v3247 = vadd.f32 %v2936, %v3180
        %v3248 = vadd.f32 %v2937, %v3179
        %v3249 = vadd.f32 %v2938, %v3178
        %v3250 = vadd.f32 %v2939, %v3177
        %v3251 = vadd.f32 %v2940, %v3176
        %v3252 = vadd.f32 %v2941, %v3175
        %v3253 = vadd.f32 %v2942, %v3174
        %v3254 = vadd.f32 %v2943, %v3173
        %v3255 = vadd.f32 %v2944, %v3172
        %v3256 = vadd.f32 %v2945, %v3171
        %v3257 = vadd.f32 %v2946, %v3170
        %v3258 = vadd.f32 %v2947, %v3169
        %v3259 = vadd.f32 %v2948, %v3168
        %v3260 = vadd.f32 %v2949, %v3167
        %v3261 = vadd.f32 %v2950, %v3166
        %v3262 = vadd.f32 %v2951, %v3165
        %v3263 = vadd.f32 %v2952, %v3164
        %v3264 = vadd.f32 %v2953, %v3163
        %v3265 = vadd.f32 %v2954, %v3162
        %v3266 = vadd.f32 %v2955, %v3215
        %v3267 = vadd.f32 %v2956, %v3214
        %v3268 = vadd.f32 %v2957, %v3213
        %v3269 = vadd.f32 %v2958, %v3212
        %v3270 = vld [vmem:[%s3] sm:$0x1]
        %v3272 = vperm.slane %v3270, 0
        %v3274 = vmul.f32 %v3216, %v3272
        %v3275 = vmul.f32 %v3217, %v3272
        %v3276 = vmul.f32 %v3218, %v3272
        %v3277 = vmul.f32 %v3219, %v3272
        %v3278 = vmul.f32 %v3220, %v3272
        %v3279 = vmul.f32 %v3221, %v3272
        %v3280 = vmul.f32 %v3222, %v3272
        %v3281 = vmul.f32 %v3223, %v3272
        %v3282 = vmul.f32 %v3224, %v3272
        %v3283 = vmul.f32 %v3225, %v3272
        %v3284 = vmul.f32 %v3226, %v3272
        %v3285 = vmul.f32 %v3227, %v3272
        %v3286 = vmul.f32 %v3228, %v3272
        %v3287 = vmul.f32 %v3229, %v3272
        %v3288 = vmul.f32 %v3230, %v3272
        %v3289 = vmul.f32 %v3231, %v3272
        %v3290 = vmul.f32 %v3232, %v3272
        %v3291 = vmul.f32 %v3233, %v3272
        %v3292 = vmul.f32 %v3234, %v3272
        %v3293 = vmul.f32 %v3235, %v3272
        %v3294 = vmul.f32 %v3236, %v3272
        %v3295 = vmul.f32 %v3237, %v3272
        %v3296 = vmul.f32 %v3238, %v3272
        %v3297 = vmul.f32 %v3239, %v3272
        %v3298 = vmul.f32 %v3240, %v3272
        %v3299 = vmul.f32 %v3241, %v3272
        %v3300 = vmul.f32 %v3242, %v3272
        %v3301 = vmul.f32 %v3243, %v3272
        %v3302 = vmul.f32 %v3244, %v3272
        %v3303 = vmul.f32 %v3245, %v3272
        %v3304 = vmul.f32 %v3246, %v3272
        %v3305 = vmul.f32 %v3247, %v3272
        %v3306 = vmul.f32 %v3248, %v3272
        %v3307 = vmul.f32 %v3249, %v3272
        %v3308 = vmul.f32 %v3250, %v3272
        %v3309 = vmul.f32 %v3251, %v3272
        %v3310 = vmul.f32 %v3252, %v3272
        %v3311 = vmul.f32 %v3253, %v3272
        %v3312 = vmul.f32 %v3254, %v3272
        %v3313 = vmul.f32 %v3255, %v3272
        %v3314 = vmul.f32 %v3256, %v3272
        %v3315 = vmul.f32 %v3257, %v3272
        %v3316 = vmul.f32 %v3258, %v3272
        %v3317 = vmul.f32 %v3259, %v3272
        %v3318 = vmul.f32 %v3260, %v3272
        %v3319 = vmul.f32 %v3261, %v3272
        %v3320 = vmul.f32 %v3262, %v3272
        %v3321 = vmul.f32 %v3263, %v3272
        %v3322 = vmul.f32 %v3264, %v3272
        %v3323 = vmul.f32 %v3265, %v3272
        %v3324 = vmul.f32 %v3266, %v3272
        %v3325 = vmul.f32 %v3267, %v3272
        %v3326 = vmul.f32 %v3268, %v3272
        %v3327 = vmul.f32 %v3269, %v3272
        %v3328 = vld [vmem:[%s4] sm:$0x1]
        %v3330 = vperm.slane %v3328, 0
        %v3332 = vadd.f32 %v3274, %v3330
        %v3333 = vadd.f32 %v3275, %v3330
        %v3334 = vadd.f32 %v3276, %v3330
        %v3335 = vadd.f32 %v3277, %v3330
        %v3336 = vadd.f32 %v3278, %v3330
        %v3337 = vadd.f32 %v3279, %v3330
        %v3338 = vadd.f32 %v3280, %v3330
        %v3339 = vadd.f32 %v3281, %v3330
        %v3340 = vadd.f32 %v3282, %v3330
        %v3341 = vadd.f32 %v3283, %v3330
        %v3342 = vadd.f32 %v3284, %v3330
        %v3343 = vadd.f32 %v3285, %v3330
        %v3344 = vadd.f32 %v3286, %v3330
        %v3345 = vadd.f32 %v3287, %v3330
        %v3346 = vadd.f32 %v3288, %v3330
        %v3347 = vadd.f32 %v3289, %v3330
        %v3348 = vadd.f32 %v3290, %v3330
        %v3349 = vadd.f32 %v3291, %v3330
        %v3350 = vadd.f32 %v3292, %v3330
        %v3351 = vadd.f32 %v3293, %v3330
        %v3352 = vadd.f32 %v3294, %v3330
        %v3353 = vadd.f32 %v3295, %v3330
        %v3354 = vadd.f32 %v3296, %v3330
        %v3355 = vadd.f32 %v3297, %v3330
        %v3356 = vadd.f32 %v3298, %v3330
        %v3357 = vadd.f32 %v3299, %v3330
        %v3358 = vadd.f32 %v3300, %v3330
        %v3359 = vadd.f32 %v3301, %v3330
        %v3360 = vadd.f32 %v3302, %v3330
        %v3361 = vadd.f32 %v3303, %v3330
        %v3362 = vadd.f32 %v3304, %v3330
        %v3363 = vadd.f32 %v3305, %v3330
        %v3364 = vadd.f32 %v3306, %v3330
        %v3365 = vadd.f32 %v3307, %v3330
        %v3366 = vadd.f32 %v3308, %v3330
        %v3367 = vadd.f32 %v3309, %v3330
        %v3368 = vadd.f32 %v3310, %v3330
        %v3369 = vadd.f32 %v3311, %v3330
        %v3370 = vadd.f32 %v3312, %v3330
        %v3371 = vadd.f32 %v3313, %v3330
        %v3372 = vadd.f32 %v3314, %v3330
        %v3373 = vadd.f32 %v3315, %v3330
        %v3374 = vadd.f32 %v3316, %v3330
        %v3375 = vadd.f32 %v3317, %v3330
        %v3376 = vadd.f32 %v3318, %v3330
        %v3377 = vadd.f32 %v3319, %v3330
        %v3378 = vadd.f32 %v3320, %v3330
        %v3379 = vadd.f32 %v3321, %v3330
        %v3380 = vadd.f32 %v3322, %v3330
        %v3381 = vadd.f32 %v3323, %v3330
        %v3382 = vadd.f32 %v3324, %v3330
        %v3383 = vadd.f32 %v3325, %v3330
        %v3384 = vadd.f32 %v3326, %v3330
        %v3385 = vadd.f32 %v3327, %v3330
        %v3386 = vmax.f32 %v3332, 0.0
        %v3387 = vmax.f32 %v3333, 0.0
        %v3388 = vmax.f32 %v3334, 0.0
        %v3389 = vmax.f32 %v3335, 0.0
        %v3390 = vmax.f32 %v3336, 0.0
        %v3391 = vmax.f32 %v3337, 0.0
        %v3392 = vmax.f32 %v3338, 0.0
        %v3393 = vmax.f32 %v3339, 0.0
        %v3394 = vmax.f32 %v3340, 0.0
        %v3395 = vmax.f32 %v3341, 0.0
        %v3396 = vmax.f32 %v3342, 0.0
        %v3397 = vmax.f32 %v3343, 0.0
        %v3398 = vmax.f32 %v3344, 0.0
        %v3399 = vmax.f32 %v3345, 0.0
        %v3400 = vmax.f32 %v3346, 0.0
        %v3401 = vmax.f32 %v3347, 0.0
        %v3402 = vmax.f32 %v3348, 0.0
        %v3403 = vmax.f32 %v3349, 0.0
        %v3404 = vmax.f32 %v3350, 0.0
        %v3405 = vmax.f32 %v3351, 0.0
        %v3406 = vmax.f32 %v3352, 0.0
        %v3407 = vmax.f32 %v3353, 0.0
        %v3408 = vmax.f32 %v3354, 0.0
        %v3409 = vmax.f32 %v3355, 0.0
        %v3410 = vmax.f32 %v3356, 0.0
        %v3411 = vmax.f32 %v3357, 0.0
        %v3412 = vmax.f32 %v3358, 0.0
        %v3413 = vmax.f32 %v3359, 0.0
        %v3414 = vmax.f32 %v3360, 0.0
        %v3415 = vmax.f32 %v3361, 0.0
        %v3416 = vmax.f32 %v3362, 0.0
        %v3417 = vmax.f32 %v3363, 0.0
        %v3418 = vmax.f32 %v3364, 0.0
        %v3419 = vmax.f32 %v3365, 0.0
        %v3420 = vmax.f32 %v3366, 0.0
        %v3421 = vmax.f32 %v3367, 0.0
        %v3422 = vmax.f32 %v3368, 0.0
        %v3423 = vmax.f32 %v3369, 0.0
        %v3424 = vmax.f32 %v3370, 0.0
        %v3425 = vmax.f32 %v3371, 0.0
        %v3426 = vmax.f32 %v3372, 0.0
        %v3427 = vmax.f32 %v3373, 0.0
        %v3428 = vmax.f32 %v3374, 0.0
        %v3429 = vmax.f32 %v3375, 0.0
        %v3430 = vmax.f32 %v3376, 0.0
        %v3431 = vmax.f32 %v3377, 0.0
        %v3432 = vmax.f32 %v3378, 0.0
        %v3433 = vmax.f32 %v3379, 0.0
        %v3434 = vmax.f32 %v3380, 0.0
        %v3435 = vmax.f32 %v3381, 0.0
        %v3436 = vmax.f32 %v3382, 0.0
        %v3437 = vmax.f32 %v3383, 0.0
        %v3438 = vmax.f32 %v3384, 0.0
        %v3439 = vmax.f32 %v3385, 0.0
        %v3440 = vpack.c.bf16 %v3387, %v3386
        %v3441 = vpack.c.bf16 %v3389, %v3388
        %v3442 = vpack.c.bf16 %v3391, %v3390
        %v3443 = vpack.c.bf16 %v3393, %v3392
        %v3444 = vpack.c.bf16 %v3395, %v3394
        %v3445 = vpack.c.bf16 %v3397, %v3396
        %v3446 = vpack.c.bf16 %v3399, %v3398
        %v3447 = vpack.c.bf16 %v3401, %v3400
        %v3448 = vpack.c.bf16 %v3403, %v3402
        %v3449 = vpack.c.bf16 %v3405, %v3404
        %v3450 = vpack.c.bf16 %v3407, %v3406
        %v3451 = vpack.c.bf16 %v3409, %v3408
        %v3452 = vpack.c.bf16 %v3411, %v3410
        %v3453 = vpack.c.bf16 %v3413, %v3412
        %v3454 = vpack.c.bf16 %v3415, %v3414
        %v3455 = vpack.c.bf16 %v3417, %v3416
        %v3456 = vpack.c.bf16 %v3419, %v3418
        %v3457 = vpack.c.bf16 %v3421, %v3420
        %v3458 = vpack.c.bf16 %v3423, %v3422
        %v3459 = vpack.c.bf16 %v3425, %v3424
        %v3460 = vpack.c.bf16 %v3427, %v3426
        %v3461 = vpack.c.bf16 %v3429, %v3428
        %v3462 = vpack.c.bf16 %v3431, %v3430
        %v3463 = vpack.c.bf16 %v3433, %v3432
        %v3464 = vpack.c.bf16 %v3435, %v3434
        %v3465 = vpack.c.bf16 %v3437, %v3436
        %v3466 = vpack.c.bf16 %v3439, %v3438
        %v3467 = vld [vmem:[%s5] sm:$0xf]
        %v3468 = vld [vmem:[%s5 + $0x4] sm:$0xf]
        %v3469 = vld [vmem:[%s5 + $0x8] sm:$0xf]
        %v3470 = vld [vmem:[%s5 + $0xc] sm:$0xf]
        %v3471 = vld [vmem:[%s5 + $0x10] sm:$0xf]
        %v3472 = vld [vmem:[%s5 + $0x14] sm:$0xf]
        %v3473 = vld [vmem:[%s5 + $0x18] sm:$0xf]
        %v3474 = vld [vmem:[%s5 + $0x1c] sm:$0xf]
        %v3475 = vld [vmem:[%s5 + $0x20] sm:$0xf]
        %v3476 = vld [vmem:[%s5 + $0x24] sm:$0xf]
        %v3477 = vld [vmem:[%s5 + $0x28] sm:$0xf]
        %v3478 = vld [vmem:[%s5 + $0x2c] sm:$0xf]
        %v3479 = vld [vmem:[%s5 + $0x30] sm:$0xf]
        %v3480 = vld [vmem:[%s5 + $0x34] sm:$0xf]
        %v3481 = vld [vmem:[%s5 + $0x38] sm:$0xf]
        %v3482 = vld [vmem:[%s5 + $0x3c] sm:$0xf]
        %v3499 = vunpack.c.l.b16 %v3467
        %v3500 = vunpack.c.l.b16 %v3468
        %v3501 = vunpack.c.l.b16 %v3469
        %v3502 = vunpack.c.l.b16 %v3470
        %v3503 = vunpack.c.l.b16 %v3471
        %v3504 = vunpack.c.l.b16 %v3472
        %v3505 = vunpack.c.l.b16 %v3473
        %v3506 = vunpack.c.l.b16 %v3474
        %v3507 = vunpack.c.l.b16 %v3475
        %v3508 = vunpack.c.l.b16 %v3476
        %v3509 = vunpack.c.l.b16 %v3477
        %v3510 = vunpack.c.l.b16 %v3478
        %v3511 = vunpack.c.l.b16 %v3479
        %v3512 = vunpack.c.l.b16 %v3480
        %v3513 = vunpack.c.l.b16 %v3481
        %v3514 = vunpack.c.l.b16 %v3482
        %v3515 = vpack.c.b16 %v3500, %v3499
        %v3516 = vpack.c.b16 %v3502, %v3501
        %v3517 = vpack.c.b16 %v3504, %v3503
        %v3518 = vpack.c.b16 %v3506, %v3505
        %v3519 = vpack.c.b16 %v3508, %v3507
        %v3520 = vpack.c.b16 %v3510, %v3509
        %v3521 = vpack.c.b16 %v3512, %v3511
        %v3522 = vpack.c.b16 %v3514, %v3513
        %3531 = vmatpush.bf16.msra.mxu0 %v3522
        %3532 = vmatpush.bf16.msra.mxu0 %v3521
        %3533 = vmatpush.bf16.msra.mxu0 %v3520
        %3534 = vmatpush.bf16.msra.mxu0 %v3519
        %3535 = vmatpush.bf16.msra.mxu0 %v3518
        %3536 = vmatpush.bf16.msra.mxu0 %v3517
        %3537 = vmatpush.bf16.msra.mxu0 %v3516
        %3538 = vmatpush.bf16.msra.mxu0 %v3515
        %3539 = vmatmul.bf16.gmra.mxu0 %v3440
        %v3540 = vpop.f32.mrf.mxu0
        %v3541 = vadd.f32 0.0, %v3540
        %v3542 = vpop.f32.mrf.mxu0
        %v3543 = vadd.f32 0.0, %v3542
        %3544 = vmatmul.bf16.gmra.mxu0 %v3441
        %v3545 = vpop.f32.mrf.mxu0
        %v3546 = vadd.f32 0.0, %v3545
        %v3547 = vpop.f32.mrf.mxu0
        %v3548 = vadd.f32 0.0, %v3547
        %3549 = vmatmul.bf16.gmra.mxu0 %v3442
        %v3550 = vpop.f32.mrf.mxu0
        %v3551 = vadd.f32 0.0, %v3550
        %v3552 = vpop.f32.mrf.mxu0
        %v3553 = vadd.f32 0.0, %v3552
        %3554 = vmatmul.bf16.gmra.mxu0 %v3443
        %v3555 = vpop.f32.mrf.mxu0
        %v3556 = vadd.f32 0.0, %v3555
        %v3557 = vpop.f32.mrf.mxu0
        %v3558 = vadd.f32 0.0, %v3557
        %3559 = vmatmul.bf16.gmra.mxu0 %v3444
        %v3560 = vpop.f32.mrf.mxu0
        %v3561 = vadd.f32 0.0, %v3560
        %v3562 = vpop.f32.mrf.mxu0
        %v3563 = vadd.f32 0.0, %v3562
        %3564 = vmatmul.bf16.gmra.mxu0 %v3445
        %v3565 = vpop.f32.mrf.mxu0
        %v3566 = vadd.f32 0.0, %v3565
        %v3567 = vpop.f32.mrf.mxu0
        %v3568 = vadd.f32 0.0, %v3567
        %3569 = vmatmul.bf16.gmra.mxu0 %v3446
        %v3570 = vpop.f32.mrf.mxu0
        %v3571 = vadd.f32 0.0, %v3570
        %v3572 = vpop.f32.mrf.mxu0
        %v3573 = vadd.f32 0.0, %v3572
        %3574 = vmatmul.bf16.gmra.mxu0 %v3447
        %v3575 = vpop.f32.mrf.mxu0
        %v3576 = vadd.f32 0.0, %v3575
        %v3577 = vpop.f32.mrf.mxu0
        %v3578 = vadd.f32 0.0, %v3577
        %3579 = vmatmul.bf16.gmra.mxu0 %v3448
        %v3580 = vpop.f32.mrf.mxu0
        %v3581 = vadd.f32 0.0, %v3580
        %v3582 = vpop.f32.mrf.mxu0
        %v3583 = vadd.f32 0.0, %v3582
        %3584 = vmatmul.bf16.gmra.mxu0 %v3449
        %v3585 = vpop.f32.mrf.mxu0
        %v3586 = vadd.f32 0.0, %v3585
        %v3587 = vpop.f32.mrf.mxu0
        %v3588 = vadd.f32 0.0, %v3587
        %3589 = vmatmul.bf16.gmra.mxu0 %v3450
        %v3590 = vpop.f32.mrf.mxu0
        %v3591 = vadd.f32 0.0, %v3590
        %v3592 = vpop.f32.mrf.mxu0
        %v3593 = vadd.f32 0.0, %v3592
        %3594 = vmatmul.bf16.gmra.mxu0 %v3451
        %v3595 = vpop.f32.mrf.mxu0
        %v3596 = vadd.f32 0.0, %v3595
        %v3597 = vpop.f32.mrf.mxu0
        %v3598 = vadd.f32 0.0, %v3597
        %3599 = vmatmul.bf16.gmra.mxu0 %v3452
        %v3600 = vpop.f32.mrf.mxu0
        %v3601 = vadd.f32 0.0, %v3600
        %v3602 = vpop.f32.mrf.mxu0
        %v3603 = vadd.f32 0.0, %v3602
        %3604 = vmatmul.bf16.gmra.mxu0 %v3453
        %v3605 = vpop.f32.mrf.mxu0
        %v3606 = vadd.f32 0.0, %v3605
        %v3607 = vpop.f32.mrf.mxu0
        %v3608 = vadd.f32 0.0, %v3607
        %3609 = vmatmul.bf16.gmra.mxu0 %v3454
        %v3610 = vpop.f32.mrf.mxu0
        %v3611 = vadd.f32 0.0, %v3610
        %v3612 = vpop.f32.mrf.mxu0
        %v3613 = vadd.f32 0.0, %v3612
        %3614 = vmatmul.bf16.gmra.mxu0 %v3455
        %v3615 = vpop.f32.mrf.mxu0
        %v3616 = vadd.f32 0.0, %v3615
        %v3617 = vpop.f32.mrf.mxu0
        %v3618 = vadd.f32 0.0, %v3617
        %3619 = vmatmul.bf16.gmra.mxu0 %v3456
        %v3620 = vpop.f32.mrf.mxu0
        %v3621 = vadd.f32 0.0, %v3620
        %v3622 = vpop.f32.mrf.mxu0
        %v3623 = vadd.f32 0.0, %v3622
        %3624 = vmatmul.bf16.gmra.mxu0 %v3457
        %v3625 = vpop.f32.mrf.mxu0
        %v3626 = vadd.f32 0.0, %v3625
        %v3627 = vpop.f32.mrf.mxu0
        %v3628 = vadd.f32 0.0, %v3627
        %3629 = vmatmul.bf16.gmra.mxu0 %v3458
        %v3630 = vpop.f32.mrf.mxu0
        %v3631 = vadd.f32 0.0, %v3630
        %v3632 = vpop.f32.mrf.mxu0
        %v3633 = vadd.f32 0.0, %v3632
        %3634 = vmatmul.bf16.gmra.mxu0 %v3459
        %v3635 = vpop.f32.mrf.mxu0
        %v3636 = vadd.f32 0.0, %v3635
        %v3637 = vpop.f32.mrf.mxu0
        %v3638 = vadd.f32 0.0, %v3637
        %3639 = vmatmul.bf16.gmra.mxu0 %v3460
        %v3640 = vpop.f32.mrf.mxu0
        %v3641 = vadd.f32 0.0, %v3640
        %v3642 = vpop.f32.mrf.mxu0
        %v3643 = vadd.f32 0.0, %v3642
        %3644 = vmatmul.bf16.gmra.mxu0 %v3461
        %v3645 = vpop.f32.mrf.mxu0
        %v3646 = vadd.f32 0.0, %v3645
        %v3647 = vpop.f32.mrf.mxu0
        %v3648 = vadd.f32 0.0, %v3647
        %3649 = vmatmul.bf16.gmra.mxu0 %v3462
        %v3650 = vpop.f32.mrf.mxu0
        %v3651 = vadd.f32 0.0, %v3650
        %v3652 = vpop.f32.mrf.mxu0
        %v3653 = vadd.f32 0.0, %v3652
        %3654 = vmatmul.bf16.gmra.mxu0 %v3463
        %v3655 = vpop.f32.mrf.mxu0
        %v3656 = vadd.f32 0.0, %v3655
        %v3657 = vpop.f32.mrf.mxu0
        %v3658 = vadd.f32 0.0, %v3657
        %3659 = vmatmul.bf16.gmra.mxu0 %v3464
        %v3660 = vpop.f32.mrf.mxu0
        %v3661 = vadd.f32 0.0, %v3660
        %v3662 = vpop.f32.mrf.mxu0
        %v3663 = vadd.f32 0.0, %v3662
        %3664 = vmatmul.bf16.gmra.mxu0 %v3465
        %v3665 = vpop.f32.mrf.mxu0
        %v3666 = vadd.f32 0.0, %v3665
        %v3667 = vpop.f32.mrf.mxu0
        %v3668 = vadd.f32 0.0, %v3667
        %3669 = vmatmul.bf16.gmra.mxu0 %v3466
        %v3670 = vpop.f32.mrf.mxu0
        %v3671 = vadd.f32 0.0, %v3670
        %v3672 = vpop.f32.mrf.mxu0
        %v3673 = vadd.f32 0.0, %v3672
        %3674 = vdwg.mxu0
        %v3675 = vld [vmem:[%s6] sm:$0x1]
        %v3677 = vperm.slane %v3675, 0
        %v3679 = vmul.f32 %v3541, %v3677
        %v3680 = vmul.f32 %v3543, %v3677
        %v3681 = vmul.f32 %v3546, %v3677
        %v3682 = vmul.f32 %v3548, %v3677
        %v3683 = vmul.f32 %v3551, %v3677
        %v3684 = vmul.f32 %v3553, %v3677
        %v3685 = vmul.f32 %v3556, %v3677
        %v3686 = vmul.f32 %v3558, %v3677
        %v3687 = vmul.f32 %v3561, %v3677
        %v3688 = vmul.f32 %v3563, %v3677
        %v3689 = vmul.f32 %v3566, %v3677
        %v3690 = vmul.f32 %v3568, %v3677
        %v3691 = vmul.f32 %v3571, %v3677
        %v3692 = vmul.f32 %v3573, %v3677
        %v3693 = vmul.f32 %v3576, %v3677
        %v3694 = vmul.f32 %v3578, %v3677
        %v3695 = vmul.f32 %v3581, %v3677
        %v3696 = vmul.f32 %v3583, %v3677
        %v3697 = vmul.f32 %v3586, %v3677
        %v3698 = vmul.f32 %v3588, %v3677
        %v3699 = vmul.f32 %v3591, %v3677
        %v3700 = vmul.f32 %v3593, %v3677
        %v3701 = vmul.f32 %v3596, %v3677
        %v3702 = vmul.f32 %v3598, %v3677
        %v3703 = vmul.f32 %v3601, %v3677
        %v3704 = vmul.f32 %v3603, %v3677
        %v3705 = vmul.f32 %v3606, %v3677
        %v3706 = vmul.f32 %v3608, %v3677
        %v3707 = vmul.f32 %v3611, %v3677
        %v3708 = vmul.f32 %v3613, %v3677
        %v3709 = vmul.f32 %v3616, %v3677
        %v3710 = vmul.f32 %v3618, %v3677
        %v3711 = vmul.f32 %v3621, %v3677
        %v3712 = vmul.f32 %v3623, %v3677
        %v3713 = vmul.f32 %v3626, %v3677
        %v3714 = vmul.f32 %v3628, %v3677
        %v3715 = vmul.f32 %v3631, %v3677
        %v3716 = vmul.f32 %v3633, %v3677
        %v3717 = vmul.f32 %v3636, %v3677
        %v3718 = vmul.f32 %v3638, %v3677
        %v3719 = vmul.f32 %v3641, %v3677
        %v3720 = vmul.f32 %v3643, %v3677
        %v3721 = vmul.f32 %v3646, %v3677
        %v3722 = vmul.f32 %v3648, %v3677
        %v3723 = vmul.f32 %v3651, %v3677
        %v3724 = vmul.f32 %v3653, %v3677
        %v3725 = vmul.f32 %v3656, %v3677
        %v3726 = vmul.f32 %v3658, %v3677
        %v3727 = vmul.f32 %v3661, %v3677
        %v3728 = vmul.f32 %v3663, %v3677
        %v3729 = vmul.f32 %v3666, %v3677
        %v3730 = vmul.f32 %v3668, %v3677
        %v3731 = vmul.f32 %v3671, %v3677
        %v3732 = vmul.f32 %v3673, %v3677
        %v3733 = vld [vmem:[%s7] sm:$0x1]
        %v3735 = vperm.slane %v3733, 0
        %v3737 = vadd.f32 %v3679, %v3735
        %v3738 = vadd.f32 %v3680, %v3735
        %v3739 = vadd.f32 %v3681, %v3735
        %v3740 = vadd.f32 %v3682, %v3735
        %v3741 = vadd.f32 %v3683, %v3735
        %v3742 = vadd.f32 %v3684, %v3735
        %v3743 = vadd.f32 %v3685, %v3735
        %v3744 = vadd.f32 %v3686, %v3735
        %v3745 = vadd.f32 %v3687, %v3735
        %v3746 = vadd.f32 %v3688, %v3735
        %v3747 = vadd.f32 %v3689, %v3735
        %v3748 = vadd.f32 %v3690, %v3735
        %v3749 = vadd.f32 %v3691, %v3735
        %v3750 = vadd.f32 %v3692, %v3735
        %v3751 = vadd.f32 %v3693, %v3735
        %v3752 = vadd.f32 %v3694, %v3735
        %v3753 = vadd.f32 %v3695, %v3735
        %v3754 = vadd.f32 %v3696, %v3735
        %v3755 = vadd.f32 %v3697, %v3735
        %v3756 = vadd.f32 %v3698, %v3735
        %v3757 = vadd.f32 %v3699, %v3735
        %v3758 = vadd.f32 %v3700, %v3735
        %v3759 = vadd.f32 %v3701, %v3735
        %v3760 = vadd.f32 %v3702, %v3735
        %v3761 = vadd.f32 %v3703, %v3735
        %v3762 = vadd.f32 %v3704, %v3735
        %v3763 = vadd.f32 %v3705, %v3735
        %v3764 = vadd.f32 %v3706, %v3735
        %v3765 = vadd.f32 %v3707, %v3735
        %v3766 = vadd.f32 %v3708, %v3735
        %v3767 = vadd.f32 %v3709, %v3735
        %v3768 = vadd.f32 %v3710, %v3735
        %v3769 = vadd.f32 %v3711, %v3735
        %v3770 = vadd.f32 %v3712, %v3735
        %v3771 = vadd.f32 %v3713, %v3735
        %v3772 = vadd.f32 %v3714, %v3735
        %v3773 = vadd.f32 %v3715, %v3735
        %v3774 = vadd.f32 %v3716, %v3735
        %v3775 = vadd.f32 %v3717, %v3735
        %v3776 = vadd.f32 %v3718, %v3735
        %v3777 = vadd.f32 %v3719, %v3735
        %v3778 = vadd.f32 %v3720, %v3735
        %v3779 = vadd.f32 %v3721, %v3735
        %v3780 = vadd.f32 %v3722, %v3735
        %v3781 = vadd.f32 %v3723, %v3735
        %v3782 = vadd.f32 %v3724, %v3735
        %v3783 = vadd.f32 %v3725, %v3735
        %v3784 = vadd.f32 %v3726, %v3735
        %v3785 = vadd.f32 %v3727, %v3735
        %v3786 = vadd.f32 %v3728, %v3735
        %v3787 = vadd.f32 %v3729, %v3735
        %v3788 = vadd.f32 %v3730, %v3735
        %v3789 = vadd.f32 %v3731, %v3735
        %v3790 = vadd.f32 %v3732, %v3735
        %v3791 = vmax.f32 %v3737, 0.0
        %v3792 = vmax.f32 %v3738, 0.0
        %v3793 = vmax.f32 %v3739, 0.0
        %v3794 = vmax.f32 %v3740, 0.0
        %v3795 = vmax.f32 %v3741, 0.0
        %v3796 = vmax.f32 %v3742, 0.0
        %v3797 = vmax.f32 %v3743, 0.0
        %v3798 = vmax.f32 %v3744, 0.0
        %v3799 = vmax.f32 %v3745, 0.0
        %v3800 = vmax.f32 %v3746, 0.0
        %v3801 = vmax.f32 %v3747, 0.0
        %v3802 = vmax.f32 %v3748, 0.0
        %v3803 = vmax.f32 %v3749, 0.0
        %v3804 = vmax.f32 %v3750, 0.0
        %v3805 = vmax.f32 %v3751, 0.0
        %v3806 = vmax.f32 %v3752, 0.0
        %v3807 = vmax.f32 %v3753, 0.0
        %v3808 = vmax.f32 %v3754, 0.0
        %v3809 = vmax.f32 %v3755, 0.0
        %v3810 = vmax.f32 %v3756, 0.0
        %v3811 = vmax.f32 %v3757, 0.0
        %v3812 = vmax.f32 %v3758, 0.0
        %v3813 = vmax.f32 %v3759, 0.0
        %v3814 = vmax.f32 %v3760, 0.0
        %v3815 = vmax.f32 %v3761, 0.0
        %v3816 = vmax.f32 %v3762, 0.0
        %v3817 = vmax.f32 %v3763, 0.0
        %v3818 = vmax.f32 %v3764, 0.0
        %v3819 = vmax.f32 %v3765, 0.0
        %v3820 = vmax.f32 %v3766, 0.0
        %v3821 = vmax.f32 %v3767, 0.0
        %v3822 = vmax.f32 %v3768, 0.0
        %v3823 = vmax.f32 %v3769, 0.0
        %v3824 = vmax.f32 %v3770, 0.0
        %v3825 = vmax.f32 %v3771, 0.0
        %v3826 = vmax.f32 %v3772, 0.0
        %v3827 = vmax.f32 %v3773, 0.0
        %v3828 = vmax.f32 %v3774, 0.0
        %v3829 = vmax.f32 %v3775, 0.0
        %v3830 = vmax.f32 %v3776, 0.0
        %v3831 = vmax.f32 %v3777, 0.0
        %v3832 = vmax.f32 %v3778, 0.0
        %v3833 = vmax.f32 %v3779, 0.0
        %v3834 = vmax.f32 %v3780, 0.0
        %v3835 = vmax.f32 %v3781, 0.0
        %v3836 = vmax.f32 %v3782, 0.0
        %v3837 = vmax.f32 %v3783, 0.0
        %v3838 = vmax.f32 %v3784, 0.0
        %v3839 = vmax.f32 %v3785, 0.0
        %v3840 = vmax.f32 %v3786, 0.0
        %v3841 = vmax.f32 %v3787, 0.0
        %v3842 = vmax.f32 %v3788, 0.0
        %v3843 = vmax.f32 %v3789, 0.0
        %v3844 = vmax.f32 %v3790, 0.0
        %v3845 = vsel %vm574, 1, 0
        %v3846 = vsel %vm575, 1, 0
        %v3847 = vsel %vm576, 1, 0
        %v3848 = vsel %vm577, 1, 0
        %v3849 = vsel %vm578, 1, 0
        %v3850 = vsel %vm579, 1, 0
        %v3851 = vsel %vm580, 1, 0
        %v3852 = vsel %vm581, 1, 0
        %v3853 = vsel %vm582, 1, 0
        %v3854 = vsel %vm583, 1, 0
        %v3855 = vsel %vm584, 1, 0
        %v3856 = vsel %vm585, 1, 0
        %v3857 = vsel %vm586, 1, 0
        %v3858 = vsel %vm587, 1, 0
        %v3859 = vsel %vm588, 1, 0
        %v3860 = vsel %vm589, 1, 0
        %v3861 = vsel %vm590, 1, 0
        %v3862 = vsel %vm591, 1, 0
        %v3863 = vsel %vm592, 1, 0
        %v3864 = vsel %vm593, 1, 0
        %v3865 = vsel %vm594, 1, 0
        %v3866 = vsel %vm595, 1, 0
        %v3867 = vsel %vm596, 1, 0
        %v3868 = vsel %vm597, 1, 0
        %v3869 = vsel %vm598, 1, 0
        %v3870 = vsel %vm599, 1, 0
        %v3871 = vsel %vm600, 1, 0
        %v3872 = vsel %vm601, 1, 0
        %v3873 = vsel %vm602, 1, 0
        %v3874 = vsel %vm603, 1, 0
        %v3875 = vsel %vm604, 1, 0
        %v3876 = vsel %vm605, 1, 0
        %v3877 = vsel %vm606, 1, 0
        %v3878 = vsel %vm607, 1, 0
        %v3879 = vsel %vm608, 1, 0
        %v3880 = vsel %vm609, 1, 0
        %v3881 = vsel %vm610, 1, 0
        %v3882 = vsel %vm611, 1, 0
        %v3883 = vsel %vm612, 1, 0
        %v3884 = vsel %vm613, 1, 0
        %v3885 = vsel %vm614, 1, 0
        %v3886 = vsel %vm615, 1, 0
        %v3887 = vsel %vm616, 1, 0
        %v3888 = vsel %vm617, 1, 0
        %v3889 = vsel %vm618, 1, 0
        %v3890 = vsel %vm619, 1, 0
        %v3891 = vsel %vm620, 1, 0
        %v3892 = vsel %vm621, 1, 0
        %v3893 = vsel %vm622, 1, 0
        %v3894 = vsel %vm623, 1, 0
        %v3895 = vsel %vm624, 1, 0
        %v3896 = vsel %vm625, 1, 0
        %v3897 = vsel %vm626, 1, 0
        %v3898 = vsel %vm627, 1, 0
        %3899 = vset.pattern.permute.xlu0 0
        %3900 = vperm.xlu0 %3899, %v3845
        %v3901 = vpop.permute.xlu0 %3900
        %3902 = vset.pattern.permute.xlu0 0
        %3903 = vperm.xlu0 %3902, %v3846
        %v3904 = vpop.permute.xlu0 %3903
        %3905 = vset.pattern.permute.xlu0 0
        %3906 = vperm.xlu0 %3905, %v3847
        %v3907 = vpop.permute.xlu0 %3906
        %3908 = vset.pattern.permute.xlu0 0
        %3909 = vperm.xlu0 %3908, %v3848
        %v3910 = vpop.permute.xlu0 %3909
        %3911 = vset.pattern.permute.xlu0 0
        %3912 = vperm.xlu0 %3911, %v3849
        %v3913 = vpop.permute.xlu0 %3912
        %3914 = vset.pattern.permute.xlu0 0
        %3915 = vperm.xlu0 %3914, %v3850
        %v3916 = vpop.permute.xlu0 %3915
        %3917 = vset.pattern.permute.xlu0 0
        %3918 = vperm.xlu0 %3917, %v3851
        %v3919 = vpop.permute.xlu0 %3918
        %3920 = vset.pattern.permute.xlu0 0
        %3921 = vperm.xlu0 %3920, %v3852
        %v3922 = vpop.permute.xlu0 %3921
        %3923 = vset.pattern.permute.xlu0 0
        %3924 = vperm.xlu0 %3923, %v3853
        %v3925 = vpop.permute.xlu0 %3924
        %3926 = vset.pattern.permute.xlu0 0
        %3927 = vperm.xlu0 %3926, %v3854
        %v3928 = vpop.permute.xlu0 %3927
        %3929 = vset.pattern.permute.xlu0 0
        %3930 = vperm.xlu0 %3929, %v3855
        %v3931 = vpop.permute.xlu0 %3930
        %3932 = vset.pattern.permute.xlu0 0
        %3933 = vperm.xlu0 %3932, %v3856
        %v3934 = vpop.permute.xlu0 %3933
        %3935 = vset.pattern.permute.xlu0 0
        %3936 = vperm.xlu0 %3935, %v3857
        %v3937 = vpop.permute.xlu0 %3936
        %3938 = vset.pattern.permute.xlu0 0
        %3939 = vperm.xlu0 %3938, %v3858
        %v3940 = vpop.permute.xlu0 %3939
        %3941 = vset.pattern.permute.xlu0 0
        %3942 = vperm.xlu0 %3941, %v3859
        %v3943 = vpop.permute.xlu0 %3942
        %3944 = vset.pattern.permute.xlu0 0
        %3945 = vperm.xlu0 %3944, %v3860
        %v3946 = vpop.permute.xlu0 %3945
        %3947 = vset.pattern.permute.xlu0 0
        %3948 = vperm.xlu0 %3947, %v3861
        %v3949 = vpop.permute.xlu0 %3948
        %3950 = vset.pattern.permute.xlu0 0
        %3951 = vperm.xlu0 %3950, %v3862
        %v3952 = vpop.permute.xlu0 %3951
        %3953 = vset.pattern.permute.xlu0 0
        %3954 = vperm.xlu0 %3953, %v3863
        %v3955 = vpop.permute.xlu0 %3954
        %3956 = vset.pattern.permute.xlu0 0
        %3957 = vperm.xlu0 %3956, %v3864
        %v3958 = vpop.permute.xlu0 %3957
        %3959 = vset.pattern.permute.xlu0 0
        %3960 = vperm.xlu0 %3959, %v3865
        %v3961 = vpop.permute.xlu0 %3960
        %3962 = vset.pattern.permute.xlu0 0
        %3963 = vperm.xlu0 %3962, %v3866
        %v3964 = vpop.permute.xlu0 %3963
        %3965 = vset.pattern.permute.xlu0 0
        %3966 = vperm.xlu0 %3965, %v3867
        %v3967 = vpop.permute.xlu0 %3966
        %3968 = vset.pattern.permute.xlu0 0
        %3969 = vperm.xlu0 %3968, %v3868
        %v3970 = vpop.permute.xlu0 %3969
        %3971 = vset.pattern.permute.xlu0 0
        %3972 = vperm.xlu0 %3971, %v3869
        %v3973 = vpop.permute.xlu0 %3972
        %3974 = vset.pattern.permute.xlu0 0
        %3975 = vperm.xlu0 %3974, %v3870
        %v3976 = vpop.permute.xlu0 %3975
        %3977 = vset.pattern.permute.xlu0 0
        %3978 = vperm.xlu0 %3977, %v3871
        %v3979 = vpop.permute.xlu0 %3978
        %3980 = vset.pattern.permute.xlu0 0
        %3981 = vperm.xlu0 %3980, %v3872
        %v3982 = vpop.permute.xlu0 %3981
        %3983 = vset.pattern.permute.xlu0 0
        %3984 = vperm.xlu0 %3983, %v3873
        %v3985 = vpop.permute.xlu0 %3984
        %3986 = vset.pattern.permute.xlu0 0
        %3987 = vperm.xlu0 %3986, %v3874
        %v3988 = vpop.permute.xlu0 %3987
        %3989 = vset.pattern.permute.xlu0 0
        %3990 = vperm.xlu0 %3989, %v3875
        %v3991 = vpop.permute.xlu0 %3990
        %3992 = vset.pattern.permute.xlu0 0
        %3993 = vperm.xlu0 %3992, %v3876
        %v3994 = vpop.permute.xlu0 %3993
        %3995 = vset.pattern.permute.xlu0 0
        %3996 = vperm.xlu0 %3995, %v3877
        %v3997 = vpop.permute.xlu0 %3996
        %3998 = vset.pattern.permute.xlu0 0
        %3999 = vperm.xlu0 %3998, %v3878
        %v4000 = vpop.permute.xlu0 %3999
        %4001 = vset.pattern.permute.xlu0 0
        %4002 = vperm.xlu0 %4001, %v3879
        %v4003 = vpop.permute.xlu0 %4002
        %4004 = vset.pattern.permute.xlu0 0
        %4005 = vperm.xlu0 %4004, %v3880
        %v4006 = vpop.permute.xlu0 %4005
        %4007 = vset.pattern.permute.xlu0 0
        %4008 = vperm.xlu0 %4007, %v3881
        %v4009 = vpop.permute.xlu0 %4008
        %4010 = vset.pattern.permute.xlu0 0
        %4011 = vperm.xlu0 %4010, %v3882
        %v4012 = vpop.permute.xlu0 %4011
        %4013 = vset.pattern.permute.xlu0 0
        %4014 = vperm.xlu0 %4013, %v3883
        %v4015 = vpop.permute.xlu0 %4014
        %4016 = vset.pattern.permute.xlu0 0
        %4017 = vperm.xlu0 %4016, %v3884
        %v4018 = vpop.permute.xlu0 %4017
        %4019 = vset.pattern.permute.xlu0 0
        %4020 = vperm.xlu0 %4019, %v3885
        %v4021 = vpop.permute.xlu0 %4020
        %4022 = vset.pattern.permute.xlu0 0
        %4023 = vperm.xlu0 %4022, %v3886
        %v4024 = vpop.permute.xlu0 %4023
        %4025 = vset.pattern.permute.xlu0 0
        %4026 = vperm.xlu0 %4025, %v3887
        %v4027 = vpop.permute.xlu0 %4026
        %4028 = vset.pattern.permute.xlu0 0
        %4029 = vperm.xlu0 %4028, %v3888
        %v4030 = vpop.permute.xlu0 %4029
        %4031 = vset.pattern.permute.xlu0 0
        %4032 = vperm.xlu0 %4031, %v3889
        %v4033 = vpop.permute.xlu0 %4032
        %4034 = vset.pattern.permute.xlu0 0
        %4035 = vperm.xlu0 %4034, %v3890
        %v4036 = vpop.permute.xlu0 %4035
        %4037 = vset.pattern.permute.xlu0 0
        %4038 = vperm.xlu0 %4037, %v3891
        %v4039 = vpop.permute.xlu0 %4038
        %4040 = vset.pattern.permute.xlu0 0
        %4041 = vperm.xlu0 %4040, %v3892
        %v4042 = vpop.permute.xlu0 %4041
        %4043 = vset.pattern.permute.xlu0 0
        %4044 = vperm.xlu0 %4043, %v3893
        %v4045 = vpop.permute.xlu0 %4044
        %4046 = vset.pattern.permute.xlu0 0
        %4047 = vperm.xlu0 %4046, %v3894
        %v4048 = vpop.permute.xlu0 %4047
        %4049 = vset.pattern.permute.xlu0 0
        %4050 = vperm.xlu0 %4049, %v3895
        %v4051 = vpop.permute.xlu0 %4050
        %4052 = vset.pattern.permute.xlu0 0
        %4053 = vperm.xlu0 %4052, %v3896
        %v4054 = vpop.permute.xlu0 %4053
        %4055 = vset.pattern.permute.xlu0 0
        %4056 = vperm.xlu0 %4055, %v3897
        %v4057 = vpop.permute.xlu0 %4056
        %4058 = vset.pattern.permute.xlu0 0
        %4059 = vperm.xlu0 %4058, %v3898
        %v4060 = vpop.permute.xlu0 %4059
        %vm4061 = vcmp.eq.s32.totalorder %v3901, 1
        %vm4062 = vcmp.eq.s32.totalorder %v3904, 1
        %vm4063 = vcmp.eq.s32.totalorder %v3907, 1
        %vm4064 = vcmp.eq.s32.totalorder %v3910, 1
        %vm4065 = vcmp.eq.s32.totalorder %v3913, 1
        %vm4066 = vcmp.eq.s32.totalorder %v3916, 1
        %vm4067 = vcmp.eq.s32.totalorder %v3919, 1
        %vm4068 = vcmp.eq.s32.totalorder %v3922, 1
        %vm4069 = vcmp.eq.s32.totalorder %v3925, 1
        %vm4070 = vcmp.eq.s32.totalorder %v3928, 1
        %vm4071 = vcmp.eq.s32.totalorder %v3931, 1
        %vm4072 = vcmp.eq.s32.totalorder %v3934, 1
        %vm4073 = vcmp.eq.s32.totalorder %v3937, 1
        %vm4074 = vcmp.eq.s32.totalorder %v3940, 1
        %vm4075 = vcmp.eq.s32.totalorder %v3943, 1
        %vm4076 = vcmp.eq.s32.totalorder %v3946, 1
        %vm4077 = vcmp.eq.s32.totalorder %v3949, 1
        %vm4078 = vcmp.eq.s32.totalorder %v3952, 1
        %vm4079 = vcmp.eq.s32.totalorder %v3955, 1
        %vm4080 = vcmp.eq.s32.totalorder %v3958, 1
        %vm4081 = vcmp.eq.s32.totalorder %v3961, 1
        %vm4082 = vcmp.eq.s32.totalorder %v3964, 1
        %vm4083 = vcmp.eq.s32.totalorder %v3967, 1
        %vm4084 = vcmp.eq.s32.totalorder %v3970, 1
        %vm4085 = vcmp.eq.s32.totalorder %v3973, 1
        %vm4086 = vcmp.eq.s32.totalorder %v3976, 1
        %vm4087 = vcmp.eq.s32.totalorder %v3979, 1
        %vm4088 = vcmp.eq.s32.totalorder %v3982, 1
        %vm4089 = vcmp.eq.s32.totalorder %v3985, 1
        %vm4090 = vcmp.eq.s32.totalorder %v3988, 1
        %vm4091 = vcmp.eq.s32.totalorder %v3991, 1
        %vm4092 = vcmp.eq.s32.totalorder %v3994, 1
        %vm4093 = vcmp.eq.s32.totalorder %v3997, 1
        %vm4094 = vcmp.eq.s32.totalorder %v4000, 1
        %vm4095 = vcmp.eq.s32.totalorder %v4003, 1
        %vm4096 = vcmp.eq.s32.totalorder %v4006, 1
        %vm4097 = vcmp.eq.s32.totalorder %v4009, 1
        %vm4098 = vcmp.eq.s32.totalorder %v4012, 1
        %vm4099 = vcmp.eq.s32.totalorder %v4015, 1
        %vm4100 = vcmp.eq.s32.totalorder %v4018, 1
        %vm4101 = vcmp.eq.s32.totalorder %v4021, 1
        %vm4102 = vcmp.eq.s32.totalorder %v4024, 1
        %vm4103 = vcmp.eq.s32.totalorder %v4027, 1
        %vm4104 = vcmp.eq.s32.totalorder %v4030, 1
        %vm4105 = vcmp.eq.s32.totalorder %v4033, 1
        %vm4106 = vcmp.eq.s32.totalorder %v4036, 1
        %vm4107 = vcmp.eq.s32.totalorder %v4039, 1
        %vm4108 = vcmp.eq.s32.totalorder %v4042, 1
        %vm4109 = vcmp.eq.s32.totalorder %v4045, 1
        %vm4110 = vcmp.eq.s32.totalorder %v4048, 1
        %vm4111 = vcmp.eq.s32.totalorder %v4051, 1
        %vm4112 = vcmp.eq.s32.totalorder %v4054, 1
        %vm4113 = vcmp.eq.s32.totalorder %v4057, 1
        %vm4114 = vcmp.eq.s32.totalorder %v4060, 1
        %v4115 = vsel %vm4061, %v3791, 0.0
        %v4116 = vsel %vm4062, %v3792, 0.0
        %v4117 = vsel %vm4063, %v3793, 0.0
        %v4118 = vsel %vm4064, %v3794, 0.0
        %v4119 = vsel %vm4065, %v3795, 0.0
        %v4120 = vsel %vm4066, %v3796, 0.0
        %v4121 = vsel %vm4067, %v3797, 0.0
        %v4122 = vsel %vm4068, %v3798, 0.0
        %v4123 = vsel %vm4069, %v3799, 0.0
        %v4124 = vsel %vm4070, %v3800, 0.0
        %v4125 = vsel %vm4071, %v3801, 0.0
        %v4126 = vsel %vm4072, %v3802, 0.0
        %v4127 = vsel %vm4073, %v3803, 0.0
        %v4128 = vsel %vm4074, %v3804, 0.0
        %v4129 = vsel %vm4075, %v3805, 0.0
        %v4130 = vsel %vm4076, %v3806, 0.0
        %v4131 = vsel %vm4077, %v3807, 0.0
        %v4132 = vsel %vm4078, %v3808, 0.0
        %v4133 = vsel %vm4079, %v3809, 0.0
        %v4134 = vsel %vm4080, %v3810, 0.0
        %v4135 = vsel %vm4081, %v3811, 0.0
        %v4136 = vsel %vm4082, %v3812, 0.0
        %v4137 = vsel %vm4083, %v3813, 0.0
        %v4138 = vsel %vm4084, %v3814, 0.0
        %v4139 = vsel %vm4085, %v3815, 0.0
        %v4140 = vsel %vm4086, %v3816, 0.0
        %v4141 = vsel %vm4087, %v3817, 0.0
        %v4142 = vsel %vm4088, %v3818, 0.0
        %v4143 = vsel %vm4089, %v3819, 0.0
        %v4144 = vsel %vm4090, %v3820, 0.0
        %v4145 = vsel %vm4091, %v3821, 0.0
        %v4146 = vsel %vm4092, %v3822, 0.0
        %v4147 = vsel %vm4093, %v3823, 0.0
        %v4148 = vsel %vm4094, %v3824, 0.0
        %v4149 = vsel %vm4095, %v3825, 0.0
        %v4150 = vsel %vm4096, %v3826, 0.0
        %v4151 = vsel %vm4097, %v3827, 0.0
        %v4152 = vsel %vm4098, %v3828, 0.0
        %v4153 = vsel %vm4099, %v3829, 0.0
        %v4154 = vsel %vm4100, %v3830, 0.0
        %v4155 = vsel %vm4101, %v3831, 0.0
        %v4156 = vsel %vm4102, %v3832, 0.0
        %v4157 = vsel %vm4103, %v3833, 0.0
        %v4158 = vsel %vm4104, %v3834, 0.0
        %v4159 = vsel %vm4105, %v3835, 0.0
        %v4160 = vsel %vm4106, %v3836, 0.0
        %v4161 = vsel %vm4107, %v3837, 0.0
        %v4162 = vsel %vm4108, %v3838, 0.0
        %v4163 = vsel %vm4109, %v3839, 0.0
        %v4164 = vsel %vm4110, %v3840, 0.0
        %v4165 = vsel %vm4111, %v3841, 0.0
        %v4166 = vsel %vm4112, %v3842, 0.0
        %v4167 = vsel %vm4113, %v3843, 0.0
        %v4168 = vsel %vm4114, %v3844, 0.0
        %v4169 = vpack.c.bf16 %v4116, %v4115
        %v4170 = vpack.c.bf16 %v4118, %v4117
        %v4171 = vpack.c.bf16 %v4120, %v4119
        %v4172 = vpack.c.bf16 %v4122, %v4121
        %v4173 = vpack.c.bf16 %v4124, %v4123
        %v4174 = vpack.c.bf16 %v4126, %v4125
        %v4175 = vpack.c.bf16 %v4128, %v4127
        %v4176 = vpack.c.bf16 %v4130, %v4129
        %v4177 = vpack.c.bf16 %v4132, %v4131
        %v4178 = vpack.c.bf16 %v4134, %v4133
        %v4179 = vpack.c.bf16 %v4136, %v4135
        %v4180 = vpack.c.bf16 %v4138, %v4137
        %v4181 = vpack.c.bf16 %v4140, %v4139
        %v4182 = vpack.c.bf16 %v4142, %v4141
        %v4183 = vpack.c.bf16 %v4144, %v4143
        %v4184 = vpack.c.bf16 %v4146, %v4145
        %v4185 = vpack.c.bf16 %v4148, %v4147
        %v4186 = vpack.c.bf16 %v4150, %v4149
        %v4187 = vpack.c.bf16 %v4152, %v4151
        %v4188 = vpack.c.bf16 %v4154, %v4153
        %v4189 = vpack.c.bf16 %v4156, %v4155
        %v4190 = vpack.c.bf16 %v4158, %v4157
        %v4191 = vpack.c.bf16 %v4160, %v4159
        %v4192 = vpack.c.bf16 %v4162, %v4161
        %v4193 = vpack.c.bf16 %v4164, %v4163
        %v4194 = vpack.c.bf16 %v4166, %v4165
        %v4195 = vpack.c.bf16 %v4168, %v4167
        %v4196 = vld [vmem:[%s8] sm:$0xf]
        %v4197 = vld [vmem:[%s8 + $0x4] sm:$0xf]
        %v4198 = vld [vmem:[%s8 + $0x8] sm:$0xf]
        %v4199 = vld [vmem:[%s8 + $0xc] sm:$0xf]
        %v4200 = vld [vmem:[%s8 + $0x10] sm:$0xf]
        %v4201 = vld [vmem:[%s8 + $0x14] sm:$0xf]
        %v4202 = vld [vmem:[%s8 + $0x18] sm:$0xf]
        %v4203 = vld [vmem:[%s8 + $0x1c] sm:$0xf]
        %v4204 = vld [vmem:[%s8 + $0x20] sm:$0xf]
        %v4205 = vld [vmem:[%s8 + $0x24] sm:$0xf]
        %v4206 = vld [vmem:[%s8 + $0x28] sm:$0xf]
        %v4207 = vld [vmem:[%s8 + $0x2c] sm:$0xf]
        %v4208 = vld [vmem:[%s8 + $0x30] sm:$0xf]
        %v4209 = vld [vmem:[%s8 + $0x34] sm:$0xf]
        %v4210 = vld [vmem:[%s8 + $0x38] sm:$0xf]
        %v4211 = vld [vmem:[%s8 + $0x3c] sm:$0xf]
        %v4228 = vunpack.c.l.b16 %v4196
        %v4229 = vunpack.c.l.b16 %v4197
        %v4230 = vunpack.c.l.b16 %v4198
        %v4231 = vunpack.c.l.b16 %v4199
        %v4232 = vunpack.c.l.b16 %v4200
        %v4233 = vunpack.c.l.b16 %v4201
        %v4234 = vunpack.c.l.b16 %v4202
        %v4235 = vunpack.c.l.b16 %v4203
        %v4236 = vunpack.c.l.b16 %v4204
        %v4237 = vunpack.c.l.b16 %v4205
        %v4238 = vunpack.c.l.b16 %v4206
        %v4239 = vunpack.c.l.b16 %v4207
        %v4240 = vunpack.c.l.b16 %v4208
        %v4241 = vunpack.c.l.b16 %v4209
        %v4242 = vunpack.c.l.b16 %v4210
        %v4243 = vunpack.c.l.b16 %v4211
        %v4244 = vpack.c.b16 %v4229, %v4228
        %v4245 = vpack.c.b16 %v4231, %v4230
        %v4246 = vpack.c.b16 %v4233, %v4232
        %v4247 = vpack.c.b16 %v4235, %v4234
        %v4248 = vpack.c.b16 %v4237, %v4236
        %v4249 = vpack.c.b16 %v4239, %v4238
        %v4250 = vpack.c.b16 %v4241, %v4240
        %v4251 = vpack.c.b16 %v4243, %v4242
        %4260 = vmatpush.bf16.msra.mxu0 %v4251
        %4261 = vmatpush.bf16.msra.mxu0 %v4250
        %4262 = vmatpush.bf16.msra.mxu0 %v4249
        %4263 = vmatpush.bf16.msra.mxu0 %v4248
        %4264 = vmatpush.bf16.msra.mxu0 %v4247
        %4265 = vmatpush.bf16.msra.mxu0 %v4246
        %4266 = vmatpush.bf16.msra.mxu0 %v4245
        %4267 = vmatpush.bf16.msra.mxu0 %v4244
        %4268 = vmatmul.bf16.gmra.mxu0 %v4169
        %v4269 = vpop.f32.mrf.mxu0
        %v4270 = vadd.f32 0.0, %v4269
        %v4271 = vpop.f32.mrf.mxu0
        %v4272 = vadd.f32 0.0, %v4271
        %4273 = vmatmul.bf16.gmra.mxu0 %v4170
        %v4274 = vpop.f32.mrf.mxu0
        %v4275 = vadd.f32 0.0, %v4274
        %v4276 = vpop.f32.mrf.mxu0
        %v4277 = vadd.f32 0.0, %v4276
        %4278 = vmatmul.bf16.gmra.mxu0 %v4171
        %v4279 = vpop.f32.mrf.mxu0
        %v4280 = vadd.f32 0.0, %v4279
        %v4281 = vpop.f32.mrf.mxu0
        %v4282 = vadd.f32 0.0, %v4281
        %4283 = vmatmul.bf16.gmra.mxu0 %v4172
        %v4284 = vpop.f32.mrf.mxu0
        %v4285 = vadd.f32 0.0, %v4284
        %v4286 = vpop.f32.mrf.mxu0
        %v4287 = vadd.f32 0.0, %v4286
        %4288 = vmatmul.bf16.gmra.mxu0 %v4173
        %v4289 = vpop.f32.mrf.mxu0
        %v4290 = vadd.f32 0.0, %v4289
        %v4291 = vpop.f32.mrf.mxu0
        %v4292 = vadd.f32 0.0, %v4291
        %4293 = vmatmul.bf16.gmra.mxu0 %v4174
        %v4294 = vpop.f32.mrf.mxu0
        %v4295 = vadd.f32 0.0, %v4294
        %v4296 = vpop.f32.mrf.mxu0
        %v4297 = vadd.f32 0.0, %v4296
        %4298 = vmatmul.bf16.gmra.mxu0 %v4175
        %v4299 = vpop.f32.mrf.mxu0
        %v4300 = vadd.f32 0.0, %v4299
        %v4301 = vpop.f32.mrf.mxu0
        %v4302 = vadd.f32 0.0, %v4301
        %4303 = vmatmul.bf16.gmra.mxu0 %v4176
        %v4304 = vpop.f32.mrf.mxu0
        %v4305 = vadd.f32 0.0, %v4304
        %v4306 = vpop.f32.mrf.mxu0
        %v4307 = vadd.f32 0.0, %v4306
        %4308 = vmatmul.bf16.gmra.mxu0 %v4177
        %v4309 = vpop.f32.mrf.mxu0
        %v4310 = vadd.f32 0.0, %v4309
        %v4311 = vpop.f32.mrf.mxu0
        %v4312 = vadd.f32 0.0, %v4311
        %4313 = vmatmul.bf16.gmra.mxu0 %v4178
        %v4314 = vpop.f32.mrf.mxu0
        %v4315 = vadd.f32 0.0, %v4314
        %v4316 = vpop.f32.mrf.mxu0
        %v4317 = vadd.f32 0.0, %v4316
        %4318 = vmatmul.bf16.gmra.mxu0 %v4179
        %v4319 = vpop.f32.mrf.mxu0
        %v4320 = vadd.f32 0.0, %v4319
        %v4321 = vpop.f32.mrf.mxu0
        %v4322 = vadd.f32 0.0, %v4321
        %4323 = vmatmul.bf16.gmra.mxu0 %v4180
        %v4324 = vpop.f32.mrf.mxu0
        %v4325 = vadd.f32 0.0, %v4324
        %v4326 = vpop.f32.mrf.mxu0
        %v4327 = vadd.f32 0.0, %v4326
        %4328 = vmatmul.bf16.gmra.mxu0 %v4181
        %v4329 = vpop.f32.mrf.mxu0
        %v4330 = vadd.f32 0.0, %v4329
        %v4331 = vpop.f32.mrf.mxu0
        %v4332 = vadd.f32 0.0, %v4331
        %4333 = vmatmul.bf16.gmra.mxu0 %v4182
        %v4334 = vpop.f32.mrf.mxu0
        %v4335 = vadd.f32 0.0, %v4334
        %v4336 = vpop.f32.mrf.mxu0
        %v4337 = vadd.f32 0.0, %v4336
        %4338 = vmatmul.bf16.gmra.mxu0 %v4183
        %v4339 = vpop.f32.mrf.mxu0
        %v4340 = vadd.f32 0.0, %v4339
        %v4341 = vpop.f32.mrf.mxu0
        %v4342 = vadd.f32 0.0, %v4341
        %4343 = vmatmul.bf16.gmra.mxu0 %v4184
        %v4344 = vpop.f32.mrf.mxu0
        %v4345 = vadd.f32 0.0, %v4344
        %v4346 = vpop.f32.mrf.mxu0
        %v4347 = vadd.f32 0.0, %v4346
        %4348 = vmatmul.bf16.gmra.mxu0 %v4185
        %v4349 = vpop.f32.mrf.mxu0
        %v4350 = vadd.f32 0.0, %v4349
        %v4351 = vpop.f32.mrf.mxu0
        %v4352 = vadd.f32 0.0, %v4351
        %4353 = vmatmul.bf16.gmra.mxu0 %v4186
        %v4354 = vpop.f32.mrf.mxu0
        %v4355 = vadd.f32 0.0, %v4354
        %v4356 = vpop.f32.mrf.mxu0
        %v4357 = vadd.f32 0.0, %v4356
        %4358 = vmatmul.bf16.gmra.mxu0 %v4187
        %v4359 = vpop.f32.mrf.mxu0
        %v4360 = vadd.f32 0.0, %v4359
        %v4361 = vpop.f32.mrf.mxu0
        %v4362 = vadd.f32 0.0, %v4361
        %4363 = vmatmul.bf16.gmra.mxu0 %v4188
        %v4364 = vpop.f32.mrf.mxu0
        %v4365 = vadd.f32 0.0, %v4364
        %v4366 = vpop.f32.mrf.mxu0
        %v4367 = vadd.f32 0.0, %v4366
        %4368 = vmatmul.bf16.gmra.mxu0 %v4189
        %v4369 = vpop.f32.mrf.mxu0
        %v4370 = vadd.f32 0.0, %v4369
        %v4371 = vpop.f32.mrf.mxu0
        %v4372 = vadd.f32 0.0, %v4371
        %4373 = vmatmul.bf16.gmra.mxu0 %v4190
        %v4374 = vpop.f32.mrf.mxu0
        %v4375 = vadd.f32 0.0, %v4374
        %v4376 = vpop.f32.mrf.mxu0
        %v4377 = vadd.f32 0.0, %v4376
        %4378 = vmatmul.bf16.gmra.mxu0 %v4191
        %v4379 = vpop.f32.mrf.mxu0
        %v4380 = vadd.f32 0.0, %v4379
        %v4381 = vpop.f32.mrf.mxu0
        %v4382 = vadd.f32 0.0, %v4381
        %4383 = vmatmul.bf16.gmra.mxu0 %v4192
        %v4384 = vpop.f32.mrf.mxu0
        %v4385 = vadd.f32 0.0, %v4384
        %v4386 = vpop.f32.mrf.mxu0
        %v4387 = vadd.f32 0.0, %v4386
        %4388 = vmatmul.bf16.gmra.mxu0 %v4193
        %v4389 = vpop.f32.mrf.mxu0
        %v4390 = vadd.f32 0.0, %v4389
        %v4391 = vpop.f32.mrf.mxu0
        %v4392 = vadd.f32 0.0, %v4391
        %4393 = vmatmul.bf16.gmra.mxu0 %v4194
        %v4394 = vpop.f32.mrf.mxu0
        %v4395 = vadd.f32 0.0, %v4394
        %v4396 = vpop.f32.mrf.mxu0
        %v4397 = vadd.f32 0.0, %v4396
        %4398 = vmatmul.bf16.gmra.mxu0 %v4195
        %v4399 = vpop.f32.mrf.mxu0
        %v4400 = vadd.f32 0.0, %v4399
        %v4401 = vpop.f32.mrf.mxu0
        %v4402 = vadd.f32 0.0, %v4401
        %4403 = vdwg.mxu0
        %v4404 = vrot.slane %v4270, 7
        %v4405 = vrot.slane %v4272, 7
        %v4406 = vrot.slane %v4275, 7
        %v4407 = vrot.slane %v4277, 7
        %v4408 = vrot.slane %v4280, 7
        %v4409 = vrot.slane %v4282, 7
        %v4410 = vrot.slane %v4285, 7
        %v4411 = vrot.slane %v4287, 7
        %v4412 = vrot.slane %v4290, 7
        %v4413 = vrot.slane %v4292, 7
        %v4414 = vrot.slane %v4295, 7
        %v4415 = vrot.slane %v4297, 7
        %v4416 = vrot.slane %v4300, 7
        %v4417 = vrot.slane %v4302, 7
        %v4418 = vrot.slane %v4305, 7
        %v4419 = vrot.slane %v4307, 7
        %v4420 = vrot.slane %v4310, 7
        %v4421 = vrot.slane %v4312, 7
        %v4422 = vrot.slane %v4315, 7
        %v4423 = vrot.slane %v4317, 7
        %v4424 = vrot.slane %v4320, 7
        %v4425 = vrot.slane %v4322, 7
        %v4426 = vrot.slane %v4325, 7
        %v4427 = vrot.slane %v4327, 7
        %v4428 = vrot.slane %v4330, 7
        %v4429 = vrot.slane %v4332, 7
        %v4430 = vrot.slane %v4335, 7
        %v4431 = vrot.slane %v4337, 7
        %v4432 = vrot.slane %v4340, 7
        %v4433 = vrot.slane %v4342, 7
        %v4434 = vrot.slane %v4345, 7
        %v4435 = vrot.slane %v4347, 7
        %v4436 = vrot.slane %v4350, 7
        %v4437 = vrot.slane %v4352, 7
        %v4438 = vrot.slane %v4355, 7
        %v4439 = vrot.slane %v4357, 7
        %v4440 = vrot.slane %v4360, 7
        %v4441 = vrot.slane %v4362, 7
        %v4442 = vrot.slane %v4365, 7
        %v4443 = vrot.slane %v4367, 7
        %v4444 = vrot.slane %v4370, 7
        %v4445 = vrot.slane %v4372, 7
        %v4446 = vrot.slane %v4375, 7
        %v4447 = vrot.slane %v4377, 7
        %v4448 = vrot.slane %v4380, 7
        %v4449 = vrot.slane %v4382, 7
        %v4450 = vrot.slane %v4385, 7
        %v4451 = vrot.slane %v4387, 7
        %v4452 = vrot.slane %v4390, 7
        %v4453 = vrot.slane %v4392, 7
        %v4454 = vrot.slane %v4395, 7
        %v4455 = vrot.slane %v4397, 7
        %v4456 = vrot.slane %v4400, 7
        %v4457 = vrot.slane %v4402, 7
        %v4458 = vsel %vm1050, %v4456, %v4457
        %v4459 = vsel %vm1050, %v4455, %v4456
        %v4460 = vsel %vm1050, %v4454, %v4455
        %v4461 = vsel %vm1050, %v4453, %v4454
        %v4462 = vsel %vm1050, %v4452, %v4453
        %v4463 = vsel %vm1050, %v4451, %v4452
        %v4464 = vsel %vm1050, %v4450, %v4451
        %v4465 = vsel %vm1050, %v4449, %v4450
        %v4466 = vsel %vm1050, %v4448, %v4449
        %v4467 = vsel %vm1050, %v4447, %v4448
        %v4468 = vsel %vm1050, %v4446, %v4447
        %v4469 = vsel %vm1050, %v4445, %v4446
        %v4470 = vsel %vm1050, %v4444, %v4445
        %v4471 = vsel %vm1050, %v4443, %v4444
        %v4472 = vsel %vm1050, %v4442, %v4443
        %v4473 = vsel %vm1050, %v4441, %v4442
        %v4474 = vsel %vm1050, %v4440, %v4441
        %v4475 = vsel %vm1050, %v4439, %v4440
        %v4476 = vsel %vm1050, %v4438, %v4439
        %v4477 = vsel %vm1050, %v4437, %v4438
        %v4478 = vsel %vm1050, %v4436, %v4437
        %v4479 = vsel %vm1050, %v4435, %v4436
        %v4480 = vsel %vm1050, %v4434, %v4435
        %v4481 = vsel %vm1050, %v4433, %v4434
        %v4482 = vsel %vm1050, %v4432, %v4433
        %v4483 = vsel %vm1050, %v4431, %v4432
        %v4484 = vsel %vm1050, %v4430, %v4431
        %v4485 = vsel %vm1050, %v4429, %v4430
        %v4486 = vsel %vm1050, %v4428, %v4429
        %v4487 = vsel %vm1050, %v4427, %v4428
        %v4488 = vsel %vm1050, %v4426, %v4427
        %v4489 = vsel %vm1050, %v4425, %v4426
        %v4490 = vsel %vm1050, %v4424, %v4425
        %v4491 = vsel %vm1050, %v4423, %v4424
        %v4492 = vsel %vm1050, %v4422, %v4423
        %v4493 = vsel %vm1050, %v4421, %v4422
        %v4494 = vsel %vm1050, %v4420, %v4421
        %v4495 = vsel %vm1050, %v4419, %v4420
        %v4496 = vsel %vm1050, %v4418, %v4419
        %v4497 = vsel %vm1050, %v4417, %v4418
        %v4498 = vsel %vm1050, %v4416, %v4417
        %v4499 = vsel %vm1050, %v4415, %v4416
        %v4500 = vsel %vm1050, %v4414, %v4415
        %v4501 = vsel %vm1050, %v4413, %v4414
        %v4502 = vsel %vm1050, %v4412, %v4413
        %v4503 = vsel %vm1050, %v4411, %v4412
        %v4504 = vsel %vm1050, %v4410, %v4411
        %v4505 = vsel %vm1050, %v4409, %v4410
        %v4506 = vsel %vm1050, %v4408, %v4409
        %v4507 = vsel %vm1050, %v4407, %v4408
        %v4508 = vsel %vm1050, %v4406, %v4407
        %v4509 = vsel %vm1050, %v4405, %v4406
        %v4510 = vsel %vm1050, %v4404, %v4405
        %v4511 = vsel %vm1050, %v4457, %v4404
        %s4512 = scalar_lea.vmem %s8, 64
        %v4513 = vld [vmem:[%s4512] sm:$0xf]
        %v4514 = vld [vmem:[%s4512 + $0x4] sm:$0xf]
        %v4515 = vld [vmem:[%s4512 + $0x8] sm:$0xf]
        %v4516 = vld [vmem:[%s4512 + $0xc] sm:$0xf]
        %v4517 = vld [vmem:[%s4512 + $0x10] sm:$0xf]
        %v4518 = vld [vmem:[%s4512 + $0x14] sm:$0xf]
        %v4519 = vld [vmem:[%s4512 + $0x18] sm:$0xf]
        %v4520 = vld [vmem:[%s4512 + $0x1c] sm:$0xf]
        %v4521 = vld [vmem:[%s4512 + $0x20] sm:$0xf]
        %v4522 = vld [vmem:[%s4512 + $0x24] sm:$0xf]
        %v4523 = vld [vmem:[%s4512 + $0x28] sm:$0xf]
        %v4524 = vld [vmem:[%s4512 + $0x2c] sm:$0xf]
        %v4525 = vld [vmem:[%s4512 + $0x30] sm:$0xf]
        %v4526 = vld [vmem:[%s4512 + $0x34] sm:$0xf]
        %v4527 = vld [vmem:[%s4512 + $0x38] sm:$0xf]
        %v4528 = vld [vmem:[%s4512 + $0x3c] sm:$0xf]
        %v4545 = vunpack.c.l.b16 %v4513
        %v4546 = vunpack.c.l.b16 %v4514
        %v4547 = vunpack.c.l.b16 %v4515
        %v4548 = vunpack.c.l.b16 %v4516
        %v4549 = vunpack.c.l.b16 %v4517
        %v4550 = vunpack.c.l.b16 %v4518
        %v4551 = vunpack.c.l.b16 %v4519
        %v4552 = vunpack.c.l.b16 %v4520
        %v4553 = vunpack.c.l.b16 %v4521
        %v4554 = vunpack.c.l.b16 %v4522
        %v4555 = vunpack.c.l.b16 %v4523
        %v4556 = vunpack.c.l.b16 %v4524
        %v4557 = vunpack.c.l.b16 %v4525
        %v4558 = vunpack.c.l.b16 %v4526
        %v4559 = vunpack.c.l.b16 %v4527
        %v4560 = vunpack.c.l.b16 %v4528
        %v4561 = vpack.c.b16 %v4546, %v4545
        %v4562 = vpack.c.b16 %v4548, %v4547
        %v4563 = vpack.c.b16 %v4550, %v4549
        %v4564 = vpack.c.b16 %v4552, %v4551
        %v4565 = vpack.c.b16 %v4554, %v4553
        %v4566 = vpack.c.b16 %v4556, %v4555
        %v4567 = vpack.c.b16 %v4558, %v4557
        %v4568 = vpack.c.b16 %v4560, %v4559
        %4577 = vmatpush.bf16.msra.mxu0 %v4568
        %4578 = vmatpush.bf16.msra.mxu0 %v4567
        %4579 = vmatpush.bf16.msra.mxu0 %v4566
        %4580 = vmatpush.bf16.msra.mxu0 %v4565
        %4581 = vmatpush.bf16.msra.mxu0 %v4564
        %4582 = vmatpush.bf16.msra.mxu0 %v4563
        %4583 = vmatpush.bf16.msra.mxu0 %v4562
        %4584 = vmatpush.bf16.msra.mxu0 %v4561
        %4585 = vmatmul.bf16.gmra.mxu0 %v4169
        %v4586 = vpop.f32.mrf.mxu0
        %v4587 = vadd.f32 0.0, %v4586
        %v4588 = vpop.f32.mrf.mxu0
        %v4589 = vadd.f32 0.0, %v4588
        %4590 = vmatmul.bf16.gmra.mxu0 %v4170
        %v4591 = vpop.f32.mrf.mxu0
        %v4592 = vadd.f32 0.0, %v4591
        %v4593 = vpop.f32.mrf.mxu0
        %v4594 = vadd.f32 0.0, %v4593
        %4595 = vmatmul.bf16.gmra.mxu0 %v4171
        %v4596 = vpop.f32.mrf.mxu0
        %v4597 = vadd.f32 0.0, %v4596
        %v4598 = vpop.f32.mrf.mxu0
        %v4599 = vadd.f32 0.0, %v4598
        %4600 = vmatmul.bf16.gmra.mxu0 %v4172
        %v4601 = vpop.f32.mrf.mxu0
        %v4602 = vadd.f32 0.0, %v4601
        %v4603 = vpop.f32.mrf.mxu0
        %v4604 = vadd.f32 0.0, %v4603
        %4605 = vmatmul.bf16.gmra.mxu0 %v4173
        %v4606 = vpop.f32.mrf.mxu0
        %v4607 = vadd.f32 0.0, %v4606
        %v4608 = vpop.f32.mrf.mxu0
        %v4609 = vadd.f32 0.0, %v4608
        %4610 = vmatmul.bf16.gmra.mxu0 %v4174
        %v4611 = vpop.f32.mrf.mxu0
        %v4612 = vadd.f32 0.0, %v4611
        %v4613 = vpop.f32.mrf.mxu0
        %v4614 = vadd.f32 0.0, %v4613
        %4615 = vmatmul.bf16.gmra.mxu0 %v4175
        %v4616 = vpop.f32.mrf.mxu0
        %v4617 = vadd.f32 0.0, %v4616
        %v4618 = vpop.f32.mrf.mxu0
        %v4619 = vadd.f32 0.0, %v4618
        %4620 = vmatmul.bf16.gmra.mxu0 %v4176
        %v4621 = vpop.f32.mrf.mxu0
        %v4622 = vadd.f32 0.0, %v4621
        %v4623 = vpop.f32.mrf.mxu0
        %v4624 = vadd.f32 0.0, %v4623
        %4625 = vmatmul.bf16.gmra.mxu0 %v4177
        %v4626 = vpop.f32.mrf.mxu0
        %v4627 = vadd.f32 0.0, %v4626
        %v4628 = vpop.f32.mrf.mxu0
        %v4629 = vadd.f32 0.0, %v4628
        %4630 = vmatmul.bf16.gmra.mxu0 %v4178
        %v4631 = vpop.f32.mrf.mxu0
        %v4632 = vadd.f32 0.0, %v4631
        %v4633 = vpop.f32.mrf.mxu0
        %v4634 = vadd.f32 0.0, %v4633
        %4635 = vmatmul.bf16.gmra.mxu0 %v4179
        %v4636 = vpop.f32.mrf.mxu0
        %v4637 = vadd.f32 0.0, %v4636
        %v4638 = vpop.f32.mrf.mxu0
        %v4639 = vadd.f32 0.0, %v4638
        %4640 = vmatmul.bf16.gmra.mxu0 %v4180
        %v4641 = vpop.f32.mrf.mxu0
        %v4642 = vadd.f32 0.0, %v4641
        %v4643 = vpop.f32.mrf.mxu0
        %v4644 = vadd.f32 0.0, %v4643
        %4645 = vmatmul.bf16.gmra.mxu0 %v4181
        %v4646 = vpop.f32.mrf.mxu0
        %v4647 = vadd.f32 0.0, %v4646
        %v4648 = vpop.f32.mrf.mxu0
        %v4649 = vadd.f32 0.0, %v4648
        %4650 = vmatmul.bf16.gmra.mxu0 %v4182
        %v4651 = vpop.f32.mrf.mxu0
        %v4652 = vadd.f32 0.0, %v4651
        %v4653 = vpop.f32.mrf.mxu0
        %v4654 = vadd.f32 0.0, %v4653
        %4655 = vmatmul.bf16.gmra.mxu0 %v4183
        %v4656 = vpop.f32.mrf.mxu0
        %v4657 = vadd.f32 0.0, %v4656
        %v4658 = vpop.f32.mrf.mxu0
        %v4659 = vadd.f32 0.0, %v4658
        %4660 = vmatmul.bf16.gmra.mxu0 %v4184
        %v4661 = vpop.f32.mrf.mxu0
        %v4662 = vadd.f32 0.0, %v4661
        %v4663 = vpop.f32.mrf.mxu0
        %v4664 = vadd.f32 0.0, %v4663
        %4665 = vmatmul.bf16.gmra.mxu0 %v4185
        %v4666 = vpop.f32.mrf.mxu0
        %v4667 = vadd.f32 0.0, %v4666
        %v4668 = vpop.f32.mrf.mxu0
        %v4669 = vadd.f32 0.0, %v4668
        %4670 = vmatmul.bf16.gmra.mxu0 %v4186
        %v4671 = vpop.f32.mrf.mxu0
        %v4672 = vadd.f32 0.0, %v4671
        %v4673 = vpop.f32.mrf.mxu0
        %v4674 = vadd.f32 0.0, %v4673
        %4675 = vmatmul.bf16.gmra.mxu0 %v4187
        %v4676 = vpop.f32.mrf.mxu0
        %v4677 = vadd.f32 0.0, %v4676
        %v4678 = vpop.f32.mrf.mxu0
        %v4679 = vadd.f32 0.0, %v4678
        %4680 = vmatmul.bf16.gmra.mxu0 %v4188
        %v4681 = vpop.f32.mrf.mxu0
        %v4682 = vadd.f32 0.0, %v4681
        %v4683 = vpop.f32.mrf.mxu0
        %v4684 = vadd.f32 0.0, %v4683
        %4685 = vmatmul.bf16.gmra.mxu0 %v4189
        %v4686 = vpop.f32.mrf.mxu0
        %v4687 = vadd.f32 0.0, %v4686
        %v4688 = vpop.f32.mrf.mxu0
        %v4689 = vadd.f32 0.0, %v4688
        %4690 = vmatmul.bf16.gmra.mxu0 %v4190
        %v4691 = vpop.f32.mrf.mxu0
        %v4692 = vadd.f32 0.0, %v4691
        %v4693 = vpop.f32.mrf.mxu0
        %v4694 = vadd.f32 0.0, %v4693
        %4695 = vmatmul.bf16.gmra.mxu0 %v4191
        %v4696 = vpop.f32.mrf.mxu0
        %v4697 = vadd.f32 0.0, %v4696
        %v4698 = vpop.f32.mrf.mxu0
        %v4699 = vadd.f32 0.0, %v4698
        %4700 = vmatmul.bf16.gmra.mxu0 %v4192
        %v4701 = vpop.f32.mrf.mxu0
        %v4702 = vadd.f32 0.0, %v4701
        %v4703 = vpop.f32.mrf.mxu0
        %v4704 = vadd.f32 0.0, %v4703
        %4705 = vmatmul.bf16.gmra.mxu0 %v4193
        %v4706 = vpop.f32.mrf.mxu0
        %v4707 = vadd.f32 0.0, %v4706
        %v4708 = vpop.f32.mrf.mxu0
        %v4709 = vadd.f32 0.0, %v4708
        %4710 = vmatmul.bf16.gmra.mxu0 %v4194
        %v4711 = vpop.f32.mrf.mxu0
        %v4712 = vadd.f32 0.0, %v4711
        %v4713 = vpop.f32.mrf.mxu0
        %v4714 = vadd.f32 0.0, %v4713
        %4715 = vmatmul.bf16.gmra.mxu0 %v4195
        %v4716 = vpop.f32.mrf.mxu0
        %v4717 = vadd.f32 0.0, %v4716
        %v4718 = vpop.f32.mrf.mxu0
        %v4719 = vadd.f32 0.0, %v4718
        %4720 = vdwg.mxu0
        %v4721 = vadd.f32 %v4460, %v4714
        %v4722 = vadd.f32 %v4459, %v4717
        %v4723 = vadd.f32 %v4458, %v4719
        %v4724 = vadd.f32 %v4511, %v4587
        %v4725 = vadd.f32 %v4510, %v4589
        %v4726 = vadd.f32 %v4509, %v4592
        %v4727 = vadd.f32 %v4508, %v4594
        %v4728 = vadd.f32 %v4507, %v4597
        %v4729 = vadd.f32 %v4506, %v4599
        %v4730 = vadd.f32 %v4505, %v4602
        %v4731 = vadd.f32 %v4504, %v4604
        %v4732 = vadd.f32 %v4503, %v4607
        %v4733 = vadd.f32 %v4502, %v4609
        %v4734 = vadd.f32 %v4501, %v4612
        %v4735 = vadd.f32 %v4500, %v4614
        %v4736 = vadd.f32 %v4499, %v4617
        %v4737 = vadd.f32 %v4498, %v4619
        %v4738 = vadd.f32 %v4497, %v4622
        %v4739 = vadd.f32 %v4496, %v4624
        %v4740 = vadd.f32 %v4495, %v4627
        %v4741 = vadd.f32 %v4494, %v4629
        %v4742 = vadd.f32 %v4493, %v4632
        %v4743 = vadd.f32 %v4492, %v4634
        %v4744 = vadd.f32 %v4491, %v4637
        %v4745 = vadd.f32 %v4490, %v4639
        %v4746 = vadd.f32 %v4489, %v4642
        %v4747 = vadd.f32 %v4488, %v4644
        %v4748 = vadd.f32 %v4487, %v4647
        %v4749 = vadd.f32 %v4486, %v4649
        %v4750 = vadd.f32 %v4485, %v4652
        %v4751 = vadd.f32 %v4484, %v4654
        %v4752 = vadd.f32 %v4483, %v4657
        %v4753 = vadd.f32 %v4482, %v4659
        %v4754 = vadd.f32 %v4481, %v4662
        %v4755 = vadd.f32 %v4480, %v4664
        %v4756 = vadd.f32 %v4479, %v4667
        %v4757 = vadd.f32 %v4478, %v4669
        %v4758 = vadd.f32 %v4477, %v4672
        %v4759 = vadd.f32 %v4476, %v4674
        %v4760 = vadd.f32 %v4475, %v4677
        %v4761 = vadd.f32 %v4474, %v4679
        %v4762 = vadd.f32 %v4473, %v4682
        %v4763 = vadd.f32 %v4472, %v4684
        %v4764 = vadd.f32 %v4471, %v4687
        %v4765 = vadd.f32 %v4470, %v4689
        %v4766 = vadd.f32 %v4469, %v4692
        %v4767 = vadd.f32 %v4468, %v4694
        %v4768 = vadd.f32 %v4467, %v4697
        %v4769 = vadd.f32 %v4466, %v4699
        %v4770 = vadd.f32 %v4465, %v4702
        %v4771 = vadd.f32 %v4464, %v4704
        %v4772 = vadd.f32 %v4463, %v4707
        %v4773 = vadd.f32 %v4462, %v4709
        %v4774 = vadd.f32 %v4461, %v4712
        %s4775 = scalar_lea.vmem %s8, 128
        %v4776 = vld [vmem:[%s4775] sm:$0xf]
        %v4777 = vld [vmem:[%s4775 + $0x4] sm:$0xf]
        %v4778 = vld [vmem:[%s4775 + $0x8] sm:$0xf]
        %v4779 = vld [vmem:[%s4775 + $0xc] sm:$0xf]
        %v4780 = vld [vmem:[%s4775 + $0x10] sm:$0xf]
        %v4781 = vld [vmem:[%s4775 + $0x14] sm:$0xf]
        %v4782 = vld [vmem:[%s4775 + $0x18] sm:$0xf]
        %v4783 = vld [vmem:[%s4775 + $0x1c] sm:$0xf]
        %v4784 = vld [vmem:[%s4775 + $0x20] sm:$0xf]
        %v4785 = vld [vmem:[%s4775 + $0x24] sm:$0xf]
        %v4786 = vld [vmem:[%s4775 + $0x28] sm:$0xf]
        %v4787 = vld [vmem:[%s4775 + $0x2c] sm:$0xf]
        %v4788 = vld [vmem:[%s4775 + $0x30] sm:$0xf]
        %v4789 = vld [vmem:[%s4775 + $0x34] sm:$0xf]
        %v4790 = vld [vmem:[%s4775 + $0x38] sm:$0xf]
        %v4791 = vld [vmem:[%s4775 + $0x3c] sm:$0xf]
        %v4808 = vunpack.c.l.b16 %v4776
        %v4809 = vunpack.c.l.b16 %v4777
        %v4810 = vunpack.c.l.b16 %v4778
        %v4811 = vunpack.c.l.b16 %v4779
        %v4812 = vunpack.c.l.b16 %v4780
        %v4813 = vunpack.c.l.b16 %v4781
        %v4814 = vunpack.c.l.b16 %v4782
        %v4815 = vunpack.c.l.b16 %v4783
        %v4816 = vunpack.c.l.b16 %v4784
        %v4817 = vunpack.c.l.b16 %v4785
        %v4818 = vunpack.c.l.b16 %v4786
        %v4819 = vunpack.c.l.b16 %v4787
        %v4820 = vunpack.c.l.b16 %v4788
        %v4821 = vunpack.c.l.b16 %v4789
        %v4822 = vunpack.c.l.b16 %v4790
        %v4823 = vunpack.c.l.b16 %v4791
        %v4824 = vpack.c.b16 %v4809, %v4808
        %v4825 = vpack.c.b16 %v4811, %v4810
        %v4826 = vpack.c.b16 %v4813, %v4812
        %v4827 = vpack.c.b16 %v4815, %v4814
        %v4828 = vpack.c.b16 %v4817, %v4816
        %v4829 = vpack.c.b16 %v4819, %v4818
        %v4830 = vpack.c.b16 %v4821, %v4820
        %v4831 = vpack.c.b16 %v4823, %v4822
        %4840 = vmatpush.bf16.msra.mxu0 %v4831
        %4841 = vmatpush.bf16.msra.mxu0 %v4830
        %4842 = vmatpush.bf16.msra.mxu0 %v4829
        %4843 = vmatpush.bf16.msra.mxu0 %v4828
        %4844 = vmatpush.bf16.msra.mxu0 %v4827
        %4845 = vmatpush.bf16.msra.mxu0 %v4826
        %4846 = vmatpush.bf16.msra.mxu0 %v4825
        %4847 = vmatpush.bf16.msra.mxu0 %v4824
        %4848 = vmatmul.bf16.gmra.mxu0 %v4169
        %v4849 = vpop.f32.mrf.mxu0
        %v4850 = vadd.f32 0.0, %v4849
        %v4851 = vpop.f32.mrf.mxu0
        %v4852 = vadd.f32 0.0, %v4851
        %4853 = vmatmul.bf16.gmra.mxu0 %v4170
        %v4854 = vpop.f32.mrf.mxu0
        %v4855 = vadd.f32 0.0, %v4854
        %v4856 = vpop.f32.mrf.mxu0
        %v4857 = vadd.f32 0.0, %v4856
        %4858 = vmatmul.bf16.gmra.mxu0 %v4171
        %v4859 = vpop.f32.mrf.mxu0
        %v4860 = vadd.f32 0.0, %v4859
        %v4861 = vpop.f32.mrf.mxu0
        %v4862 = vadd.f32 0.0, %v4861
        %4863 = vmatmul.bf16.gmra.mxu0 %v4172
        %v4864 = vpop.f32.mrf.mxu0
        %v4865 = vadd.f32 0.0, %v4864
        %v4866 = vpop.f32.mrf.mxu0
        %v4867 = vadd.f32 0.0, %v4866
        %4868 = vmatmul.bf16.gmra.mxu0 %v4173
        %v4869 = vpop.f32.mrf.mxu0
        %v4870 = vadd.f32 0.0, %v4869
        %v4871 = vpop.f32.mrf.mxu0
        %v4872 = vadd.f32 0.0, %v4871
        %4873 = vmatmul.bf16.gmra.mxu0 %v4174
        %v4874 = vpop.f32.mrf.mxu0
        %v4875 = vadd.f32 0.0, %v4874
        %v4876 = vpop.f32.mrf.mxu0
        %v4877 = vadd.f32 0.0, %v4876
        %4878 = vmatmul.bf16.gmra.mxu0 %v4175
        %v4879 = vpop.f32.mrf.mxu0
        %v4880 = vadd.f32 0.0, %v4879
        %v4881 = vpop.f32.mrf.mxu0
        %v4882 = vadd.f32 0.0, %v4881
        %4883 = vmatmul.bf16.gmra.mxu0 %v4176
        %v4884 = vpop.f32.mrf.mxu0
        %v4885 = vadd.f32 0.0, %v4884
        %v4886 = vpop.f32.mrf.mxu0
        %v4887 = vadd.f32 0.0, %v4886
        %4888 = vmatmul.bf16.gmra.mxu0 %v4177
        %v4889 = vpop.f32.mrf.mxu0
        %v4890 = vadd.f32 0.0, %v4889
        %v4891 = vpop.f32.mrf.mxu0
        %v4892 = vadd.f32 0.0, %v4891
        %4893 = vmatmul.bf16.gmra.mxu0 %v4178
        %v4894 = vpop.f32.mrf.mxu0
        %v4895 = vadd.f32 0.0, %v4894
        %v4896 = vpop.f32.mrf.mxu0
        %v4897 = vadd.f32 0.0, %v4896
        %4898 = vmatmul.bf16.gmra.mxu0 %v4179
        %v4899 = vpop.f32.mrf.mxu0
        %v4900 = vadd.f32 0.0, %v4899
        %v4901 = vpop.f32.mrf.mxu0
        %v4902 = vadd.f32 0.0, %v4901
        %4903 = vmatmul.bf16.gmra.mxu0 %v4180
        %v4904 = vpop.f32.mrf.mxu0
        %v4905 = vadd.f32 0.0, %v4904
        %v4906 = vpop.f32.mrf.mxu0
        %v4907 = vadd.f32 0.0, %v4906
        %4908 = vmatmul.bf16.gmra.mxu0 %v4181
        %v4909 = vpop.f32.mrf.mxu0
        %v4910 = vadd.f32 0.0, %v4909
        %v4911 = vpop.f32.mrf.mxu0
        %v4912 = vadd.f32 0.0, %v4911
        %4913 = vmatmul.bf16.gmra.mxu0 %v4182
        %v4914 = vpop.f32.mrf.mxu0
        %v4915 = vadd.f32 0.0, %v4914
        %v4916 = vpop.f32.mrf.mxu0
        %v4917 = vadd.f32 0.0, %v4916
        %4918 = vmatmul.bf16.gmra.mxu0 %v4183
        %v4919 = vpop.f32.mrf.mxu0
        %v4920 = vadd.f32 0.0, %v4919
        %v4921 = vpop.f32.mrf.mxu0
        %v4922 = vadd.f32 0.0, %v4921
        %4923 = vmatmul.bf16.gmra.mxu0 %v4184
        %v4924 = vpop.f32.mrf.mxu0
        %v4925 = vadd.f32 0.0, %v4924
        %v4926 = vpop.f32.mrf.mxu0
        %v4927 = vadd.f32 0.0, %v4926
        %4928 = vmatmul.bf16.gmra.mxu0 %v4185
        %v4929 = vpop.f32.mrf.mxu0
        %v4930 = vadd.f32 0.0, %v4929
        %v4931 = vpop.f32.mrf.mxu0
        %v4932 = vadd.f32 0.0, %v4931
        %4933 = vmatmul.bf16.gmra.mxu0 %v4186
        %v4934 = vpop.f32.mrf.mxu0
        %v4935 = vadd.f32 0.0, %v4934
        %v4936 = vpop.f32.mrf.mxu0
        %v4937 = vadd.f32 0.0, %v4936
        %4938 = vmatmul.bf16.gmra.mxu0 %v4187
        %v4939 = vpop.f32.mrf.mxu0
        %v4940 = vadd.f32 0.0, %v4939
        %v4941 = vpop.f32.mrf.mxu0
        %v4942 = vadd.f32 0.0, %v4941
        %4943 = vmatmul.bf16.gmra.mxu0 %v4188
        %v4944 = vpop.f32.mrf.mxu0
        %v4945 = vadd.f32 0.0, %v4944
        %v4946 = vpop.f32.mrf.mxu0
        %v4947 = vadd.f32 0.0, %v4946
        %4948 = vmatmul.bf16.gmra.mxu0 %v4189
        %v4949 = vpop.f32.mrf.mxu0
        %v4950 = vadd.f32 0.0, %v4949
        %v4951 = vpop.f32.mrf.mxu0
        %v4952 = vadd.f32 0.0, %v4951
        %4953 = vmatmul.bf16.gmra.mxu0 %v4190
        %v4954 = vpop.f32.mrf.mxu0
        %v4955 = vadd.f32 0.0, %v4954
        %v4956 = vpop.f32.mrf.mxu0
        %v4957 = vadd.f32 0.0, %v4956
        %4958 = vmatmul.bf16.gmra.mxu0 %v4191
        %v4959 = vpop.f32.mrf.mxu0
        %v4960 = vadd.f32 0.0, %v4959
        %v4961 = vpop.f32.mrf.mxu0
        %v4962 = vadd.f32 0.0, %v4961
        %4963 = vmatmul.bf16.gmra.mxu0 %v4192
        %v4964 = vpop.f32.mrf.mxu0
        %v4965 = vadd.f32 0.0, %v4964
        %v4966 = vpop.f32.mrf.mxu0
        %v4967 = vadd.f32 0.0, %v4966
        %4968 = vmatmul.bf16.gmra.mxu0 %v4193
        %v4969 = vpop.f32.mrf.mxu0
        %v4970 = vadd.f32 0.0, %v4969
        %v4971 = vpop.f32.mrf.mxu0
        %v4972 = vadd.f32 0.0, %v4971
        %4973 = vmatmul.bf16.gmra.mxu0 %v4194
        %v4974 = vpop.f32.mrf.mxu0
        %v4975 = vadd.f32 0.0, %v4974
        %v4976 = vpop.f32.mrf.mxu0
        %v4977 = vadd.f32 0.0, %v4976
        %4978 = vmatmul.bf16.gmra.mxu0 %v4195
        %v4979 = vpop.f32.mrf.mxu0
        %v4980 = vadd.f32 0.0, %v4979
        %v4981 = vpop.f32.mrf.mxu0
        %v4982 = vadd.f32 0.0, %v4981
        %4983 = vdwg.mxu0
        %v4984 = vrot.slane %v4850, 1
        %v4985 = vrot.slane %v4852, 1
        %v4986 = vrot.slane %v4855, 1
        %v4987 = vrot.slane %v4857, 1
        %v4988 = vrot.slane %v4860, 1
        %v4989 = vrot.slane %v4862, 1
        %v4990 = vrot.slane %v4865, 1
        %v4991 = vrot.slane %v4867, 1
        %v4992 = vrot.slane %v4870, 1
        %v4993 = vrot.slane %v4872, 1
        %v4994 = vrot.slane %v4875, 1
        %v4995 = vrot.slane %v4877, 1
        %v4996 = vrot.slane %v4880, 1
        %v4997 = vrot.slane %v4882, 1
        %v4998 = vrot.slane %v4885, 1
        %v4999 = vrot.slane %v4887, 1
        %v5000 = vrot.slane %v4890, 1
        %v5001 = vrot.slane %v4892, 1
        %v5002 = vrot.slane %v4895, 1
        %v5003 = vrot.slane %v4897, 1
        %v5004 = vrot.slane %v4900, 1
        %v5005 = vrot.slane %v4902, 1
        %v5006 = vrot.slane %v4905, 1
        %v5007 = vrot.slane %v4907, 1
        %v5008 = vrot.slane %v4910, 1
        %v5009 = vrot.slane %v4912, 1
        %v5010 = vrot.slane %v4915, 1
        %v5011 = vrot.slane %v4917, 1
        %v5012 = vrot.slane %v4920, 1
        %v5013 = vrot.slane %v4922, 1
        %v5014 = vrot.slane %v4925, 1
        %v5015 = vrot.slane %v4927, 1
        %v5016 = vrot.slane %v4930, 1
        %v5017 = vrot.slane %v4932, 1
        %v5018 = vrot.slane %v4935, 1
        %v5019 = vrot.slane %v4937, 1
        %v5020 = vrot.slane %v4940, 1
        %v5021 = vrot.slane %v4942, 1
        %v5022 = vrot.slane %v4945, 1
        %v5023 = vrot.slane %v4947, 1
        %v5024 = vrot.slane %v4950, 1
        %v5025 = vrot.slane %v4952, 1
        %v5026 = vrot.slane %v4955, 1
        %v5027 = vrot.slane %v4957, 1
        %v5028 = vrot.slane %v4960, 1
        %v5029 = vrot.slane %v4962, 1
        %v5030 = vrot.slane %v4965, 1
        %v5031 = vrot.slane %v4967, 1
        %v5032 = vrot.slane %v4970, 1
        %v5033 = vrot.slane %v4972, 1
        %v5034 = vrot.slane %v4975, 1
        %v5035 = vrot.slane %v4977, 1
        %v5036 = vrot.slane %v4980, 1
        %v5037 = vrot.slane %v4982, 1
        %v5038 = vsel %vm1511, %v5036, %v5037
        %v5039 = vsel %vm1511, %v5035, %v5036
        %v5040 = vsel %vm1511, %v5034, %v5035
        %v5041 = vsel %vm1511, %v5033, %v5034
        %v5042 = vsel %vm1511, %v5032, %v5033
        %v5043 = vsel %vm1511, %v5031, %v5032
        %v5044 = vsel %vm1511, %v5030, %v5031
        %v5045 = vsel %vm1511, %v5029, %v5030
        %v5046 = vsel %vm1511, %v5028, %v5029
        %v5047 = vsel %vm1511, %v5027, %v5028
        %v5048 = vsel %vm1511, %v5026, %v5027
        %v5049 = vsel %vm1511, %v5025, %v5026
        %v5050 = vsel %vm1511, %v5024, %v5025
        %v5051 = vsel %vm1511, %v5023, %v5024
        %v5052 = vsel %vm1511, %v5022, %v5023
        %v5053 = vsel %vm1511, %v5021, %v5022
        %v5054 = vsel %vm1511, %v5020, %v5021
        %v5055 = vsel %vm1511, %v5019, %v5020
        %v5056 = vsel %vm1511, %v5018, %v5019
        %v5057 = vsel %vm1511, %v5017, %v5018
        %v5058 = vsel %vm1511, %v5016, %v5017
        %v5059 = vsel %vm1511, %v5015, %v5016
        %v5060 = vsel %vm1511, %v5014, %v5015
        %v5061 = vsel %vm1511, %v5013, %v5014
        %v5062 = vsel %vm1511, %v5012, %v5013
        %v5063 = vsel %vm1511, %v5011, %v5012
        %v5064 = vsel %vm1511, %v5010, %v5011
        %v5065 = vsel %vm1511, %v5009, %v5010
        %v5066 = vsel %vm1511, %v5008, %v5009
        %v5067 = vsel %vm1511, %v5007, %v5008
        %v5068 = vsel %vm1511, %v5006, %v5007
        %v5069 = vsel %vm1511, %v5005, %v5006
        %v5070 = vsel %vm1511, %v5004, %v5005
        %v5071 = vsel %vm1511, %v5003, %v5004
        %v5072 = vsel %vm1511, %v5002, %v5003
        %v5073 = vsel %vm1511, %v5001, %v5002
        %v5074 = vsel %vm1511, %v5000, %v5001
        %v5075 = vsel %vm1511, %v4999, %v5000
        %v5076 = vsel %vm1511, %v4998, %v4999
        %v5077 = vsel %vm1511, %v4997, %v4998
        %v5078 = vsel %vm1511, %v4996, %v4997
        %v5079 = vsel %vm1511, %v4995, %v4996
        %v5080 = vsel %vm1511, %v4994, %v4995
        %v5081 = vsel %vm1511, %v4993, %v4994
        %v5082 = vsel %vm1511, %v4992, %v4993
        %v5083 = vsel %vm1511, %v4991, %v4992
        %v5084 = vsel %vm1511, %v4990, %v4991
        %v5085 = vsel %vm1511, %v4989, %v4990
        %v5086 = vsel %vm1511, %v4988, %v4989
        %v5087 = vsel %vm1511, %v4987, %v4988
        %v5088 = vsel %vm1511, %v4986, %v4987
        %v5089 = vsel %vm1511, %v4985, %v4986
        %v5090 = vsel %vm1511, %v4984, %v4985
        %v5091 = vsel %vm1511, %v5037, %v4984
        %v5092 = vadd.f32 %v4721, %v5039
        %v5093 = vadd.f32 %v4722, %v5038
        %v5094 = vadd.f32 %v4723, %v5091
        %v5095 = vadd.f32 %v4724, %v5090
        %v5096 = vadd.f32 %v4725, %v5089
        %v5097 = vadd.f32 %v4726, %v5088
        %v5098 = vadd.f32 %v4727, %v5087
        %v5099 = vadd.f32 %v4728, %v5086
        %v5100 = vadd.f32 %v4729, %v5085
        %v5101 = vadd.f32 %v4730, %v5084
        %v5102 = vadd.f32 %v4731, %v5083
        %v5103 = vadd.f32 %v4732, %v5082
        %v5104 = vadd.f32 %v4733, %v5081
        %v5105 = vadd.f32 %v4734, %v5080
        %v5106 = vadd.f32 %v4735, %v5079
        %v5107 = vadd.f32 %v4736, %v5078
        %v5108 = vadd.f32 %v4737, %v5077
        %v5109 = vadd.f32 %v4738, %v5076
        %v5110 = vadd.f32 %v4739, %v5075
        %v5111 = vadd.f32 %v4740, %v5074
        %v5112 = vadd.f32 %v4741, %v5073
        %v5113 = vadd.f32 %v4742, %v5072
        %v5114 = vadd.f32 %v4743, %v5071
        %v5115 = vadd.f32 %v4744, %v5070
        %v5116 = vadd.f32 %v4745, %v5069
        %v5117 = vadd.f32 %v4746, %v5068
        %v5118 = vadd.f32 %v4747, %v5067
        %v5119 = vadd.f32 %v4748, %v5066
        %v5120 = vadd.f32 %v4749, %v5065
        %v5121 = vadd.f32 %v4750, %v5064
        %v5122 = vadd.f32 %v4751, %v5063
        %v5123 = vadd.f32 %v4752, %v5062
        %v5124 = vadd.f32 %v4753, %v5061
        %v5125 = vadd.f32 %v4754, %v5060
        %v5126 = vadd.f32 %v4755, %v5059
        %v5127 = vadd.f32 %v4756, %v5058
        %v5128 = vadd.f32 %v4757, %v5057
        %v5129 = vadd.f32 %v4758, %v5056
        %v5130 = vadd.f32 %v4759, %v5055
        %v5131 = vadd.f32 %v4760, %v5054
        %v5132 = vadd.f32 %v4761, %v5053
        %v5133 = vadd.f32 %v4762, %v5052
        %v5134 = vadd.f32 %v4763, %v5051
        %v5135 = vadd.f32 %v4764, %v5050
        %v5136 = vadd.f32 %v4765, %v5049
        %v5137 = vadd.f32 %v4766, %v5048
        %v5138 = vadd.f32 %v4767, %v5047
        %v5139 = vadd.f32 %v4768, %v5046
        %v5140 = vadd.f32 %v4769, %v5045
        %v5141 = vadd.f32 %v4770, %v5044
        %v5142 = vadd.f32 %v4771, %v5043
        %v5143 = vadd.f32 %v4772, %v5042
        %v5144 = vadd.f32 %v4773, %v5041
        %v5145 = vadd.f32 %v4774, %v5040
        %s5146 = scalar_lea.vmem %s8, 192
        %v5147 = vld [vmem:[%s5146] sm:$0xf]
        %v5148 = vld [vmem:[%s5146 + $0x4] sm:$0xf]
        %v5149 = vld [vmem:[%s5146 + $0x8] sm:$0xf]
        %v5150 = vld [vmem:[%s5146 + $0xc] sm:$0xf]
        %v5151 = vld [vmem:[%s5146 + $0x10] sm:$0xf]
        %v5152 = vld [vmem:[%s5146 + $0x14] sm:$0xf]
        %v5153 = vld [vmem:[%s5146 + $0x18] sm:$0xf]
        %v5154 = vld [vmem:[%s5146 + $0x1c] sm:$0xf]
        %v5155 = vld [vmem:[%s5146 + $0x20] sm:$0xf]
        %v5156 = vld [vmem:[%s5146 + $0x24] sm:$0xf]
        %v5157 = vld [vmem:[%s5146 + $0x28] sm:$0xf]
        %v5158 = vld [vmem:[%s5146 + $0x2c] sm:$0xf]
        %v5159 = vld [vmem:[%s5146 + $0x30] sm:$0xf]
        %v5160 = vld [vmem:[%s5146 + $0x34] sm:$0xf]
        %v5161 = vld [vmem:[%s5146 + $0x38] sm:$0xf]
        %v5162 = vld [vmem:[%s5146 + $0x3c] sm:$0xf]
        %v5179 = vunpack.c.l.b16 %v5147
        %v5180 = vunpack.c.l.b16 %v5148
        %v5181 = vunpack.c.l.b16 %v5149
        %v5182 = vunpack.c.l.b16 %v5150
        %v5183 = vunpack.c.l.b16 %v5151
        %v5184 = vunpack.c.l.b16 %v5152
        %v5185 = vunpack.c.l.b16 %v5153
        %v5186 = vunpack.c.l.b16 %v5154
        %v5187 = vunpack.c.l.b16 %v5155
        %v5188 = vunpack.c.l.b16 %v5156
        %v5189 = vunpack.c.l.b16 %v5157
        %v5190 = vunpack.c.l.b16 %v5158
        %v5191 = vunpack.c.l.b16 %v5159
        %v5192 = vunpack.c.l.b16 %v5160
        %v5193 = vunpack.c.l.b16 %v5161
        %v5194 = vunpack.c.l.b16 %v5162
        %v5195 = vpack.c.b16 %v5180, %v5179
        %v5196 = vpack.c.b16 %v5182, %v5181
        %v5197 = vpack.c.b16 %v5184, %v5183
        %v5198 = vpack.c.b16 %v5186, %v5185
        %v5199 = vpack.c.b16 %v5188, %v5187
        %v5200 = vpack.c.b16 %v5190, %v5189
        %v5201 = vpack.c.b16 %v5192, %v5191
        %v5202 = vpack.c.b16 %v5194, %v5193
        %5211 = vmatpush.bf16.msra.mxu0 %v5202
        %5212 = vmatpush.bf16.msra.mxu0 %v5201
        %5213 = vmatpush.bf16.msra.mxu0 %v5200
        %5214 = vmatpush.bf16.msra.mxu0 %v5199
        %5215 = vmatpush.bf16.msra.mxu0 %v5198
        %5216 = vmatpush.bf16.msra.mxu0 %v5197
        %5217 = vmatpush.bf16.msra.mxu0 %v5196
        %5218 = vmatpush.bf16.msra.mxu0 %v5195
        %5219 = vmatmul.bf16.gmra.mxu0 %v4169
        %v5220 = vpop.f32.mrf.mxu0
        %v5221 = vadd.f32 0.0, %v5220
        %v5222 = vpop.f32.mrf.mxu0
        %v5223 = vadd.f32 0.0, %v5222
        %5224 = vmatmul.bf16.gmra.mxu0 %v4170
        %v5225 = vpop.f32.mrf.mxu0
        %v5226 = vadd.f32 0.0, %v5225
        %v5227 = vpop.f32.mrf.mxu0
        %v5228 = vadd.f32 0.0, %v5227
        %5229 = vmatmul.bf16.gmra.mxu0 %v4171
        %v5230 = vpop.f32.mrf.mxu0
        %v5231 = vadd.f32 0.0, %v5230
        %v5232 = vpop.f32.mrf.mxu0
        %v5233 = vadd.f32 0.0, %v5232
        %5234 = vmatmul.bf16.gmra.mxu0 %v4172
        %v5235 = vpop.f32.mrf.mxu0
        %v5236 = vadd.f32 0.0, %v5235
        %v5237 = vpop.f32.mrf.mxu0
        %v5238 = vadd.f32 0.0, %v5237
        %5239 = vmatmul.bf16.gmra.mxu0 %v4173
        %v5240 = vpop.f32.mrf.mxu0
        %v5241 = vadd.f32 0.0, %v5240
        %v5242 = vpop.f32.mrf.mxu0
        %v5243 = vadd.f32 0.0, %v5242
        %5244 = vmatmul.bf16.gmra.mxu0 %v4174
        %v5245 = vpop.f32.mrf.mxu0
        %v5246 = vadd.f32 0.0, %v5245
        %v5247 = vpop.f32.mrf.mxu0
        %v5248 = vadd.f32 0.0, %v5247
        %5249 = vmatmul.bf16.gmra.mxu0 %v4175
        %v5250 = vpop.f32.mrf.mxu0
        %v5251 = vadd.f32 0.0, %v5250
        %v5252 = vpop.f32.mrf.mxu0
        %v5253 = vadd.f32 0.0, %v5252
        %5254 = vmatmul.bf16.gmra.mxu0 %v4176
        %v5255 = vpop.f32.mrf.mxu0
        %v5256 = vadd.f32 0.0, %v5255
        %v5257 = vpop.f32.mrf.mxu0
        %v5258 = vadd.f32 0.0, %v5257
        %5259 = vmatmul.bf16.gmra.mxu0 %v4177
        %v5260 = vpop.f32.mrf.mxu0
        %v5261 = vadd.f32 0.0, %v5260
        %v5262 = vpop.f32.mrf.mxu0
        %v5263 = vadd.f32 0.0, %v5262
        %5264 = vmatmul.bf16.gmra.mxu0 %v4178
        %v5265 = vpop.f32.mrf.mxu0
        %v5266 = vadd.f32 0.0, %v5265
        %v5267 = vpop.f32.mrf.mxu0
        %v5268 = vadd.f32 0.0, %v5267
        %5269 = vmatmul.bf16.gmra.mxu0 %v4179
        %v5270 = vpop.f32.mrf.mxu0
        %v5271 = vadd.f32 0.0, %v5270
        %v5272 = vpop.f32.mrf.mxu0
        %v5273 = vadd.f32 0.0, %v5272
        %5274 = vmatmul.bf16.gmra.mxu0 %v4180
        %v5275 = vpop.f32.mrf.mxu0
        %v5276 = vadd.f32 0.0, %v5275
        %v5277 = vpop.f32.mrf.mxu0
        %v5278 = vadd.f32 0.0, %v5277
        %5279 = vmatmul.bf16.gmra.mxu0 %v4181
        %v5280 = vpop.f32.mrf.mxu0
        %v5281 = vadd.f32 0.0, %v5280
        %v5282 = vpop.f32.mrf.mxu0
        %v5283 = vadd.f32 0.0, %v5282
        %5284 = vmatmul.bf16.gmra.mxu0 %v4182
        %v5285 = vpop.f32.mrf.mxu0
        %v5286 = vadd.f32 0.0, %v5285
        %v5287 = vpop.f32.mrf.mxu0
        %v5288 = vadd.f32 0.0, %v5287
        %5289 = vmatmul.bf16.gmra.mxu0 %v4183
        %v5290 = vpop.f32.mrf.mxu0
        %v5291 = vadd.f32 0.0, %v5290
        %v5292 = vpop.f32.mrf.mxu0
        %v5293 = vadd.f32 0.0, %v5292
        %5294 = vmatmul.bf16.gmra.mxu0 %v4184
        %v5295 = vpop.f32.mrf.mxu0
        %v5296 = vadd.f32 0.0, %v5295
        %v5297 = vpop.f32.mrf.mxu0
        %v5298 = vadd.f32 0.0, %v5297
        %5299 = vmatmul.bf16.gmra.mxu0 %v4185
        %v5300 = vpop.f32.mrf.mxu0
        %v5301 = vadd.f32 0.0, %v5300
        %v5302 = vpop.f32.mrf.mxu0
        %v5303 = vadd.f32 0.0, %v5302
        %5304 = vmatmul.bf16.gmra.mxu0 %v4186
        %v5305 = vpop.f32.mrf.mxu0
        %v5306 = vadd.f32 0.0, %v5305
        %v5307 = vpop.f32.mrf.mxu0
        %v5308 = vadd.f32 0.0, %v5307
        %5309 = vmatmul.bf16.gmra.mxu0 %v4187
        %v5310 = vpop.f32.mrf.mxu0
        %v5311 = vadd.f32 0.0, %v5310
        %v5312 = vpop.f32.mrf.mxu0
        %v5313 = vadd.f32 0.0, %v5312
        %5314 = vmatmul.bf16.gmra.mxu0 %v4188
        %v5315 = vpop.f32.mrf.mxu0
        %v5316 = vadd.f32 0.0, %v5315
        %v5317 = vpop.f32.mrf.mxu0
        %v5318 = vadd.f32 0.0, %v5317
        %5319 = vmatmul.bf16.gmra.mxu0 %v4189
        %v5320 = vpop.f32.mrf.mxu0
        %v5321 = vadd.f32 0.0, %v5320
        %v5322 = vpop.f32.mrf.mxu0
        %v5323 = vadd.f32 0.0, %v5322
        %5324 = vmatmul.bf16.gmra.mxu0 %v4190
        %v5325 = vpop.f32.mrf.mxu0
        %v5326 = vadd.f32 0.0, %v5325
        %v5327 = vpop.f32.mrf.mxu0
        %v5328 = vadd.f32 0.0, %v5327
        %5329 = vmatmul.bf16.gmra.mxu0 %v4191
        %v5330 = vpop.f32.mrf.mxu0
        %v5331 = vadd.f32 0.0, %v5330
        %v5332 = vpop.f32.mrf.mxu0
        %v5333 = vadd.f32 0.0, %v5332
        %5334 = vmatmul.bf16.gmra.mxu0 %v4192
        %v5335 = vpop.f32.mrf.mxu0
        %v5336 = vadd.f32 0.0, %v5335
        %v5337 = vpop.f32.mrf.mxu0
        %v5338 = vadd.f32 0.0, %v5337
        %5339 = vmatmul.bf16.gmra.mxu0 %v4193
        %v5340 = vpop.f32.mrf.mxu0
        %v5341 = vadd.f32 0.0, %v5340
        %v5342 = vpop.f32.mrf.mxu0
        %v5343 = vadd.f32 0.0, %v5342
        %5344 = vmatmul.bf16.gmra.mxu0 %v4194
        %v5345 = vpop.f32.mrf.mxu0
        %v5346 = vadd.f32 0.0, %v5345
        %v5347 = vpop.f32.mrf.mxu0
        %v5348 = vadd.f32 0.0, %v5347
        %5349 = vmatmul.bf16.gmra.mxu0 %v4195
        %v5350 = vpop.f32.mrf.mxu0
        %v5351 = vadd.f32 0.0, %v5350
        %v5352 = vpop.f32.mrf.mxu0
        %v5353 = vadd.f32 0.0, %v5352
        %5354 = vdwg.mxu0
        %v5355 = vrot.slane %v5221, 7
        %v5356 = vrot.slane %v5223, 7
        %v5357 = vrot.slane %v5226, 7
        %v5358 = vrot.slane %v5228, 7
        %v5359 = vrot.slane %v5231, 7
        %v5360 = vrot.slane %v5233, 7
        %v5361 = vrot.slane %v5236, 7
        %v5362 = vrot.slane %v5238, 7
        %v5363 = vrot.slane %v5241, 7
        %v5364 = vrot.slane %v5243, 7
        %v5365 = vrot.slane %v5246, 7
        %v5366 = vrot.slane %v5248, 7
        %v5367 = vrot.slane %v5251, 7
        %v5368 = vrot.slane %v5253, 7
        %v5369 = vrot.slane %v5256, 7
        %v5370 = vrot.slane %v5258, 7
        %v5371 = vrot.slane %v5261, 7
        %v5372 = vrot.slane %v5263, 7
        %v5373 = vrot.slane %v5266, 7
        %v5374 = vrot.slane %v5268, 7
        %v5375 = vrot.slane %v5271, 7
        %v5376 = vrot.slane %v5273, 7
        %v5377 = vrot.slane %v5276, 7
        %v5378 = vrot.slane %v5278, 7
        %v5379 = vrot.slane %v5281, 7
        %v5380 = vrot.slane %v5283, 7
        %v5381 = vrot.slane %v5286, 7
        %v5382 = vrot.slane %v5288, 7
        %v5383 = vrot.slane %v5291, 7
        %v5384 = vrot.slane %v5293, 7
        %v5385 = vrot.slane %v5296, 7
        %v5386 = vrot.slane %v5298, 7
        %v5387 = vrot.slane %v5301, 7
        %v5388 = vrot.slane %v5303, 7
        %v5389 = vrot.slane %v5306, 7
        %v5390 = vrot.slane %v5308, 7
        %v5391 = vrot.slane %v5311, 7
        %v5392 = vrot.slane %v5313, 7
        %v5393 = vrot.slane %v5316, 7
        %v5394 = vrot.slane %v5318, 7
        %v5395 = vrot.slane %v5321, 7
        %v5396 = vrot.slane %v5323, 7
        %v5397 = vrot.slane %v5326, 7
        %v5398 = vrot.slane %v5328, 7
        %v5399 = vrot.slane %v5331, 7
        %v5400 = vrot.slane %v5333, 7
        %v5401 = vrot.slane %v5336, 7
        %v5402 = vrot.slane %v5338, 7
        %v5403 = vrot.slane %v5341, 7
        %v5404 = vrot.slane %v5343, 7
        %v5405 = vrot.slane %v5346, 7
        %v5406 = vrot.slane %v5348, 7
        %v5407 = vrot.slane %v5351, 7
        %v5408 = vrot.slane %v5353, 7
        %v5409 = vsel %vm1050, %v5407, %v5408
        %v5410 = vsel %vm1050, %v5406, %v5407
        %v5411 = vsel %vm1050, %v5405, %v5406
        %v5412 = vsel %vm1050, %v5404, %v5405
        %v5413 = vsel %vm1050, %v5403, %v5404
        %v5414 = vsel %vm1050, %v5402, %v5403
        %v5415 = vsel %vm1050, %v5401, %v5402
        %v5416 = vsel %vm1050, %v5400, %v5401
        %v5417 = vsel %vm1050, %v5399, %v5400
        %v5418 = vsel %vm1050, %v5398, %v5399
        %v5419 = vsel %vm1050, %v5397, %v5398
        %v5420 = vsel %vm1050, %v5396, %v5397
        %v5421 = vsel %vm1050, %v5395, %v5396
        %v5422 = vsel %vm1050, %v5394, %v5395
        %v5423 = vsel %vm1050, %v5393, %v5394
        %v5424 = vsel %vm1050, %v5392, %v5393
        %v5425 = vsel %vm1050, %v5391, %v5392
        %v5426 = vsel %vm1050, %v5390, %v5391
        %v5427 = vsel %vm1050, %v5389, %v5390
        %v5428 = vsel %vm1050, %v5388, %v5389
        %v5429 = vsel %vm1050, %v5387, %v5388
        %v5430 = vsel %vm1050, %v5386, %v5387
        %v5431 = vsel %vm1050, %v5385, %v5386
        %v5432 = vsel %vm1050, %v5384, %v5385
        %v5433 = vsel %vm1050, %v5383, %v5384
        %v5434 = vsel %vm1050, %v5382, %v5383
        %v5435 = vsel %vm1050, %v5381, %v5382
        %v5436 = vsel %vm1050, %v5380, %v5381
        %v5437 = vsel %vm1050, %v5379, %v5380
        %v5438 = vsel %vm1050, %v5378, %v5379
        %v5439 = vsel %vm1050, %v5377, %v5378
        %v5440 = vsel %vm1050, %v5376, %v5377
        %v5441 = vsel %vm1050, %v5375, %v5376
        %v5442 = vsel %vm1050, %v5374, %v5375
        %v5443 = vsel %vm1050, %v5373, %v5374
        %v5444 = vsel %vm1050, %v5372, %v5373
        %v5445 = vsel %vm1050, %v5371, %v5372
        %v5446 = vsel %vm1050, %v5370, %v5371
        %v5447 = vsel %vm1050, %v5369, %v5370
        %v5448 = vsel %vm1050, %v5368, %v5369
        %v5449 = vsel %vm1050, %v5367, %v5368
        %v5450 = vsel %vm1050, %v5366, %v5367
        %v5451 = vsel %vm1050, %v5365, %v5366
        %v5452 = vsel %vm1050, %v5364, %v5365
        %v5453 = vsel %vm1050, %v5363, %v5364
        %v5454 = vsel %vm1050, %v5362, %v5363
        %v5455 = vsel %vm1050, %v5361, %v5362
        %v5456 = vsel %vm1050, %v5360, %v5361
        %v5457 = vsel %vm1050, %v5359, %v5360
        %v5458 = vsel %vm1050, %v5358, %v5359
        %v5459 = vsel %vm1050, %v5357, %v5358
        %v5460 = vsel %vm1050, %v5356, %v5357
        %v5461 = vsel %vm1050, %v5355, %v5356
        %v5462 = vsel %vm1050, %v5408, %v5355
        %v5463 = vadd.f32 %v5092, %v5462
        %v5464 = vadd.f32 %v5093, %v5461
        %v5465 = vadd.f32 %v5094, %v5460
        %v5466 = vadd.f32 %v5095, %v5459
        %v5467 = vadd.f32 %v5096, %v5458
        %v5468 = vadd.f32 %v5097, %v5457
        %v5469 = vadd.f32 %v5098, %v5456
        %v5470 = vadd.f32 %v5099, %v5455
        %v5471 = vadd.f32 %v5100, %v5454
        %v5472 = vadd.f32 %v5101, %v5453
        %v5473 = vadd.f32 %v5102, %v5452
        %v5474 = vadd.f32 %v5103, %v5451
        %v5475 = vadd.f32 %v5104, %v5450
        %v5476 = vadd.f32 %v5105, %v5449
        %v5477 = vadd.f32 %v5106, %v5448
        %v5478 = vadd.f32 %v5107, %v5447
        %v5479 = vadd.f32 %v5108, %v5446
        %v5480 = vadd.f32 %v5109, %v5445
        %v5481 = vadd.f32 %v5110, %v5444
        %v5482 = vadd.f32 %v5111, %v5443
        %v5483 = vadd.f32 %v5112, %v5442
        %v5484 = vadd.f32 %v5113, %v5441
        %v5485 = vadd.f32 %v5114, %v5440
        %v5486 = vadd.f32 %v5115, %v5439
        %v5487 = vadd.f32 %v5116, %v5438
        %v5488 = vadd.f32 %v5117, %v5437
        %v5489 = vadd.f32 %v5118, %v5436
        %v5490 = vadd.f32 %v5119, %v5435
        %v5491 = vadd.f32 %v5120, %v5434
        %v5492 = vadd.f32 %v5121, %v5433
        %v5493 = vadd.f32 %v5122, %v5432
        %v5494 = vadd.f32 %v5123, %v5431
        %v5495 = vadd.f32 %v5124, %v5430
        %v5496 = vadd.f32 %v5125, %v5429
        %v5497 = vadd.f32 %v5126, %v5428
        %v5498 = vadd.f32 %v5127, %v5427
        %v5499 = vadd.f32 %v5128, %v5426
        %v5500 = vadd.f32 %v5129, %v5425
        %v5501 = vadd.f32 %v5130, %v5424
        %v5502 = vadd.f32 %v5131, %v5423
        %v5503 = vadd.f32 %v5132, %v5422
        %v5504 = vadd.f32 %v5133, %v5421
        %v5505 = vadd.f32 %v5134, %v5420
        %v5506 = vadd.f32 %v5135, %v5419
        %v5507 = vadd.f32 %v5136, %v5418
        %v5508 = vadd.f32 %v5137, %v5417
        %v5509 = vadd.f32 %v5138, %v5416
        %v5510 = vadd.f32 %v5139, %v5415
        %v5511 = vadd.f32 %v5140, %v5414
        %v5512 = vadd.f32 %v5141, %v5413
        %v5513 = vadd.f32 %v5142, %v5412
        %v5514 = vadd.f32 %v5143, %v5411
        %v5515 = vadd.f32 %v5144, %v5410
        %v5516 = vadd.f32 %v5145, %v5409
        %s5517 = scalar_lea.vmem %s8, 256
        %v5518 = vld [vmem:[%s5517] sm:$0xf]
        %v5519 = vld [vmem:[%s5517 + $0x4] sm:$0xf]
        %v5520 = vld [vmem:[%s5517 + $0x8] sm:$0xf]
        %v5521 = vld [vmem:[%s5517 + $0xc] sm:$0xf]
        %v5522 = vld [vmem:[%s5517 + $0x10] sm:$0xf]
        %v5523 = vld [vmem:[%s5517 + $0x14] sm:$0xf]
        %v5524 = vld [vmem:[%s5517 + $0x18] sm:$0xf]
        %v5525 = vld [vmem:[%s5517 + $0x1c] sm:$0xf]
        %v5526 = vld [vmem:[%s5517 + $0x20] sm:$0xf]
        %v5527 = vld [vmem:[%s5517 + $0x24] sm:$0xf]
        %v5528 = vld [vmem:[%s5517 + $0x28] sm:$0xf]
        %v5529 = vld [vmem:[%s5517 + $0x2c] sm:$0xf]
        %v5530 = vld [vmem:[%s5517 + $0x30] sm:$0xf]
        %v5531 = vld [vmem:[%s5517 + $0x34] sm:$0xf]
        %v5532 = vld [vmem:[%s5517 + $0x38] sm:$0xf]
        %v5533 = vld [vmem:[%s5517 + $0x3c] sm:$0xf]
        %v5550 = vunpack.c.l.b16 %v5518
        %v5551 = vunpack.c.l.b16 %v5519
        %v5552 = vunpack.c.l.b16 %v5520
        %v5553 = vunpack.c.l.b16 %v5521
        %v5554 = vunpack.c.l.b16 %v5522
        %v5555 = vunpack.c.l.b16 %v5523
        %v5556 = vunpack.c.l.b16 %v5524
        %v5557 = vunpack.c.l.b16 %v5525
        %v5558 = vunpack.c.l.b16 %v5526
        %v5559 = vunpack.c.l.b16 %v5527
        %v5560 = vunpack.c.l.b16 %v5528
        %v5561 = vunpack.c.l.b16 %v5529
        %v5562 = vunpack.c.l.b16 %v5530
        %v5563 = vunpack.c.l.b16 %v5531
        %v5564 = vunpack.c.l.b16 %v5532
        %v5565 = vunpack.c.l.b16 %v5533
        %v5566 = vpack.c.b16 %v5551, %v5550
        %v5567 = vpack.c.b16 %v5553, %v5552
        %v5568 = vpack.c.b16 %v5555, %v5554
        %v5569 = vpack.c.b16 %v5557, %v5556
        %v5570 = vpack.c.b16 %v5559, %v5558
        %v5571 = vpack.c.b16 %v5561, %v5560
        %v5572 = vpack.c.b16 %v5563, %v5562
        %v5573 = vpack.c.b16 %v5565, %v5564
        %5582 = vmatpush.bf16.msra.mxu0 %v5573
        %5583 = vmatpush.bf16.msra.mxu0 %v5572
        %5584 = vmatpush.bf16.msra.mxu0 %v5571
        %5585 = vmatpush.bf16.msra.mxu0 %v5570
        %5586 = vmatpush.bf16.msra.mxu0 %v5569
        %5587 = vmatpush.bf16.msra.mxu0 %v5568
        %5588 = vmatpush.bf16.msra.mxu0 %v5567
        %5589 = vmatpush.bf16.msra.mxu0 %v5566
        %5590 = vmatmul.bf16.gmra.mxu0 %v4169
        %v5591 = vpop.f32.mrf.mxu0
        %v5592 = vadd.f32 0.0, %v5591
        %v5593 = vpop.f32.mrf.mxu0
        %v5594 = vadd.f32 0.0, %v5593
        %5595 = vmatmul.bf16.gmra.mxu0 %v4170
        %v5596 = vpop.f32.mrf.mxu0
        %v5597 = vadd.f32 0.0, %v5596
        %v5598 = vpop.f32.mrf.mxu0
        %v5599 = vadd.f32 0.0, %v5598
        %5600 = vmatmul.bf16.gmra.mxu0 %v4171
        %v5601 = vpop.f32.mrf.mxu0
        %v5602 = vadd.f32 0.0, %v5601
        %v5603 = vpop.f32.mrf.mxu0
        %v5604 = vadd.f32 0.0, %v5603
        %5605 = vmatmul.bf16.gmra.mxu0 %v4172
        %v5606 = vpop.f32.mrf.mxu0
        %v5607 = vadd.f32 0.0, %v5606
        %v5608 = vpop.f32.mrf.mxu0
        %v5609 = vadd.f32 0.0, %v5608
        %5610 = vmatmul.bf16.gmra.mxu0 %v4173
        %v5611 = vpop.f32.mrf.mxu0
        %v5612 = vadd.f32 0.0, %v5611
        %v5613 = vpop.f32.mrf.mxu0
        %v5614 = vadd.f32 0.0, %v5613
        %5615 = vmatmul.bf16.gmra.mxu0 %v4174
        %v5616 = vpop.f32.mrf.mxu0
        %v5617 = vadd.f32 0.0, %v5616
        %v5618 = vpop.f32.mrf.mxu0
        %v5619 = vadd.f32 0.0, %v5618
        %5620 = vmatmul.bf16.gmra.mxu0 %v4175
        %v5621 = vpop.f32.mrf.mxu0
        %v5622 = vadd.f32 0.0, %v5621
        %v5623 = vpop.f32.mrf.mxu0
        %v5624 = vadd.f32 0.0, %v5623
        %5625 = vmatmul.bf16.gmra.mxu0 %v4176
        %v5626 = vpop.f32.mrf.mxu0
        %v5627 = vadd.f32 0.0, %v5626
        %v5628 = vpop.f32.mrf.mxu0
        %v5629 = vadd.f32 0.0, %v5628
        %5630 = vmatmul.bf16.gmra.mxu0 %v4177
        %v5631 = vpop.f32.mrf.mxu0
        %v5632 = vadd.f32 0.0, %v5631
        %v5633 = vpop.f32.mrf.mxu0
        %v5634 = vadd.f32 0.0, %v5633
        %5635 = vmatmul.bf16.gmra.mxu0 %v4178
        %v5636 = vpop.f32.mrf.mxu0
        %v5637 = vadd.f32 0.0, %v5636
        %v5638 = vpop.f32.mrf.mxu0
        %v5639 = vadd.f32 0.0, %v5638
        %5640 = vmatmul.bf16.gmra.mxu0 %v4179
        %v5641 = vpop.f32.mrf.mxu0
        %v5642 = vadd.f32 0.0, %v5641
        %v5643 = vpop.f32.mrf.mxu0
        %v5644 = vadd.f32 0.0, %v5643
        %5645 = vmatmul.bf16.gmra.mxu0 %v4180
        %v5646 = vpop.f32.mrf.mxu0
        %v5647 = vadd.f32 0.0, %v5646
        %v5648 = vpop.f32.mrf.mxu0
        %v5649 = vadd.f32 0.0, %v5648
        %5650 = vmatmul.bf16.gmra.mxu0 %v4181
        %v5651 = vpop.f32.mrf.mxu0
        %v5652 = vadd.f32 0.0, %v5651
        %v5653 = vpop.f32.mrf.mxu0
        %v5654 = vadd.f32 0.0, %v5653
        %5655 = vmatmul.bf16.gmra.mxu0 %v4182
        %v5656 = vpop.f32.mrf.mxu0
        %v5657 = vadd.f32 0.0, %v5656
        %v5658 = vpop.f32.mrf.mxu0
        %v5659 = vadd.f32 0.0, %v5658
        %5660 = vmatmul.bf16.gmra.mxu0 %v4183
        %v5661 = vpop.f32.mrf.mxu0
        %v5662 = vadd.f32 0.0, %v5661
        %v5663 = vpop.f32.mrf.mxu0
        %v5664 = vadd.f32 0.0, %v5663
        %5665 = vmatmul.bf16.gmra.mxu0 %v4184
        %v5666 = vpop.f32.mrf.mxu0
        %v5667 = vadd.f32 0.0, %v5666
        %v5668 = vpop.f32.mrf.mxu0
        %v5669 = vadd.f32 0.0, %v5668
        %5670 = vmatmul.bf16.gmra.mxu0 %v4185
        %v5671 = vpop.f32.mrf.mxu0
        %v5672 = vadd.f32 0.0, %v5671
        %v5673 = vpop.f32.mrf.mxu0
        %v5674 = vadd.f32 0.0, %v5673
        %5675 = vmatmul.bf16.gmra.mxu0 %v4186
        %v5676 = vpop.f32.mrf.mxu0
        %v5677 = vadd.f32 0.0, %v5676
        %v5678 = vpop.f32.mrf.mxu0
        %v5679 = vadd.f32 0.0, %v5678
        %5680 = vmatmul.bf16.gmra.mxu0 %v4187
        %v5681 = vpop.f32.mrf.mxu0
        %v5682 = vadd.f32 0.0, %v5681
        %v5683 = vpop.f32.mrf.mxu0
        %v5684 = vadd.f32 0.0, %v5683
        %5685 = vmatmul.bf16.gmra.mxu0 %v4188
        %v5686 = vpop.f32.mrf.mxu0
        %v5687 = vadd.f32 0.0, %v5686
        %v5688 = vpop.f32.mrf.mxu0
        %v5689 = vadd.f32 0.0, %v5688
        %5690 = vmatmul.bf16.gmra.mxu0 %v4189
        %v5691 = vpop.f32.mrf.mxu0
        %v5692 = vadd.f32 0.0, %v5691
        %v5693 = vpop.f32.mrf.mxu0
        %v5694 = vadd.f32 0.0, %v5693
        %5695 = vmatmul.bf16.gmra.mxu0 %v4190
        %v5696 = vpop.f32.mrf.mxu0
        %v5697 = vadd.f32 0.0, %v5696
        %v5698 = vpop.f32.mrf.mxu0
        %v5699 = vadd.f32 0.0, %v5698
        %5700 = vmatmul.bf16.gmra.mxu0 %v4191
        %v5701 = vpop.f32.mrf.mxu0
        %v5702 = vadd.f32 0.0, %v5701
        %v5703 = vpop.f32.mrf.mxu0
        %v5704 = vadd.f32 0.0, %v5703
        %5705 = vmatmul.bf16.gmra.mxu0 %v4192
        %v5706 = vpop.f32.mrf.mxu0
        %v5707 = vadd.f32 0.0, %v5706
        %v5708 = vpop.f32.mrf.mxu0
        %v5709 = vadd.f32 0.0, %v5708
        %5710 = vmatmul.bf16.gmra.mxu0 %v4193
        %v5711 = vpop.f32.mrf.mxu0
        %v5712 = vadd.f32 0.0, %v5711
        %v5713 = vpop.f32.mrf.mxu0
        %v5714 = vadd.f32 0.0, %v5713
        %5715 = vmatmul.bf16.gmra.mxu0 %v4194
        %v5716 = vpop.f32.mrf.mxu0
        %v5717 = vadd.f32 0.0, %v5716
        %v5718 = vpop.f32.mrf.mxu0
        %v5719 = vadd.f32 0.0, %v5718
        %5720 = vmatmul.bf16.gmra.mxu0 %v4195
        %v5721 = vpop.f32.mrf.mxu0
        %v5722 = vadd.f32 0.0, %v5721
        %v5723 = vpop.f32.mrf.mxu0
        %v5724 = vadd.f32 0.0, %v5723
        %5725 = vdwg.mxu0
        %v5726 = vadd.f32 %v5463, %v5592
        %v5727 = vadd.f32 %v5464, %v5594
        %v5728 = vadd.f32 %v5465, %v5597
        %v5729 = vadd.f32 %v5466, %v5599
        %v5730 = vadd.f32 %v5467, %v5602
        %v5731 = vadd.f32 %v5468, %v5604
        %v5732 = vadd.f32 %v5469, %v5607
        %v5733 = vadd.f32 %v5470, %v5609
        %v5734 = vadd.f32 %v5471, %v5612
        %v5735 = vadd.f32 %v5472, %v5614
        %v5736 = vadd.f32 %v5473, %v5617
        %v5737 = vadd.f32 %v5474, %v5619
        %v5738 = vadd.f32 %v5475, %v5622
        %v5739 = vadd.f32 %v5476, %v5624
        %v5740 = vadd.f32 %v5477, %v5627
        %v5741 = vadd.f32 %v5478, %v5629
        %v5742 = vadd.f32 %v5479, %v5632
        %v5743 = vadd.f32 %v5480, %v5634
        %v5744 = vadd.f32 %v5481, %v5637
        %v5745 = vadd.f32 %v5482, %v5639
        %v5746 = vadd.f32 %v5483, %v5642
        %v5747 = vadd.f32 %v5484, %v5644
        %v5748 = vadd.f32 %v5485, %v5647
        %v5749 = vadd.f32 %v5486, %v5649
        %v5750 = vadd.f32 %v5487, %v5652
        %v5751 = vadd.f32 %v5488, %v5654
        %v5752 = vadd.f32 %v5489, %v5657
        %v5753 = vadd.f32 %v5490, %v5659
        %v5754 = vadd.f32 %v5491, %v5662
        %v5755 = vadd.f32 %v5492, %v5664
        %v5756 = vadd.f32 %v5493, %v5667
        %v5757 = vadd.f32 %v5494, %v5669
        %v5758 = vadd.f32 %v5495, %v5672
        %v5759 = vadd.f32 %v5496, %v5674
        %v5760 = vadd.f32 %v5497, %v5677
        %v5761 = vadd.f32 %v5498, %v5679
        %v5762 = vadd.f32 %v5499, %v5682
        %v5763 = vadd.f32 %v5500, %v5684
        %v5764 = vadd.f32 %v5501, %v5687
        %v5765 = vadd.f32 %v5502, %v5689
        %v5766 = vadd.f32 %v5503, %v5692
        %v5767 = vadd.f32 %v5504, %v5694
        %v5768 = vadd.f32 %v5505, %v5697
        %v5769 = vadd.f32 %v5506, %v5699
        %v5770 = vadd.f32 %v5507, %v5702
        %v5771 = vadd.f32 %v5508, %v5704
        %v5772 = vadd.f32 %v5509, %v5707
        %v5773 = vadd.f32 %v5510, %v5709
        %v5774 = vadd.f32 %v5511, %v5712
        %v5775 = vadd.f32 %v5512, %v5714
        %v5776 = vadd.f32 %v5513, %v5717
        %v5777 = vadd.f32 %v5514, %v5719
        %v5778 = vadd.f32 %v5515, %v5722
        %v5779 = vadd.f32 %v5516, %v5724
        %s5780 = scalar_lea.vmem %s8, 320
        %v5781 = vld [vmem:[%s5780] sm:$0xf]
        %v5782 = vld [vmem:[%s5780 + $0x4] sm:$0xf]
        %v5783 = vld [vmem:[%s5780 + $0x8] sm:$0xf]
        %v5784 = vld [vmem:[%s5780 + $0xc] sm:$0xf]
        %v5785 = vld [vmem:[%s5780 + $0x10] sm:$0xf]
        %v5786 = vld [vmem:[%s5780 + $0x14] sm:$0xf]
        %v5787 = vld [vmem:[%s5780 + $0x18] sm:$0xf]
        %v5788 = vld [vmem:[%s5780 + $0x1c] sm:$0xf]
        %v5789 = vld [vmem:[%s5780 + $0x20] sm:$0xf]
        %v5790 = vld [vmem:[%s5780 + $0x24] sm:$0xf]
        %v5791 = vld [vmem:[%s5780 + $0x28] sm:$0xf]
        %v5792 = vld [vmem:[%s5780 + $0x2c] sm:$0xf]
        %v5793 = vld [vmem:[%s5780 + $0x30] sm:$0xf]
        %v5794 = vld [vmem:[%s5780 + $0x34] sm:$0xf]
        %v5795 = vld [vmem:[%s5780 + $0x38] sm:$0xf]
        %v5796 = vld [vmem:[%s5780 + $0x3c] sm:$0xf]
        %v5813 = vunpack.c.l.b16 %v5781
        %v5814 = vunpack.c.l.b16 %v5782
        %v5815 = vunpack.c.l.b16 %v5783
        %v5816 = vunpack.c.l.b16 %v5784
        %v5817 = vunpack.c.l.b16 %v5785
        %v5818 = vunpack.c.l.b16 %v5786
        %v5819 = vunpack.c.l.b16 %v5787
        %v5820 = vunpack.c.l.b16 %v5788
        %v5821 = vunpack.c.l.b16 %v5789
        %v5822 = vunpack.c.l.b16 %v5790
        %v5823 = vunpack.c.l.b16 %v5791
        %v5824 = vunpack.c.l.b16 %v5792
        %v5825 = vunpack.c.l.b16 %v5793
        %v5826 = vunpack.c.l.b16 %v5794
        %v5827 = vunpack.c.l.b16 %v5795
        %v5828 = vunpack.c.l.b16 %v5796
        %v5829 = vpack.c.b16 %v5814, %v5813
        %v5830 = vpack.c.b16 %v5816, %v5815
        %v5831 = vpack.c.b16 %v5818, %v5817
        %v5832 = vpack.c.b16 %v5820, %v5819
        %v5833 = vpack.c.b16 %v5822, %v5821
        %v5834 = vpack.c.b16 %v5824, %v5823
        %v5835 = vpack.c.b16 %v5826, %v5825
        %v5836 = vpack.c.b16 %v5828, %v5827
        %5845 = vmatpush.bf16.msra.mxu0 %v5836
        %5846 = vmatpush.bf16.msra.mxu0 %v5835
        %5847 = vmatpush.bf16.msra.mxu0 %v5834
        %5848 = vmatpush.bf16.msra.mxu0 %v5833
        %5849 = vmatpush.bf16.msra.mxu0 %v5832
        %5850 = vmatpush.bf16.msra.mxu0 %v5831
        %5851 = vmatpush.bf16.msra.mxu0 %v5830
        %5852 = vmatpush.bf16.msra.mxu0 %v5829
        %5853 = vmatmul.bf16.gmra.mxu0 %v4169
        %v5854 = vpop.f32.mrf.mxu0
        %v5855 = vadd.f32 0.0, %v5854
        %v5856 = vpop.f32.mrf.mxu0
        %v5857 = vadd.f32 0.0, %v5856
        %5858 = vmatmul.bf16.gmra.mxu0 %v4170
        %v5859 = vpop.f32.mrf.mxu0
        %v5860 = vadd.f32 0.0, %v5859
        %v5861 = vpop.f32.mrf.mxu0
        %v5862 = vadd.f32 0.0, %v5861
        %5863 = vmatmul.bf16.gmra.mxu0 %v4171
        %v5864 = vpop.f32.mrf.mxu0
        %v5865 = vadd.f32 0.0, %v5864
        %v5866 = vpop.f32.mrf.mxu0
        %v5867 = vadd.f32 0.0, %v5866
        %5868 = vmatmul.bf16.gmra.mxu0 %v4172
        %v5869 = vpop.f32.mrf.mxu0
        %v5870 = vadd.f32 0.0, %v5869
        %v5871 = vpop.f32.mrf.mxu0
        %v5872 = vadd.f32 0.0, %v5871
        %5873 = vmatmul.bf16.gmra.mxu0 %v4173
        %v5874 = vpop.f32.mrf.mxu0
        %v5875 = vadd.f32 0.0, %v5874
        %v5876 = vpop.f32.mrf.mxu0
        %v5877 = vadd.f32 0.0, %v5876
        %5878 = vmatmul.bf16.gmra.mxu0 %v4174
        %v5879 = vpop.f32.mrf.mxu0
        %v5880 = vadd.f32 0.0, %v5879
        %v5881 = vpop.f32.mrf.mxu0
        %v5882 = vadd.f32 0.0, %v5881
        %5883 = vmatmul.bf16.gmra.mxu0 %v4175
        %v5884 = vpop.f32.mrf.mxu0
        %v5885 = vadd.f32 0.0, %v5884
        %v5886 = vpop.f32.mrf.mxu0
        %v5887 = vadd.f32 0.0, %v5886
        %5888 = vmatmul.bf16.gmra.mxu0 %v4176
        %v5889 = vpop.f32.mrf.mxu0
        %v5890 = vadd.f32 0.0, %v5889
        %v5891 = vpop.f32.mrf.mxu0
        %v5892 = vadd.f32 0.0, %v5891
        %5893 = vmatmul.bf16.gmra.mxu0 %v4177
        %v5894 = vpop.f32.mrf.mxu0
        %v5895 = vadd.f32 0.0, %v5894
        %v5896 = vpop.f32.mrf.mxu0
        %v5897 = vadd.f32 0.0, %v5896
        %5898 = vmatmul.bf16.gmra.mxu0 %v4178
        %v5899 = vpop.f32.mrf.mxu0
        %v5900 = vadd.f32 0.0, %v5899
        %v5901 = vpop.f32.mrf.mxu0
        %v5902 = vadd.f32 0.0, %v5901
        %5903 = vmatmul.bf16.gmra.mxu0 %v4179
        %v5904 = vpop.f32.mrf.mxu0
        %v5905 = vadd.f32 0.0, %v5904
        %v5906 = vpop.f32.mrf.mxu0
        %v5907 = vadd.f32 0.0, %v5906
        %5908 = vmatmul.bf16.gmra.mxu0 %v4180
        %v5909 = vpop.f32.mrf.mxu0
        %v5910 = vadd.f32 0.0, %v5909
        %v5911 = vpop.f32.mrf.mxu0
        %v5912 = vadd.f32 0.0, %v5911
        %5913 = vmatmul.bf16.gmra.mxu0 %v4181
        %v5914 = vpop.f32.mrf.mxu0
        %v5915 = vadd.f32 0.0, %v5914
        %v5916 = vpop.f32.mrf.mxu0
        %v5917 = vadd.f32 0.0, %v5916
        %5918 = vmatmul.bf16.gmra.mxu0 %v4182
        %v5919 = vpop.f32.mrf.mxu0
        %v5920 = vadd.f32 0.0, %v5919
        %v5921 = vpop.f32.mrf.mxu0
        %v5922 = vadd.f32 0.0, %v5921
        %5923 = vmatmul.bf16.gmra.mxu0 %v4183
        %v5924 = vpop.f32.mrf.mxu0
        %v5925 = vadd.f32 0.0, %v5924
        %v5926 = vpop.f32.mrf.mxu0
        %v5927 = vadd.f32 0.0, %v5926
        %5928 = vmatmul.bf16.gmra.mxu0 %v4184
        %v5929 = vpop.f32.mrf.mxu0
        %v5930 = vadd.f32 0.0, %v5929
        %v5931 = vpop.f32.mrf.mxu0
        %v5932 = vadd.f32 0.0, %v5931
        %5933 = vmatmul.bf16.gmra.mxu0 %v4185
        %v5934 = vpop.f32.mrf.mxu0
        %v5935 = vadd.f32 0.0, %v5934
        %v5936 = vpop.f32.mrf.mxu0
        %v5937 = vadd.f32 0.0, %v5936
        %5938 = vmatmul.bf16.gmra.mxu0 %v4186
        %v5939 = vpop.f32.mrf.mxu0
        %v5940 = vadd.f32 0.0, %v5939
        %v5941 = vpop.f32.mrf.mxu0
        %v5942 = vadd.f32 0.0, %v5941
        %5943 = vmatmul.bf16.gmra.mxu0 %v4187
        %v5944 = vpop.f32.mrf.mxu0
        %v5945 = vadd.f32 0.0, %v5944
        %v5946 = vpop.f32.mrf.mxu0
        %v5947 = vadd.f32 0.0, %v5946
        %5948 = vmatmul.bf16.gmra.mxu0 %v4188
        %v5949 = vpop.f32.mrf.mxu0
        %v5950 = vadd.f32 0.0, %v5949
        %v5951 = vpop.f32.mrf.mxu0
        %v5952 = vadd.f32 0.0, %v5951
        %5953 = vmatmul.bf16.gmra.mxu0 %v4189
        %v5954 = vpop.f32.mrf.mxu0
        %v5955 = vadd.f32 0.0, %v5954
        %v5956 = vpop.f32.mrf.mxu0
        %v5957 = vadd.f32 0.0, %v5956
        %5958 = vmatmul.bf16.gmra.mxu0 %v4190
        %v5959 = vpop.f32.mrf.mxu0
        %v5960 = vadd.f32 0.0, %v5959
        %v5961 = vpop.f32.mrf.mxu0
        %v5962 = vadd.f32 0.0, %v5961
        %5963 = vmatmul.bf16.gmra.mxu0 %v4191
        %v5964 = vpop.f32.mrf.mxu0
        %v5965 = vadd.f32 0.0, %v5964
        %v5966 = vpop.f32.mrf.mxu0
        %v5967 = vadd.f32 0.0, %v5966
        %5968 = vmatmul.bf16.gmra.mxu0 %v4192
        %v5969 = vpop.f32.mrf.mxu0
        %v5970 = vadd.f32 0.0, %v5969
        %v5971 = vpop.f32.mrf.mxu0
        %v5972 = vadd.f32 0.0, %v5971
        %5973 = vmatmul.bf16.gmra.mxu0 %v4193
        %v5974 = vpop.f32.mrf.mxu0
        %v5975 = vadd.f32 0.0, %v5974
        %v5976 = vpop.f32.mrf.mxu0
        %v5977 = vadd.f32 0.0, %v5976
        %5978 = vmatmul.bf16.gmra.mxu0 %v4194
        %v5979 = vpop.f32.mrf.mxu0
        %v5980 = vadd.f32 0.0, %v5979
        %v5981 = vpop.f32.mrf.mxu0
        %v5982 = vadd.f32 0.0, %v5981
        %5983 = vmatmul.bf16.gmra.mxu0 %v4195
        %v5984 = vpop.f32.mrf.mxu0
        %v5985 = vadd.f32 0.0, %v5984
        %v5986 = vpop.f32.mrf.mxu0
        %v5987 = vadd.f32 0.0, %v5986
        %5988 = vdwg.mxu0
        %v5989 = vrot.slane %v5855, 1
        %v5990 = vrot.slane %v5857, 1
        %v5991 = vrot.slane %v5860, 1
        %v5992 = vrot.slane %v5862, 1
        %v5993 = vrot.slane %v5865, 1
        %v5994 = vrot.slane %v5867, 1
        %v5995 = vrot.slane %v5870, 1
        %v5996 = vrot.slane %v5872, 1
        %v5997 = vrot.slane %v5875, 1
        %v5998 = vrot.slane %v5877, 1
        %v5999 = vrot.slane %v5880, 1
        %v6000 = vrot.slane %v5882, 1
        %v6001 = vrot.slane %v5885, 1
        %v6002 = vrot.slane %v5887, 1
        %v6003 = vrot.slane %v5890, 1
        %v6004 = vrot.slane %v5892, 1
        %v6005 = vrot.slane %v5895, 1
        %v6006 = vrot.slane %v5897, 1
        %v6007 = vrot.slane %v5900, 1
        %v6008 = vrot.slane %v5902, 1
        %v6009 = vrot.slane %v5905, 1
        %v6010 = vrot.slane %v5907, 1
        %v6011 = vrot.slane %v5910, 1
        %v6012 = vrot.slane %v5912, 1
        %v6013 = vrot.slane %v5915, 1
        %v6014 = vrot.slane %v5917, 1
        %v6015 = vrot.slane %v5920, 1
        %v6016 = vrot.slane %v5922, 1
        %v6017 = vrot.slane %v5925, 1
        %v6018 = vrot.slane %v5927, 1
        %v6019 = vrot.slane %v5930, 1
        %v6020 = vrot.slane %v5932, 1
        %v6021 = vrot.slane %v5935, 1
        %v6022 = vrot.slane %v5937, 1
        %v6023 = vrot.slane %v5940, 1
        %v6024 = vrot.slane %v5942, 1
        %v6025 = vrot.slane %v5945, 1
        %v6026 = vrot.slane %v5947, 1
        %v6027 = vrot.slane %v5950, 1
        %v6028 = vrot.slane %v5952, 1
        %v6029 = vrot.slane %v5955, 1
        %v6030 = vrot.slane %v5957, 1
        %v6031 = vrot.slane %v5960, 1
        %v6032 = vrot.slane %v5962, 1
        %v6033 = vrot.slane %v5965, 1
        %v6034 = vrot.slane %v5967, 1
        %v6035 = vrot.slane %v5970, 1
        %v6036 = vrot.slane %v5972, 1
        %v6037 = vrot.slane %v5975, 1
        %v6038 = vrot.slane %v5977, 1
        %v6039 = vrot.slane %v5980, 1
        %v6040 = vrot.slane %v5982, 1
        %v6041 = vrot.slane %v5985, 1
        %v6042 = vrot.slane %v5987, 1
        %v6043 = vsel %vm1511, %v6041, %v6042
        %v6044 = vsel %vm1511, %v6040, %v6041
        %v6045 = vsel %vm1511, %v6039, %v6040
        %v6046 = vsel %vm1511, %v6038, %v6039
        %v6047 = vsel %vm1511, %v6037, %v6038
        %v6048 = vsel %vm1511, %v6036, %v6037
        %v6049 = vsel %vm1511, %v6035, %v6036
        %v6050 = vsel %vm1511, %v6034, %v6035
        %v6051 = vsel %vm1511, %v6033, %v6034
        %v6052 = vsel %vm1511, %v6032, %v6033
        %v6053 = vsel %vm1511, %v6031, %v6032
        %v6054 = vsel %vm1511, %v6030, %v6031
        %v6055 = vsel %vm1511, %v6029, %v6030
        %v6056 = vsel %vm1511, %v6028, %v6029
        %v6057 = vsel %vm1511, %v6027, %v6028
        %v6058 = vsel %vm1511, %v6026, %v6027
        %v6059 = vsel %vm1511, %v6025, %v6026
        %v6060 = vsel %vm1511, %v6024, %v6025
        %v6061 = vsel %vm1511, %v6023, %v6024
        %v6062 = vsel %vm1511, %v6022, %v6023
        %v6063 = vsel %vm1511, %v6021, %v6022
        %v6064 = vsel %vm1511, %v6020, %v6021
        %v6065 = vsel %vm1511, %v6019, %v6020
        %v6066 = vsel %vm1511, %v6018, %v6019
        %v6067 = vsel %vm1511, %v6017, %v6018
        %v6068 = vsel %vm1511, %v6016, %v6017
        %v6069 = vsel %vm1511, %v6015, %v6016
        %v6070 = vsel %vm1511, %v6014, %v6015
        %v6071 = vsel %vm1511, %v6013, %v6014
        %v6072 = vsel %vm1511, %v6012, %v6013
        %v6073 = vsel %vm1511, %v6011, %v6012
        %v6074 = vsel %vm1511, %v6010, %v6011
        %v6075 = vsel %vm1511, %v6009, %v6010
        %v6076 = vsel %vm1511, %v6008, %v6009
        %v6077 = vsel %vm1511, %v6007, %v6008
        %v6078 = vsel %vm1511, %v6006, %v6007
        %v6079 = vsel %vm1511, %v6005, %v6006
        %v6080 = vsel %vm1511, %v6004, %v6005
        %v6081 = vsel %vm1511, %v6003, %v6004
        %v6082 = vsel %vm1511, %v6002, %v6003
        %v6083 = vsel %vm1511, %v6001, %v6002
        %v6084 = vsel %vm1511, %v6000, %v6001
        %v6085 = vsel %vm1511, %v5999, %v6000
        %v6086 = vsel %vm1511, %v5998, %v5999
        %v6087 = vsel %vm1511, %v5997, %v5998
        %v6088 = vsel %vm1511, %v5996, %v5997
        %v6089 = vsel %vm1511, %v5995, %v5996
        %v6090 = vsel %vm1511, %v5994, %v5995
        %v6091 = vsel %vm1511, %v5993, %v5994
        %v6092 = vsel %vm1511, %v5992, %v5993
        %v6093 = vsel %vm1511, %v5991, %v5992
        %v6094 = vsel %vm1511, %v5990, %v5991
        %v6095 = vsel %vm1511, %v5989, %v5990
        %v6096 = vsel %vm1511, %v6042, %v5989
        %v6097 = vadd.f32 %v5726, %v6095
        %v6098 = vadd.f32 %v5727, %v6094
        %v6099 = vadd.f32 %v5728, %v6093
        %v6100 = vadd.f32 %v5729, %v6092
        %v6101 = vadd.f32 %v5730, %v6091
        %v6102 = vadd.f32 %v5731, %v6090
        %v6103 = vadd.f32 %v5732, %v6089
        %v6104 = vadd.f32 %v5733, %v6088
        %v6105 = vadd.f32 %v5734, %v6087
        %v6106 = vadd.f32 %v5735, %v6086
        %v6107 = vadd.f32 %v5736, %v6085
        %v6108 = vadd.f32 %v5737, %v6084
        %v6109 = vadd.f32 %v5738, %v6083
        %v6110 = vadd.f32 %v5739, %v6082
        %v6111 = vadd.f32 %v5740, %v6081
        %v6112 = vadd.f32 %v5741, %v6080
        %v6113 = vadd.f32 %v5742, %v6079
        %v6114 = vadd.f32 %v5743, %v6078
        %v6115 = vadd.f32 %v5744, %v6077
        %v6116 = vadd.f32 %v5745, %v6076
        %v6117 = vadd.f32 %v5746, %v6075
        %v6118 = vadd.f32 %v5747, %v6074
        %v6119 = vadd.f32 %v5748, %v6073
        %v6120 = vadd.f32 %v5749, %v6072
        %v6121 = vadd.f32 %v5750, %v6071
        %v6122 = vadd.f32 %v5751, %v6070
        %v6123 = vadd.f32 %v5752, %v6069
        %v6124 = vadd.f32 %v5753, %v6068
        %v6125 = vadd.f32 %v5754, %v6067
        %v6126 = vadd.f32 %v5755, %v6066
        %v6127 = vadd.f32 %v5756, %v6065
        %v6128 = vadd.f32 %v5757, %v6064
        %v6129 = vadd.f32 %v5758, %v6063
        %v6130 = vadd.f32 %v5759, %v6062
        %v6131 = vadd.f32 %v5760, %v6061
        %v6132 = vadd.f32 %v5761, %v6060
        %v6133 = vadd.f32 %v5762, %v6059
        %v6134 = vadd.f32 %v5763, %v6058
        %v6135 = vadd.f32 %v5764, %v6057
        %v6136 = vadd.f32 %v5765, %v6056
        %v6137 = vadd.f32 %v5766, %v6055
        %v6138 = vadd.f32 %v5767, %v6054
        %v6139 = vadd.f32 %v5768, %v6053
        %v6140 = vadd.f32 %v5769, %v6052
        %v6141 = vadd.f32 %v5770, %v6051
        %v6142 = vadd.f32 %v5771, %v6050
        %v6143 = vadd.f32 %v5772, %v6049
        %v6144 = vadd.f32 %v5773, %v6048
        %v6145 = vadd.f32 %v5774, %v6047
        %v6146 = vadd.f32 %v5775, %v6046
        %v6147 = vadd.f32 %v5776, %v6045
        %v6148 = vadd.f32 %v5777, %v6044
        %v6149 = vadd.f32 %v5778, %v6043
        %v6150 = vadd.f32 %v5779, %v6096
        %s6151 = scalar_lea.vmem %s8, 384
        %v6152 = vld [vmem:[%s6151] sm:$0xf]
        %v6153 = vld [vmem:[%s6151 + $0x4] sm:$0xf]
        %v6154 = vld [vmem:[%s6151 + $0x8] sm:$0xf]
        %v6155 = vld [vmem:[%s6151 + $0xc] sm:$0xf]
        %v6156 = vld [vmem:[%s6151 + $0x10] sm:$0xf]
        %v6157 = vld [vmem:[%s6151 + $0x14] sm:$0xf]
        %v6158 = vld [vmem:[%s6151 + $0x18] sm:$0xf]
        %v6159 = vld [vmem:[%s6151 + $0x1c] sm:$0xf]
        %v6160 = vld [vmem:[%s6151 + $0x20] sm:$0xf]
        %v6161 = vld [vmem:[%s6151 + $0x24] sm:$0xf]
        %v6162 = vld [vmem:[%s6151 + $0x28] sm:$0xf]
        %v6163 = vld [vmem:[%s6151 + $0x2c] sm:$0xf]
        %v6164 = vld [vmem:[%s6151 + $0x30] sm:$0xf]
        %v6165 = vld [vmem:[%s6151 + $0x34] sm:$0xf]
        %v6166 = vld [vmem:[%s6151 + $0x38] sm:$0xf]
        %v6167 = vld [vmem:[%s6151 + $0x3c] sm:$0xf]
        %v6184 = vunpack.c.l.b16 %v6152
        %v6185 = vunpack.c.l.b16 %v6153
        %v6186 = vunpack.c.l.b16 %v6154
        %v6187 = vunpack.c.l.b16 %v6155
        %v6188 = vunpack.c.l.b16 %v6156
        %v6189 = vunpack.c.l.b16 %v6157
        %v6190 = vunpack.c.l.b16 %v6158
        %v6191 = vunpack.c.l.b16 %v6159
        %v6192 = vunpack.c.l.b16 %v6160
        %v6193 = vunpack.c.l.b16 %v6161
        %v6194 = vunpack.c.l.b16 %v6162
        %v6195 = vunpack.c.l.b16 %v6163
        %v6196 = vunpack.c.l.b16 %v6164
        %v6197 = vunpack.c.l.b16 %v6165
        %v6198 = vunpack.c.l.b16 %v6166
        %v6199 = vunpack.c.l.b16 %v6167
        %v6200 = vpack.c.b16 %v6185, %v6184
        %v6201 = vpack.c.b16 %v6187, %v6186
        %v6202 = vpack.c.b16 %v6189, %v6188
        %v6203 = vpack.c.b16 %v6191, %v6190
        %v6204 = vpack.c.b16 %v6193, %v6192
        %v6205 = vpack.c.b16 %v6195, %v6194
        %v6206 = vpack.c.b16 %v6197, %v6196
        %v6207 = vpack.c.b16 %v6199, %v6198
        %6216 = vmatpush.bf16.msra.mxu0 %v6207
        %6217 = vmatpush.bf16.msra.mxu0 %v6206
        %6218 = vmatpush.bf16.msra.mxu0 %v6205
        %6219 = vmatpush.bf16.msra.mxu0 %v6204
        %6220 = vmatpush.bf16.msra.mxu0 %v6203
        %6221 = vmatpush.bf16.msra.mxu0 %v6202
        %6222 = vmatpush.bf16.msra.mxu0 %v6201
        %6223 = vmatpush.bf16.msra.mxu0 %v6200
        %6224 = vmatmul.bf16.gmra.mxu0 %v4169
        %v6225 = vpop.f32.mrf.mxu0
        %v6226 = vadd.f32 0.0, %v6225
        %v6227 = vpop.f32.mrf.mxu0
        %v6228 = vadd.f32 0.0, %v6227
        %6229 = vmatmul.bf16.gmra.mxu0 %v4170
        %v6230 = vpop.f32.mrf.mxu0
        %v6231 = vadd.f32 0.0, %v6230
        %v6232 = vpop.f32.mrf.mxu0
        %v6233 = vadd.f32 0.0, %v6232
        %6234 = vmatmul.bf16.gmra.mxu0 %v4171
        %v6235 = vpop.f32.mrf.mxu0
        %v6236 = vadd.f32 0.0, %v6235
        %v6237 = vpop.f32.mrf.mxu0
        %v6238 = vadd.f32 0.0, %v6237
        %6239 = vmatmul.bf16.gmra.mxu0 %v4172
        %v6240 = vpop.f32.mrf.mxu0
        %v6241 = vadd.f32 0.0, %v6240
        %v6242 = vpop.f32.mrf.mxu0
        %v6243 = vadd.f32 0.0, %v6242
        %6244 = vmatmul.bf16.gmra.mxu0 %v4173
        %v6245 = vpop.f32.mrf.mxu0
        %v6246 = vadd.f32 0.0, %v6245
        %v6247 = vpop.f32.mrf.mxu0
        %v6248 = vadd.f32 0.0, %v6247
        %6249 = vmatmul.bf16.gmra.mxu0 %v4174
        %v6250 = vpop.f32.mrf.mxu0
        %v6251 = vadd.f32 0.0, %v6250
        %v6252 = vpop.f32.mrf.mxu0
        %v6253 = vadd.f32 0.0, %v6252
        %6254 = vmatmul.bf16.gmra.mxu0 %v4175
        %v6255 = vpop.f32.mrf.mxu0
        %v6256 = vadd.f32 0.0, %v6255
        %v6257 = vpop.f32.mrf.mxu0
        %v6258 = vadd.f32 0.0, %v6257
        %6259 = vmatmul.bf16.gmra.mxu0 %v4176
        %v6260 = vpop.f32.mrf.mxu0
        %v6261 = vadd.f32 0.0, %v6260
        %v6262 = vpop.f32.mrf.mxu0
        %v6263 = vadd.f32 0.0, %v6262
        %6264 = vmatmul.bf16.gmra.mxu0 %v4177
        %v6265 = vpop.f32.mrf.mxu0
        %v6266 = vadd.f32 0.0, %v6265
        %v6267 = vpop.f32.mrf.mxu0
        %v6268 = vadd.f32 0.0, %v6267
        %6269 = vmatmul.bf16.gmra.mxu0 %v4178
        %v6270 = vpop.f32.mrf.mxu0
        %v6271 = vadd.f32 0.0, %v6270
        %v6272 = vpop.f32.mrf.mxu0
        %v6273 = vadd.f32 0.0, %v6272
        %6274 = vmatmul.bf16.gmra.mxu0 %v4179
        %v6275 = vpop.f32.mrf.mxu0
        %v6276 = vadd.f32 0.0, %v6275
        %v6277 = vpop.f32.mrf.mxu0
        %v6278 = vadd.f32 0.0, %v6277
        %6279 = vmatmul.bf16.gmra.mxu0 %v4180
        %v6280 = vpop.f32.mrf.mxu0
        %v6281 = vadd.f32 0.0, %v6280
        %v6282 = vpop.f32.mrf.mxu0
        %v6283 = vadd.f32 0.0, %v6282
        %6284 = vmatmul.bf16.gmra.mxu0 %v4181
        %v6285 = vpop.f32.mrf.mxu0
        %v6286 = vadd.f32 0.0, %v6285
        %v6287 = vpop.f32.mrf.mxu0
        %v6288 = vadd.f32 0.0, %v6287
        %6289 = vmatmul.bf16.gmra.mxu0 %v4182
        %v6290 = vpop.f32.mrf.mxu0
        %v6291 = vadd.f32 0.0, %v6290
        %v6292 = vpop.f32.mrf.mxu0
        %v6293 = vadd.f32 0.0, %v6292
        %6294 = vmatmul.bf16.gmra.mxu0 %v4183
        %v6295 = vpop.f32.mrf.mxu0
        %v6296 = vadd.f32 0.0, %v6295
        %v6297 = vpop.f32.mrf.mxu0
        %v6298 = vadd.f32 0.0, %v6297
        %6299 = vmatmul.bf16.gmra.mxu0 %v4184
        %v6300 = vpop.f32.mrf.mxu0
        %v6301 = vadd.f32 0.0, %v6300
        %v6302 = vpop.f32.mrf.mxu0
        %v6303 = vadd.f32 0.0, %v6302
        %6304 = vmatmul.bf16.gmra.mxu0 %v4185
        %v6305 = vpop.f32.mrf.mxu0
        %v6306 = vadd.f32 0.0, %v6305
        %v6307 = vpop.f32.mrf.mxu0
        %v6308 = vadd.f32 0.0, %v6307
        %6309 = vmatmul.bf16.gmra.mxu0 %v4186
        %v6310 = vpop.f32.mrf.mxu0
        %v6311 = vadd.f32 0.0, %v6310
        %v6312 = vpop.f32.mrf.mxu0
        %v6313 = vadd.f32 0.0, %v6312
        %6314 = vmatmul.bf16.gmra.mxu0 %v4187
        %v6315 = vpop.f32.mrf.mxu0
        %v6316 = vadd.f32 0.0, %v6315
        %v6317 = vpop.f32.mrf.mxu0
        %v6318 = vadd.f32 0.0, %v6317
        %6319 = vmatmul.bf16.gmra.mxu0 %v4188
        %v6320 = vpop.f32.mrf.mxu0
        %v6321 = vadd.f32 0.0, %v6320
        %v6322 = vpop.f32.mrf.mxu0
        %v6323 = vadd.f32 0.0, %v6322
        %6324 = vmatmul.bf16.gmra.mxu0 %v4189
        %v6325 = vpop.f32.mrf.mxu0
        %v6326 = vadd.f32 0.0, %v6325
        %v6327 = vpop.f32.mrf.mxu0
        %v6328 = vadd.f32 0.0, %v6327
        %6329 = vmatmul.bf16.gmra.mxu0 %v4190
        %v6330 = vpop.f32.mrf.mxu0
        %v6331 = vadd.f32 0.0, %v6330
        %v6332 = vpop.f32.mrf.mxu0
        %v6333 = vadd.f32 0.0, %v6332
        %6334 = vmatmul.bf16.gmra.mxu0 %v4191
        %v6335 = vpop.f32.mrf.mxu0
        %v6336 = vadd.f32 0.0, %v6335
        %v6337 = vpop.f32.mrf.mxu0
        %v6338 = vadd.f32 0.0, %v6337
        %6339 = vmatmul.bf16.gmra.mxu0 %v4192
        %v6340 = vpop.f32.mrf.mxu0
        %v6341 = vadd.f32 0.0, %v6340
        %v6342 = vpop.f32.mrf.mxu0
        %v6343 = vadd.f32 0.0, %v6342
        %6344 = vmatmul.bf16.gmra.mxu0 %v4193
        %v6345 = vpop.f32.mrf.mxu0
        %v6346 = vadd.f32 0.0, %v6345
        %v6347 = vpop.f32.mrf.mxu0
        %v6348 = vadd.f32 0.0, %v6347
        %6349 = vmatmul.bf16.gmra.mxu0 %v4194
        %v6350 = vpop.f32.mrf.mxu0
        %v6351 = vadd.f32 0.0, %v6350
        %v6352 = vpop.f32.mrf.mxu0
        %v6353 = vadd.f32 0.0, %v6352
        %6354 = vmatmul.bf16.gmra.mxu0 %v4195
        %v6355 = vpop.f32.mrf.mxu0
        %v6356 = vadd.f32 0.0, %v6355
        %v6357 = vpop.f32.mrf.mxu0
        %v6358 = vadd.f32 0.0, %v6357
        %6359 = vdwg.mxu0
        %v6360 = vrot.slane %v6226, 7
        %v6361 = vrot.slane %v6228, 7
        %v6362 = vrot.slane %v6231, 7
        %v6363 = vrot.slane %v6233, 7
        %v6364 = vrot.slane %v6236, 7
        %v6365 = vrot.slane %v6238, 7
        %v6366 = vrot.slane %v6241, 7
        %v6367 = vrot.slane %v6243, 7
        %v6368 = vrot.slane %v6246, 7
        %v6369 = vrot.slane %v6248, 7
        %v6370 = vrot.slane %v6251, 7
        %v6371 = vrot.slane %v6253, 7
        %v6372 = vrot.slane %v6256, 7
        %v6373 = vrot.slane %v6258, 7
        %v6374 = vrot.slane %v6261, 7
        %v6375 = vrot.slane %v6263, 7
        %v6376 = vrot.slane %v6266, 7
        %v6377 = vrot.slane %v6268, 7
        %v6378 = vrot.slane %v6271, 7
        %v6379 = vrot.slane %v6273, 7
        %v6380 = vrot.slane %v6276, 7
        %v6381 = vrot.slane %v6278, 7
        %v6382 = vrot.slane %v6281, 7
        %v6383 = vrot.slane %v6283, 7
        %v6384 = vrot.slane %v6286, 7
        %v6385 = vrot.slane %v6288, 7
        %v6386 = vrot.slane %v6291, 7
        %v6387 = vrot.slane %v6293, 7
        %v6388 = vrot.slane %v6296, 7
        %v6389 = vrot.slane %v6298, 7
        %v6390 = vrot.slane %v6301, 7
        %v6391 = vrot.slane %v6303, 7
        %v6392 = vrot.slane %v6306, 7
        %v6393 = vrot.slane %v6308, 7
        %v6394 = vrot.slane %v6311, 7
        %v6395 = vrot.slane %v6313, 7
        %v6396 = vrot.slane %v6316, 7
        %v6397 = vrot.slane %v6318, 7
        %v6398 = vrot.slane %v6321, 7
        %v6399 = vrot.slane %v6323, 7
        %v6400 = vrot.slane %v6326, 7
        %v6401 = vrot.slane %v6328, 7
        %v6402 = vrot.slane %v6331, 7
        %v6403 = vrot.slane %v6333, 7
        %v6404 = vrot.slane %v6336, 7
        %v6405 = vrot.slane %v6338, 7
        %v6406 = vrot.slane %v6341, 7
        %v6407 = vrot.slane %v6343, 7
        %v6408 = vrot.slane %v6346, 7
        %v6409 = vrot.slane %v6348, 7
        %v6410 = vrot.slane %v6351, 7
        %v6411 = vrot.slane %v6353, 7
        %v6412 = vrot.slane %v6356, 7
        %v6413 = vrot.slane %v6358, 7
        %v6414 = vsel %vm1050, %v6412, %v6413
        %v6415 = vsel %vm1050, %v6411, %v6412
        %v6416 = vsel %vm1050, %v6410, %v6411
        %v6417 = vsel %vm1050, %v6409, %v6410
        %v6418 = vsel %vm1050, %v6408, %v6409
        %v6419 = vsel %vm1050, %v6407, %v6408
        %v6420 = vsel %vm1050, %v6406, %v6407
        %v6421 = vsel %vm1050, %v6405, %v6406
        %v6422 = vsel %vm1050, %v6404, %v6405
        %v6423 = vsel %vm1050, %v6403, %v6404
        %v6424 = vsel %vm1050, %v6402, %v6403
        %v6425 = vsel %vm1050, %v6401, %v6402
        %v6426 = vsel %vm1050, %v6400, %v6401
        %v6427 = vsel %vm1050, %v6399, %v6400
        %v6428 = vsel %vm1050, %v6398, %v6399
        %v6429 = vsel %vm1050, %v6397, %v6398
        %v6430 = vsel %vm1050, %v6396, %v6397
        %v6431 = vsel %vm1050, %v6395, %v6396
        %v6432 = vsel %vm1050, %v6394, %v6395
        %v6433 = vsel %vm1050, %v6393, %v6394
        %v6434 = vsel %vm1050, %v6392, %v6393
        %v6435 = vsel %vm1050, %v6391, %v6392
        %v6436 = vsel %vm1050, %v6390, %v6391
        %v6437 = vsel %vm1050, %v6389, %v6390
        %v6438 = vsel %vm1050, %v6388, %v6389
        %v6439 = vsel %vm1050, %v6387, %v6388
        %v6440 = vsel %vm1050, %v6386, %v6387
        %v6441 = vsel %vm1050, %v6385, %v6386
        %v6442 = vsel %vm1050, %v6384, %v6385
        %v6443 = vsel %vm1050, %v6383, %v6384
        %v6444 = vsel %vm1050, %v6382, %v6383
        %v6445 = vsel %vm1050, %v6381, %v6382
        %v6446 = vsel %vm1050, %v6380, %v6381
        %v6447 = vsel %vm1050, %v6379, %v6380
        %v6448 = vsel %vm1050, %v6378, %v6379
        %v6449 = vsel %vm1050, %v6377, %v6378
        %v6450 = vsel %vm1050, %v6376, %v6377
        %v6451 = vsel %vm1050, %v6375, %v6376
        %v6452 = vsel %vm1050, %v6374, %v6375
        %v6453 = vsel %vm1050, %v6373, %v6374
        %v6454 = vsel %vm1050, %v6372, %v6373
        %v6455 = vsel %vm1050, %v6371, %v6372
        %v6456 = vsel %vm1050, %v6370, %v6371
        %v6457 = vsel %vm1050, %v6369, %v6370
        %v6458 = vsel %vm1050, %v6368, %v6369
        %v6459 = vsel %vm1050, %v6367, %v6368
        %v6460 = vsel %vm1050, %v6366, %v6367
        %v6461 = vsel %vm1050, %v6365, %v6366
        %v6462 = vsel %vm1050, %v6364, %v6365
        %v6463 = vsel %vm1050, %v6363, %v6364
        %v6464 = vsel %vm1050, %v6362, %v6363
        %v6465 = vsel %vm1050, %v6361, %v6362
        %v6466 = vsel %vm1050, %v6360, %v6361
        %v6467 = vsel %vm1050, %v6413, %v6360
        %v6468 = vadd.f32 %v6097, %v6464
        %v6469 = vadd.f32 %v6098, %v6463
        %v6470 = vadd.f32 %v6099, %v6462
        %v6471 = vadd.f32 %v6100, %v6461
        %v6472 = vadd.f32 %v6101, %v6460
        %v6473 = vadd.f32 %v6102, %v6459
        %v6474 = vadd.f32 %v6103, %v6458
        %v6475 = vadd.f32 %v6104, %v6457
        %v6476 = vadd.f32 %v6105, %v6456
        %v6477 = vadd.f32 %v6106, %v6455
        %v6478 = vadd.f32 %v6107, %v6454
        %v6479 = vadd.f32 %v6108, %v6453
        %v6480 = vadd.f32 %v6109, %v6452
        %v6481 = vadd.f32 %v6110, %v6451
        %v6482 = vadd.f32 %v6111, %v6450
        %v6483 = vadd.f32 %v6112, %v6449
        %v6484 = vadd.f32 %v6113, %v6448
        %v6485 = vadd.f32 %v6114, %v6447
        %v6486 = vadd.f32 %v6115, %v6446
        %v6487 = vadd.f32 %v6116, %v6445
        %v6488 = vadd.f32 %v6117, %v6444
        %v6489 = vadd.f32 %v6118, %v6443
        %v6490 = vadd.f32 %v6119, %v6442
        %v6491 = vadd.f32 %v6120, %v6441
        %v6492 = vadd.f32 %v6121, %v6440
        %v6493 = vadd.f32 %v6122, %v6439
        %v6494 = vadd.f32 %v6123, %v6438
        %v6495 = vadd.f32 %v6124, %v6437
        %v6496 = vadd.f32 %v6125, %v6436
        %v6497 = vadd.f32 %v6126, %v6435
        %v6498 = vadd.f32 %v6127, %v6434
        %v6499 = vadd.f32 %v6128, %v6433
        %v6500 = vadd.f32 %v6129, %v6432
        %v6501 = vadd.f32 %v6130, %v6431
        %v6502 = vadd.f32 %v6131, %v6430
        %v6503 = vadd.f32 %v6132, %v6429
        %v6504 = vadd.f32 %v6133, %v6428
        %v6505 = vadd.f32 %v6134, %v6427
        %v6506 = vadd.f32 %v6135, %v6426
        %v6507 = vadd.f32 %v6136, %v6425
        %v6508 = vadd.f32 %v6137, %v6424
        %v6509 = vadd.f32 %v6138, %v6423
        %v6510 = vadd.f32 %v6139, %v6422
        %v6511 = vadd.f32 %v6140, %v6421
        %v6512 = vadd.f32 %v6141, %v6420
        %v6513 = vadd.f32 %v6142, %v6419
        %v6514 = vadd.f32 %v6143, %v6418
        %v6515 = vadd.f32 %v6144, %v6417
        %v6516 = vadd.f32 %v6145, %v6416
        %v6517 = vadd.f32 %v6146, %v6415
        %v6518 = vadd.f32 %v6147, %v6414
        %v6519 = vadd.f32 %v6148, %v6467
        %v6520 = vadd.f32 %v6149, %v6466
        %v6521 = vadd.f32 %v6150, %v6465
        %s6522 = scalar_lea.vmem %s8, 448
        %v6523 = vld [vmem:[%s6522] sm:$0xf]
        %v6524 = vld [vmem:[%s6522 + $0x4] sm:$0xf]
        %v6525 = vld [vmem:[%s6522 + $0x8] sm:$0xf]
        %v6526 = vld [vmem:[%s6522 + $0xc] sm:$0xf]
        %v6527 = vld [vmem:[%s6522 + $0x10] sm:$0xf]
        %v6528 = vld [vmem:[%s6522 + $0x14] sm:$0xf]
        %v6529 = vld [vmem:[%s6522 + $0x18] sm:$0xf]
        %v6530 = vld [vmem:[%s6522 + $0x1c] sm:$0xf]
        %v6531 = vld [vmem:[%s6522 + $0x20] sm:$0xf]
        %v6532 = vld [vmem:[%s6522 + $0x24] sm:$0xf]
        %v6533 = vld [vmem:[%s6522 + $0x28] sm:$0xf]
        %v6534 = vld [vmem:[%s6522 + $0x2c] sm:$0xf]
        %v6535 = vld [vmem:[%s6522 + $0x30] sm:$0xf]
        %v6536 = vld [vmem:[%s6522 + $0x34] sm:$0xf]
        %v6537 = vld [vmem:[%s6522 + $0x38] sm:$0xf]
        %v6538 = vld [vmem:[%s6522 + $0x3c] sm:$0xf]
        %v6555 = vunpack.c.l.b16 %v6523
        %v6556 = vunpack.c.l.b16 %v6524
        %v6557 = vunpack.c.l.b16 %v6525
        %v6558 = vunpack.c.l.b16 %v6526
        %v6559 = vunpack.c.l.b16 %v6527
        %v6560 = vunpack.c.l.b16 %v6528
        %v6561 = vunpack.c.l.b16 %v6529
        %v6562 = vunpack.c.l.b16 %v6530
        %v6563 = vunpack.c.l.b16 %v6531
        %v6564 = vunpack.c.l.b16 %v6532
        %v6565 = vunpack.c.l.b16 %v6533
        %v6566 = vunpack.c.l.b16 %v6534
        %v6567 = vunpack.c.l.b16 %v6535
        %v6568 = vunpack.c.l.b16 %v6536
        %v6569 = vunpack.c.l.b16 %v6537
        %v6570 = vunpack.c.l.b16 %v6538
        %v6571 = vpack.c.b16 %v6556, %v6555
        %v6572 = vpack.c.b16 %v6558, %v6557
        %v6573 = vpack.c.b16 %v6560, %v6559
        %v6574 = vpack.c.b16 %v6562, %v6561
        %v6575 = vpack.c.b16 %v6564, %v6563
        %v6576 = vpack.c.b16 %v6566, %v6565
        %v6577 = vpack.c.b16 %v6568, %v6567
        %v6578 = vpack.c.b16 %v6570, %v6569
        %6587 = vmatpush.bf16.msra.mxu0 %v6578
        %6588 = vmatpush.bf16.msra.mxu0 %v6577
        %6589 = vmatpush.bf16.msra.mxu0 %v6576
        %6590 = vmatpush.bf16.msra.mxu0 %v6575
        %6591 = vmatpush.bf16.msra.mxu0 %v6574
        %6592 = vmatpush.bf16.msra.mxu0 %v6573
        %6593 = vmatpush.bf16.msra.mxu0 %v6572
        %6594 = vmatpush.bf16.msra.mxu0 %v6571
        %6595 = vmatmul.bf16.gmra.mxu0 %v4169
        %v6596 = vpop.f32.mrf.mxu0
        %v6597 = vadd.f32 0.0, %v6596
        %v6598 = vpop.f32.mrf.mxu0
        %v6599 = vadd.f32 0.0, %v6598
        %6600 = vmatmul.bf16.gmra.mxu0 %v4170
        %v6601 = vpop.f32.mrf.mxu0
        %v6602 = vadd.f32 0.0, %v6601
        %v6603 = vpop.f32.mrf.mxu0
        %v6604 = vadd.f32 0.0, %v6603
        %6605 = vmatmul.bf16.gmra.mxu0 %v4171
        %v6606 = vpop.f32.mrf.mxu0
        %v6607 = vadd.f32 0.0, %v6606
        %v6608 = vpop.f32.mrf.mxu0
        %v6609 = vadd.f32 0.0, %v6608
        %6610 = vmatmul.bf16.gmra.mxu0 %v4172
        %v6611 = vpop.f32.mrf.mxu0
        %v6612 = vadd.f32 0.0, %v6611
        %v6613 = vpop.f32.mrf.mxu0
        %v6614 = vadd.f32 0.0, %v6613
        %6615 = vmatmul.bf16.gmra.mxu0 %v4173
        %v6616 = vpop.f32.mrf.mxu0
        %v6617 = vadd.f32 0.0, %v6616
        %v6618 = vpop.f32.mrf.mxu0
        %v6619 = vadd.f32 0.0, %v6618
        %6620 = vmatmul.bf16.gmra.mxu0 %v4174
        %v6621 = vpop.f32.mrf.mxu0
        %v6622 = vadd.f32 0.0, %v6621
        %v6623 = vpop.f32.mrf.mxu0
        %v6624 = vadd.f32 0.0, %v6623
        %6625 = vmatmul.bf16.gmra.mxu0 %v4175
        %v6626 = vpop.f32.mrf.mxu0
        %v6627 = vadd.f32 0.0, %v6626
        %v6628 = vpop.f32.mrf.mxu0
        %v6629 = vadd.f32 0.0, %v6628
        %6630 = vmatmul.bf16.gmra.mxu0 %v4176
        %v6631 = vpop.f32.mrf.mxu0
        %v6632 = vadd.f32 0.0, %v6631
        %v6633 = vpop.f32.mrf.mxu0
        %v6634 = vadd.f32 0.0, %v6633
        %6635 = vmatmul.bf16.gmra.mxu0 %v4177
        %v6636 = vpop.f32.mrf.mxu0
        %v6637 = vadd.f32 0.0, %v6636
        %v6638 = vpop.f32.mrf.mxu0
        %v6639 = vadd.f32 0.0, %v6638
        %6640 = vmatmul.bf16.gmra.mxu0 %v4178
        %v6641 = vpop.f32.mrf.mxu0
        %v6642 = vadd.f32 0.0, %v6641
        %v6643 = vpop.f32.mrf.mxu0
        %v6644 = vadd.f32 0.0, %v6643
        %6645 = vmatmul.bf16.gmra.mxu0 %v4179
        %v6646 = vpop.f32.mrf.mxu0
        %v6647 = vadd.f32 0.0, %v6646
        %v6648 = vpop.f32.mrf.mxu0
        %v6649 = vadd.f32 0.0, %v6648
        %6650 = vmatmul.bf16.gmra.mxu0 %v4180
        %v6651 = vpop.f32.mrf.mxu0
        %v6652 = vadd.f32 0.0, %v6651
        %v6653 = vpop.f32.mrf.mxu0
        %v6654 = vadd.f32 0.0, %v6653
        %6655 = vmatmul.bf16.gmra.mxu0 %v4181
        %v6656 = vpop.f32.mrf.mxu0
        %v6657 = vadd.f32 0.0, %v6656
        %v6658 = vpop.f32.mrf.mxu0
        %v6659 = vadd.f32 0.0, %v6658
        %6660 = vmatmul.bf16.gmra.mxu0 %v4182
        %v6661 = vpop.f32.mrf.mxu0
        %v6662 = vadd.f32 0.0, %v6661
        %v6663 = vpop.f32.mrf.mxu0
        %v6664 = vadd.f32 0.0, %v6663
        %6665 = vmatmul.bf16.gmra.mxu0 %v4183
        %v6666 = vpop.f32.mrf.mxu0
        %v6667 = vadd.f32 0.0, %v6666
        %v6668 = vpop.f32.mrf.mxu0
        %v6669 = vadd.f32 0.0, %v6668
        %6670 = vmatmul.bf16.gmra.mxu0 %v4184
        %v6671 = vpop.f32.mrf.mxu0
        %v6672 = vadd.f32 0.0, %v6671
        %v6673 = vpop.f32.mrf.mxu0
        %v6674 = vadd.f32 0.0, %v6673
        %6675 = vmatmul.bf16.gmra.mxu0 %v4185
        %v6676 = vpop.f32.mrf.mxu0
        %v6677 = vadd.f32 0.0, %v6676
        %v6678 = vpop.f32.mrf.mxu0
        %v6679 = vadd.f32 0.0, %v6678
        %6680 = vmatmul.bf16.gmra.mxu0 %v4186
        %v6681 = vpop.f32.mrf.mxu0
        %v6682 = vadd.f32 0.0, %v6681
        %v6683 = vpop.f32.mrf.mxu0
        %v6684 = vadd.f32 0.0, %v6683
        %6685 = vmatmul.bf16.gmra.mxu0 %v4187
        %v6686 = vpop.f32.mrf.mxu0
        %v6687 = vadd.f32 0.0, %v6686
        %v6688 = vpop.f32.mrf.mxu0
        %v6689 = vadd.f32 0.0, %v6688
        %6690 = vmatmul.bf16.gmra.mxu0 %v4188
        %v6691 = vpop.f32.mrf.mxu0
        %v6692 = vadd.f32 0.0, %v6691
        %v6693 = vpop.f32.mrf.mxu0
        %v6694 = vadd.f32 0.0, %v6693
        %6695 = vmatmul.bf16.gmra.mxu0 %v4189
        %v6696 = vpop.f32.mrf.mxu0
        %v6697 = vadd.f32 0.0, %v6696
        %v6698 = vpop.f32.mrf.mxu0
        %v6699 = vadd.f32 0.0, %v6698
        %6700 = vmatmul.bf16.gmra.mxu0 %v4190
        %v6701 = vpop.f32.mrf.mxu0
        %v6702 = vadd.f32 0.0, %v6701
        %v6703 = vpop.f32.mrf.mxu0
        %v6704 = vadd.f32 0.0, %v6703
        %6705 = vmatmul.bf16.gmra.mxu0 %v4191
        %v6706 = vpop.f32.mrf.mxu0
        %v6707 = vadd.f32 0.0, %v6706
        %v6708 = vpop.f32.mrf.mxu0
        %v6709 = vadd.f32 0.0, %v6708
        %6710 = vmatmul.bf16.gmra.mxu0 %v4192
        %v6711 = vpop.f32.mrf.mxu0
        %v6712 = vadd.f32 0.0, %v6711
        %v6713 = vpop.f32.mrf.mxu0
        %v6714 = vadd.f32 0.0, %v6713
        %6715 = vmatmul.bf16.gmra.mxu0 %v4193
        %v6716 = vpop.f32.mrf.mxu0
        %v6717 = vadd.f32 0.0, %v6716
        %v6718 = vpop.f32.mrf.mxu0
        %v6719 = vadd.f32 0.0, %v6718
        %6720 = vmatmul.bf16.gmra.mxu0 %v4194
        %v6721 = vpop.f32.mrf.mxu0
        %v6722 = vadd.f32 0.0, %v6721
        %v6723 = vpop.f32.mrf.mxu0
        %v6724 = vadd.f32 0.0, %v6723
        %6725 = vmatmul.bf16.gmra.mxu0 %v4195
        %v6726 = vpop.f32.mrf.mxu0
        %v6727 = vadd.f32 0.0, %v6726
        %v6728 = vpop.f32.mrf.mxu0
        %v6729 = vadd.f32 0.0, %v6728
        %6730 = vdwg.mxu0
        %v6731 = vadd.f32 %v6468, %v6604
        %v6732 = vadd.f32 %v6469, %v6607
        %v6733 = vadd.f32 %v6470, %v6609
        %v6734 = vadd.f32 %v6471, %v6612
        %v6735 = vadd.f32 %v6472, %v6614
        %v6736 = vadd.f32 %v6473, %v6617
        %v6737 = vadd.f32 %v6474, %v6619
        %v6738 = vadd.f32 %v6475, %v6622
        %v6739 = vadd.f32 %v6476, %v6624
        %v6740 = vadd.f32 %v6477, %v6627
        %v6741 = vadd.f32 %v6478, %v6629
        %v6742 = vadd.f32 %v6479, %v6632
        %v6743 = vadd.f32 %v6480, %v6634
        %v6744 = vadd.f32 %v6481, %v6637
        %v6745 = vadd.f32 %v6482, %v6639
        %v6746 = vadd.f32 %v6483, %v6642
        %v6747 = vadd.f32 %v6484, %v6644
        %v6748 = vadd.f32 %v6485, %v6647
        %v6749 = vadd.f32 %v6486, %v6649
        %v6750 = vadd.f32 %v6487, %v6652
        %v6751 = vadd.f32 %v6488, %v6654
        %v6752 = vadd.f32 %v6489, %v6657
        %v6753 = vadd.f32 %v6490, %v6659
        %v6754 = vadd.f32 %v6491, %v6662
        %v6755 = vadd.f32 %v6492, %v6664
        %v6756 = vadd.f32 %v6493, %v6667
        %v6757 = vadd.f32 %v6494, %v6669
        %v6758 = vadd.f32 %v6495, %v6672
        %v6759 = vadd.f32 %v6496, %v6674
        %v6760 = vadd.f32 %v6497, %v6677
        %v6761 = vadd.f32 %v6498, %v6679
        %v6762 = vadd.f32 %v6499, %v6682
        %v6763 = vadd.f32 %v6500, %v6684
        %v6764 = vadd.f32 %v6501, %v6687
        %v6765 = vadd.f32 %v6502, %v6689
        %v6766 = vadd.f32 %v6503, %v6692
        %v6767 = vadd.f32 %v6504, %v6694
        %v6768 = vadd.f32 %v6505, %v6697
        %v6769 = vadd.f32 %v6506, %v6699
        %v6770 = vadd.f32 %v6507, %v6702
        %v6771 = vadd.f32 %v6508, %v6704
        %v6772 = vadd.f32 %v6509, %v6707
        %v6773 = vadd.f32 %v6510, %v6709
        %v6774 = vadd.f32 %v6511, %v6712
        %v6775 = vadd.f32 %v6512, %v6714
        %v6776 = vadd.f32 %v6513, %v6717
        %v6777 = vadd.f32 %v6514, %v6719
        %v6778 = vadd.f32 %v6515, %v6722
        %v6779 = vadd.f32 %v6516, %v6724
        %v6780 = vadd.f32 %v6517, %v6727
        %v6781 = vadd.f32 %v6518, %v6729
        %v6782 = vadd.f32 %v6519, %v6597
        %v6783 = vadd.f32 %v6520, %v6599
        %v6784 = vadd.f32 %v6521, %v6602
        %s6785 = scalar_lea.vmem %s8, 512
        %v6786 = vld [vmem:[%s6785] sm:$0xf]
        %v6787 = vld [vmem:[%s6785 + $0x4] sm:$0xf]
        %v6788 = vld [vmem:[%s6785 + $0x8] sm:$0xf]
        %v6789 = vld [vmem:[%s6785 + $0xc] sm:$0xf]
        %v6790 = vld [vmem:[%s6785 + $0x10] sm:$0xf]
        %v6791 = vld [vmem:[%s6785 + $0x14] sm:$0xf]
        %v6792 = vld [vmem:[%s6785 + $0x18] sm:$0xf]
        %v6793 = vld [vmem:[%s6785 + $0x1c] sm:$0xf]
        %v6794 = vld [vmem:[%s6785 + $0x20] sm:$0xf]
        %v6795 = vld [vmem:[%s6785 + $0x24] sm:$0xf]
        %v6796 = vld [vmem:[%s6785 + $0x28] sm:$0xf]
        %v6797 = vld [vmem:[%s6785 + $0x2c] sm:$0xf]
        %v6798 = vld [vmem:[%s6785 + $0x30] sm:$0xf]
        %v6799 = vld [vmem:[%s6785 + $0x34] sm:$0xf]
        %v6800 = vld [vmem:[%s6785 + $0x38] sm:$0xf]
        %v6801 = vld [vmem:[%s6785 + $0x3c] sm:$0xf]
        %v6818 = vunpack.c.l.b16 %v6786
        %v6819 = vunpack.c.l.b16 %v6787
        %v6820 = vunpack.c.l.b16 %v6788
        %v6821 = vunpack.c.l.b16 %v6789
        %v6822 = vunpack.c.l.b16 %v6790
        %v6823 = vunpack.c.l.b16 %v6791
        %v6824 = vunpack.c.l.b16 %v6792
        %v6825 = vunpack.c.l.b16 %v6793
        %v6826 = vunpack.c.l.b16 %v6794
        %v6827 = vunpack.c.l.b16 %v6795
        %v6828 = vunpack.c.l.b16 %v6796
        %v6829 = vunpack.c.l.b16 %v6797
        %v6830 = vunpack.c.l.b16 %v6798
        %v6831 = vunpack.c.l.b16 %v6799
        %v6832 = vunpack.c.l.b16 %v6800
        %v6833 = vunpack.c.l.b16 %v6801
        %v6834 = vpack.c.b16 %v6819, %v6818
        %v6835 = vpack.c.b16 %v6821, %v6820
        %v6836 = vpack.c.b16 %v6823, %v6822
        %v6837 = vpack.c.b16 %v6825, %v6824
        %v6838 = vpack.c.b16 %v6827, %v6826
        %v6839 = vpack.c.b16 %v6829, %v6828
        %v6840 = vpack.c.b16 %v6831, %v6830
        %v6841 = vpack.c.b16 %v6833, %v6832
        %6850 = vmatpush.bf16.msra.mxu0 %v6841
        %6851 = vmatpush.bf16.msra.mxu0 %v6840
        %6852 = vmatpush.bf16.msra.mxu0 %v6839
        %6853 = vmatpush.bf16.msra.mxu0 %v6838
        %6854 = vmatpush.bf16.msra.mxu0 %v6837
        %6855 = vmatpush.bf16.msra.mxu0 %v6836
        %6856 = vmatpush.bf16.msra.mxu0 %v6835
        %6857 = vmatpush.bf16.msra.mxu0 %v6834
        %6858 = vmatmul.bf16.gmra.mxu0 %v4169
        %v6859 = vpop.f32.mrf.mxu0
        %v6860 = vadd.f32 0.0, %v6859
        %v6861 = vpop.f32.mrf.mxu0
        %v6862 = vadd.f32 0.0, %v6861
        %6863 = vmatmul.bf16.gmra.mxu0 %v4170
        %v6864 = vpop.f32.mrf.mxu0
        %v6865 = vadd.f32 0.0, %v6864
        %v6866 = vpop.f32.mrf.mxu0
        %v6867 = vadd.f32 0.0, %v6866
        %6868 = vmatmul.bf16.gmra.mxu0 %v4171
        %v6869 = vpop.f32.mrf.mxu0
        %v6870 = vadd.f32 0.0, %v6869
        %v6871 = vpop.f32.mrf.mxu0
        %v6872 = vadd.f32 0.0, %v6871
        %6873 = vmatmul.bf16.gmra.mxu0 %v4172
        %v6874 = vpop.f32.mrf.mxu0
        %v6875 = vadd.f32 0.0, %v6874
        %v6876 = vpop.f32.mrf.mxu0
        %v6877 = vadd.f32 0.0, %v6876
        %6878 = vmatmul.bf16.gmra.mxu0 %v4173
        %v6879 = vpop.f32.mrf.mxu0
        %v6880 = vadd.f32 0.0, %v6879
        %v6881 = vpop.f32.mrf.mxu0
        %v6882 = vadd.f32 0.0, %v6881
        %6883 = vmatmul.bf16.gmra.mxu0 %v4174
        %v6884 = vpop.f32.mrf.mxu0
        %v6885 = vadd.f32 0.0, %v6884
        %v6886 = vpop.f32.mrf.mxu0
        %v6887 = vadd.f32 0.0, %v6886
        %6888 = vmatmul.bf16.gmra.mxu0 %v4175
        %v6889 = vpop.f32.mrf.mxu0
        %v6890 = vadd.f32 0.0, %v6889
        %v6891 = vpop.f32.mrf.mxu0
        %v6892 = vadd.f32 0.0, %v6891
        %6893 = vmatmul.bf16.gmra.mxu0 %v4176
        %v6894 = vpop.f32.mrf.mxu0
        %v6895 = vadd.f32 0.0, %v6894
        %v6896 = vpop.f32.mrf.mxu0
        %v6897 = vadd.f32 0.0, %v6896
        %6898 = vmatmul.bf16.gmra.mxu0 %v4177
        %v6899 = vpop.f32.mrf.mxu0
        %v6900 = vadd.f32 0.0, %v6899
        %v6901 = vpop.f32.mrf.mxu0
        %v6902 = vadd.f32 0.0, %v6901
        %6903 = vmatmul.bf16.gmra.mxu0 %v4178
        %v6904 = vpop.f32.mrf.mxu0
        %v6905 = vadd.f32 0.0, %v6904
        %v6906 = vpop.f32.mrf.mxu0
        %v6907 = vadd.f32 0.0, %v6906
        %6908 = vmatmul.bf16.gmra.mxu0 %v4179
        %v6909 = vpop.f32.mrf.mxu0
        %v6910 = vadd.f32 0.0, %v6909
        %v6911 = vpop.f32.mrf.mxu0
        %v6912 = vadd.f32 0.0, %v6911
        %6913 = vmatmul.bf16.gmra.mxu0 %v4180
        %v6914 = vpop.f32.mrf.mxu0
        %v6915 = vadd.f32 0.0, %v6914
        %v6916 = vpop.f32.mrf.mxu0
        %v6917 = vadd.f32 0.0, %v6916
        %6918 = vmatmul.bf16.gmra.mxu0 %v4181
        %v6919 = vpop.f32.mrf.mxu0
        %v6920 = vadd.f32 0.0, %v6919
        %v6921 = vpop.f32.mrf.mxu0
        %v6922 = vadd.f32 0.0, %v6921
        %6923 = vmatmul.bf16.gmra.mxu0 %v4182
        %v6924 = vpop.f32.mrf.mxu0
        %v6925 = vadd.f32 0.0, %v6924
        %v6926 = vpop.f32.mrf.mxu0
        %v6927 = vadd.f32 0.0, %v6926
        %6928 = vmatmul.bf16.gmra.mxu0 %v4183
        %v6929 = vpop.f32.mrf.mxu0
        %v6930 = vadd.f32 0.0, %v6929
        %v6931 = vpop.f32.mrf.mxu0
        %v6932 = vadd.f32 0.0, %v6931
        %6933 = vmatmul.bf16.gmra.mxu0 %v4184
        %v6934 = vpop.f32.mrf.mxu0
        %v6935 = vadd.f32 0.0, %v6934
        %v6936 = vpop.f32.mrf.mxu0
        %v6937 = vadd.f32 0.0, %v6936
        %6938 = vmatmul.bf16.gmra.mxu0 %v4185
        %v6939 = vpop.f32.mrf.mxu0
        %v6940 = vadd.f32 0.0, %v6939
        %v6941 = vpop.f32.mrf.mxu0
        %v6942 = vadd.f32 0.0, %v6941
        %6943 = vmatmul.bf16.gmra.mxu0 %v4186
        %v6944 = vpop.f32.mrf.mxu0
        %v6945 = vadd.f32 0.0, %v6944
        %v6946 = vpop.f32.mrf.mxu0
        %v6947 = vadd.f32 0.0, %v6946
        %6948 = vmatmul.bf16.gmra.mxu0 %v4187
        %v6949 = vpop.f32.mrf.mxu0
        %v6950 = vadd.f32 0.0, %v6949
        %v6951 = vpop.f32.mrf.mxu0
        %v6952 = vadd.f32 0.0, %v6951
        %6953 = vmatmul.bf16.gmra.mxu0 %v4188
        %v6954 = vpop.f32.mrf.mxu0
        %v6955 = vadd.f32 0.0, %v6954
        %v6956 = vpop.f32.mrf.mxu0
        %v6957 = vadd.f32 0.0, %v6956
        %6958 = vmatmul.bf16.gmra.mxu0 %v4189
        %v6959 = vpop.f32.mrf.mxu0
        %v6960 = vadd.f32 0.0, %v6959
        %v6961 = vpop.f32.mrf.mxu0
        %v6962 = vadd.f32 0.0, %v6961
        %6963 = vmatmul.bf16.gmra.mxu0 %v4190
        %v6964 = vpop.f32.mrf.mxu0
        %v6965 = vadd.f32 0.0, %v6964
        %v6966 = vpop.f32.mrf.mxu0
        %v6967 = vadd.f32 0.0, %v6966
        %6968 = vmatmul.bf16.gmra.mxu0 %v4191
        %v6969 = vpop.f32.mrf.mxu0
        %v6970 = vadd.f32 0.0, %v6969
        %v6971 = vpop.f32.mrf.mxu0
        %v6972 = vadd.f32 0.0, %v6971
        %6973 = vmatmul.bf16.gmra.mxu0 %v4192
        %v6974 = vpop.f32.mrf.mxu0
        %v6975 = vadd.f32 0.0, %v6974
        %v6976 = vpop.f32.mrf.mxu0
        %v6977 = vadd.f32 0.0, %v6976
        %6978 = vmatmul.bf16.gmra.mxu0 %v4193
        %v6979 = vpop.f32.mrf.mxu0
        %v6980 = vadd.f32 0.0, %v6979
        %v6981 = vpop.f32.mrf.mxu0
        %v6982 = vadd.f32 0.0, %v6981
        %6983 = vmatmul.bf16.gmra.mxu0 %v4194
        %v6984 = vpop.f32.mrf.mxu0
        %v6985 = vadd.f32 0.0, %v6984
        %v6986 = vpop.f32.mrf.mxu0
        %v6987 = vadd.f32 0.0, %v6986
        %6988 = vmatmul.bf16.gmra.mxu0 %v4195
        %v6989 = vpop.f32.mrf.mxu0
        %v6990 = vadd.f32 0.0, %v6989
        %v6991 = vpop.f32.mrf.mxu0
        %v6992 = vadd.f32 0.0, %v6991
        %6993 = vdwg.mxu0
        %v6994 = vrot.slane %v6860, 1
        %v6995 = vrot.slane %v6862, 1
        %v6996 = vrot.slane %v6865, 1
        %v6997 = vrot.slane %v6867, 1
        %v6998 = vrot.slane %v6870, 1
        %v6999 = vrot.slane %v6872, 1
        %v7000 = vrot.slane %v6875, 1
        %v7001 = vrot.slane %v6877, 1
        %v7002 = vrot.slane %v6880, 1
        %v7003 = vrot.slane %v6882, 1
        %v7004 = vrot.slane %v6885, 1
        %v7005 = vrot.slane %v6887, 1
        %v7006 = vrot.slane %v6890, 1
        %v7007 = vrot.slane %v6892, 1
        %v7008 = vrot.slane %v6895, 1
        %v7009 = vrot.slane %v6897, 1
        %v7010 = vrot.slane %v6900, 1
        %v7011 = vrot.slane %v6902, 1
        %v7012 = vrot.slane %v6905, 1
        %v7013 = vrot.slane %v6907, 1
        %v7014 = vrot.slane %v6910, 1
        %v7015 = vrot.slane %v6912, 1
        %v7016 = vrot.slane %v6915, 1
        %v7017 = vrot.slane %v6917, 1
        %v7018 = vrot.slane %v6920, 1
        %v7019 = vrot.slane %v6922, 1
        %v7020 = vrot.slane %v6925, 1
        %v7021 = vrot.slane %v6927, 1
        %v7022 = vrot.slane %v6930, 1
        %v7023 = vrot.slane %v6932, 1
        %v7024 = vrot.slane %v6935, 1
        %v7025 = vrot.slane %v6937, 1
        %v7026 = vrot.slane %v6940, 1
        %v7027 = vrot.slane %v6942, 1
        %v7028 = vrot.slane %v6945, 1
        %v7029 = vrot.slane %v6947, 1
        %v7030 = vrot.slane %v6950, 1
        %v7031 = vrot.slane %v6952, 1
        %v7032 = vrot.slane %v6955, 1
        %v7033 = vrot.slane %v6957, 1
        %v7034 = vrot.slane %v6960, 1
        %v7035 = vrot.slane %v6962, 1
        %v7036 = vrot.slane %v6965, 1
        %v7037 = vrot.slane %v6967, 1
        %v7038 = vrot.slane %v6970, 1
        %v7039 = vrot.slane %v6972, 1
        %v7040 = vrot.slane %v6975, 1
        %v7041 = vrot.slane %v6977, 1
        %v7042 = vrot.slane %v6980, 1
        %v7043 = vrot.slane %v6982, 1
        %v7044 = vrot.slane %v6985, 1
        %v7045 = vrot.slane %v6987, 1
        %v7046 = vrot.slane %v6990, 1
        %v7047 = vrot.slane %v6992, 1
        %v7048 = vsel %vm1511, %v7046, %v7047
        %v7049 = vsel %vm1511, %v7045, %v7046
        %v7050 = vsel %vm1511, %v7044, %v7045
        %v7051 = vsel %vm1511, %v7043, %v7044
        %v7052 = vsel %vm1511, %v7042, %v7043
        %v7053 = vsel %vm1511, %v7041, %v7042
        %v7054 = vsel %vm1511, %v7040, %v7041
        %v7055 = vsel %vm1511, %v7039, %v7040
        %v7056 = vsel %vm1511, %v7038, %v7039
        %v7057 = vsel %vm1511, %v7037, %v7038
        %v7058 = vsel %vm1511, %v7036, %v7037
        %v7059 = vsel %vm1511, %v7035, %v7036
        %v7060 = vsel %vm1511, %v7034, %v7035
        %v7061 = vsel %vm1511, %v7033, %v7034
        %v7062 = vsel %vm1511, %v7032, %v7033
        %v7063 = vsel %vm1511, %v7031, %v7032
        %v7064 = vsel %vm1511, %v7030, %v7031
        %v7065 = vsel %vm1511, %v7029, %v7030
        %v7066 = vsel %vm1511, %v7028, %v7029
        %v7067 = vsel %vm1511, %v7027, %v7028
        %v7068 = vsel %vm1511, %v7026, %v7027
        %v7069 = vsel %vm1511, %v7025, %v7026
        %v7070 = vsel %vm1511, %v7024, %v7025
        %v7071 = vsel %vm1511, %v7023, %v7024
        %v7072 = vsel %vm1511, %v7022, %v7023
        %v7073 = vsel %vm1511, %v7021, %v7022
        %v7074 = vsel %vm1511, %v7020, %v7021
        %v7075 = vsel %vm1511, %v7019, %v7020
        %v7076 = vsel %vm1511, %v7018, %v7019
        %v7077 = vsel %vm1511, %v7017, %v7018
        %v7078 = vsel %vm1511, %v7016, %v7017
        %v7079 = vsel %vm1511, %v7015, %v7016
        %v7080 = vsel %vm1511, %v7014, %v7015
        %v7081 = vsel %vm1511, %v7013, %v7014
        %v7082 = vsel %vm1511, %v7012, %v7013
        %v7083 = vsel %vm1511, %v7011, %v7012
        %v7084 = vsel %vm1511, %v7010, %v7011
        %v7085 = vsel %vm1511, %v7009, %v7010
        %v7086 = vsel %vm1511, %v7008, %v7009
        %v7087 = vsel %vm1511, %v7007, %v7008
        %v7088 = vsel %vm1511, %v7006, %v7007
        %v7089 = vsel %vm1511, %v7005, %v7006
        %v7090 = vsel %vm1511, %v7004, %v7005
        %v7091 = vsel %vm1511, %v7003, %v7004
        %v7092 = vsel %vm1511, %v7002, %v7003
        %v7093 = vsel %vm1511, %v7001, %v7002
        %v7094 = vsel %vm1511, %v7000, %v7001
        %v7095 = vsel %vm1511, %v6999, %v7000
        %v7096 = vsel %vm1511, %v6998, %v6999
        %v7097 = vsel %vm1511, %v6997, %v6998
        %v7098 = vsel %vm1511, %v6996, %v6997
        %v7099 = vsel %vm1511, %v6995, %v6996
        %v7100 = vsel %vm1511, %v6994, %v6995
        %v7101 = vsel %vm1511, %v7047, %v6994
        %v7102 = vadd.f32 %v6731, %v7097
        %v7103 = vadd.f32 %v6732, %v7096
        %v7104 = vadd.f32 %v6733, %v7095
        %v7105 = vadd.f32 %v6734, %v7094
        %v7106 = vadd.f32 %v6735, %v7093
        %v7107 = vadd.f32 %v6736, %v7092
        %v7108 = vadd.f32 %v6737, %v7091
        %v7109 = vadd.f32 %v6738, %v7090
        %v7110 = vadd.f32 %v6739, %v7089
        %v7111 = vadd.f32 %v6740, %v7088
        %v7112 = vadd.f32 %v6741, %v7087
        %v7113 = vadd.f32 %v6742, %v7086
        %v7114 = vadd.f32 %v6743, %v7085
        %v7115 = vadd.f32 %v6744, %v7084
        %v7116 = vadd.f32 %v6745, %v7083
        %v7117 = vadd.f32 %v6746, %v7082
        %v7118 = vadd.f32 %v6747, %v7081
        %v7119 = vadd.f32 %v6748, %v7080
        %v7120 = vadd.f32 %v6749, %v7079
        %v7121 = vadd.f32 %v6750, %v7078
        %v7122 = vadd.f32 %v6751, %v7077
        %v7123 = vadd.f32 %v6752, %v7076
        %v7124 = vadd.f32 %v6753, %v7075
        %v7125 = vadd.f32 %v6754, %v7074
        %v7126 = vadd.f32 %v6755, %v7073
        %v7127 = vadd.f32 %v6756, %v7072
        %v7128 = vadd.f32 %v6757, %v7071
        %v7129 = vadd.f32 %v6758, %v7070
        %v7130 = vadd.f32 %v6759, %v7069
        %v7131 = vadd.f32 %v6760, %v7068
        %v7132 = vadd.f32 %v6761, %v7067
        %v7133 = vadd.f32 %v6762, %v7066
        %v7134 = vadd.f32 %v6763, %v7065
        %v7135 = vadd.f32 %v6764, %v7064
        %v7136 = vadd.f32 %v6765, %v7063
        %v7137 = vadd.f32 %v6766, %v7062
        %v7138 = vadd.f32 %v6767, %v7061
        %v7139 = vadd.f32 %v6768, %v7060
        %v7140 = vadd.f32 %v6769, %v7059
        %v7141 = vadd.f32 %v6770, %v7058
        %v7142 = vadd.f32 %v6771, %v7057
        %v7143 = vadd.f32 %v6772, %v7056
        %v7144 = vadd.f32 %v6773, %v7055
        %v7145 = vadd.f32 %v6774, %v7054
        %v7146 = vadd.f32 %v6775, %v7053
        %v7147 = vadd.f32 %v6776, %v7052
        %v7148 = vadd.f32 %v6777, %v7051
        %v7149 = vadd.f32 %v6778, %v7050
        %v7150 = vadd.f32 %v6779, %v7049
        %v7151 = vadd.f32 %v6780, %v7048
        %v7152 = vadd.f32 %v6781, %v7101
        %v7153 = vadd.f32 %v6782, %v7100
        %v7154 = vadd.f32 %v6783, %v7099
        %v7155 = vadd.f32 %v6784, %v7098
        %v7156 = vld [vmem:[%s9] sm:$0x1]
        %v7158 = vperm.slane %v7156, 0
        %v7160 = vmul.f32 %v7102, %v7158
        %v7161 = vmul.f32 %v7103, %v7158
        %v7162 = vmul.f32 %v7104, %v7158
        %v7163 = vmul.f32 %v7105, %v7158
        %v7164 = vmul.f32 %v7106, %v7158
        %v7165 = vmul.f32 %v7107, %v7158
        %v7166 = vmul.f32 %v7108, %v7158
        %v7167 = vmul.f32 %v7109, %v7158
        %v7168 = vmul.f32 %v7110, %v7158
        %v7169 = vmul.f32 %v7111, %v7158
        %v7170 = vmul.f32 %v7112, %v7158
        %v7171 = vmul.f32 %v7113, %v7158
        %v7172 = vmul.f32 %v7114, %v7158
        %v7173 = vmul.f32 %v7115, %v7158
        %v7174 = vmul.f32 %v7116, %v7158
        %v7175 = vmul.f32 %v7117, %v7158
        %v7176 = vmul.f32 %v7118, %v7158
        %v7177 = vmul.f32 %v7119, %v7158
        %v7178 = vmul.f32 %v7120, %v7158
        %v7179 = vmul.f32 %v7121, %v7158
        %v7180 = vmul.f32 %v7122, %v7158
        %v7181 = vmul.f32 %v7123, %v7158
        %v7182 = vmul.f32 %v7124, %v7158
        %v7183 = vmul.f32 %v7125, %v7158
        %v7184 = vmul.f32 %v7126, %v7158
        %v7185 = vmul.f32 %v7127, %v7158
        %v7186 = vmul.f32 %v7128, %v7158
        %v7187 = vmul.f32 %v7129, %v7158
        %v7188 = vmul.f32 %v7130, %v7158
        %v7189 = vmul.f32 %v7131, %v7158
        %v7190 = vmul.f32 %v7132, %v7158
        %v7191 = vmul.f32 %v7133, %v7158
        %v7192 = vmul.f32 %v7134, %v7158
        %v7193 = vmul.f32 %v7135, %v7158
        %v7194 = vmul.f32 %v7136, %v7158
        %v7195 = vmul.f32 %v7137, %v7158
        %v7196 = vmul.f32 %v7138, %v7158
        %v7197 = vmul.f32 %v7139, %v7158
        %v7198 = vmul.f32 %v7140, %v7158
        %v7199 = vmul.f32 %v7141, %v7158
        %v7200 = vmul.f32 %v7142, %v7158
        %v7201 = vmul.f32 %v7143, %v7158
        %v7202 = vmul.f32 %v7144, %v7158
        %v7203 = vmul.f32 %v7145, %v7158
        %v7204 = vmul.f32 %v7146, %v7158
        %v7205 = vmul.f32 %v7147, %v7158
        %v7206 = vmul.f32 %v7148, %v7158
        %v7207 = vmul.f32 %v7149, %v7158
        %v7208 = vmul.f32 %v7150, %v7158
        %v7209 = vmul.f32 %v7151, %v7158
        %v7210 = vmul.f32 %v7152, %v7158
        %v7211 = vmul.f32 %v7153, %v7158
        %v7212 = vmul.f32 %v7154, %v7158
        %v7213 = vmul.f32 %v7155, %v7158
        %v7214 = vld [vmem:[%s10] sm:$0x1]
        %v7216 = vperm.slane %v7214, 0
        %v7218 = vadd.f32 %v7160, %v7216
        %v7219 = vadd.f32 %v7161, %v7216
        %v7220 = vadd.f32 %v7162, %v7216
        %v7221 = vadd.f32 %v7163, %v7216
        %v7222 = vadd.f32 %v7164, %v7216
        %v7223 = vadd.f32 %v7165, %v7216
        %v7224 = vadd.f32 %v7166, %v7216
        %v7225 = vadd.f32 %v7167, %v7216
        %v7226 = vadd.f32 %v7168, %v7216
        %v7227 = vadd.f32 %v7169, %v7216
        %v7228 = vadd.f32 %v7170, %v7216
        %v7229 = vadd.f32 %v7171, %v7216
        %v7230 = vadd.f32 %v7172, %v7216
        %v7231 = vadd.f32 %v7173, %v7216
        %v7232 = vadd.f32 %v7174, %v7216
        %v7233 = vadd.f32 %v7175, %v7216
        %v7234 = vadd.f32 %v7176, %v7216
        %v7235 = vadd.f32 %v7177, %v7216
        %v7236 = vadd.f32 %v7178, %v7216
        %v7237 = vadd.f32 %v7179, %v7216
        %v7238 = vadd.f32 %v7180, %v7216
        %v7239 = vadd.f32 %v7181, %v7216
        %v7240 = vadd.f32 %v7182, %v7216
        %v7241 = vadd.f32 %v7183, %v7216
        %v7242 = vadd.f32 %v7184, %v7216
        %v7243 = vadd.f32 %v7185, %v7216
        %v7244 = vadd.f32 %v7186, %v7216
        %v7245 = vadd.f32 %v7187, %v7216
        %v7246 = vadd.f32 %v7188, %v7216
        %v7247 = vadd.f32 %v7189, %v7216
        %v7248 = vadd.f32 %v7190, %v7216
        %v7249 = vadd.f32 %v7191, %v7216
        %v7250 = vadd.f32 %v7192, %v7216
        %v7251 = vadd.f32 %v7193, %v7216
        %v7252 = vadd.f32 %v7194, %v7216
        %v7253 = vadd.f32 %v7195, %v7216
        %v7254 = vadd.f32 %v7196, %v7216
        %v7255 = vadd.f32 %v7197, %v7216
        %v7256 = vadd.f32 %v7198, %v7216
        %v7257 = vadd.f32 %v7199, %v7216
        %v7258 = vadd.f32 %v7200, %v7216
        %v7259 = vadd.f32 %v7201, %v7216
        %v7260 = vadd.f32 %v7202, %v7216
        %v7261 = vadd.f32 %v7203, %v7216
        %v7262 = vadd.f32 %v7204, %v7216
        %v7263 = vadd.f32 %v7205, %v7216
        %v7264 = vadd.f32 %v7206, %v7216
        %v7265 = vadd.f32 %v7207, %v7216
        %v7266 = vadd.f32 %v7208, %v7216
        %v7267 = vadd.f32 %v7209, %v7216
        %v7268 = vadd.f32 %v7210, %v7216
        %v7269 = vadd.f32 %v7211, %v7216
        %v7270 = vadd.f32 %v7212, %v7216
        %v7271 = vadd.f32 %v7213, %v7216
        %v7272 = vmax.f32 %v7218, 0.0
        %v7273 = vmax.f32 %v7219, 0.0
        %v7274 = vmax.f32 %v7220, 0.0
        %v7275 = vmax.f32 %v7221, 0.0
        %v7276 = vmax.f32 %v7222, 0.0
        %v7277 = vmax.f32 %v7223, 0.0
        %v7278 = vmax.f32 %v7224, 0.0
        %v7279 = vmax.f32 %v7225, 0.0
        %v7280 = vmax.f32 %v7226, 0.0
        %v7281 = vmax.f32 %v7227, 0.0
        %v7282 = vmax.f32 %v7228, 0.0
        %v7283 = vmax.f32 %v7229, 0.0
        %v7284 = vmax.f32 %v7230, 0.0
        %v7285 = vmax.f32 %v7231, 0.0
        %v7286 = vmax.f32 %v7232, 0.0
        %v7287 = vmax.f32 %v7233, 0.0
        %v7288 = vmax.f32 %v7234, 0.0
        %v7289 = vmax.f32 %v7235, 0.0
        %v7290 = vmax.f32 %v7236, 0.0
        %v7291 = vmax.f32 %v7237, 0.0
        %v7292 = vmax.f32 %v7238, 0.0
        %v7293 = vmax.f32 %v7239, 0.0
        %v7294 = vmax.f32 %v7240, 0.0
        %v7295 = vmax.f32 %v7241, 0.0
        %v7296 = vmax.f32 %v7242, 0.0
        %v7297 = vmax.f32 %v7243, 0.0
        %v7298 = vmax.f32 %v7244, 0.0
        %v7299 = vmax.f32 %v7245, 0.0
        %v7300 = vmax.f32 %v7246, 0.0
        %v7301 = vmax.f32 %v7247, 0.0
        %v7302 = vmax.f32 %v7248, 0.0
        %v7303 = vmax.f32 %v7249, 0.0
        %v7304 = vmax.f32 %v7250, 0.0
        %v7305 = vmax.f32 %v7251, 0.0
        %v7306 = vmax.f32 %v7252, 0.0
        %v7307 = vmax.f32 %v7253, 0.0
        %v7308 = vmax.f32 %v7254, 0.0
        %v7309 = vmax.f32 %v7255, 0.0
        %v7310 = vmax.f32 %v7256, 0.0
        %v7311 = vmax.f32 %v7257, 0.0
        %v7312 = vmax.f32 %v7258, 0.0
        %v7313 = vmax.f32 %v7259, 0.0
        %v7314 = vmax.f32 %v7260, 0.0
        %v7315 = vmax.f32 %v7261, 0.0
        %v7316 = vmax.f32 %v7262, 0.0
        %v7317 = vmax.f32 %v7263, 0.0
        %v7318 = vmax.f32 %v7264, 0.0
        %v7319 = vmax.f32 %v7265, 0.0
        %v7320 = vmax.f32 %v7266, 0.0
        %v7321 = vmax.f32 %v7267, 0.0
        %v7322 = vmax.f32 %v7268, 0.0
        %v7323 = vmax.f32 %v7269, 0.0
        %v7324 = vmax.f32 %v7270, 0.0
        %v7325 = vmax.f32 %v7271, 0.0
        %v7326 = vpack.c.bf16 %v7273, %v7272
        %v7327 = vpack.c.bf16 %v7275, %v7274
        %v7328 = vpack.c.bf16 %v7277, %v7276
        %v7329 = vpack.c.bf16 %v7279, %v7278
        %v7330 = vpack.c.bf16 %v7281, %v7280
        %v7331 = vpack.c.bf16 %v7283, %v7282
        %v7332 = vpack.c.bf16 %v7285, %v7284
        %v7333 = vpack.c.bf16 %v7287, %v7286
        %v7334 = vpack.c.bf16 %v7289, %v7288
        %v7335 = vpack.c.bf16 %v7291, %v7290
        %v7336 = vpack.c.bf16 %v7293, %v7292
        %v7337 = vpack.c.bf16 %v7295, %v7294
        %v7338 = vpack.c.bf16 %v7297, %v7296
        %v7339 = vpack.c.bf16 %v7299, %v7298
        %v7340 = vpack.c.bf16 %v7301, %v7300
        %v7341 = vpack.c.bf16 %v7303, %v7302
        %v7342 = vpack.c.bf16 %v7305, %v7304
        %v7343 = vpack.c.bf16 %v7307, %v7306
        %v7344 = vpack.c.bf16 %v7309, %v7308
        %v7345 = vpack.c.bf16 %v7311, %v7310
        %v7346 = vpack.c.bf16 %v7313, %v7312
        %v7347 = vpack.c.bf16 %v7315, %v7314
        %v7348 = vpack.c.bf16 %v7317, %v7316
        %v7349 = vpack.c.bf16 %v7319, %v7318
        %v7350 = vpack.c.bf16 %v7321, %v7320
        %v7351 = vpack.c.bf16 %v7323, %v7322
        %v7352 = vpack.c.bf16 %v7325, %v7324
        %v7353 = vld [vmem:[%s11] sm:$0xf]
        %v7354 = vld [vmem:[%s11 + $0x4] sm:$0xf]
        %v7355 = vld [vmem:[%s11 + $0x8] sm:$0xf]
        %v7356 = vld [vmem:[%s11 + $0xc] sm:$0xf]
        %v7357 = vld [vmem:[%s11 + $0x10] sm:$0xf]
        %v7358 = vld [vmem:[%s11 + $0x14] sm:$0xf]
        %v7359 = vld [vmem:[%s11 + $0x18] sm:$0xf]
        %v7360 = vld [vmem:[%s11 + $0x1c] sm:$0xf]
        %v7361 = vld [vmem:[%s11 + $0x20] sm:$0xf]
        %v7362 = vld [vmem:[%s11 + $0x24] sm:$0xf]
        %v7363 = vld [vmem:[%s11 + $0x28] sm:$0xf]
        %v7364 = vld [vmem:[%s11 + $0x2c] sm:$0xf]
        %v7365 = vld [vmem:[%s11 + $0x30] sm:$0xf]
        %v7366 = vld [vmem:[%s11 + $0x34] sm:$0xf]
        %v7367 = vld [vmem:[%s11 + $0x38] sm:$0xf]
        %v7368 = vld [vmem:[%s11 + $0x3c] sm:$0xf]
        %v7385 = vunpack.c.l.b16 %v7353
        %v7386 = vunpack.c.l.b16 %v7354
        %v7387 = vunpack.c.l.b16 %v7355
        %v7388 = vunpack.c.l.b16 %v7356
        %v7389 = vunpack.c.l.b16 %v7357
        %v7390 = vunpack.c.l.b16 %v7358
        %v7391 = vunpack.c.l.b16 %v7359
        %v7392 = vunpack.c.l.b16 %v7360
        %v7393 = vunpack.c.l.b16 %v7361
        %v7394 = vunpack.c.l.b16 %v7362
        %v7395 = vunpack.c.l.b16 %v7363
        %v7396 = vunpack.c.l.b16 %v7364
        %v7397 = vunpack.c.l.b16 %v7365
        %v7398 = vunpack.c.l.b16 %v7366
        %v7399 = vunpack.c.l.b16 %v7367
        %v7400 = vunpack.c.l.b16 %v7368
        %v7401 = vpack.c.b16 %v7386, %v7385
        %v7402 = vpack.c.b16 %v7388, %v7387
        %v7403 = vpack.c.b16 %v7390, %v7389
        %v7404 = vpack.c.b16 %v7392, %v7391
        %v7405 = vpack.c.b16 %v7394, %v7393
        %v7406 = vpack.c.b16 %v7396, %v7395
        %v7407 = vpack.c.b16 %v7398, %v7397
        %v7408 = vpack.c.b16 %v7400, %v7399
        %7417 = vmatpush.bf16.msra.mxu0 %v7408
        %7418 = vmatpush.bf16.msra.mxu0 %v7407
        %7419 = vmatpush.bf16.msra.mxu0 %v7406
        %7420 = vmatpush.bf16.msra.mxu0 %v7405
        %7421 = vmatpush.bf16.msra.mxu0 %v7404
        %7422 = vmatpush.bf16.msra.mxu0 %v7403
        %7423 = vmatpush.bf16.msra.mxu0 %v7402
        %7424 = vmatpush.bf16.msra.mxu0 %v7401
        %7425 = vmatmul.bf16.gmra.mxu0 %v7326
        %v7426 = vpop.f32.mrf.mxu0
        %v7427 = vadd.f32 0.0, %v7426
        %v7428 = vpop.f32.mrf.mxu0
        %v7429 = vadd.f32 0.0, %v7428
        %7430 = vmatmul.bf16.gmra.mxu0 %v7327
        %v7431 = vpop.f32.mrf.mxu0
        %v7432 = vadd.f32 0.0, %v7431
        %v7433 = vpop.f32.mrf.mxu0
        %v7434 = vadd.f32 0.0, %v7433
        %7435 = vmatmul.bf16.gmra.mxu0 %v7328
        %v7436 = vpop.f32.mrf.mxu0
        %v7437 = vadd.f32 0.0, %v7436
        %v7438 = vpop.f32.mrf.mxu0
        %v7439 = vadd.f32 0.0, %v7438
        %7440 = vmatmul.bf16.gmra.mxu0 %v7329
        %v7441 = vpop.f32.mrf.mxu0
        %v7442 = vadd.f32 0.0, %v7441
        %v7443 = vpop.f32.mrf.mxu0
        %v7444 = vadd.f32 0.0, %v7443
        %7445 = vmatmul.bf16.gmra.mxu0 %v7330
        %v7446 = vpop.f32.mrf.mxu0
        %v7447 = vadd.f32 0.0, %v7446
        %v7448 = vpop.f32.mrf.mxu0
        %v7449 = vadd.f32 0.0, %v7448
        %7450 = vmatmul.bf16.gmra.mxu0 %v7331
        %v7451 = vpop.f32.mrf.mxu0
        %v7452 = vadd.f32 0.0, %v7451
        %v7453 = vpop.f32.mrf.mxu0
        %v7454 = vadd.f32 0.0, %v7453
        %7455 = vmatmul.bf16.gmra.mxu0 %v7332
        %v7456 = vpop.f32.mrf.mxu0
        %v7457 = vadd.f32 0.0, %v7456
        %v7458 = vpop.f32.mrf.mxu0
        %v7459 = vadd.f32 0.0, %v7458
        %7460 = vmatmul.bf16.gmra.mxu0 %v7333
        %v7461 = vpop.f32.mrf.mxu0
        %v7462 = vadd.f32 0.0, %v7461
        %v7463 = vpop.f32.mrf.mxu0
        %v7464 = vadd.f32 0.0, %v7463
        %7465 = vmatmul.bf16.gmra.mxu0 %v7334
        %v7466 = vpop.f32.mrf.mxu0
        %v7467 = vadd.f32 0.0, %v7466
        %v7468 = vpop.f32.mrf.mxu0
        %v7469 = vadd.f32 0.0, %v7468
        %7470 = vmatmul.bf16.gmra.mxu0 %v7335
        %v7471 = vpop.f32.mrf.mxu0
        %v7472 = vadd.f32 0.0, %v7471
        %v7473 = vpop.f32.mrf.mxu0
        %v7474 = vadd.f32 0.0, %v7473
        %7475 = vmatmul.bf16.gmra.mxu0 %v7336
        %v7476 = vpop.f32.mrf.mxu0
        %v7477 = vadd.f32 0.0, %v7476
        %v7478 = vpop.f32.mrf.mxu0
        %v7479 = vadd.f32 0.0, %v7478
        %7480 = vmatmul.bf16.gmra.mxu0 %v7337
        %v7481 = vpop.f32.mrf.mxu0
        %v7482 = vadd.f32 0.0, %v7481
        %v7483 = vpop.f32.mrf.mxu0
        %v7484 = vadd.f32 0.0, %v7483
        %7485 = vmatmul.bf16.gmra.mxu0 %v7338
        %v7486 = vpop.f32.mrf.mxu0
        %v7487 = vadd.f32 0.0, %v7486
        %v7488 = vpop.f32.mrf.mxu0
        %v7489 = vadd.f32 0.0, %v7488
        %7490 = vmatmul.bf16.gmra.mxu0 %v7339
        %v7491 = vpop.f32.mrf.mxu0
        %v7492 = vadd.f32 0.0, %v7491
        %v7493 = vpop.f32.mrf.mxu0
        %v7494 = vadd.f32 0.0, %v7493
        %7495 = vmatmul.bf16.gmra.mxu0 %v7340
        %v7496 = vpop.f32.mrf.mxu0
        %v7497 = vadd.f32 0.0, %v7496
        %v7498 = vpop.f32.mrf.mxu0
        %v7499 = vadd.f32 0.0, %v7498
        %7500 = vmatmul.bf16.gmra.mxu0 %v7341
        %v7501 = vpop.f32.mrf.mxu0
        %v7502 = vadd.f32 0.0, %v7501
        %v7503 = vpop.f32.mrf.mxu0
        %v7504 = vadd.f32 0.0, %v7503
        %7505 = vmatmul.bf16.gmra.mxu0 %v7342
        %v7506 = vpop.f32.mrf.mxu0
        %v7507 = vadd.f32 0.0, %v7506
        %v7508 = vpop.f32.mrf.mxu0
        %v7509 = vadd.f32 0.0, %v7508
        %7510 = vmatmul.bf16.gmra.mxu0 %v7343
        %v7511 = vpop.f32.mrf.mxu0
        %v7512 = vadd.f32 0.0, %v7511
        %v7513 = vpop.f32.mrf.mxu0
        %v7514 = vadd.f32 0.0, %v7513
        %7515 = vmatmul.bf16.gmra.mxu0 %v7344
        %v7516 = vpop.f32.mrf.mxu0
        %v7517 = vadd.f32 0.0, %v7516
        %v7518 = vpop.f32.mrf.mxu0
        %v7519 = vadd.f32 0.0, %v7518
        %7520 = vmatmul.bf16.gmra.mxu0 %v7345
        %v7521 = vpop.f32.mrf.mxu0
        %v7522 = vadd.f32 0.0, %v7521
        %v7523 = vpop.f32.mrf.mxu0
        %v7524 = vadd.f32 0.0, %v7523
        %7525 = vmatmul.bf16.gmra.mxu0 %v7346
        %v7526 = vpop.f32.mrf.mxu0
        %v7527 = vadd.f32 0.0, %v7526
        %v7528 = vpop.f32.mrf.mxu0
        %v7529 = vadd.f32 0.0, %v7528
        %7530 = vmatmul.bf16.gmra.mxu0 %v7347
        %v7531 = vpop.f32.mrf.mxu0
        %v7532 = vadd.f32 0.0, %v7531
        %v7533 = vpop.f32.mrf.mxu0
        %v7534 = vadd.f32 0.0, %v7533
        %7535 = vmatmul.bf16.gmra.mxu0 %v7348
        %v7536 = vpop.f32.mrf.mxu0
        %v7537 = vadd.f32 0.0, %v7536
        %v7538 = vpop.f32.mrf.mxu0
        %v7539 = vadd.f32 0.0, %v7538
        %7540 = vmatmul.bf16.gmra.mxu0 %v7349
        %v7541 = vpop.f32.mrf.mxu0
        %v7542 = vadd.f32 0.0, %v7541
        %v7543 = vpop.f32.mrf.mxu0
        %v7544 = vadd.f32 0.0, %v7543
        %7545 = vmatmul.bf16.gmra.mxu0 %v7350
        %v7546 = vpop.f32.mrf.mxu0
        %v7547 = vadd.f32 0.0, %v7546
        %v7548 = vpop.f32.mrf.mxu0
        %v7549 = vadd.f32 0.0, %v7548
        %7550 = vmatmul.bf16.gmra.mxu0 %v7351
        %v7551 = vpop.f32.mrf.mxu0
        %v7552 = vadd.f32 0.0, %v7551
        %v7553 = vpop.f32.mrf.mxu0
        %v7554 = vadd.f32 0.0, %v7553
        %7555 = vmatmul.bf16.gmra.mxu0 %v7352
        %v7556 = vpop.f32.mrf.mxu0
        %v7557 = vadd.f32 0.0, %v7556
        %v7558 = vpop.f32.mrf.mxu0
        %v7559 = vadd.f32 0.0, %v7558
        %7560 = vdwg.mxu0
        %v7561 = vld [vmem:[%s12] sm:$0x1]
        %v7563 = vperm.slane %v7561, 0
        %v7565 = vmul.f32 %v7427, %v7563
        %v7566 = vmul.f32 %v7429, %v7563
        %v7567 = vmul.f32 %v7432, %v7563
        %v7568 = vmul.f32 %v7434, %v7563
        %v7569 = vmul.f32 %v7437, %v7563
        %v7570 = vmul.f32 %v7439, %v7563
        %v7571 = vmul.f32 %v7442, %v7563
        %v7572 = vmul.f32 %v7444, %v7563
        %v7573 = vmul.f32 %v7447, %v7563
        %v7574 = vmul.f32 %v7449, %v7563
        %v7575 = vmul.f32 %v7452, %v7563
        %v7576 = vmul.f32 %v7454, %v7563
        %v7577 = vmul.f32 %v7457, %v7563
        %v7578 = vmul.f32 %v7459, %v7563
        %v7579 = vmul.f32 %v7462, %v7563
        %v7580 = vmul.f32 %v7464, %v7563
        %v7581 = vmul.f32 %v7467, %v7563
        %v7582 = vmul.f32 %v7469, %v7563
        %v7583 = vmul.f32 %v7472, %v7563
        %v7584 = vmul.f32 %v7474, %v7563
        %v7585 = vmul.f32 %v7477, %v7563
        %v7586 = vmul.f32 %v7479, %v7563
        %v7587 = vmul.f32 %v7482, %v7563
        %v7588 = vmul.f32 %v7484, %v7563
        %v7589 = vmul.f32 %v7487, %v7563
        %v7590 = vmul.f32 %v7489, %v7563
        %v7591 = vmul.f32 %v7492, %v7563
        %v7592 = vmul.f32 %v7494, %v7563
        %v7593 = vmul.f32 %v7497, %v7563
        %v7594 = vmul.f32 %v7499, %v7563
        %v7595 = vmul.f32 %v7502, %v7563
        %v7596 = vmul.f32 %v7504, %v7563
        %v7597 = vmul.f32 %v7507, %v7563
        %v7598 = vmul.f32 %v7509, %v7563
        %v7599 = vmul.f32 %v7512, %v7563
        %v7600 = vmul.f32 %v7514, %v7563
        %v7601 = vmul.f32 %v7517, %v7563
        %v7602 = vmul.f32 %v7519, %v7563
        %v7603 = vmul.f32 %v7522, %v7563
        %v7604 = vmul.f32 %v7524, %v7563
        %v7605 = vmul.f32 %v7527, %v7563
        %v7606 = vmul.f32 %v7529, %v7563
        %v7607 = vmul.f32 %v7532, %v7563
        %v7608 = vmul.f32 %v7534, %v7563
        %v7609 = vmul.f32 %v7537, %v7563
        %v7610 = vmul.f32 %v7539, %v7563
        %v7611 = vmul.f32 %v7542, %v7563
        %v7612 = vmul.f32 %v7544, %v7563
        %v7613 = vmul.f32 %v7547, %v7563
        %v7614 = vmul.f32 %v7549, %v7563
        %v7615 = vmul.f32 %v7552, %v7563
        %v7616 = vmul.f32 %v7554, %v7563
        %v7617 = vmul.f32 %v7557, %v7563
        %v7618 = vmul.f32 %v7559, %v7563
        %v7619 = vld [vmem:[%s13] sm:$0x1]
        %v7621 = vperm.slane %v7619, 0
        %v7623 = vadd.f32 %v7565, %v7621
        %v7624 = vadd.f32 %v7566, %v7621
        %v7625 = vadd.f32 %v7567, %v7621
        %v7626 = vadd.f32 %v7568, %v7621
        %v7627 = vadd.f32 %v7569, %v7621
        %v7628 = vadd.f32 %v7570, %v7621
        %v7629 = vadd.f32 %v7571, %v7621
        %v7630 = vadd.f32 %v7572, %v7621
        %v7631 = vadd.f32 %v7573, %v7621
        %v7632 = vadd.f32 %v7574, %v7621
        %v7633 = vadd.f32 %v7575, %v7621
        %v7634 = vadd.f32 %v7576, %v7621
        %v7635 = vadd.f32 %v7577, %v7621
        %v7636 = vadd.f32 %v7578, %v7621
        %v7637 = vadd.f32 %v7579, %v7621
        %v7638 = vadd.f32 %v7580, %v7621
        %v7639 = vadd.f32 %v7581, %v7621
        %v7640 = vadd.f32 %v7582, %v7621
        %v7641 = vadd.f32 %v7583, %v7621
        %v7642 = vadd.f32 %v7584, %v7621
        %v7643 = vadd.f32 %v7585, %v7621
        %v7644 = vadd.f32 %v7586, %v7621
        %v7645 = vadd.f32 %v7587, %v7621
        %v7646 = vadd.f32 %v7588, %v7621
        %v7647 = vadd.f32 %v7589, %v7621
        %v7648 = vadd.f32 %v7590, %v7621
        %v7649 = vadd.f32 %v7591, %v7621
        %v7650 = vadd.f32 %v7592, %v7621
        %v7651 = vadd.f32 %v7593, %v7621
        %v7652 = vadd.f32 %v7594, %v7621
        %v7653 = vadd.f32 %v7595, %v7621
        %v7654 = vadd.f32 %v7596, %v7621
        %v7655 = vadd.f32 %v7597, %v7621
        %v7656 = vadd.f32 %v7598, %v7621
        %v7657 = vadd.f32 %v7599, %v7621
        %v7658 = vadd.f32 %v7600, %v7621
        %v7659 = vadd.f32 %v7601, %v7621
        %v7660 = vadd.f32 %v7602, %v7621
        %v7661 = vadd.f32 %v7603, %v7621
        %v7662 = vadd.f32 %v7604, %v7621
        %v7663 = vadd.f32 %v7605, %v7621
        %v7664 = vadd.f32 %v7606, %v7621
        %v7665 = vadd.f32 %v7607, %v7621
        %v7666 = vadd.f32 %v7608, %v7621
        %v7667 = vadd.f32 %v7609, %v7621
        %v7668 = vadd.f32 %v7610, %v7621
        %v7669 = vadd.f32 %v7611, %v7621
        %v7670 = vadd.f32 %v7612, %v7621
        %v7671 = vadd.f32 %v7613, %v7621
        %v7672 = vadd.f32 %v7614, %v7621
        %v7673 = vadd.f32 %v7615, %v7621
        %v7674 = vadd.f32 %v7616, %v7621
        %v7675 = vadd.f32 %v7617, %v7621
        %v7676 = vadd.f32 %v7618, %v7621
        %v7677 = vadd.f32 %v7623, %v3386
        %v7678 = vadd.f32 %v7624, %v3387
        %v7679 = vadd.f32 %v7625, %v3388
        %v7680 = vadd.f32 %v7626, %v3389
        %v7681 = vadd.f32 %v7627, %v3390
        %v7682 = vadd.f32 %v7628, %v3391
        %v7683 = vadd.f32 %v7629, %v3392
        %v7684 = vadd.f32 %v7630, %v3393
        %v7685 = vadd.f32 %v7631, %v3394
        %v7686 = vadd.f32 %v7632, %v3395
        %v7687 = vadd.f32 %v7633, %v3396
        %v7688 = vadd.f32 %v7634, %v3397
        %v7689 = vadd.f32 %v7635, %v3398
        %v7690 = vadd.f32 %v7636, %v3399
        %v7691 = vadd.f32 %v7637, %v3400
        %v7692 = vadd.f32 %v7638, %v3401
        %v7693 = vadd.f32 %v7639, %v3402
        %v7694 = vadd.f32 %v7640, %v3403
        %v7695 = vadd.f32 %v7641, %v3404
        %v7696 = vadd.f32 %v7642, %v3405
        %v7697 = vadd.f32 %v7643, %v3406
        %v7698 = vadd.f32 %v7644, %v3407
        %v7699 = vadd.f32 %v7645, %v3408
        %v7700 = vadd.f32 %v7646, %v3409
        %v7701 = vadd.f32 %v7647, %v3410
        %v7702 = vadd.f32 %v7648, %v3411
        %v7703 = vadd.f32 %v7649, %v3412
        %v7704 = vadd.f32 %v7650, %v3413
        %v7705 = vadd.f32 %v7651, %v3414
        %v7706 = vadd.f32 %v7652, %v3415
        %v7707 = vadd.f32 %v7653, %v3416
        %v7708 = vadd.f32 %v7654, %v3417
        %v7709 = vadd.f32 %v7655, %v3418
        %v7710 = vadd.f32 %v7656, %v3419
        %v7711 = vadd.f32 %v7657, %v3420
        %v7712 = vadd.f32 %v7658, %v3421
        %v7713 = vadd.f32 %v7659, %v3422
        %v7714 = vadd.f32 %v7660, %v3423
        %v7715 = vadd.f32 %v7661, %v3424
        %v7716 = vadd.f32 %v7662, %v3425
        %v7717 = vadd.f32 %v7663, %v3426
        %v7718 = vadd.f32 %v7664, %v3427
        %v7719 = vadd.f32 %v7665, %v3428
        %v7720 = vadd.f32 %v7666, %v3429
        %v7721 = vadd.f32 %v7667, %v3430
        %v7722 = vadd.f32 %v7668, %v3431
        %v7723 = vadd.f32 %v7669, %v3432
        %v7724 = vadd.f32 %v7670, %v3433
        %v7725 = vadd.f32 %v7671, %v3434
        %v7726 = vadd.f32 %v7672, %v3435
        %v7727 = vadd.f32 %v7673, %v3436
        %v7728 = vadd.f32 %v7674, %v3437
        %v7729 = vadd.f32 %v7675, %v3438
        %v7730 = vadd.f32 %v7676, %v3439
        %v7731 = vmax.f32 %v7677, 0.0
        %v7732 = vmax.f32 %v7678, 0.0
        %v7733 = vmax.f32 %v7679, 0.0
        %v7734 = vmax.f32 %v7680, 0.0
        %v7735 = vmax.f32 %v7681, 0.0
        %v7736 = vmax.f32 %v7682, 0.0
        %v7737 = vmax.f32 %v7683, 0.0
        %v7738 = vmax.f32 %v7684, 0.0
        %v7739 = vmax.f32 %v7685, 0.0
        %v7740 = vmax.f32 %v7686, 0.0
        %v7741 = vmax.f32 %v7687, 0.0
        %v7742 = vmax.f32 %v7688, 0.0
        %v7743 = vmax.f32 %v7689, 0.0
        %v7744 = vmax.f32 %v7690, 0.0
        %v7745 = vmax.f32 %v7691, 0.0
        %v7746 = vmax.f32 %v7692, 0.0
        %v7747 = vmax.f32 %v7693, 0.0
        %v7748 = vmax.f32 %v7694, 0.0
        %v7749 = vmax.f32 %v7695, 0.0
        %v7750 = vmax.f32 %v7696, 0.0
        %v7751 = vmax.f32 %v7697, 0.0
        %v7752 = vmax.f32 %v7698, 0.0
        %v7753 = vmax.f32 %v7699, 0.0
        %v7754 = vmax.f32 %v7700, 0.0
        %v7755 = vmax.f32 %v7701, 0.0
        %v7756 = vmax.f32 %v7702, 0.0
        %v7757 = vmax.f32 %v7703, 0.0
        %v7758 = vmax.f32 %v7704, 0.0
        %v7759 = vmax.f32 %v7705, 0.0
        %v7760 = vmax.f32 %v7706, 0.0
        %v7761 = vmax.f32 %v7707, 0.0
        %v7762 = vmax.f32 %v7708, 0.0
        %v7763 = vmax.f32 %v7709, 0.0
        %v7764 = vmax.f32 %v7710, 0.0
        %v7765 = vmax.f32 %v7711, 0.0
        %v7766 = vmax.f32 %v7712, 0.0
        %v7767 = vmax.f32 %v7713, 0.0
        %v7768 = vmax.f32 %v7714, 0.0
        %v7769 = vmax.f32 %v7715, 0.0
        %v7770 = vmax.f32 %v7716, 0.0
        %v7771 = vmax.f32 %v7717, 0.0
        %v7772 = vmax.f32 %v7718, 0.0
        %v7773 = vmax.f32 %v7719, 0.0
        %v7774 = vmax.f32 %v7720, 0.0
        %v7775 = vmax.f32 %v7721, 0.0
        %v7776 = vmax.f32 %v7722, 0.0
        %v7777 = vmax.f32 %v7723, 0.0
        %v7778 = vmax.f32 %v7724, 0.0
        %v7779 = vmax.f32 %v7725, 0.0
        %v7780 = vmax.f32 %v7726, 0.0
        %v7781 = vmax.f32 %v7727, 0.0
        %v7782 = vmax.f32 %v7728, 0.0
        %v7783 = vmax.f32 %v7729, 0.0
        %v7784 = vmax.f32 %v7730, 0.0
        %v7785 = vsel %vm4061, %v7731, 0.0
        %v7786 = vsel %vm4062, %v7732, 0.0
        %v7787 = vsel %vm4063, %v7733, 0.0
        %v7788 = vsel %vm4064, %v7734, 0.0
        %v7789 = vsel %vm4065, %v7735, 0.0
        %v7790 = vsel %vm4066, %v7736, 0.0
        %v7791 = vsel %vm4067, %v7737, 0.0
        %v7792 = vsel %vm4068, %v7738, 0.0
        %v7793 = vsel %vm4069, %v7739, 0.0
        %v7794 = vsel %vm4070, %v7740, 0.0
        %v7795 = vsel %vm4071, %v7741, 0.0
        %v7796 = vsel %vm4072, %v7742, 0.0
        %v7797 = vsel %vm4073, %v7743, 0.0
        %v7798 = vsel %vm4074, %v7744, 0.0
        %v7799 = vsel %vm4075, %v7745, 0.0
        %v7800 = vsel %vm4076, %v7746, 0.0
        %v7801 = vsel %vm4077, %v7747, 0.0
        %v7802 = vsel %vm4078, %v7748, 0.0
        %v7803 = vsel %vm4079, %v7749, 0.0
        %v7804 = vsel %vm4080, %v7750, 0.0
        %v7805 = vsel %vm4081, %v7751, 0.0
        %v7806 = vsel %vm4082, %v7752, 0.0
        %v7807 = vsel %vm4083, %v7753, 0.0
        %v7808 = vsel %vm4084, %v7754, 0.0
        %v7809 = vsel %vm4085, %v7755, 0.0
        %v7810 = vsel %vm4086, %v7756, 0.0
        %v7811 = vsel %vm4087, %v7757, 0.0
        %v7812 = vsel %vm4088, %v7758, 0.0
        %v7813 = vsel %vm4089, %v7759, 0.0
        %v7814 = vsel %vm4090, %v7760, 0.0
        %v7815 = vsel %vm4091, %v7761, 0.0
        %v7816 = vsel %vm4092, %v7762, 0.0
        %v7817 = vsel %vm4093, %v7763, 0.0
        %v7818 = vsel %vm4094, %v7764, 0.0
        %v7819 = vsel %vm4095, %v7765, 0.0
        %v7820 = vsel %vm4096, %v7766, 0.0
        %v7821 = vsel %vm4097, %v7767, 0.0
        %v7822 = vsel %vm4098, %v7768, 0.0
        %v7823 = vsel %vm4099, %v7769, 0.0
        %v7824 = vsel %vm4100, %v7770, 0.0
        %v7825 = vsel %vm4101, %v7771, 0.0
        %v7826 = vsel %vm4102, %v7772, 0.0
        %v7827 = vsel %vm4103, %v7773, 0.0
        %v7828 = vsel %vm4104, %v7774, 0.0
        %v7829 = vsel %vm4105, %v7775, 0.0
        %v7830 = vsel %vm4106, %v7776, 0.0
        %v7831 = vsel %vm4107, %v7777, 0.0
        %v7832 = vsel %vm4108, %v7778, 0.0
        %v7833 = vsel %vm4109, %v7779, 0.0
        %v7834 = vsel %vm4110, %v7780, 0.0
        %v7835 = vsel %vm4111, %v7781, 0.0
        %v7836 = vsel %vm4112, %v7782, 0.0
        %v7837 = vsel %vm4113, %v7783, 0.0
        %v7838 = vsel %vm4114, %v7784, 0.0
        %v7839 = vadd.f32 %v7785, %v7786
        %v7840 = vadd.f32 %v7839, %v7787
        %v7841 = vadd.f32 %v7840, %v7788
        %v7842 = vadd.f32 %v7841, %v7789
        %v7843 = vadd.f32 %v7842, %v7790
        %v7844 = vadd.f32 %v7843, %v7791
        %v7845 = vadd.f32 %v7844, %v7792
        %v7846 = vadd.f32 %v7845, %v7793
        %v7847 = vadd.f32 %v7846, %v7794
        %v7848 = vadd.f32 %v7847, %v7795
        %v7849 = vadd.f32 %v7848, %v7796
        %v7850 = vadd.f32 %v7849, %v7797
        %v7851 = vadd.f32 %v7850, %v7798
        %v7852 = vadd.f32 %v7851, %v7799
        %v7853 = vadd.f32 %v7852, %v7800
        %v7854 = vadd.f32 %v7853, %v7801
        %v7855 = vadd.f32 %v7854, %v7802
        %v7856 = vadd.f32 %v7855, %v7803
        %v7857 = vadd.f32 %v7856, %v7804
        %v7858 = vadd.f32 %v7857, %v7805
        %v7859 = vadd.f32 %v7858, %v7806
        %v7860 = vadd.f32 %v7859, %v7807
        %v7861 = vadd.f32 %v7860, %v7808
        %v7862 = vadd.f32 %v7861, %v7809
        %v7863 = vadd.f32 %v7862, %v7810
        %v7864 = vadd.f32 %v7863, %v7811
        %v7865 = vadd.f32 %v7864, %v7812
        %v7866 = vadd.f32 %v7865, %v7813
        %v7867 = vadd.f32 %v7866, %v7814
        %v7868 = vadd.f32 %v7867, %v7815
        %v7869 = vadd.f32 %v7868, %v7816
        %v7870 = vadd.f32 %v7869, %v7817
        %v7871 = vadd.f32 %v7870, %v7818
        %v7872 = vadd.f32 %v7871, %v7819
        %v7873 = vadd.f32 %v7872, %v7820
        %v7874 = vadd.f32 %v7873, %v7821
        %v7875 = vadd.f32 %v7874, %v7822
        %v7876 = vadd.f32 %v7875, %v7823
        %v7877 = vadd.f32 %v7876, %v7824
        %v7878 = vadd.f32 %v7877, %v7825
        %v7879 = vadd.f32 %v7878, %v7826
        %v7880 = vadd.f32 %v7879, %v7827
        %v7881 = vadd.f32 %v7880, %v7828
        %v7882 = vadd.f32 %v7881, %v7829
        %v7883 = vadd.f32 %v7882, %v7830
        %v7884 = vadd.f32 %v7883, %v7831
        %v7885 = vadd.f32 %v7884, %v7832
        %v7886 = vadd.f32 %v7885, %v7833
        %v7887 = vadd.f32 %v7886, %v7834
        %v7888 = vadd.f32 %v7887, %v7835
        %v7889 = vadd.f32 %v7888, %v7836
        %v7890 = vadd.f32 %v7889, %v7837
        %v7891 = vadd.f32 %v7890, %v7838
        %v7892 = vrot.slane %v7891, 4
        %v7893 = vadd.f32 %v7891, %v7892
        %v7894 = vrot.slane %v7893, 2
        %v7895 = vadd.f32 %v7893, %v7894
        %v7896 = vrot.slane %v7895, 1
        %v7897 = vadd.f32 %v7895, %v7896
        %v7898 = vmul.f32 %v7897, 0.00390625
        %7899 = vst [vmem:[%s459] sm:$0x1] %v7898
        %s7900 = sand.u32 %s335, 1
        %s7901 = scalar_lea.sflag [#allocation3], %s7900
        %s7902 = sand.u32 %s335, 1
        %s7903 = scalar_lea.vmem [#allocation2], %s7902
        // Predicated region
        $region77: #{image_encoder_forward.1} parent=75 // pred_check
          %p7904 = pneg %p345
        $region78: #{image_encoder_forward.1} parent=75 // pred_check_branch
          %7906 = sbr.rel (%p7904) target = $region80
        $region79: #{image_encoder_forward.1} parent=75 // pred_region
          %7908 = vsyncadd %s7901, 0
          %s7909 = scalar_lea.hbm %s14, %s28
          %s7911 = sshll.u32 %s7903, 4
          %s7912 = int_to_ptr.vmem [resolvable:$true] %s7911
          %s7913 = sshll.u32 %s7909, 4
          %s7914 = int_to_ptr.hbm [resolvable:$true] %s7913
          %7916 = dma.vmem_to_hbm [thread:$0]  %s7912, 16, %s7914, %s7901
        $region80: #{image_encoder_forward.1} parent=75 // pred_fallthru
          _
      $region76: #{image_encoder_forward.1} parent=5 // pred_fallthru
        _
      %p7917 = scmp.le.s32.totalorder 2, %s23
      // Predicated region
      $region81: #{image_encoder_forward.1} parent=5 // pred_check
        %p7918 = pneg %p7917
      $region82: #{image_encoder_forward.1} parent=5 // pred_check_branch
        %7920 = sbr.rel (%p7918) target = $region84
      $region83: #{image_encoder_forward.1} parent=5 // pred_region
        %s7921 = ssub.s32 %s23, 2
        // Predicated region
        $region85: #{image_encoder_forward.1} parent=83 // pred_check
          %p7922 = pneg %p351
        $region86: #{image_encoder_forward.1} parent=83 // pred_check_branch
          %7924 = sbr.rel (%p7922) target = $region88
        $region87: #{image_encoder_forward.1} parent=83 // pred_region
          %s7925 = sand.u32 %s336, 1
          %s7926 = scalar_lea.sflag [#allocation3], %s7925
          %s7927 = sand.u32 %s336, 1
          %s7928 = scalar_lea.vmem [#allocation2], %s7927
          %7930 = dma.done %s7926, 16
        $region88: #{image_encoder_forward.1} parent=83 // pred_fallthru
          _
      $region84: #{image_encoder_forward.1} parent=5 // pred_fallthru
        _
    $region6: #{image_encoder_forward.1} parent=1 // loop_footer
      %s27 = sadd.s32 1, %s23
    $region7: #{image_encoder_forward.1} parent=1 // loop_footer_branch
      %22 = sbr.rel target = $region3
    $region8: #{image_encoder_forward.1} parent=1 // loop_exit
      _
    %7931 = vsyncpa [#allocation3], 1
    %s7932 = scalar_lea.sflag [#allocation3], 1
    %7933 = vsyncpa %s7932, 1

</llo_original>
